<compile_context>
chip_gen: v5e
topology: v5e:2x2
jax: 0.10.0
libtpu: 0.0.40
codegen_flags: <defaults>
</compile_context>

<pallas_src>
import numpy as np
import jax
import jax.numpy as jnp
from jax import lax
from jax.experimental import pallas as pl
from jax.experimental.pallas import tpu as pltpu

EPS = 1e-5
LANE = 128


def _round_up(x, m):
    return (x + m - 1) // m * m


def _vmem_limit_bytes():
    # Generation-aware scoped-VMEM budget: ~112 MiB on v5e/v6e, ~48 MiB on v7x.
    try:
        cap = int(getattr(pltpu.get_tpu_info(), "vmem_capacity_bytes", 128 << 20))
    except Exception:
        cap = 128 << 20
    return max(cap - (16 << 20), 32 << 20)


VMEM_LIMIT = _vmem_limit_bytes()


# ----------------------------- BN statistics --------------------------------

def _make_stats_kernel(tile_r, total_rows):
    need_mask = (total_rows % tile_r) != 0

    def kernel(x_ref, o_ref):
        # o_ref (16, CT): rows 0-7 per-sublane sums, rows 8-15 per-sublane
        # sums of squares; resident across the row-tile ("arbitrary") axis.
        @pl.when(pl.program_id(1) == 0)
        def _init():
            o_ref[...] = jnp.zeros_like(o_ref)

        x = x_ref[...]
        if need_mask:
            row0 = pl.program_id(1) * tile_r
            ridx = lax.broadcasted_iota(jnp.int32, x.shape, 0)
            x = jnp.where(row0 + ridx < total_rows, x, 0.0)
        c = x.shape[-1]
        # Per-sublane partials: pure VPU adds + full-vreg accumulator stores
        # (no cross-sublane XLU reduction, no masked single-row stores).
        o_ref[0:8, :] += x.reshape(-1, 8, c).sum(axis=0)
        o_ref[8:16, :] += (x * x).reshape(-1, 8, c).sum(axis=0)

    return kernel


def _channel_stats(x_flat):
    """Per-channel (sum, sum of squares) of a (rows, Cp) f32 array."""
    rows, cp = x_flat.shape
    ct = LANE                                   # cp is padded to a LANE multiple
    tile_r = max(8, min(1024, _round_up(rows, 8)))
    grid = (cp // ct, pl.cdiv(rows, tile_r))    # channels parallel (v7x 2 TCs)
    out = pl.pallas_call(
        _make_stats_kernel(tile_r, rows),
        out_shape=jax.ShapeDtypeStruct((16, cp), jnp.float32),
        grid=grid,
        in_specs=[pl.BlockSpec((tile_r, ct), lambda c, r: (r, c))],
        out_specs=pl.BlockSpec((16, ct), lambda c, r: (0, c)),  # resident over r
        compiler_params=pltpu.CompilerParams(
            dimension_semantics=("parallel", "arbitrary"),
            vmem_limit_bytes=VMEM_LIMIT),
    )(x_flat)
    return out[0:8].sum(axis=0), out[8:16].sum(axis=0)


def _bn_scale_shift(s, ss, gamma, beta, count):
    # TODO(synk): E[x^2] - mean^2 in f32 can cancel for large-mean activations;
    # a shifted / Welford merge over the per-tile partials would be more robust.
    mean = s / count
    var = jnp.maximum(ss / count - mean * mean, 0.0)   # biased (training-mode BN)
    scale = gamma * lax.rsqrt(var + EPS)
    shift = beta - mean * scale
    return scale.reshape(1, -1), shift.reshape(1, -1)


# ----------------------------- conv kernels ----------------------------------

def _bn_silu_pad_im2col(xm_ref, xt_ref, xb_ref, scale_ref, shift_ref,
                        pad_ref, col_ref, th, W, HT):
    """Fused conv prologue for one (image, H-tile).

    BN (precomputed batch scale/shift) + SiLU on the tile and its two halo
    rows, zero-halo assembly into bf16 pad_ref, and a dx-only im2col into
    col_ref (TH+2, W, 3*C) bf16.  The dy shift is a cheap leading-dim slice
    taken later by the accumulating matmul loop.
    """
    h = pl.program_id(1)
    C = xm_ref.shape[-1]
    scale = scale_ref[...].reshape(1, 1, C)
    shift = shift_ref[...].reshape(1, 1, C)

    def bn_silu(v):
        y = v * scale + shift
        return (y * jax.nn.sigmoid(y)).astype(pad_ref.dtype)

    # Only the two W-border columns need zeroing; interior and halo rows are
    # rewritten every grid step (so this is megacore-safe and avoids a full
    # (TH+2)x(W+2)xC memset per step).
    zcol = jnp.zeros((th + 2, 1, C), pad_ref.dtype)
    pad_ref[:, 0:1, :] = zcol
    pad_ref[:, W + 1:W + 2, :] = zcol

    pad_ref[1:th + 1, 1:W + 1, :] = bn_silu(xm_ref[0])
    top = bn_silu(xt_ref[0])                       # (1, W, C)
    bot = bn_silu(xb_ref[0])
    zrow = jnp.zeros_like(top)
    pad_ref[0:1, 1:W + 1, :] = jnp.where(h > 0, top, zrow)
    pad_ref[th + 1:th + 2, 1:W + 1, :] = jnp.where(h < HT - 1, bot, zrow)

    for dx in range(3):                            # dx-only im2col (3x smaller)
        col_ref[:, :, dx * C:(dx + 1) * C] = pad_ref[:, dx:dx + W, :]


def _conv3x3_acc(col_ref, w_ref, th, W):
    """3 accumulating MXU matmuls over dy with K = 3*C (f32 accumulation)."""
    k = col_ref.shape[-1]
    acc = None
    for dy in range(3):
        lhs = col_ref[dy:dy + th].reshape(th * W, k)
        p = jnp.dot(lhs, w_ref[dy], preferred_element_type=jnp.float32)
        acc = p if acc is None else acc + p
    return acc


def _tile_moments(v):
    """(rows, C) f32 -> (16, C): rows 0-7 per-sublane sums, 8-15 sumsq."""
    rows, c = v.shape
    if rows % 8 == 0:
        s = v.reshape(-1, 8, c).sum(axis=0)
        q = (v * v).reshape(-1, 8, c).sum(axis=0)
    else:
        z = jnp.zeros((7, c), v.dtype)
        s = jnp.concatenate([v.sum(axis=0, keepdims=True), z], axis=0)
        q = jnp.concatenate([(v * v).sum(axis=0, keepdims=True), z], axis=0)
    return jnp.concatenate([s, q], axis=0)


def _make_conv1_kernel(th, W, HT):
    def kernel(xm, xt, xb, scale, shift, w, b, o_ref, st_ref, pad_ref, col_ref):
        _bn_silu_pad_im2col(xm, xt, xb, scale, shift, pad_ref, col_ref, th, W, HT)
        cout = o_ref.shape[-1]
        h1 = _conv3x3_acc(col_ref, w, th, W) + b[...]
        o_ref[0] = h1.reshape(th, W, cout)
        st_ref[0, 0] = _tile_moments(h1)           # fused BN2 partial moments
    return kernel


def _make_conv2_kernel(th, W, HT, has_nin):
    def kernel(hm, ht, hb, xr, scale, shift, w, b, *rest):
        if has_nin:
            ws, bs, o_ref, pad_ref, col_ref = rest
        else:
            o_ref, pad_ref, col_ref = rest
        _bn_silu_pad_im2col(hm, ht, hb, scale, shift, pad_ref, col_ref, th, W, HT)
        cout = o_ref.shape[-1]
        acc = _conv3x3_acc(col_ref, w, th, W) + b[...]
        x0 = xr[0]                                 # (th, W, Cin) f32 residual
        if has_nin:
            cin = x0.shape[-1]
            xf = x0.reshape(th * W, cin).astype(jnp.bfloat16)
            sc = jnp.dot(xf, ws[...],              # bf16 x bf16 -> f32 (MXU)
                         preferred_element_type=jnp.float32) + bs[...]
            o_ref[0] = (acc + sc).reshape(th, W, cout)
        else:
            o_ref[0] = acc.reshape(th, W, cout) + x0
    return kernel


# ----------------------------- pallas_call wrappers --------------------------

def _const_spec(a):
    # Constant-index operands (weights / bias / BN scale+shift): fetched once.
    # TODO(synk): single-buffer these via pipeline_mode=pl.Buffered(1) to free
    # the redundant second buffer inside v7x's 64 MiB VMEM.
    nd = a.ndim
    return pl.BlockSpec(a.shape, lambda *_: (0,) * nd)


def _tile_specs(th, W, C, H):
    main = pl.BlockSpec((1, th, W, C), lambda n, h: (n, h, 0, 0))
    top = pl.BlockSpec((1, 1, W, C),
                       lambda n, h: (n, jnp.maximum(h * th - 1, 0), 0, 0))
    bot = pl.BlockSpec((1, 1, W, C),
                       lambda n, h: (n, jnp.minimum((h + 1) * th, H - 1), 0, 0))
    return main, top, bot


def _pick_h_tile(H, W, c_in, c_out):
    """Largest divisor of H whose per-step VMEM footprint fits the budget."""
    budget = int(VMEM_LIMIT * 0.6)
    cmax = max(c_in, c_out)

    def step_bytes(th):
        f32, bf16 = 4, 2
        b = 2 * th * W * cmax * f32               # main activation block (x2 buf)
        b += 2 * th * W * c_out * f32             # output block (x2 buf)
        b += 2 * th * W * c_in * f32              # residual x block (conv2)
        b += 4 * 2 * W * cmax * f32               # halo row blocks
        b += 2 * 9 * cmax * c_out * bf16          # 3x3 weights
        b += 2 * c_in * c_out * bf16              # nin weights
        b += (th + 2) * (W + 2) * cmax * bf16     # padded-tile scratch (bf16)
        b += (th + 2) * W * 3 * cmax * bf16       # dx-only im2col scratch (bf16)
        return b

    divisors = [d for d in range(H, 0, -1) if H % d == 0]
    for d in divisors:                            # prefer >=2 H tiles (pipeline depth)
        if H // d >= 2 and step_bytes(d) <= budget:
            return d
    for d in divisors:
        if step_bytes(d) <= budget:
            return d
    return 1


def _conv1(x_p, scale, shift, w_flat, b, th):
    N, H, W, Cin = x_p.shape
    Cout = w_flat.shape[-1]
    HT = H // th
    xm, xt, xb = _tile_specs(th, W, Cin, H)
    cost = pl.CostEstimate(
        flops=2 * N * H * W * 9 * Cin * Cout,
        transcendentals=N * H * W * Cin,
        bytes_accessed=(x_p.size * 4 + w_flat.size * 2
                        + N * H * W * Cout * 4 + N * HT * 16 * Cout * 4))
    return pl.pallas_call(
        _make_conv1_kernel(th, W, HT),
        out_shape=(jax.ShapeDtypeStruct((N, H, W, Cout), jnp.float32),
                   jax.ShapeDtypeStruct((N, HT, 16, Cout), jnp.float32)),
        grid=(N, HT),
        in_specs=[xm, xt, xb, _const_spec(scale), _const_spec(shift),
                  _const_spec(w_flat), _const_spec(b)],
        out_specs=(pl.BlockSpec((1, th, W, Cout), lambda n, h: (n, h, 0, 0)),
                   pl.BlockSpec((1, 1, 16, Cout), lambda n, h: (n, h, 0, 0))),
        scratch_shapes=[pltpu.VMEM((th + 2, W + 2, Cin), jnp.bfloat16),
                        pltpu.VMEM((th + 2, W, 3 * Cin), jnp.bfloat16)],
        compiler_params=pltpu.CompilerParams(
            dimension_semantics=("parallel", "parallel"),
            vmem_limit_bytes=VMEM_LIMIT),
        cost_estimate=cost,
    )(x_p, x_p, x_p, scale, shift, w_flat, b)


def _conv2(h1, x_p, scale, shift, w_flat, b, th, ws=None, bs=None):
    N, H, W, Cm = h1.shape
    Cin = x_p.shape[-1]
    Cout = w_flat.shape[-1]
    HT = H // th
    hm, ht, hb = _tile_specs(th, W, Cm, H)
    xr = pl.BlockSpec((1, th, W, Cin), lambda n, h: (n, h, 0, 0))
    has_nin = ws is not None
    flops = 2 * N * H * W * 9 * Cm * Cout
    if has_nin:
        flops += 2 * N * H * W * Cin * Cout
    cost = pl.CostEstimate(
        flops=flops, transcendentals=N * H * W * Cm,
        bytes_accessed=(h1.size * 4 + x_p.size * 4 + w_flat.size * 2
                        + N * H * W * Cout * 4))
    in_specs = [hm, ht, hb, xr, _const_spec(scale), _const_spec(shift),
                _const_spec(w_flat), _const_spec(b)]
    args = [h1, h1, h1, x_p, scale, shift, w_flat, b]
    if has_nin:
        in_specs += [_const_spec(ws), _const_spec(bs)]
        args += [ws, bs]
    return pl.pallas_call(
        _make_conv2_kernel(th, W, HT, has_nin),
        out_shape=jax.ShapeDtypeStruct((N, H, W, Cout), jnp.float32),
        grid=(N, HT),
        in_specs=in_specs,
        out_specs=pl.BlockSpec((1, th, W, Cout), lambda n, h: (n, h, 0, 0)),
        scratch_shapes=[pltpu.VMEM((th + 2, W + 2, Cm), jnp.bfloat16),
                        pltpu.VMEM((th + 2, W, 3 * Cm), jnp.bfloat16)],
        compiler_params=pltpu.CompilerParams(
            dimension_semantics=("parallel", "parallel"),
            vmem_limit_bytes=VMEM_LIMIT),
        cost_estimate=cost,
    )(*args)


# ----------------------------- params / forward ------------------------------

def init_resnet_block_params(key, cin, cout):
    """Deterministic parameter init (shapes match the PyTorch module, HWIO)."""
    k1, kb1, k2, kb2, k3, kb3 = jax.random.split(key, 6)

    def conv_w(k, kh, kw, ci, co):               # PyTorch-style fan-in uniform bound
        bound = 1.0 / float(ci * kh * kw) ** 0.5
        return jax.random.uniform(k, (kh, kw, ci, co), jnp.float32, -bound, bound)

    def conv_b(k, kh, kw, ci, co):
        bound = 1.0 / float(ci * kh * kw) ** 0.5
        return jax.random.uniform(k, (1, co), jnp.float32, -bound, bound)

    params = dict(
        gamma1=jnp.ones((1, cin), jnp.float32), beta1=jnp.zeros((1, cin), jnp.float32),
        w1=conv_w(k1, 3, 3, cin, cout), b1=conv_b(kb1, 3, 3, cin, cout),
        gamma2=jnp.ones((1, cout), jnp.float32), beta2=jnp.zeros((1, cout), jnp.float32),
        w2=conv_w(k2, 3, 3, cout, cout), b2=conv_b(kb2, 3, 3, cout, cout),
    )
    if cin != cout:
        params["ws"] = conv_w(k3, 1, 1, cin, cout)[0, 0]   # (cin, cout)
        params["bs"] = conv_b(kb3, 1, 1, cin, cout)
    return params


def _pad_vec(v, cp):
    v = v.reshape(-1)
    return jnp.pad(v, (0, cp - v.shape[0]))


def _pad_row(b, cp):
    return jnp.pad(b, ((0, 0), (0, cp - b.shape[1])))


def _pad_conv3(w, cip, cop):
    kh, kw, ci, co = w.shape
    wp = jnp.pad(w, ((0, 0), (0, 0), (0, cip - ci), (0, cop - co)))
    # (3, 3*Cip, Cop): one (dx, ci)-flattened weight slab per dy tap.
    return wp.reshape(kh, kw * cip, cop).astype(jnp.bfloat16)


def _pad_nin(w, cip, cop):
    ci, co = w.shape
    return jnp.pad(w, ((0, cip - ci), (0, cop - co))).astype(jnp.bfloat16)


def resnet_block_forward(params, x_nchw):
    # NCHW (PyTorch) -> NHWC (channels on the lane dim) -> NCHW out.
    x = jnp.transpose(x_nchw, (0, 2, 3, 1)).astype(jnp.float32)
    N, H, W, Cin = x.shape
    Cout = params["w1"].shape[-1]
    Cip = _round_up(Cin, LANE)      # lane-dense channels (no-op at LDM widths)
    Cop = _round_up(Cout, LANE)

    x_p = jnp.pad(x, ((0, 0), (0, 0), (0, 0), (0, Cip - Cin)))

    w1 = _pad_conv3(params["w1"], Cip, Cop)
    b1 = _pad_row(params["b1"], Cop)
    w2 = _pad_conv3(params["w2"], Cop, Cop)
    b2 = _pad_row(params["b2"], Cop)
    gamma1, beta1 = _pad_vec(params["gamma1"], Cip), _pad_vec(params["beta1"], Cip)
    gamma2, beta2 = _pad_vec(params["gamma2"], Cop), _pad_vec(params["beta2"], Cop)

    rows = N * H * W
    count = jnp.float32(rows)
    th = _pick_h_tile(H, W, Cip, Cop)

    # BN1 statistics (HBM-bound reduction pass over x).
    s1, ss1 = _channel_stats(x_p.reshape(rows, Cip))
    scale1, shift1 = _bn_scale_shift(s1, ss1, gamma1, beta1, count)

    # Fused BN1 + SiLU + conv1; BN2 partial moments come out of the same pass.
    h1, st2 = _conv1(x_p, scale1, shift1, w1, b1, th)
    s2 = st2[:, :, 0:8, :].sum(axis=(0, 1, 2))
    ss2 = st2[:, :, 8:16, :].sum(axis=(0, 1, 2))
    scale2, shift2 = _bn_scale_shift(s2, ss2, gamma2, beta2, count)

    # Fused BN2 + SiLU + conv2 + (nin_shortcut | identity) residual add.
    if "ws" in params:
        ws = _pad_nin(params["ws"], Cip, Cop)
        bs = _pad_row(params["bs"], Cop)
        out_p = _conv2(h1, x_p, scale2, shift2, w2, b2, th, ws, bs)
    else:
        out_p = _conv2(h1, x_p, scale2, shift2, w2, b2, th)

    return jnp.transpose(out_p[..., :Cout], (0, 3, 1, 2))


# ----------------------------- reference ------------------------------------

def reference_forward(params, x_nchw):
    x = jnp.transpose(x_nchw, (0, 2, 3, 1)).astype(jnp.float32)

    def bn_silu(v, g, b):
        m = jnp.mean(v, axis=(0, 1, 2), keepdims=True)
        var = jnp.mean((v - m) ** 2, axis=(0, 1, 2), keepdims=True)
        y = (v - m) / jnp.sqrt(var + EPS) * g.reshape(1, 1, 1, -1) + b.reshape(1, 1, 1, -1)
        return y * jax.nn.sigmoid(y)

    def conv(v, w, b):
        o = lax.conv_general_dilated(v, w, (1, 1), "SAME",
                                     dimension_numbers=("NHWC", "HWIO", "NHWC"))
        return o + b.reshape(1, 1, 1, -1)

    h = bn_silu(x, params["gamma1"], params["beta1"])
    h = conv(h, params["w1"], params["b1"])
    h = bn_silu(h, params["gamma2"], params["beta2"])
    h = conv(h, params["w2"], params["b2"])
    if "ws" in params:
        sc = jnp.einsum("nhwc,cd->nhwd", x, params["ws"]) + params["bs"].reshape(1, 1, 1, -1)
    else:
        sc = x
    return jnp.transpose(sc + h, (0, 3, 1, 2))


# ----------------------------- main -----------------------------------------

if __name__ == "__main__":
    key = jax.random.PRNGKey(0)
    kx1, kp1, kx2, kp2 = jax.random.split(key, 4)
    fwd = jax.jit(resnet_block_forward)

    # in_channels != out_channels -> exercises the fused nin_shortcut path.
    # H=16 with the H-tile picker gives 2 H tiles per image (halo path tested).
    N, Cin, H, W, Cout = 2, 4, 16, 16, 8
    x = jax.random.normal(kx1, (N, Cin, H, W), jnp.float32)
    params = init_resnet_block_params(kp1, Cin, Cout)
    out = jax.block_until_ready(fwd(params, x))
    assert out.shape == (N, Cout, H, W)
    ref = reference_forward(params, x)
    # bf16 MXU operands (f32 accumulation, f32 residual path) -> bf16-scale tol.
    np.testing.assert_allclose(np.asarray(out), np.asarray(ref), atol=2e-2, rtol=2e-2)

    # in_channels == out_channels -> identity shortcut path.
    x2 = jax.random.normal(kx2, (N, Cout, H, W), jnp.float32)
    params2 = init_resnet_block_params(kp2, Cout, Cout)
    out2 = jax.block_until_ready(fwd(params2, x2))
    ref2 = reference_forward(params2, x2)
    np.testing.assert_allclose(np.asarray(out2), np.asarray(ref2), atol=2e-2, rtol=2e-2)

    print("KERNEL_OK")
</pallas_src>

<mosaic_0001>
module attributes {stable_mosaic.version = 11 : i64} {
  func.func @kernel(%arg0: i32, %arg1: i32, %arg2: memref<512x128xf32, #tpu.memory_space<vmem>>, %arg3: memref<16x128xf32, #tpu.memory_space<vmem>>) attributes {dimension_semantics = [#tpu.dimension_semantics<parallel>, #tpu.dimension_semantics<arbitrary>], iteration_bounds = array<i64: 1, 1>, scalar_prefetch = 0 : i64, scratch_operands = 0 : i64, tpu.core_type = #tpu.core_type<tc>, window_params = [{transform_indices = @transform_0, window_bounds = array<i64: 512, 128>}, {transform_indices = @transform_1, window_bounds = array<i64: 16, 128>}]} {
    %c0_i32 = arith.constant 0 : i32
    %0 = arith.cmpi eq, %arg1, %c0_i32 : i32
    %1 = arith.extui %0 : i1 to i32
    %c0_i32_0 = arith.constant 0 : i32
    %2 = arith.cmpi ne, %1, %c0_i32_0 : i32
    scf.if %2 {
      %cst_10 = arith.constant 0.000000e+00 : f32
      %15 = vector.broadcast %cst_10 : f32 to vector<16x128xf32>
      %c0_11 = arith.constant 0 : index
      %c0_12 = arith.constant 0 : index
      %16 = vector.load %arg3[%c0_11, %c0_12] : memref<16x128xf32, #tpu.memory_space<vmem>>, vector<16x128xf32>
      tpu.vector_store %arg3[%c0_11, %c0_12], %15 {strides = array<i32>} : memref<16x128xf32, #tpu.memory_space<vmem>>, vector<16x128xf32>,
    } else {
    }
    %c0 = arith.constant 0 : index
    %c0_1 = arith.constant 0 : index
    %3 = vector.load %arg2[%c0, %c0_1] : memref<512x128xf32, #tpu.memory_space<vmem>>, vector<512x128xf32>
    %c0_2 = arith.constant 0 : index
    %c0_3 = arith.constant 0 : index
    %4 = vector.load %arg3[%c0_2, %c0_3] : memref<16x128xf32, #tpu.memory_space<vmem>>, vector<8x128xf32>
    %5 = vector.shape_cast %3 : vector<512x128xf32> to vector<64x8x128xf32>
    %cst = arith.constant dense<0.000000e+00> : vector<8x128xf32>
    %6 = vector.multi_reduction <add>, %5, %cst [0] : vector<64x8x128xf32> to vector<8x128xf32>
    %7 = arith.addf %4, %6 : vector<8x128xf32>
    %c0_4 = arith.constant 0 : index
    %c0_5 = arith.constant 0 : index
    %8 = vector.load %arg3[%c0_4, %c0_5] : memref<16x128xf32, #tpu.memory_space<vmem>>, vector<8x128xf32>
    tpu.vector_store %arg3[%c0_4, %c0_5], %7 {strides = array<i32>} : memref<16x128xf32, #tpu.memory_space<vmem>>, vector<8x128xf32>,
    %c8 = arith.constant 8 : index
    %c0_6 = arith.constant 0 : index
    %9 = vector.load %arg3[%c8, %c0_6] : memref<16x128xf32, #tpu.memory_space<vmem>>, vector<8x128xf32>
    %10 = arith.mulf %3, %3 : vector<512x128xf32>
    %11 = vector.shape_cast %10 : vector<512x128xf32> to vector<64x8x128xf32>
    %cst_7 = arith.constant dense<0.000000e+00> : vector<8x128xf32>
    %12 = vector.multi_reduction <add>, %11, %cst_7 [0] : vector<64x8x128xf32> to vector<8x128xf32>
    %13 = arith.addf %9, %12 : vector<8x128xf32>
    %c8_8 = arith.constant 8 : index
    %c0_9 = arith.constant 0 : index
    %14 = vector.load %arg3[%c8_8, %c0_9] : memref<16x128xf32, #tpu.memory_space<vmem>>, vector<8x128xf32>
    tpu.vector_store %arg3[%c8_8, %c0_9], %13 {strides = array<i32>} : memref<16x128xf32, #tpu.memory_space<vmem>>, vector<8x128xf32>,
    return
  }
  func.func @transform_0(%arg0: i32, %arg1: i32) -> (i32, i32) {
    %c0_i32 = arith.constant 0 : i32
    return %arg1, %arg0 : i32, i32
  }
  func.func @transform_1(%arg0: i32, %arg1: i32) -> (i32, i32) {
    %c0_i32 = arith.constant 0 : i32
    %c0_i32_0 = arith.constant 0 : i32
    return %c0_i32, %arg0 : i32, i32
  }
}

module attributes {stable_mosaic.version = 11 : i64} {
  func.func @kernel(%arg0: i32, %arg1: i32, %arg2: memref<1x8x16x128xf32, #tpu.memory_space<vmem>>, %arg3: memref<1x1x16x128xf32, #tpu.memory_space<vmem>>, %arg4: memref<1x1x16x128xf32, #tpu.memory_space<vmem>>, %arg5: memref<1x128xf32, #tpu.memory_space<vmem>>, %arg6: memref<1x128xf32, #tpu.memory_space<vmem>>, %arg7: memref<3x384x128xbf16, #tpu.memory_space<vmem>>, %arg8: memref<1x128xf32, #tpu.memory_space<vmem>>, %arg9: memref<1x8x16x128xf32, #tpu.memory_space<vmem>>, %arg10: memref<1x1x16x128xf32, #tpu.memory_space<vmem>>, %arg11: memref<10x18x128xbf16, #tpu.memory_space<vmem>>, %arg12: memref<10x16x384xbf16, #tpu.memory_space<vmem>>) attributes {dimension_semantics = [#tpu.dimension_semantics<parallel>, #tpu.dimension_semantics<parallel>], iteration_bounds = array<i64: 2, 2>, scalar_prefetch = 0 : i64, scratch_operands = 2 : i64, tpu.core_type = #tpu.core_type<tc>, window_params = [{transform_indices = @transform_0, window_bounds = array<i64: 1, 8, 16, 128>}, {transform_indices = @transform_1, window_bounds = array<i64: 1, 1, 16, 128>}, {transform_indices = @transform_2, window_bounds = array<i64: 1, 1, 16, 128>}, {pipeline_mode = #tpu.pipeline_mode<synchronous>, transform_indices = @transform_3, window_bounds = array<i64: 1, 128>}, {pipeline_mode = #tpu.pipeline_mode<synchronous>, transform_indices = @transform_4, window_bounds = array<i64: 1, 128>}, {pipeline_mode = #tpu.pipeline_mode<synchronous>, transform_indices = @transform_5, window_bounds = array<i64: 3, 384, 128>}, {pipeline_mode = #tpu.pipeline_mode<synchronous>, transform_indices = @transform_6, window_bounds = array<i64: 1, 128>}, {transform_indices = @transform_7, window_bounds = array<i64: 1, 8, 16, 128>}, {transform_indices = @transform_8, window_bounds = array<i64: 1, 1, 16, 128>}]} {
    %c0 = arith.constant 0 : index
    %c0_0 = arith.constant 0 : index
    %0 = vector.load %arg5[%c0, %c0_0] : memref<1x128xf32, #tpu.memory_space<vmem>>, vector<1x128xf32>
    %1 = vector.shape_cast %0 : vector<1x128xf32> to vector<1x1x128xf32>
    %c0_1 = arith.constant 0 : index
    %c0_2 = arith.constant 0 : index
    %2 = vector.load %arg6[%c0_1, %c0_2] : memref<1x128xf32, #tpu.memory_space<vmem>>, vector<1x128xf32>
    %3 = vector.shape_cast %2 : vector<1x128xf32> to vector<1x1x128xf32>
    %cst = arith.constant 0.000000e+00 : bf16
    %4 = vector.broadcast %cst : bf16 to vector<10x1x128xbf16>
    %c0_3 = arith.constant 0 : index
    %c0_4 = arith.constant 0 : index
    %c0_5 = arith.constant 0 : index
    %5 = vector.load %arg11[%c0_3, %c0_4, %c0_5] : memref<10x18x128xbf16, #tpu.memory_space<vmem>>, vector<10x1x128xbf16>
    tpu.vector_store %arg11[%c0_3, %c0_4, %c0_5], %4 {strides = array<i32>} : memref<10x18x128xbf16, #tpu.memory_space<vmem>>, vector<10x1x128xbf16>,
    %c0_6 = arith.constant 0 : index
    %c17 = arith.constant 17 : index
    %c0_7 = arith.constant 0 : index
    %6 = vector.load %arg11[%c0_6, %c17, %c0_7] : memref<10x18x128xbf16, #tpu.memory_space<vmem>>, vector<10x1x128xbf16>
    tpu.vector_store %arg11[%c0_6, %c17, %c0_7], %4 {strides = array<i32>} : memref<10x18x128xbf16, #tpu.memory_space<vmem>>, vector<10x1x128xbf16>,
    %c0_8 = arith.constant 0 : index
    %c0_9 = arith.constant 0 : index
    %c0_10 = arith.constant 0 : index
    %c0_11 = arith.constant 0 : index
    %7 = vector.load %arg2[%c0_8, %c0_9, %c0_10, %c0_11] : memref<1x8x16x128xf32, #tpu.memory_space<vmem>>, vector<1x8x16x128xf32>
    %8 = vector.shape_cast %7 : vector<1x8x16x128xf32> to vector<8x16x128xf32>
    %9 = vector.broadcast %1 : vector<1x1x128xf32> to vector<8x16x128xf32>
    %10 = arith.mulf %8, %9 : vector<8x16x128xf32>
    %11 = vector.broadcast %3 : vector<1x1x128xf32> to vector<8x16x128xf32>
    %12 = arith.addf %10, %11 : vector<8x16x128xf32>
    %13 = arith.negf %12 : vector<8x16x128xf32>
    %14 = math.exp %13 : vector<8x16x128xf32>
    %cst_12 = arith.constant 1.000000e+00 : f32
    %15 = vector.broadcast %cst_12 : f32 to vector<8x16x128xf32>
    %16 = arith.addf %15, %14 : vector<8x16x128xf32>
    %17 = arith.divf %15, %16 : vector<8x16x128xf32>
    %18 = arith.mulf %12, %17 : vector<8x16x128xf32>
    %19 = arith.truncf %18 : vector<8x16x128xf32> to vector<8x16x128xbf16>
    %c1 = arith.constant 1 : index
    %c1_13 = arith.constant 1 : index
    %c0_14 = arith.constant 0 : index
    %20 = vector.load %arg11[%c1, %c1_13, %c0_14] : memref<10x18x128xbf16, #tpu.memory_space<vmem>>, vector<8x16x128xbf16>
    tpu.vector_store %arg11[%c1, %c1_13, %c0_14], %19 {strides = array<i32>} : memref<10x18x128xbf16, #tpu.memory_space<vmem>>, vector<8x16x128xbf16>,
    %c0_15 = arith.constant 0 : index
    %c0_16 = arith.constant 0 : index
    %c0_17 = arith.constant 0 : index
    %c0_18 = arith.constant 0 : index
    %21 = vector.load %arg3[%c0_15, %c0_16, %c0_17, %c0_18] : memref<1x1x16x128xf32, #tpu.memory_space<vmem>>, vector<1x1x16x128xf32>
    %22 = vector.shape_cast %21 : vector<1x1x16x128xf32> to vector<1x16x128xf32>
    %23 = vector.broadcast %1 : vector<1x1x128xf32> to vector<1x16x128xf32>
    %24 = arith.mulf %22, %23 : vector<1x16x128xf32>
    %25 = vector.broadcast %3 : vector<1x1x128xf32> to vector<1x16x128xf32>
    %26 = arith.addf %24, %25 : vector<1x16x128xf32>
    %27 = arith.negf %26 : vector<1x16x128xf32>
    %28 = math.exp %27 : vector<1x16x128xf32>
    %cst_19 = arith.constant 1.000000e+00 : f32
    %29 = vector.broadcast %cst_19 : f32 to vector<1x16x128xf32>
    %30 = arith.addf %29, %28 : vector<1x16x128xf32>
    %31 = arith.divf %29, %30 : vector<1x16x128xf32>
    %32 = arith.mulf %26, %31 : vector<1x16x128xf32>
    %33 = arith.truncf %32 : vector<1x16x128xf32> to vector<1x16x128xbf16>
    %c0_20 = arith.constant 0 : index
    %c0_21 = arith.constant 0 : index
    %c0_22 = arith.constant 0 : index
    %c0_23 = arith.constant 0 : index
    %34 = vector.load %arg4[%c0_20, %c0_21, %c0_22, %c0_23] : memref<1x1x16x128xf32, #tpu.memory_space<vmem>>, vector<1x1x16x128xf32>
    %35 = vector.shape_cast %34 : vector<1x1x16x128xf32> to vector<1x16x128xf32>
    %36 = vector.broadcast %1 : vector<1x1x128xf32> to vector<1x16x128xf32>
    %37 = arith.mulf %35, %36 : vector<1x16x128xf32>
    %38 = vector.broadcast %3 : vector<1x1x128xf32> to vector<1x16x128xf32>
    %39 = arith.addf %37, %38 : vector<1x16x128xf32>
    %40 = arith.negf %39 : vector<1x16x128xf32>
    %41 = math.exp %40 : vector<1x16x128xf32>
    %cst_24 = arith.constant 1.000000e+00 : f32
    %42 = vector.broadcast %cst_24 : f32 to vector<1x16x128xf32>
    %43 = arith.addf %42, %41 : vector<1x16x128xf32>
    %44 = arith.divf %42, %43 : vector<1x16x128xf32>
    %45 = arith.mulf %39, %44 : vector<1x16x128xf32>
    %46 = arith.truncf %45 : vector<1x16x128xf32> to vector<1x16x128xbf16>
    %cst_25 = arith.constant 0.000000e+00 : bf16
    %47 = vector.broadcast %cst_25 : bf16 to vector<1x16x128xbf16>
    %c0_i32 = arith.constant 0 : i32
    %48 = arith.cmpi sgt, %arg1, %c0_i32 : i32
    %49 = arith.select %48, %33, %47 : vector<1x16x128xbf16>
    %c0_26 = arith.constant 0 : index
    %c1_27 = arith.constant 1 : index
    %c0_28 = arith.constant 0 : index
    %50 = vector.load %arg11[%c0_26, %c1_27, %c0_28] : memref<10x18x128xbf16, #tpu.memory_space<vmem>>, vector<1x16x128xbf16>
    tpu.vector_store %arg11[%c0_26, %c1_27, %c0_28], %49 {strides = array<i32>} : memref<10x18x128xbf16, #tpu.memory_space<vmem>>, vector<1x16x128xbf16>,
    %c1_i32 = arith.constant 1 : i32
    %51 = arith.cmpi slt, %arg1, %c1_i32 : i32
    %52 = arith.select %51, %46, %47 : vector<1x16x128xbf16>
    %c9 = arith.constant 9 : index
    %c1_29 = arith.constant 1 : index
    %c0_30 = arith.constant 0 : index
    %53 = vector.load %arg11[%c9, %c1_29, %c0_30] : memref<10x18x128xbf16, #tpu.memory_space<vmem>>, vector<1x16x128xbf16>
    tpu.vector_store %arg11[%c9, %c1_29, %c0_30], %52 {strides = array<i32>} : memref<10x18x128xbf16, #tpu.memory_space<vmem>>, vector<1x16x128xbf16>,
    %c0_31 = arith.constant 0 : index
    %c0_32 = arith.constant 0 : index
    %c0_33 = arith.constant 0 : index
    %54 = vector.load %arg11[%c0_31, %c0_32, %c0_33] : memref<10x18x128xbf16, #tpu.memory_space<vmem>>, vector<10x16x128xbf16>
    %c0_34 = arith.constant 0 : index
    %c0_35 = arith.constant 0 : index
    %c0_36 = arith.constant 0 : index
    %55 = vector.load %arg12[%c0_34, %c0_35, %c0_36] : memref<10x16x384xbf16, #tpu.memory_space<vmem>>, vector<10x16x128xbf16>
    tpu.vector_store %arg12[%c0_34, %c0_35, %c0_36], %54 {strides = array<i32>} : memref<10x16x384xbf16, #tpu.memory_space<vmem>>, vector<10x16x128xbf16>,
    %c0_37 = arith.constant 0 : index
    %c1_38 = arith.constant 1 : index
    %c0_39 = arith.constant 0 : index
    %56 = vector.load %arg11[%c0_37, %c1_38, %c0_39] : memref<10x18x128xbf16, #tpu.memory_space<vmem>>, vector<10x16x128xbf16>
    %c0_40 = arith.constant 0 : index
    %c0_41 = arith.constant 0 : index
    %c128 = arith.constant 128 : index
    %57 = vector.load %arg12[%c0_40, %c0_41, %c128] : memref<10x16x384xbf16, #tpu.memory_space<vmem>>, vector<10x16x128xbf16>
    tpu.vector_store %arg12[%c0_40, %c0_41, %c128], %56 {strides = array<i32>} : memref<10x16x384xbf16, #tpu.memory_space<vmem>>, vector<10x16x128xbf16>,
    %c0_42 = arith.constant 0 : index
    %c2 = arith.constant 2 : index
    %c0_43 = arith.constant 0 : index
    %58 = vector.load %arg11[%c0_42, %c2, %c0_43] : memref<10x18x128xbf16, #tpu.memory_space<vmem>>, vector<10x16x128xbf16>
    %c0_44 = arith.constant 0 : index
    %c0_45 = arith.constant 0 : index
    %c256 = arith.constant 256 : index
    %59 = vector.load %arg12[%c0_44, %c0_45, %c256] : memref<10x16x384xbf16, #tpu.memory_space<vmem>>, vector<10x16x128xbf16>
    tpu.vector_store %arg12[%c0_44, %c0_45, %c256], %58 {strides = array<i32>} : memref<10x16x384xbf16, #tpu.memory_space<vmem>>, vector<10x16x128xbf16>,
    %c0_46 = arith.constant 0 : index
    %c0_47 = arith.constant 0 : index
    %c0_48 = arith.constant 0 : index
    %60 = vector.load %arg12[%c0_46, %c0_47, %c0_48] : memref<10x16x384xbf16, #tpu.memory_space<vmem>>, vector<8x16x384xbf16>
    %61 = vector.shape_cast %60 : vector<8x16x384xbf16> to vector<128x384xbf16>
    %c0_49 = arith.constant 0 : index
    %c0_50 = arith.constant 0 : index
    %c0_51 = arith.constant 0 : index
    %62 = vector.load %arg7[%c0_49, %c0_50, %c0_51] : memref<3x384x128xbf16, #tpu.memory_space<vmem>>, vector<1x384x128xbf16>
    %63 = vector.shape_cast %62 : vector<1x384x128xbf16> to vector<384x128xbf16>
    %cst_52 = arith.constant dense<0.000000e+00> : vector<128x128xf32>
    %64 = tpu.matmul %61, %63, %cst_52 {dimension_numbers = #tpu.dot_dimension_numbers<[1], [0], [0], [1], [0, 0, 1, 1], [], []>} : vector<128x384xbf16>, vector<384x128xbf16>, vector<128x128xf32> -> vector<128x128xf32>
    %c1_53 = arith.constant 1 : index
    %c0_54 = arith.constant 0 : index
    %c0_55 = arith.constant 0 : index
    %65 = vector.load %arg12[%c1_53, %c0_54, %c0_55] : memref<10x16x384xbf16, #tpu.memory_space<vmem>>, vector<8x16x384xbf16>
    %66 = vector.shape_cast %65 : vector<8x16x384xbf16> to vector<128x384xbf16>
    %c1_56 = arith.constant 1 : index
    %c0_57 = arith.constant 0 : index
    %c0_58 = arith.constant 0 : index
    %67 = vector.load %arg7[%c1_56, %c0_57, %c0_58] : memref<3x384x128xbf16, #tpu.memory_space<vmem>>, vector<1x384x128xbf16>
    %68 = vector.shape_cast %67 : vector<1x384x128xbf16> to vector<384x128xbf16>
    %cst_59 = arith.constant dense<0.000000e+00> : vector<128x128xf32>
    %69 = tpu.matmul %66, %68, %cst_59 {dimension_numbers = #tpu.dot_dimension_numbers<[1], [0], [0], [1], [0, 0, 1, 1], [], []>} : vector<128x384xbf16>, vector<384x128xbf16>, vector<128x128xf32> -> vector<128x128xf32>
    %70 = arith.addf %64, %69 : vector<128x128xf32>
    %c2_60 = arith.constant 2 : index
    %c0_61 = arith.constant 0 : index
    %c0_62 = arith.constant 0 : index
    %71 = vector.load %arg12[%c2_60, %c0_61, %c0_62] : memref<10x16x384xbf16, #tpu.memory_space<vmem>>, vector<8x16x384xbf16>
    %72 = vector.shape_cast %71 : vector<8x16x384xbf16> to vector<128x384xbf16>
    %c2_63 = arith.constant 2 : index
    %c0_64 = arith.constant 0 : index
    %c0_65 = arith.constant 0 : index
    %73 = vector.load %arg7[%c2_63, %c0_64, %c0_65] : memref<3x384x128xbf16, #tpu.memory_space<vmem>>, vector<1x384x128xbf16>
    %74 = vector.shape_cast %73 : vector<1x384x128xbf16> to vector<384x128xbf16>
    %cst_66 = arith.constant dense<0.000000e+00> : vector<128x128xf32>
    %75 = tpu.matmul %72, %74, %cst_66 {dimension_numbers = #tpu.dot_dimension_numbers<[1], [0], [0], [1], [0, 0, 1, 1], [], []>} : vector<128x384xbf16>, vector<384x128xbf16>, vector<128x128xf32> -> vector<128x128xf32>
    %76 = arith.addf %70, %75 : vector<128x128xf32>
    %c0_67 = arith.constant 0 : index
    %c0_68 = arith.constant 0 : index
    %77 = vector.load %arg8[%c0_67, %c0_68] : memref<1x128xf32, #tpu.memory_space<vmem>>, vector<1x128xf32>
    %78 = vector.broadcast %77 : vector<1x128xf32> to vector<128x128xf32>
    %79 = arith.addf %76, %78 : vector<128x128xf32>
    %80 = vector.shape_cast %79 : vector<128x128xf32> to vector<8x16x128xf32>
    %c0_69 = arith.constant 0 : index
    %c0_70 = arith.constant 0 : index
    %c0_71 = arith.constant 0 : index
    %c0_72 = arith.constant 0 : index
    %81 = vector.load %arg9[%c0_69, %c0_70, %c0_71, %c0_72] : memref<1x8x16x128xf32, #tpu.memory_space<vmem>>, vector<1x8x16x128xf32>
    %82 = vector.shape_cast %81 : vector<1x8x16x128xf32> to vector<8x16x128xf32>
    %83 = vector.shape_cast %80 : vector<8x16x128xf32> to vector<1x8x16x128xf32>
    tpu.vector_store %arg9[%c0_69, %c0_70, %c0_71, %c0_72], %83 {strides = array<i32>} : memref<1x8x16x128xf32, #tpu.memory_space<vmem>>, vector<1x8x16x128xf32>,
    %84 = vector.shape_cast %79 : vector<128x128xf32> to vector<16x8x128xf32>
    %cst_73 = arith.constant dense<0.000000e+00> : vector<8x128xf32>
    %85 = vector.multi_reduction <add>, %84, %cst_73 [0] : vector<16x8x128xf32> to vector<8x128xf32>
    %86 = arith.mulf %79, %79 : vector<128x128xf32>
    %87 = vector.shape_cast %86 : vector<128x128xf32> to vector<16x8x128xf32>
    %cst_74 = arith.constant dense<0.000000e+00> : vector<8x128xf32>
    %88 = vector.multi_reduction <add>, %87, %cst_74 [0] : vector<16x8x128xf32> to vector<8x128xf32>
    %89 = tpu.concatenate %85, %88 in 0 : vector<8x128xf32>, vector<8x128xf32> -> vector<16x128xf32>
    %c0_75 = arith.constant 0 : index
    %c0_76 = arith.constant 0 : index
    %c0_77 = arith.constant 0 : index
    %c0_78 = arith.constant 0 : index
    %90 = vector.load %arg10[%c0_75, %c0_76, %c0_77, %c0_78] : memref<1x1x16x128xf32, #tpu.memory_space<vmem>>, vector<1x1x16x128xf32>
    %91 = vector.shape_cast %90 : vector<1x1x16x128xf32> to vector<16x128xf32>
    %92 = vector.shape_cast %89 : vector<16x128xf32> to vector<1x1x16x128xf32>
    tpu.vector_store %arg10[%c0_75, %c0_76, %c0_77, %c0_78], %92 {strides = array<i32>} : memref<1x1x16x128xf32, #tpu.memory_space<vmem>>, vector<1x1x16x128xf32>,
    return
  }
  func.func @transform_0(%arg0: i32, %arg1: i32) -> (i32, i32, i32, i32) {
    %c0_i32 = arith.constant 0 : i32
    %c0_i32_0 = arith.constant 0 : i32
    %c0_i32_1 = arith.constant 0 : i32
    return %arg0, %arg1, %c0_i32, %c0_i32_0 : i32, i32, i32, i32
  }
  func.func @transform_1(%arg0: i32, %arg1: i32) -> (i32, i32, i32, i32) {
    %c8_i32 = arith.constant 8 : i32
    %0 = arith.muli %arg1, %c8_i32 : i32
    %c1_i32 = arith.constant 1 : i32
    %1 = arith.subi %0, %c1_i32 : i32
    %c0_i32 = arith.constant 0 : i32
    %2 = arith.maxsi %1, %c0_i32 : i32
    %c0_i32_0 = arith.constant 0 : i32
    %c0_i32_1 = arith.constant 0 : i32
    %c0_i32_2 = arith.constant 0 : i32
    return %arg0, %2, %c0_i32_0, %c0_i32_1 : i32, i32, i32, i32
  }
  func.func @transform_2(%arg0: i32, %arg1: i32) -> (i32, i32, i32, i32) {
    %c1_i32 = arith.constant 1 : i32
    %0 = arith.addi %arg1, %c1_i32 : i32
    %c8_i32 = arith.constant 8 : i32
    %1 = arith.muli %0, %c8_i32 : i32
    %c15_i32 = arith.constant 15 : i32
    %2 = arith.minsi %1, %c15_i32 : i32
    %c0_i32 = arith.constant 0 : i32
    %c0_i32_0 = arith.constant 0 : i32
    %c0_i32_1 = arith.constant 0 : i32
    return %arg0, %2, %c0_i32, %c0_i32_0 : i32, i32, i32, i32
  }
  func.func @transform_3(%arg0: i32, %arg1: i32) -> (i32, i32) {
    %c0_i32 = arith.constant 0 : i32
    %c0_i32_0 = arith.constant 0 : i32
    %c0_i32_1 = arith.constant 0 : i32
    return %c0_i32, %c0_i32_0 : i32, i32
  }
  func.func @transform_4(%arg0: i32, %arg1: i32) -> (i32, i32) {
    %c0_i32 = arith.constant 0 : i32
    %c0_i32_0 = arith.constant 0 : i32
    %c0_i32_1 = arith.constant 0 : i32
    return %c0_i32, %c0_i32_0 : i32, i32
  }
  func.func @transform_5(%arg0: i32, %arg1: i32) -> (i32, i32, i32) {
    %c0_i32 = arith.constant 0 : i32
    %c0_i32_0 = arith.constant 0 : i32
    %c0_i32_1 = arith.constant 0 : i32
    %c0_i32_2 = arith.constant 0 : i32
    return %c0_i32, %c0_i32_0, %c0_i32_1 : i32, i32, i32
  }
  func.func @transform_6(%arg0: i32, %arg1: i32) -> (i32, i32) {
    %c0_i32 = arith.constant 0 : i32
    %c0_i32_0 = arith.constant 0 : i32
    %c0_i32_1 = arith.constant 0 : i32
    return %c0_i32, %c0_i32_0 : i32, i32
  }
  func.func @transform_7(%arg0: i32, %arg1: i32) -> (i32, i32, i32, i32) {
    %c0_i32 = arith.constant 0 : i32
    %c0_i32_0 = arith.constant 0 : i32
    %c0_i32_1 = arith.constant 0 : i32
    return %arg0, %arg1, %c0_i32, %c0_i32_0 : i32, i32, i32, i32
  }
  func.func @transform_8(%arg0: i32, %arg1: i32) -> (i32, i32, i32, i32) {
    %c0_i32 = arith.constant 0 : i32
    %c0_i32_0 = arith.constant 0 : i32
    %c0_i32_1 = arith.constant 0 : i32
    return %arg0, %arg1, %c0_i32, %c0_i32_0 : i32, i32, i32, i32
  }
}

module attributes {stable_mosaic.version = 11 : i64} {
  func.func @kernel(%arg0: i32, %arg1: i32, %arg2: memref<1x8x16x128xf32, #tpu.memory_space<vmem>>, %arg3: memref<1x1x16x128xf32, #tpu.memory_space<vmem>>, %arg4: memref<1x1x16x128xf32, #tpu.memory_space<vmem>>, %arg5: memref<1x8x16x128xf32, #tpu.memory_space<vmem>>, %arg6: memref<1x128xf32, #tpu.memory_space<vmem>>, %arg7: memref<1x128xf32, #tpu.memory_space<vmem>>, %arg8: memref<3x384x128xbf16, #tpu.memory_space<vmem>>, %arg9: memref<1x128xf32, #tpu.memory_space<vmem>>, %arg10: memref<128x128xbf16, #tpu.memory_space<vmem>>, %arg11: memref<1x128xf32, #tpu.memory_space<vmem>>, %arg12: memref<1x8x16x128xf32, #tpu.memory_space<vmem>>, %arg13: memref<10x18x128xbf16, #tpu.memory_space<vmem>>, %arg14: memref<10x16x384xbf16, #tpu.memory_space<vmem>>) attributes {dimension_semantics = [#tpu.dimension_semantics<parallel>, #tpu.dimension_semantics<parallel>], iteration_bounds = array<i64: 2, 2>, scalar_prefetch = 0 : i64, scratch_operands = 2 : i64, tpu.core_type = #tpu.core_type<tc>, window_params = [{transform_indices = @transform_0, window_bounds = array<i64: 1, 8, 16, 128>}, {transform_indices = @transform_1, window_bounds = array<i64: 1, 1, 16, 128>}, {transform_indices = @transform_2, window_bounds = array<i64: 1, 1, 16, 128>}, {transform_indices = @transform_3, window_bounds = array<i64: 1, 8, 16, 128>}, {pipeline_mode = #tpu.pipeline_mode<synchronous>, transform_indices = @transform_4, window_bounds = array<i64: 1, 128>}, {pipeline_mode = #tpu.pipeline_mode<synchronous>, transform_indices = @transform_5, window_bounds = array<i64: 1, 128>}, {pipeline_mode = #tpu.pipeline_mode<synchronous>, transform_indices = @transform_6, window_bounds = array<i64: 3, 384, 128>}, {pipeline_mode = #tpu.pipeline_mode<synchronous>, transform_indices = @transform_7, window_bounds = array<i64: 1, 128>}, {pipeline_mode = #tpu.pipeline_mode<synchronous>, transform_indices = @transform_8, window_bounds = array<i64: 128, 128>}, {pipeline_mode = #tpu.pipeline_mode<synchronous>, transform_indices = @transform_9, window_bounds = array<i64: 1, 128>}, {transform_indices = @transform_10, window_bounds = array<i64: 1, 8, 16, 128>}]} {
    %c0 = arith.constant 0 : index
    %c0_0 = arith.constant 0 : index
    %0 = vector.load %arg6[%c0, %c0_0] : memref<1x128xf32, #tpu.memory_space<vmem>>, vector<1x128xf32>
    %1 = vector.shape_cast %0 : vector<1x128xf32> to vector<1x1x128xf32>
    %c0_1 = arith.constant 0 : index
    %c0_2 = arith.constant 0 : index
    %2 = vector.load %arg7[%c0_1, %c0_2] : memref<1x128xf32, #tpu.memory_space<vmem>>, vector<1x128xf32>
    %3 = vector.shape_cast %2 : vector<1x128xf32> to vector<1x1x128xf32>
    %cst = arith.constant 0.000000e+00 : bf16
    %4 = vector.broadcast %cst : bf16 to vector<10x1x128xbf16>
    %c0_3 = arith.constant 0 : index
    %c0_4 = arith.constant 0 : index
    %c0_5 = arith.constant 0 : index
    %5 = vector.load %arg13[%c0_3, %c0_4, %c0_5] : memref<10x18x128xbf16, #tpu.memory_space<vmem>>, vector<10x1x128xbf16>
    tpu.vector_store %arg13[%c0_3, %c0_4, %c0_5], %4 {strides = array<i32>} : memref<10x18x128xbf16, #tpu.memory_space<vmem>>, vector<10x1x128xbf16>,
    %c0_6 = arith.constant 0 : index
    %c17 = arith.constant 17 : index
    %c0_7 = arith.constant 0 : index
    %6 = vector.load %arg13[%c0_6, %c17, %c0_7] : memref<10x18x128xbf16, #tpu.memory_space<vmem>>, vector<10x1x128xbf16>
    tpu.vector_store %arg13[%c0_6, %c17, %c0_7], %4 {strides = array<i32>} : memref<10x18x128xbf16, #tpu.memory_space<vmem>>, vector<10x1x128xbf16>,
    %c0_8 = arith.constant 0 : index
    %c0_9 = arith.constant 0 : index
    %c0_10 = arith.constant 0 : index
    %c0_11 = arith.constant 0 : index
    %7 = vector.load %arg2[%c0_8, %c0_9, %c0_10, %c0_11] : memref<1x8x16x128xf32, #tpu.memory_space<vmem>>, vector<1x8x16x128xf32>
    %8 = vector.shape_cast %7 : vector<1x8x16x128xf32> to vector<8x16x128xf32>
    %9 = vector.broadcast %1 : vector<1x1x128xf32> to vector<8x16x128xf32>
    %10 = arith.mulf %8, %9 : vector<8x16x128xf32>
    %11 = vector.broadcast %3 : vector<1x1x128xf32> to vector<8x16x128xf32>
    %12 = arith.addf %10, %11 : vector<8x16x128xf32>
    %13 = arith.negf %12 : vector<8x16x128xf32>
    %14 = math.exp %13 : vector<8x16x128xf32>
    %cst_12 = arith.constant 1.000000e+00 : f32
    %15 = vector.broadcast %cst_12 : f32 to vector<8x16x128xf32>
    %16 = arith.addf %15, %14 : vector<8x16x128xf32>
    %17 = arith.divf %15, %16 : vector<8x16x128xf32>
    %18 = arith.mulf %12, %17 : vector<8x16x128xf32>
    %19 = arith.truncf %18 : vector<8x16x128xf32> to vector<8x16x128xbf16>
    %c1 = arith.constant 1 : index
    %c1_13 = arith.constant 1 : index
    %c0_14 = arith.constant 0 : index
    %20 = vector.load %arg13[%c1, %c1_13, %c0_14] : memref<10x18x128xbf16, #tpu.memory_space<vmem>>, vector<8x16x128xbf16>
    tpu.vector_store %arg13[%c1, %c1_13, %c0_14], %19 {strides = array<i32>} : memref<10x18x128xbf16, #tpu.memory_space<vmem>>, vector<8x16x128xbf16>,
    %c0_15 = arith.constant 0 : index
    %c0_16 = arith.constant 0 : index
    %c0_17 = arith.constant 0 : index
    %c0_18 = arith.constant 0 : index
    %21 = vector.load %arg3[%c0_15, %c0_16, %c0_17, %c0_18] : memref<1x1x16x128xf32, #tpu.memory_space<vmem>>, vector<1x1x16x128xf32>
    %22 = vector.shape_cast %21 : vector<1x1x16x128xf32> to vector<1x16x128xf32>
    %23 = vector.broadcast %1 : vector<1x1x128xf32> to vector<1x16x128xf32>
    %24 = arith.mulf %22, %23 : vector<1x16x128xf32>
    %25 = vector.broadcast %3 : vector<1x1x128xf32> to vector<1x16x128xf32>
    %26 = arith.addf %24, %25 : vector<1x16x128xf32>
    %27 = arith.negf %26 : vector<1x16x128xf32>
    %28 = math.exp %27 : vector<1x16x128xf32>
    %cst_19 = arith.constant 1.000000e+00 : f32
    %29 = vector.broadcast %cst_19 : f32 to vector<1x16x128xf32>
    %30 = arith.addf %29, %28 : vector<1x16x128xf32>
    %31 = arith.divf %29, %30 : vector<1x16x128xf32>
    %32 = arith.mulf %26, %31 : vector<1x16x128xf32>
    %33 = arith.truncf %32 : vector<1x16x128xf32> to vector<1x16x128xbf16>
    %c0_20 = arith.constant 0 : index
    %c0_21 = arith.constant 0 : index
    %c0_22 = arith.constant 0 : index
    %c0_23 = arith.constant 0 : index
    %34 = vector.load %arg4[%c0_20, %c0_21, %c0_22, %c0_23] : memref<1x1x16x128xf32, #tpu.memory_space<vmem>>, vector<1x1x16x128xf32>
    %35 = vector.shape_cast %34 : vector<1x1x16x128xf32> to vector<1x16x128xf32>
    %36 = vector.broadcast %1 : vector<1x1x128xf32> to vector<1x16x128xf32>
    %37 = arith.mulf %35, %36 : vector<1x16x128xf32>
    %38 = vector.broadcast %3 : vector<1x1x128xf32> to vector<1x16x128xf32>
    %39 = arith.addf %37, %38 : vector<1x16x128xf32>
    %40 = arith.negf %39 : vector<1x16x128xf32>
    %41 = math.exp %40 : vector<1x16x128xf32>
    %cst_24 = arith.constant 1.000000e+00 : f32
    %42 = vector.broadcast %cst_24 : f32 to vector<1x16x128xf32>
    %43 = arith.addf %42, %41 : vector<1x16x128xf32>
    %44 = arith.divf %42, %43 : vector<1x16x128xf32>
    %45 = arith.mulf %39, %44 : vector<1x16x128xf32>
    %46 = arith.truncf %45 : vector<1x16x128xf32> to vector<1x16x128xbf16>
    %cst_25 = arith.constant 0.000000e+00 : bf16
    %47 = vector.broadcast %cst_25 : bf16 to vector<1x16x128xbf16>
    %c0_i32 = arith.constant 0 : i32
    %48 = arith.cmpi sgt, %arg1, %c0_i32 : i32
    %49 = arith.select %48, %33, %47 : vector<1x16x128xbf16>
    %c0_26 = arith.constant 0 : index
    %c1_27 = arith.constant 1 : index
    %c0_28 = arith.constant 0 : index
    %50 = vector.load %arg13[%c0_26, %c1_27, %c0_28] : memref<10x18x128xbf16, #tpu.memory_space<vmem>>, vector<1x16x128xbf16>
    tpu.vector_store %arg13[%c0_26, %c1_27, %c0_28], %49 {strides = array<i32>} : memref<10x18x128xbf16, #tpu.memory_space<vmem>>, vector<1x16x128xbf16>,
    %c1_i32 = arith.constant 1 : i32
    %51 = arith.cmpi slt, %arg1, %c1_i32 : i32
    %52 = arith.select %51, %46, %47 : vector<1x16x128xbf16>
    %c9 = arith.constant 9 : index
    %c1_29 = arith.constant 1 : index
    %c0_30 = arith.constant 0 : index
    %53 = vector.load %arg13[%c9, %c1_29, %c0_30] : memref<10x18x128xbf16, #tpu.memory_space<vmem>>, vector<1x16x128xbf16>
    tpu.vector_store %arg13[%c9, %c1_29, %c0_30], %52 {strides = array<i32>} : memref<10x18x128xbf16, #tpu.memory_space<vmem>>, vector<1x16x128xbf16>,
    %c0_31 = arith.constant 0 : index
    %c0_32 = arith.constant 0 : index
    %c0_33 = arith.constant 0 : index
    %54 = vector.load %arg13[%c0_31, %c0_32, %c0_33] : memref<10x18x128xbf16, #tpu.memory_space<vmem>>, vector<10x16x128xbf16>
    %c0_34 = arith.constant 0 : index
    %c0_35 = arith.constant 0 : index
    %c0_36 = arith.constant 0 : index
    %55 = vector.load %arg14[%c0_34, %c0_35, %c0_36] : memref<10x16x384xbf16, #tpu.memory_space<vmem>>, vector<10x16x128xbf16>
    tpu.vector_store %arg14[%c0_34, %c0_35, %c0_36], %54 {strides = array<i32>} : memref<10x16x384xbf16, #tpu.memory_space<vmem>>, vector<10x16x128xbf16>,
    %c0_37 = arith.constant 0 : index
    %c1_38 = arith.constant 1 : index
    %c0_39 = arith.constant 0 : index
    %56 = vector.load %arg13[%c0_37, %c1_38, %c0_39] : memref<10x18x128xbf16, #tpu.memory_space<vmem>>, vector<10x16x128xbf16>
    %c0_40 = arith.constant 0 : index
    %c0_41 = arith.constant 0 : index
    %c128 = arith.constant 128 : index
    %57 = vector.load %arg14[%c0_40, %c0_41, %c128] : memref<10x16x384xbf16, #tpu.memory_space<vmem>>, vector<10x16x128xbf16>
    tpu.vector_store %arg14[%c0_40, %c0_41, %c128], %56 {strides = array<i32>} : memref<10x16x384xbf16, #tpu.memory_space<vmem>>, vector<10x16x128xbf16>,
    %c0_42 = arith.constant 0 : index
    %c2 = arith.constant 2 : index
    %c0_43 = arith.constant 0 : index
    %58 = vector.load %arg13[%c0_42, %c2, %c0_43] : memref<10x18x128xbf16, #tpu.memory_space<vmem>>, vector<10x16x128xbf16>
    %c0_44 = arith.constant 0 : index
    %c0_45 = arith.constant 0 : index
    %c256 = arith.constant 256 : index
    %59 = vector.load %arg14[%c0_44, %c0_45, %c256] : memref<10x16x384xbf16, #tpu.memory_space<vmem>>, vector<10x16x128xbf16>
    tpu.vector_store %arg14[%c0_44, %c0_45, %c256], %58 {strides = array<i32>} : memref<10x16x384xbf16, #tpu.memory_space<vmem>>, vector<10x16x128xbf16>,
    %c0_46 = arith.constant 0 : index
    %c0_47 = arith.constant 0 : index
    %c0_48 = arith.constant 0 : index
    %60 = vector.load %arg14[%c0_46, %c0_47, %c0_48] : memref<10x16x384xbf16, #tpu.memory_space<vmem>>, vector<8x16x384xbf16>
    %61 = vector.shape_cast %60 : vector<8x16x384xbf16> to vector<128x384xbf16>
    %c0_49 = arith.constant 0 : index
    %c0_50 = arith.constant 0 : index
    %c0_51 = arith.constant 0 : index
    %62 = vector.load %arg8[%c0_49, %c0_50, %c0_51] : memref<3x384x128xbf16, #tpu.memory_space<vmem>>, vector<1x384x128xbf16>
    %63 = vector.shape_cast %62 : vector<1x384x128xbf16> to vector<384x128xbf16>
    %cst_52 = arith.constant dense<0.000000e+00> : vector<128x128xf32>
    %64 = tpu.matmul %61, %63, %cst_52 {dimension_numbers = #tpu.dot_dimension_numbers<[1], [0], [0], [1], [0, 0, 1, 1], [], []>} : vector<128x384xbf16>, vector<384x128xbf16>, vector<128x128xf32> -> vector<128x128xf32>
    %c1_53 = arith.constant 1 : index
    %c0_54 = arith.constant 0 : index
    %c0_55 = arith.constant 0 : index
    %65 = vector.load %arg14[%c1_53, %c0_54, %c0_55] : memref<10x16x384xbf16, #tpu.memory_space<vmem>>, vector<8x16x384xbf16>
    %66 = vector.shape_cast %65 : vector<8x16x384xbf16> to vector<128x384xbf16>
    %c1_56 = arith.constant 1 : index
    %c0_57 = arith.constant 0 : index
    %c0_58 = arith.constant 0 : index
    %67 = vector.load %arg8[%c1_56, %c0_57, %c0_58] : memref<3x384x128xbf16, #tpu.memory_space<vmem>>, vector<1x384x128xbf16>
    %68 = vector.shape_cast %67 : vector<1x384x128xbf16> to vector<384x128xbf16>
    %cst_59 = arith.constant dense<0.000000e+00> : vector<128x128xf32>
    %69 = tpu.matmul %66, %68, %cst_59 {dimension_numbers = #tpu.dot_dimension_numbers<[1], [0], [0], [1], [0, 0, 1, 1], [], []>} : vector<128x384xbf16>, vector<384x128xbf16>, vector<128x128xf32> -> vector<128x128xf32>
    %70 = arith.addf %64, %69 : vector<128x128xf32>
    %c2_60 = arith.constant 2 : index
    %c0_61 = arith.constant 0 : index
    %c0_62 = arith.constant 0 : index
    %71 = vector.load %arg14[%c2_60, %c0_61, %c0_62] : memref<10x16x384xbf16, #tpu.memory_space<vmem>>, vector<8x16x384xbf16>
    %72 = vector.shape_cast %71 : vector<8x16x384xbf16> to vector<128x384xbf16>
    %c2_63 = arith.constant 2 : index
    %c0_64 = arith.constant 0 : index
    %c0_65 = arith.constant 0 : index
    %73 = vector.load %arg8[%c2_63, %c0_64, %c0_65] : memref<3x384x128xbf16, #tpu.memory_space<vmem>>, vector<1x384x128xbf16>
    %74 = vector.shape_cast %73 : vector<1x384x128xbf16> to vector<384x128xbf16>
    %cst_66 = arith.constant dense<0.000000e+00> : vector<128x128xf32>
    %75 = tpu.matmul %72, %74, %cst_66 {dimension_numbers = #tpu.dot_dimension_numbers<[1], [0], [0], [1], [0, 0, 1, 1], [], []>} : vector<128x384xbf16>, vector<384x128xbf16>, vector<128x128xf32> -> vector<128x128xf32>
    %76 = arith.addf %70, %75 : vector<128x128xf32>
    %c0_67 = arith.constant 0 : index
    %c0_68 = arith.constant 0 : index
    %77 = vector.load %arg9[%c0_67, %c0_68] : memref<1x128xf32, #tpu.memory_space<vmem>>, vector<1x128xf32>
    %78 = vector.broadcast %77 : vector<1x128xf32> to vector<128x128xf32>
    %79 = arith.addf %76, %78 : vector<128x128xf32>
    %c0_69 = arith.constant 0 : index
    %c0_70 = arith.constant 0 : index
    %c0_71 = arith.constant 0 : index
    %c0_72 = arith.constant 0 : index
    %80 = vector.load %arg5[%c0_69, %c0_70, %c0_71, %c0_72] : memref<1x8x16x128xf32, #tpu.memory_space<vmem>>, vector<1x8x16x128xf32>
    %81 = vector.shape_cast %80 : vector<1x8x16x128xf32> to vector<8x16x128xf32>
    %82 = vector.shape_cast %81 : vector<8x16x128xf32> to vector<128x128xf32>
    %83 = arith.truncf %82 : vector<128x128xf32> to vector<128x128xbf16>
    %c0_73 = arith.constant 0 : index
    %c0_74 = arith.constant 0 : index
    %84 = vector.load %arg10[%c0_73, %c0_74] : memref<128x128xbf16, #tpu.memory_space<vmem>>, vector<128x128xbf16>
    %cst_75 = arith.constant dense<0.000000e+00> : vector<128x128xf32>
    %85 = tpu.matmul %83, %84, %cst_75 {dimension_numbers = #tpu.dot_dimension_numbers<[1], [0], [0], [1], [0, 0, 1, 1], [], []>} : vector<128x128xbf16>, vector<128x128xbf16>, vector<128x128xf32> -> vector<128x128xf32>
    %c0_76 = arith.constant 0 : index
    %c0_77 = arith.constant 0 : index
    %86 = vector.load %arg11[%c0_76, %c0_77] : memref<1x128xf32, #tpu.memory_space<vmem>>, vector<1x128xf32>
    %87 = vector.broadcast %86 : vector<1x128xf32> to vector<128x128xf32>
    %88 = arith.addf %85, %87 : vector<128x128xf32>
    %89 = arith.addf %79, %88 : vector<128x128xf32>
    %90 = vector.shape_cast %89 : vector<128x128xf32> to vector<8x16x128xf32>
    %c0_78 = arith.constant 0 : index
    %c0_79 = arith.constant 0 : index
    %c0_80 = arith.constant 0 : index
    %c0_81 = arith.constant 0 : index
    %91 = vector.load %arg12[%c0_78, %c0_79, %c0_80, %c0_81] : memref<1x8x16x128xf32, #tpu.memory_space<vmem>>, vector<1x8x16x128xf32>
    %92 = vector.shape_cast %91 : vector<1x8x16x128xf32> to vector<8x16x128xf32>
    %93 = vector.shape_cast %90 : vector<8x16x128xf32> to vector<1x8x16x128xf32>
    tpu.vector_store %arg12[%c0_78, %c0_79, %c0_80, %c0_81], %93 {strides = array<i32>} : memref<1x8x16x128xf32, #tpu.memory_space<vmem>>, vector<1x8x16x128xf32>,
    return
  }
  func.func @transform_0(%arg0: i32, %arg1: i32) -> (i32, i32, i32, i32) {
    %c0_i32 = arith.constant 0 : i32
    %c0_i32_0 = arith.constant 0 : i32
    %c0_i32_1 = arith.constant 0 : i32
    return %arg0, %arg1, %c0_i32, %c0_i32_0 : i32, i32, i32, i32
  }
  func.func @transform_1(%arg0: i32, %arg1: i32) -> (i32, i32, i32, i32) {
    %c8_i32 = arith.constant 8 : i32
    %0 = arith.muli %arg1, %c8_i32 : i32
    %c1_i32 = arith.constant 1 : i32
    %1 = arith.subi %0, %c1_i32 : i32
    %c0_i32 = arith.constant 0 : i32
    %2 = arith.maxsi %1, %c0_i32 : i32
    %c0_i32_0 = arith.constant 0 : i32
    %c0_i32_1 = arith.constant 0 : i32
    %c0_i32_2 = arith.constant 0 : i32
    return %arg0, %2, %c0_i32_0, %c0_i32_1 : i32, i32, i32, i32
  }
  func.func @transform_2(%arg0: i32, %arg1: i32) -> (i32, i32, i32, i32) {
    %c1_i32 = arith.constant 1 : i32
    %0 = arith.addi %arg1, %c1_i32 : i32
    %c8_i32 = arith.constant 8 : i32
    %1 = arith.muli %0, %c8_i32 : i32
    %c15_i32 = arith.constant 15 : i32
    %2 = arith.minsi %1, %c15_i32 : i32
    %c0_i32 = arith.constant 0 : i32
    %c0_i32_0 = arith.constant 0 : i32
    %c0_i32_1 = arith.constant 0 : i32
    return %arg0, %2, %c0_i32, %c0_i32_0 : i32, i32, i32, i32
  }
  func.func @transform_3(%arg0: i32, %arg1: i32) -> (i32, i32, i32, i32) {
    %c0_i32 = arith.constant 0 : i32
    %c0_i32_0 = arith.constant 0 : i32
    %c0_i32_1 = arith.constant 0 : i32
    return %arg0, %arg1, %c0_i32, %c0_i32_0 : i32, i32, i32, i32
  }
  func.func @transform_4(%arg0: i32, %arg1: i32) -> (i32, i32) {
    %c0_i32 = arith.constant 0 : i32
    %c0_i32_0 = arith.constant 0 : i32
    %c0_i32_1 = arith.constant 0 : i32
    return %c0_i32, %c0_i32_0 : i32, i32
  }
  func.func @transform_5(%arg0: i32, %arg1: i32) -> (i32, i32) {
    %c0_i32 = arith.constant 0 : i32
    %c0_i32_0 = arith.constant 0 : i32
    %c0_i32_1 = arith.constant 0 : i32
    return %c0_i32, %c0_i32_0 : i32, i32
  }
  func.func @transform_6(%arg0: i32, %arg1: i32) -> (i32, i32, i32) {
    %c0_i32 = arith.constant 0 : i32
    %c0_i32_0 = arith.constant 0 : i32
    %c0_i32_1 = arith.constant 0 : i32
    %c0_i32_2 = arith.constant 0 : i32
    return %c0_i32, %c0_i32_0, %c0_i32_1 : i32, i32, i32
  }
  func.func @transform_7(%arg0: i32, %arg1: i32) -> (i32, i32) {
    %c0_i32 = arith.constant 0 : i32
    %c0_i32_0 = arith.constant 0 : i32
    %c0_i32_1 = arith.constant 0 : i32
    return %c0_i32, %c0_i32_0 : i32, i32
  }
  func.func @transform_8(%arg0: i32, %arg1: i32) -> (i32, i32) {
    %c0_i32 = arith.constant 0 : i32
    %c0_i32_0 = arith.constant 0 : i32
    %c0_i32_1 = arith.constant 0 : i32
    return %c0_i32, %c0_i32_0 : i32, i32
  }
  func.func @transform_9(%arg0: i32, %arg1: i32) -> (i32, i32) {
    %c0_i32 = arith.constant 0 : i32
    %c0_i32_0 = arith.constant 0 : i32
    %c0_i32_1 = arith.constant 0 : i32
    return %c0_i32, %c0_i32_0 : i32, i32
  }
  func.func @transform_10(%arg0: i32, %arg1: i32) -> (i32, i32, i32, i32) {
    %c0_i32 = arith.constant 0 : i32
    %c0_i32_0 = arith.constant 0 : i32
    %c0_i32_1 = arith.constant 0 : i32
    return %arg0, %arg1, %c0_i32, %c0_i32_0 : i32, i32, i32, i32
  }
}

</mosaic_0001>

<llo_original>
// kernel: resnet_block_forward.3
$region0: #{resnet_block_forward.3}
  #allocation0 [shape = 'u32[]', space=smem, size = 0x4, offset = 0x4, fixed_abs, tag = 'smem constant byte address 0x4 - core index']
  #allocation1 [shape = 'u32[72,128]{1,0:T(1,128)}', space=vmem, size = 0x9000, scoped, tag = 'internal scratch']
  %s0 = inlined_call_operand.vmem [shape: f32[512,128], index: 0, kind: input, shape index: {}]
  %s1 = inlined_call_operand.vmem [shape: f32[16,128], index: 1, kind: output, shape index: {}]
  %s2 = sld [smem:[#allocation0]]
  $region18: #{resnet_block_forward.3} parent=0
    _
  %s4 = ssub.s32 1, %s2
  %s5 = scalar_select 0, %s4, %s2
  // Predicated region
  $region2: #{resnet_block_forward.3} parent=0 // pred_check
    _
  $region3: #{resnet_block_forward.3} parent=0 // pred_check_branch
    %7 = sbr.rel (0) target = $region5
  $region4: #{resnet_block_forward.3} parent=0 // pred_region
    _
  $region5: #{resnet_block_forward.3} parent=0 // pred_fallthru
    _
  %p8 = scmp.eq.s32.totalorder 0, 0
  // Predicated region
  $region6: #{resnet_block_forward.3} parent=0 // pred_check
    %p9 = pneg %p8
  $region7: #{resnet_block_forward.3} parent=0 // pred_check_branch
    %11 = sbr.rel (%p9) target = $region9
  $region8: #{resnet_block_forward.3} parent=0 // pred_region
    %12 = vst [vmem:[%s1] sm:$0xff] 0.0
    %13 = vst [vmem:[%s1 + $0x8] sm:$0xff] 0.0
  $region9: #{resnet_block_forward.3} parent=0 // pred_fallthru
    _
  %v14 = vld [vmem:[%s0] sm:$0xff]
  %v15 = vld [vmem:[%s0 + $0x8] sm:$0xff]
  %v16 = vld [vmem:[%s0 + $0x10] sm:$0xff]
  %v17 = vld [vmem:[%s0 + $0x18] sm:$0xff]
  %v18 = vld [vmem:[%s0 + $0x20] sm:$0xff]
  %v19 = vld [vmem:[%s0 + $0x28] sm:$0xff]
  %v20 = vld [vmem:[%s0 + $0x30] sm:$0xff]
  %v21 = vld [vmem:[%s0 + $0x38] sm:$0xff]
  %v22 = vld [vmem:[%s0 + $0x40] sm:$0xff]
  %v23 = vld [vmem:[%s0 + $0x48] sm:$0xff]
  %v24 = vld [vmem:[%s0 + $0x50] sm:$0xff]
  %v25 = vld [vmem:[%s0 + $0x58] sm:$0xff]
  %v26 = vld [vmem:[%s0 + $0x60] sm:$0xff]
  %v27 = vld [vmem:[%s0 + $0x68] sm:$0xff]
  %v28 = vld [vmem:[%s0 + $0x70] sm:$0xff]
  %v29 = vld [vmem:[%s0 + $0x78] sm:$0xff]
  %v30 = vld [vmem:[%s0 + $0x80] sm:$0xff]
  %v31 = vld [vmem:[%s0 + $0x88] sm:$0xff]
  %v32 = vld [vmem:[%s0 + $0x90] sm:$0xff]
  %v33 = vld [vmem:[%s0 + $0x98] sm:$0xff]
  %v34 = vld [vmem:[%s0 + $0xa0] sm:$0xff]
  %v35 = vld [vmem:[%s0 + $0xa8] sm:$0xff]
  %v36 = vld [vmem:[%s0 + $0xb0] sm:$0xff]
  %v37 = vld [vmem:[%s0 + $0xb8] sm:$0xff]
  %v38 = vld [vmem:[%s0 + $0xc0] sm:$0xff]
  %v39 = vld [vmem:[%s0 + $0xc8] sm:$0xff]
  %v40 = vld [vmem:[%s0 + $0xd0] sm:$0xff]
  %v41 = vld [vmem:[%s0 + $0xd8] sm:$0xff]
  %v42 = vld [vmem:[%s0 + $0xe0] sm:$0xff]
  %v43 = vld [vmem:[%s0 + $0xe8] sm:$0xff]
  %v44 = vld [vmem:[%s0 + $0xf0] sm:$0xff]
  %v45 = vld [vmem:[%s0 + $0xf8] sm:$0xff]
  %v46 = vld [vmem:[%s0 + $0x100] sm:$0xff]
  %v47 = vld [vmem:[%s0 + $0x108] sm:$0xff]
  %v48 = vld [vmem:[%s0 + $0x110] sm:$0xff]
  %v49 = vld [vmem:[%s0 + $0x118] sm:$0xff]
  %v50 = vld [vmem:[%s0 + $0x120] sm:$0xff]
  %v51 = vld [vmem:[%s0 + $0x128] sm:$0xff]
  %v52 = vld [vmem:[%s0 + $0x130] sm:$0xff]
  %v53 = vld [vmem:[%s0 + $0x138] sm:$0xff]
  %v54 = vld [vmem:[%s0 + $0x140] sm:$0xff]
  %v55 = vld [vmem:[%s0 + $0x148] sm:$0xff]
  %v56 = vld [vmem:[%s0 + $0x150] sm:$0xff]
  %v57 = vld [vmem:[%s0 + $0x158] sm:$0xff]
  %v58 = vld [vmem:[%s0 + $0x160] sm:$0xff]
  %v59 = vld [vmem:[%s0 + $0x168] sm:$0xff]
  %v60 = vld [vmem:[%s0 + $0x170] sm:$0xff]
  %v61 = vld [vmem:[%s0 + $0x178] sm:$0xff]
  %v62 = vld [vmem:[%s0 + $0x180] sm:$0xff]
  %v63 = vld [vmem:[%s0 + $0x188] sm:$0xff]
  %v64 = vld [vmem:[%s0 + $0x190] sm:$0xff]
  %v65 = vld [vmem:[%s0 + $0x198] sm:$0xff]
  %v66 = vld [vmem:[%s0 + $0x1a0] sm:$0xff]
  %v67 = vld [vmem:[%s0 + $0x1a8] sm:$0xff]
  %v68 = vld [vmem:[%s0 + $0x1b0] sm:$0xff]
  %v69 = vld [vmem:[%s0 + $0x1b8] sm:$0xff]
  %v70 = vld [vmem:[%s0 + $0x1c0] sm:$0xff]
  %v71 = vld [vmem:[%s0 + $0x1c8] sm:$0xff]
  %v72 = vld [vmem:[%s0 + $0x1d0] sm:$0xff]
  %v73 = vld [vmem:[%s0 + $0x1d8] sm:$0xff]
  %v74 = vld [vmem:[%s0 + $0x1e0] sm:$0xff]
  %v75 = vld [vmem:[%s0 + $0x1e8] sm:$0xff]
  %v76 = vld [vmem:[%s0 + $0x1f0] sm:$0xff]
  %v77 = vld [vmem:[%s0 + $0x1f8] sm:$0xff]
  %v78 = vld [vmem:[%s1] sm:$0xff]
  %v79 = vadd.f32 %v14, %v15
  %v80 = vadd.f32 %v79, %v16
  %v81 = vadd.f32 %v80, %v17
  %v82 = vadd.f32 %v81, %v18
  %v83 = vadd.f32 %v82, %v19
  %v84 = vadd.f32 %v83, %v20
  %v85 = vadd.f32 %v84, %v21
  %v86 = vadd.f32 %v85, %v22
  %v87 = vadd.f32 %v86, %v23
  %v88 = vadd.f32 %v87, %v24
  %v89 = vadd.f32 %v88, %v25
  %v90 = vadd.f32 %v89, %v26
  %v91 = vadd.f32 %v90, %v27
  %v92 = vadd.f32 %v91, %v28
  %v93 = vadd.f32 %v92, %v29
  %v94 = vadd.f32 %v93, %v30
  %v95 = vadd.f32 %v94, %v31
  %v96 = vadd.f32 %v95, %v32
  %v97 = vadd.f32 %v96, %v33
  %v98 = vadd.f32 %v97, %v34
  %v99 = vadd.f32 %v98, %v35
  %v100 = vadd.f32 %v99, %v36
  %v101 = vadd.f32 %v100, %v37
  %v102 = vadd.f32 %v101, %v38
  %v103 = vadd.f32 %v102, %v39
  %v104 = vadd.f32 %v103, %v40
  %v105 = vadd.f32 %v104, %v41
  %v106 = vadd.f32 %v105, %v42
  %v107 = vadd.f32 %v106, %v43
  %v108 = vadd.f32 %v107, %v44
  %v109 = vadd.f32 %v108, %v45
  %v110 = vadd.f32 %v109, %v46
  %v111 = vadd.f32 %v110, %v47
  %v112 = vadd.f32 %v111, %v48
  %v113 = vadd.f32 %v112, %v49
  %v114 = vadd.f32 %v113, %v50
  %v115 = vadd.f32 %v114, %v51
  %v116 = vadd.f32 %v115, %v52
  %v117 = vadd.f32 %v116, %v53
  %v118 = vadd.f32 %v117, %v54
  %v119 = vadd.f32 %v118, %v55
  %v120 = vadd.f32 %v119, %v56
  %v121 = vadd.f32 %v120, %v57
  %v122 = vadd.f32 %v121, %v58
  %v123 = vadd.f32 %v122, %v59
  %v124 = vadd.f32 %v123, %v60
  %v125 = vadd.f32 %v124, %v61
  %v126 = vadd.f32 %v125, %v62
  %v127 = vadd.f32 %v126, %v63
  %v128 = vadd.f32 %v127, %v64
  %v129 = vadd.f32 %v128, %v65
  %v130 = vadd.f32 %v129, %v66
  %v131 = vadd.f32 %v130, %v67
  %v132 = vadd.f32 %v131, %v68
  %v133 = vadd.f32 %v132, %v69
  %v134 = vadd.f32 %v133, %v70
  %v135 = vadd.f32 %v134, %v71
  %v136 = vadd.f32 %v135, %v72
  %v137 = vadd.f32 %v136, %v73
  %v138 = vadd.f32 %v137, %v74
  %v139 = vadd.f32 %v138, %v75
  %v140 = vadd.f32 %v139, %v76
  %v141 = vadd.f32 %v140, %v77
  %v142 = vadd.f32 %v78, %v141
  %143 = vst [vmem:[%s1] sm:$0xff] %v142
  %v144 = vld [vmem:[%s1 + $0x8] sm:$0xff]
  %v145 = vmul.f32 %v14, %v14
  %v146 = vmul.f32 %v15, %v15
  %v147 = vmul.f32 %v16, %v16
  %v148 = vmul.f32 %v17, %v17
  %v149 = vmul.f32 %v18, %v18
  %v150 = vmul.f32 %v19, %v19
  %v151 = vmul.f32 %v20, %v20
  %v152 = vmul.f32 %v21, %v21
  %v153 = vmul.f32 %v22, %v22
  %v154 = vmul.f32 %v23, %v23
  %v155 = vmul.f32 %v24, %v24
  %v156 = vmul.f32 %v25, %v25
  %v157 = vmul.f32 %v26, %v26
  %v158 = vmul.f32 %v27, %v27
  %v159 = vmul.f32 %v28, %v28
  %v160 = vmul.f32 %v29, %v29
  %v161 = vmul.f32 %v30, %v30
  %v162 = vmul.f32 %v31, %v31
  %v163 = vmul.f32 %v32, %v32
  %v164 = vmul.f32 %v33, %v33
  %v165 = vmul.f32 %v34, %v34
  %v166 = vmul.f32 %v35, %v35
  %v167 = vmul.f32 %v36, %v36
  %v168 = vmul.f32 %v37, %v37
  %v169 = vmul.f32 %v38, %v38
  %v170 = vmul.f32 %v39, %v39
  %v171 = vmul.f32 %v40, %v40
  %v172 = vmul.f32 %v41, %v41
  %v173 = vmul.f32 %v42, %v42
  %v174 = vmul.f32 %v43, %v43
  %v175 = vmul.f32 %v44, %v44
  %v176 = vmul.f32 %v45, %v45
  %v177 = vmul.f32 %v46, %v46
  %v178 = vmul.f32 %v47, %v47
  %v179 = vmul.f32 %v48, %v48
  %v180 = vmul.f32 %v49, %v49
  %v181 = vmul.f32 %v50, %v50
  %v182 = vmul.f32 %v51, %v51
  %v183 = vmul.f32 %v52, %v52
  %v184 = vmul.f32 %v53, %v53
  %v185 = vmul.f32 %v54, %v54
  %v186 = vmul.f32 %v55, %v55
  %v187 = vmul.f32 %v56, %v56
  %v188 = vmul.f32 %v57, %v57
  %v189 = vmul.f32 %v58, %v58
  %v190 = vmul.f32 %v59, %v59
  %v191 = vmul.f32 %v60, %v60
  %v192 = vmul.f32 %v61, %v61
  %v193 = vmul.f32 %v62, %v62
  %v194 = vmul.f32 %v63, %v63
  %v195 = vmul.f32 %v64, %v64
  %v196 = vmul.f32 %v65, %v65
  %v197 = vmul.f32 %v66, %v66
  %v198 = vmul.f32 %v67, %v67
  %v199 = vmul.f32 %v68, %v68
  %v200 = vmul.f32 %v69, %v69
  %v201 = vmul.f32 %v70, %v70
  %v202 = vmul.f32 %v71, %v71
  %v203 = vmul.f32 %v72, %v72
  %v204 = vmul.f32 %v73, %v73
  %v205 = vmul.f32 %v74, %v74
  %v206 = vmul.f32 %v75, %v75
  %v207 = vmul.f32 %v76, %v76
  %v208 = vmul.f32 %v77, %v77
  %v209 = vadd.f32 %v145, %v146
  %v210 = vadd.f32 %v209, %v147
  %v211 = vadd.f32 %v210, %v148
  %v212 = vadd.f32 %v211, %v149
  %v213 = vadd.f32 %v212, %v150
  %v214 = vadd.f32 %v213, %v151
  %v215 = vadd.f32 %v214, %v152
  %v216 = vadd.f32 %v215, %v153
  %v217 = vadd.f32 %v216, %v154
  %v218 = vadd.f32 %v217, %v155
  %v219 = vadd.f32 %v218, %v156
  %v220 = vadd.f32 %v219, %v157
  %v221 = vadd.f32 %v220, %v158
  %v222 = vadd.f32 %v221, %v159
  %v223 = vadd.f32 %v222, %v160
  %v224 = vadd.f32 %v223, %v161
  %v225 = vadd.f32 %v224, %v162
  %v226 = vadd.f32 %v225, %v163
  %v227 = vadd.f32 %v226, %v164
  %v228 = vadd.f32 %v227, %v165
  %v229 = vadd.f32 %v228, %v166
  %v230 = vadd.f32 %v229, %v167
  %v231 = vadd.f32 %v230, %v168
  %v232 = vadd.f32 %v231, %v169
  %v233 = vadd.f32 %v232, %v170
  %v234 = vadd.f32 %v233, %v171
  %v235 = vadd.f32 %v234, %v172
  %v236 = vadd.f32 %v235, %v173
  %v237 = vadd.f32 %v236, %v174
  %v238 = vadd.f32 %v237, %v175
  %v239 = vadd.f32 %v238, %v176
  %v240 = vadd.f32 %v239, %v177
  %v241 = vadd.f32 %v240, %v178
  %v242 = vadd.f32 %v241, %v179
  %v243 = vadd.f32 %v242, %v180
  %v244 = vadd.f32 %v243, %v181
  %v245 = vadd.f32 %v244, %v182
  %v246 = vadd.f32 %v245, %v183
  %v247 = vadd.f32 %v246, %v184
  %v248 = vadd.f32 %v247, %v185
  %v249 = vadd.f32 %v248, %v186
  %v250 = vadd.f32 %v249, %v187
  %v251 = vadd.f32 %v250, %v188
  %v252 = vadd.f32 %v251, %v189
  %v253 = vadd.f32 %v252, %v190
  %v254 = vadd.f32 %v253, %v191
  %v255 = vadd.f32 %v254, %v192
  %v256 = vadd.f32 %v255, %v193
  %v257 = vadd.f32 %v256, %v194
  %v258 = vadd.f32 %v257, %v195
  %v259 = vadd.f32 %v258, %v196
  %v260 = vadd.f32 %v259, %v197
  %v261 = vadd.f32 %v260, %v198
  %v262 = vadd.f32 %v261, %v199
  %v263 = vadd.f32 %v262, %v200
  %v264 = vadd.f32 %v263, %v201
  %v265 = vadd.f32 %v264, %v202
  %v266 = vadd.f32 %v265, %v203
  %v267 = vadd.f32 %v266, %v204
  %v268 = vadd.f32 %v267, %v205
  %v269 = vadd.f32 %v268, %v206
  %v270 = vadd.f32 %v269, %v207
  %v271 = vadd.f32 %v270, %v208
  %v272 = vadd.f32 %v144, %v271
  %273 = vst [vmem:[%s1 + $0x8] sm:$0xff] %v272
  // Predicated region
  $region10: #{resnet_block_forward.3} parent=0 // pred_check
    _
  $region11: #{resnet_block_forward.3} parent=0 // pred_check_branch
    %275 = sbr.rel (0) target = $region13
  $region12: #{resnet_block_forward.3} parent=0 // pred_region
    _
  $region13: #{resnet_block_forward.3} parent=0 // pred_fallthru
    _
  // Predicated region
  $region14: #{resnet_block_forward.3} parent=0 // pred_check
    _
  $region15: #{resnet_block_forward.3} parent=0 // pred_check_branch
    %277 = sbr.rel (0) target = $region17
  $region16: #{resnet_block_forward.3} parent=0 // pred_region
    _
  $region17: #{resnet_block_forward.3} parent=0 // pred_fallthru
    _

// kernel: resnet_block_forward.4
$region0: #{resnet_block_forward.4}
  #allocation0 [shape = 'u32[]', space=smem, size = 0x4, offset = 0x4, fixed_abs, tag = 'smem constant byte address 0x4 - core index']
  #allocation1 [shape = 'u32[72,128]{1,0:T(1,128)}', space=vmem, size = 0x9000, scoped, tag = 'internal scratch']
  #allocation2 [shape = 'bf16[10,18,128]{2,1,0:T(8,128)(2,1)}', space=vmem, size = 0xf000, scoped, tag = 'scratch operand']
  #allocation3 [shape = 'bf16[10,16,384]{2,1,0:T(8,128)(2,1)}', space=vmem, size = 0x1e000, scoped, tag = 'scratch operand']
  %s0 = inlined_call_operand.vmem [shape: f32[2,16,16,128], index: 0, kind: input, shape index: {}, may-alias: {0,1,2}]
  %s1 = inlined_call_operand.vmem [shape: f32[2,16,16,128], index: 1, kind: input, shape index: {}, may-alias: {0,1,2}]
  %s2 = inlined_call_operand.vmem [shape: f32[2,16,16,128], index: 2, kind: input, shape index: {}, may-alias: {0,1,2}]
  %s3 = inlined_call_operand.vmem [shape: f32[1,128], index: 3, kind: input, shape index: {}]
  %s4 = inlined_call_operand.vmem [shape: f32[1,128], index: 4, kind: input, shape index: {}]
  %s5 = inlined_call_operand.vmem [shape: bf16[3,384,128], index: 5, kind: input, shape index: {}]
  %s6 = inlined_call_operand.vmem [shape: f32[1,128], index: 6, kind: input, shape index: {}]
  %s7 = inlined_call_operand.vmem [shape: f32[2,16,16,128], index: 7, kind: output, shape index: {0}]
  %s8 = inlined_call_operand.vmem [shape: f32[2,2,16,128], index: 8, kind: output, shape index: {1}]
  %9 = xla_tuple %s7, %s8
  %s10 = sld [smem:[#allocation0]]
  $region69: #{resnet_block_forward.4} parent=0
    _
  %s12 = ssub.s32 1, %s10
  %s13 = scalar_select 0, %s12, %s10
  loop: start=0, step=1, limit=6
  $region2: #{resnet_block_forward.4} parent=0 // loop_pre_header
    _
  $region3: #{resnet_block_forward.4} parent=0 // loop_header
    %s15 = sphi 0, %s19
    %p16 = scmp.ge.s32.totalorder %s15, 6
    %s22 = sphi 0, %s34
    %s23 = sphi 0, %s30
    %s24 = sphi 0, %s22
    %s25 = sphi 0, %s23
    %s26 = sphi 0, %s24
    %s27 = sphi 0, %s25
    %s39 = sphi 0, %s41
    %s42 = sphi 0, %s39
    %s43 = sphi 0, %s42
    %s59 = sphi 0, %s43
    %s75 = sphi 0, %s77
    %s78 = sphi 0, %s75
    %s79 = sphi 0, %s78
    %s95 = sphi 0, %s79
    %s111 = sphi 0, %s113
    %s114 = sphi 0, %s111
    %s115 = sphi 0, %s114
    %s131 = sphi 0, %s115
    %s135 = sphi 0, %s135
    %s137 = sphi 0, %s135
    %s138 = sphi 0, %s137
    %s152 = sphi 0, %s138
    %s156 = sphi 0, %s156
    %s158 = sphi 0, %s156
    %s159 = sphi 0, %s158
    %s173 = sphi 0, %s159
    %s177 = sphi 0, %s177
    %s179 = sphi 0, %s177
    %s180 = sphi 0, %s179
    %s194 = sphi 0, %s180
    %s198 = sphi 0, %s198
    %s200 = sphi 0, %s198
    %s201 = sphi 0, %s200
    %s215 = sphi 0, %s201
    %s223 = sphi 0, %s225
    %s226 = sphi 0, %s223
    %s227 = sphi 0, %s226
    %s243 = sphi 0, %s227
    %s251 = sphi 0, %s253
    %s254 = sphi 0, %s251
    %s255 = sphi 0, %s254
    %s271 = sphi 0, %s255
  $region4: #{resnet_block_forward.4} parent=0 // loop_header_branch
    %18 = sbr.rel (%p16) target = $region8
  $region5: #{resnet_block_forward.4} parent=0 // loop_body
    %s20 = ssub.s32 %s15, 1
    %s21 = ssub.s32 %s15, 2
    %s28 = sadd.s32 1, %s23
    %p29 = scmp.ge.s32.totalorder %s28, 2
    %s30 = scalar_select %p29, 0, %s28
    %s31 = sadd.s32 1, %s22
    %s32 = scalar_select %p29, %s31, %s22
    %p33 = scmp.ge.s32.totalorder %s32, 2
    %s34 = scalar_select %p33, 0, %s32
    %s35 = ssub.s32 %s22, %s34
    %s36 = ssub.s32 %s23, %s30
    %s37 = sor.u32 %s35, %s36
    %p38 = scmp.eq.s32.totalorder %s37, 0
    %s40 = sadd.s32 %s39, 1
    %s41 = scalar_select %p38, %s39, %s40
    %p44 = pneg %p38
    %p45 = scmp.eq.s32.totalorder %s15, 3
    %p46 = por %p44, %p45
    %p47 = scmp.ne.s32.totalorder %s39, %s42
    %p48 = scmp.eq.s32.totalorder %s15, 0
    %p49 = por %p47, %p48
    %p50 = scmp.ne.s32.totalorder %s39, %s42
    %p51 = scmp.eq.s32.totalorder %s20, 3
    %p52 = por %p50, %p51
    %p53 = scmp.ne.s32.totalorder %s42, %s43
    %p54 = scmp.eq.s32.totalorder %s20, 0
    %p55 = por %p53, %p54
    %p56 = scmp.ne.s32.totalorder %s42, %s43
    %p57 = scmp.eq.s32.totalorder %s21, 3
    %p58 = por %p56, %p57
    %p60 = scmp.ne.s32.totalorder %s43, %s59
    %p61 = scmp.eq.s32.totalorder %s21, 0
    %p62 = por %p60, %p61
    %s63 = smul.u32 %s23, 8
    %s64 = ssub.s32 %s63, 1
    %p65 = scmp.gt.s32.totalorder %s64, 0
    %s66 = scalar_select %p65, %s64, 0
    %s67 = smul.u32 %s30, 8
    %s68 = ssub.s32 %s67, 1
    %p69 = scmp.gt.s32.totalorder %s68, 0
    %s70 = scalar_select %p69, %s68, 0
    %s71 = ssub.s32 %s22, %s34
    %s72 = ssub.s32 %s66, %s70
    %s73 = sor.u32 %s71, %s72
    %p74 = scmp.eq.s32.totalorder %s73, 0
    %s76 = sadd.s32 %s75, 1
    %s77 = scalar_select %p74, %s75, %s76
    %p80 = pneg %p74
    %p81 = scmp.eq.s32.totalorder %s15, 3
    %p82 = por %p80, %p81
    %p83 = scmp.ne.s32.totalorder %s75, %s78
    %p84 = scmp.eq.s32.totalorder %s15, 0
    %p85 = por %p83, %p84
    %p86 = scmp.ne.s32.totalorder %s75, %s78
    %p87 = scmp.eq.s32.totalorder %s20, 3
    %p88 = por %p86, %p87
    %p89 = scmp.ne.s32.totalorder %s78, %s79
    %p90 = scmp.eq.s32.totalorder %s20, 0
    %p91 = por %p89, %p90
    %p92 = scmp.ne.s32.totalorder %s78, %s79
    %p93 = scmp.eq.s32.totalorder %s21, 3
    %p94 = por %p92, %p93
    %p96 = scmp.ne.s32.totalorder %s79, %s95
    %p97 = scmp.eq.s32.totalorder %s21, 0
    %p98 = por %p96, %p97
    %s99 = sadd.s32 %s23, 1
    %s100 = smul.u32 %s99, 8
    %p101 = scmp.lt.s32.totalorder %s100, 15
    %s102 = scalar_select %p101, %s100, 15
    %s103 = sadd.s32 %s30, 1
    %s104 = smul.u32 %s103, 8
    %p105 = scmp.lt.s32.totalorder %s104, 15
    %s106 = scalar_select %p105, %s104, 15
    %s107 = ssub.s32 %s22, %s34
    %s108 = ssub.s32 %s102, %s106
    %s109 = sor.u32 %s107, %s108
    %p110 = scmp.eq.s32.totalorder %s109, 0
    %s112 = sadd.s32 %s111, 1
    %s113 = scalar_select %p110, %s111, %s112
    %p116 = pneg %p110
    %p117 = scmp.eq.s32.totalorder %s15, 3
    %p118 = por %p116, %p117
    %p119 = scmp.ne.s32.totalorder %s111, %s114
    %p120 = scmp.eq.s32.totalorder %s15, 0
    %p121 = por %p119, %p120
    %p122 = scmp.ne.s32.totalorder %s111, %s114
    %p123 = scmp.eq.s32.totalorder %s20, 3
    %p124 = por %p122, %p123
    %p125 = scmp.ne.s32.totalorder %s114, %s115
    %p126 = scmp.eq.s32.totalorder %s20, 0
    %p127 = por %p125, %p126
    %p128 = scmp.ne.s32.totalorder %s114, %s115
    %p129 = scmp.eq.s32.totalorder %s21, 3
    %p130 = por %p128, %p129
    %p132 = scmp.ne.s32.totalorder %s115, %s131
    %p133 = scmp.eq.s32.totalorder %s21, 0
    %p134 = por %p132, %p133
    %s136 = sadd.s32 %s135, 1
    %p139 = scmp.eq.s32.totalorder %s15, 3
    %p140 = scmp.ne.s32.totalorder %s135, %s137
    %p141 = scmp.eq.s32.totalorder %s15, 0
    %p142 = por %p140, %p141
    %p143 = scmp.ne.s32.totalorder %s135, %s137
    %p144 = scmp.eq.s32.totalorder %s20, 3
    %p145 = por %p143, %p144
    %p146 = scmp.ne.s32.totalorder %s137, %s138
    %p147 = scmp.eq.s32.totalorder %s20, 0
    %p148 = por %p146, %p147
    %p149 = scmp.ne.s32.totalorder %s137, %s138
    %p150 = scmp.eq.s32.totalorder %s21, 3
    %p151 = por %p149, %p150
    %p153 = scmp.ne.s32.totalorder %s138, %s152
    %p154 = scmp.eq.s32.totalorder %s21, 0
    %p155 = por %p153, %p154
    %s157 = sadd.s32 %s156, 1
    %p160 = scmp.eq.s32.totalorder %s15, 3
    %p161 = scmp.ne.s32.totalorder %s156, %s158
    %p162 = scmp.eq.s32.totalorder %s15, 0
    %p163 = por %p161, %p162
    %p164 = scmp.ne.s32.totalorder %s156, %s158
    %p165 = scmp.eq.s32.totalorder %s20, 3
    %p166 = por %p164, %p165
    %p167 = scmp.ne.s32.totalorder %s158, %s159
    %p168 = scmp.eq.s32.totalorder %s20, 0
    %p169 = por %p167, %p168
    %p170 = scmp.ne.s32.totalorder %s158, %s159
    %p171 = scmp.eq.s32.totalorder %s21, 3
    %p172 = por %p170, %p171
    %p174 = scmp.ne.s32.totalorder %s159, %s173
    %p175 = scmp.eq.s32.totalorder %s21, 0
    %p176 = por %p174, %p175
    %s178 = sadd.s32 %s177, 1
    %p181 = scmp.eq.s32.totalorder %s15, 3
    %p182 = scmp.ne.s32.totalorder %s177, %s179
    %p183 = scmp.eq.s32.totalorder %s15, 0
    %p184 = por %p182, %p183
    %p185 = scmp.ne.s32.totalorder %s177, %s179
    %p186 = scmp.eq.s32.totalorder %s20, 3
    %p187 = por %p185, %p186
    %p188 = scmp.ne.s32.totalorder %s179, %s180
    %p189 = scmp.eq.s32.totalorder %s20, 0
    %p190 = por %p188, %p189
    %p191 = scmp.ne.s32.totalorder %s179, %s180
    %p192 = scmp.eq.s32.totalorder %s21, 3
    %p193 = por %p191, %p192
    %p195 = scmp.ne.s32.totalorder %s180, %s194
    %p196 = scmp.eq.s32.totalorder %s21, 0
    %p197 = por %p195, %p196
    %s199 = sadd.s32 %s198, 1
    %p202 = scmp.eq.s32.totalorder %s15, 3
    %p203 = scmp.ne.s32.totalorder %s198, %s200
    %p204 = scmp.eq.s32.totalorder %s15, 0
    %p205 = por %p203, %p204
    %p206 = scmp.ne.s32.totalorder %s198, %s200
    %p207 = scmp.eq.s32.totalorder %s20, 3
    %p208 = por %p206, %p207
    %p209 = scmp.ne.s32.totalorder %s200, %s201
    %p210 = scmp.eq.s32.totalorder %s20, 0
    %p211 = por %p209, %p210
    %p212 = scmp.ne.s32.totalorder %s200, %s201
    %p213 = scmp.eq.s32.totalorder %s21, 3
    %p214 = por %p212, %p213
    %p216 = scmp.ne.s32.totalorder %s201, %s215
    %p217 = scmp.eq.s32.totalorder %s21, 0
    %p218 = por %p216, %p217
    %s219 = ssub.s32 %s22, %s34
    %s220 = ssub.s32 %s23, %s30
    %s221 = sor.u32 %s219, %s220
    %p222 = scmp.eq.s32.totalorder %s221, 0
    %s224 = sadd.s32 %s223, 1
    %s225 = scalar_select %p222, %s223, %s224
    %p228 = pneg %p222
    %p229 = scmp.eq.s32.totalorder %s15, 3
    %p230 = por %p228, %p229
    %p231 = scmp.ne.s32.totalorder %s223, %s226
    %p232 = scmp.eq.s32.totalorder %s15, 0
    %p233 = por %p231, %p232
    %p234 = scmp.ne.s32.totalorder %s223, %s226
    %p235 = scmp.eq.s32.totalorder %s20, 3
    %p236 = por %p234, %p235
    %p237 = scmp.ne.s32.totalorder %s226, %s227
    %p238 = scmp.eq.s32.totalorder %s20, 0
    %p239 = por %p237, %p238
    %p240 = scmp.ne.s32.totalorder %s226, %s227
    %p241 = scmp.eq.s32.totalorder %s21, 3
    %p242 = por %p240, %p241
    %p244 = scmp.ne.s32.totalorder %s227, %s243
    %p245 = scmp.eq.s32.totalorder %s21, 0
    %p246 = por %p244, %p245
    %s247 = ssub.s32 %s22, %s34
    %s248 = ssub.s32 %s23, %s30
    %s249 = sor.u32 %s247, %s248
    %p250 = scmp.eq.s32.totalorder %s249, 0
    %s252 = sadd.s32 %s251, 1
    %s253 = scalar_select %p250, %s251, %s252
    %p256 = pneg %p250
    %p257 = scmp.eq.s32.totalorder %s15, 3
    %p258 = por %p256, %p257
    %p259 = scmp.ne.s32.totalorder %s251, %s254
    %p260 = scmp.eq.s32.totalorder %s15, 0
    %p261 = por %p259, %p260
    %p262 = scmp.ne.s32.totalorder %s251, %s254
    %p263 = scmp.eq.s32.totalorder %s20, 3
    %p264 = por %p262, %p263
    %p265 = scmp.ne.s32.totalorder %s254, %s255
    %p266 = scmp.eq.s32.totalorder %s20, 0
    %p267 = por %p265, %p266
    %p268 = scmp.ne.s32.totalorder %s254, %s255
    %p269 = scmp.eq.s32.totalorder %s21, 3
    %p270 = por %p268, %p269
    %p272 = scmp.ne.s32.totalorder %s255, %s271
    %p273 = scmp.eq.s32.totalorder %s21, 0
    %p274 = por %p272, %p273
    %p275 = scmp.le.s32.totalorder 1, %s15
    %p276 = scmp.lt.s32.totalorder %s15, 5
    %p277 = pnand %p275, %p276
    %p278 = pneg %p277
    // Predicated region
    $region9: #{resnet_block_forward.4} parent=5 // pred_check
      _
    $region10: #{resnet_block_forward.4} parent=5 // pred_check_branch
      %280 = sbr.rel (%p277) target = $region12
    $region11: #{resnet_block_forward.4} parent=5 // pred_region
      %s281 = ssub.s32 %s15, 1
      // Predicated region
      $region13: #{resnet_block_forward.4} parent=11 // pred_check
        %p282 = pneg %p148
      $region14: #{resnet_block_forward.4} parent=11 // pred_check_branch
        %284 = sbr.rel (%p282) target = $region16
      $region15: #{resnet_block_forward.4} parent=11 // pred_region
        _
      $region16: #{resnet_block_forward.4} parent=11 // pred_fallthru
        _
      // Predicated region
      $region17: #{resnet_block_forward.4} parent=11 // pred_check
        %p285 = pneg %p169
      $region18: #{resnet_block_forward.4} parent=11 // pred_check_branch
        %287 = sbr.rel (%p285) target = $region20
      $region19: #{resnet_block_forward.4} parent=11 // pred_region
        _
      $region20: #{resnet_block_forward.4} parent=11 // pred_fallthru
        _
      // Predicated region
      $region21: #{resnet_block_forward.4} parent=11 // pred_check
        %p288 = pneg %p190
      $region22: #{resnet_block_forward.4} parent=11 // pred_check_branch
        %290 = sbr.rel (%p288) target = $region24
      $region23: #{resnet_block_forward.4} parent=11 // pred_region
        _
      $region24: #{resnet_block_forward.4} parent=11 // pred_fallthru
        _
      // Predicated region
      $region25: #{resnet_block_forward.4} parent=11 // pred_check
        %p291 = pneg %p211
      $region26: #{resnet_block_forward.4} parent=11 // pred_check_branch
        %293 = sbr.rel (%p291) target = $region28
      $region27: #{resnet_block_forward.4} parent=11 // pred_region
        _
      $region28: #{resnet_block_forward.4} parent=11 // pred_fallthru
        _
    $region12: #{resnet_block_forward.4} parent=5 // pred_fallthru
      _
    %p294 = scmp.lt.s32.totalorder %s15, 4
    // Predicated region
    $region29: #{resnet_block_forward.4} parent=5 // pred_check
      %p295 = pneg %p294
    $region30: #{resnet_block_forward.4} parent=5 // pred_check_branch
      %297 = sbr.rel (%p295) target = $region32
    $region31: #{resnet_block_forward.4} parent=5 // pred_region
      // Predicated region
      $region33: #{resnet_block_forward.4} parent=31 // pred_check
        %p298 = pneg %p49
      $region34: #{resnet_block_forward.4} parent=31 // pred_check_branch
        %300 = sbr.rel (%p298) target = $region36
      $region35: #{resnet_block_forward.4} parent=31 // pred_region
        %s301 = smul.u32 8, %s23
        %p302 = scmp.lt.s32.totalorder %s22, 1
        %s303 = scalar_select %p302, %s22, 1
        %p304 = scmp.lt.s32.totalorder %s301, 15
        %s305 = scalar_select %p304, %s301, 15
        %s306 = smul.addr %s305, 2
        %s307 = smul.addr %s303, 32
        %s308 = sadd.s32 %s306, %s307
        %s309 = smul.addr %s308, 8
        %s310 = scalar_lea.vmem %s0, %s309
        %s311 = smul.u32 8, %s23
      $region36: #{resnet_block_forward.4} parent=31 // pred_fallthru
        _
      // Predicated region
      $region37: #{resnet_block_forward.4} parent=31 // pred_check
        %p312 = pneg %p85
      $region38: #{resnet_block_forward.4} parent=31 // pred_check_branch
        %314 = sbr.rel (%p312) target = $region40
      $region39: #{resnet_block_forward.4} parent=31 // pred_region
        %s315 = smul.u32 %s23, 8
        %s316 = ssub.s32 %s315, 1
        %p317 = scmp.gt.s32.totalorder %s316, 0
        %s318 = scalar_select %p317, %s316, 0
        %p319 = scmp.lt.s32.totalorder %s22, 1
        %s320 = scalar_select %p319, %s22, 1
        %p321 = scmp.lt.s32.totalorder %s318, 15
        %s322 = scalar_select %p321, %s318, 15
        %s323 = smul.addr %s322, 2
        %s324 = smul.addr %s320, 32
        %s325 = sadd.s32 %s323, %s324
        %s326 = smul.addr %s325, 8
        %s327 = scalar_lea.vmem %s1, %s326
        %s328 = smul.u32 %s23, 8
        %s329 = ssub.s32 %s328, 1
        %p330 = scmp.gt.s32.totalorder %s329, 0
        %s331 = scalar_select %p330, %s329, 0
      $region40: #{resnet_block_forward.4} parent=31 // pred_fallthru
        _
      // Predicated region
      $region41: #{resnet_block_forward.4} parent=31 // pred_check
        %p332 = pneg %p121
      $region42: #{resnet_block_forward.4} parent=31 // pred_check_branch
        %334 = sbr.rel (%p332) target = $region44
      $region43: #{resnet_block_forward.4} parent=31 // pred_region
        %s335 = sadd.s32 %s23, 1
        %s336 = smul.u32 %s335, 8
        %p337 = scmp.lt.s32.totalorder %s336, 15
        %s338 = scalar_select %p337, %s336, 15
        %p339 = scmp.lt.s32.totalorder %s22, 1
        %s340 = scalar_select %p339, %s22, 1
        %p341 = scmp.lt.s32.totalorder %s338, 15
        %s342 = scalar_select %p341, %s338, 15
        %s343 = smul.addr %s342, 2
        %s344 = smul.addr %s340, 32
        %s345 = sadd.s32 %s343, %s344
        %s346 = smul.addr %s345, 8
        %s347 = scalar_lea.vmem %s2, %s346
        %s348 = sadd.s32 %s23, 1
        %s349 = smul.u32 %s348, 8
        %p350 = scmp.lt.s32.totalorder %s349, 15
        %s351 = scalar_select %p350, %s349, 15
      $region44: #{resnet_block_forward.4} parent=31 // pred_fallthru
        _
    $region32: #{resnet_block_forward.4} parent=5 // pred_fallthru
      _
    %p352 = scmp.le.s32.totalorder 1, %s15
    %p353 = scmp.lt.s32.totalorder %s15, 5
    %p354 = pnand %p352, %p353
    %p355 = pneg %p354
    // Predicated region
    $region45: #{resnet_block_forward.4} parent=5 // pred_check
      _
    $region46: #{resnet_block_forward.4} parent=5 // pred_check_branch
      %357 = sbr.rel (%p354) target = $region48
    $region47: #{resnet_block_forward.4} parent=5 // pred_region
      %s358 = ssub.s32 %s15, 1
      %s359 = smul.u32 8, %s25
      %p360 = scmp.lt.s32.totalorder %s24, 1
      %s361 = scalar_select %p360, %s24, 1
      %p362 = scmp.lt.s32.totalorder %s359, 15
      %s363 = scalar_select %p362, %s359, 15
      %s364 = smul.addr %s363, 2
      %s365 = smul.addr %s361, 32
      %s366 = sadd.s32 %s364, %s365
      %s367 = smul.addr %s366, 8
      %s368 = scalar_lea.vmem %s0, %s367
      %p369 = pneg %p55
      %p370 = pneg %p52
      %s371 = smul.u32 %s25, 8
      %s372 = ssub.s32 %s371, 1
      %p373 = scmp.gt.s32.totalorder %s372, 0
      %s374 = scalar_select %p373, %s372, 0
      %p375 = scmp.lt.s32.totalorder %s24, 1
      %s376 = scalar_select %p375, %s24, 1
      %p377 = scmp.lt.s32.totalorder %s374, 15
      %s378 = scalar_select %p377, %s374, 15
      %s379 = smul.addr %s378, 2
      %s380 = smul.addr %s376, 32
      %s381 = sadd.s32 %s379, %s380
      %s382 = smul.addr %s381, 8
      %s383 = scalar_lea.vmem %s1, %s382
      %p384 = pneg %p91
      %p385 = pneg %p88
      %s386 = sadd.s32 %s25, 1
      %s387 = smul.u32 %s386, 8
      %p388 = scmp.lt.s32.totalorder %s387, 15
      %s389 = scalar_select %p388, %s387, 15
      %p390 = scmp.lt.s32.totalorder %s24, 1
      %s391 = scalar_select %p390, %s24, 1
      %p392 = scmp.lt.s32.totalorder %s389, 15
      %s393 = scalar_select %p392, %s389, 15
      %s394 = smul.addr %s393, 2
      %s395 = smul.addr %s391, 32
      %s396 = sadd.s32 %s394, %s395
      %s397 = smul.addr %s396, 8
      %s398 = scalar_lea.vmem %s2, %s397
      %p399 = pneg %p127
      %p400 = pneg %p124
      %p401 = pneg %p148
      %p402 = pneg %p145
      %p403 = pneg %p169
      %p404 = pneg %p166
      %p405 = pneg %p190
      %p406 = pneg %p187
      %p407 = pneg %p211
      %p408 = pneg %p208
      %p409 = pneg %p239
      %p410 = pneg %p236
      %s411 = smul.u32 8, %s25
      %p412 = scmp.lt.s32.totalorder %s24, 1
      %s413 = scalar_select %p412, %s24, 1
      %p414 = scmp.lt.s32.totalorder %s411, 15
      %s415 = scalar_select %p414, %s411, 15
      %s416 = smul.addr %s415, 2
      %s417 = smul.addr %s413, 32
      %s418 = sadd.s32 %s416, %s417
      %s419 = smul.addr %s418, 8
      %s420 = scalar_lea.vmem %s7, %s419
      %p421 = pneg %p267
      %p422 = pneg %p264
      %p423 = scmp.lt.s32.totalorder %s24, 1
      %s424 = scalar_select %p423, %s24, 1
      %p425 = scmp.lt.s32.totalorder %s25, 1
      %s426 = scalar_select %p425, %s25, 1
      %s427 = smul.addr %s426, 2
      %s428 = smul.addr %s424, 4
      %s429 = sadd.s32 %s427, %s428
      %s430 = smul.addr %s429, 8
      %s431 = scalar_lea.vmem %s8, %s430
      %s432 = smul.u32 8, %s25
      %p433 = scmp.lt.s32.totalorder %s24, 1
      %s434 = scalar_select %p433, %s24, 1
      %p435 = scmp.lt.s32.totalorder %s432, 15
      %s436 = scalar_select %p435, %s432, 15
      %s437 = smul.addr %s436, 2
      %s438 = smul.addr %s434, 32
      %s439 = sadd.s32 %s437, %s438
      %s440 = smul.addr %s439, 8
      %s441 = scalar_lea.vmem %s0, %s440
      %s442 = smul.u32 8, %s25
      %s443 = smul.u32 %s25, 8
      %s444 = ssub.s32 %s443, 1
      %p445 = scmp.gt.s32.totalorder %s444, 0
      %s446 = scalar_select %p445, %s444, 0
      %p447 = scmp.lt.s32.totalorder %s24, 1
      %s448 = scalar_select %p447, %s24, 1
      %p449 = scmp.lt.s32.totalorder %s446, 15
      %s450 = scalar_select %p449, %s446, 15
      %s451 = smul.addr %s450, 2
      %s452 = smul.addr %s448, 32
      %s453 = sadd.s32 %s451, %s452
      %s454 = smul.addr %s453, 8
      %s455 = scalar_lea.vmem %s1, %s454
      %s456 = smul.u32 %s25, 8
      %s457 = ssub.s32 %s456, 1
      %p458 = scmp.gt.s32.totalorder %s457, 0
      %s459 = scalar_select %p458, %s457, 0
      %s460 = sadd.s32 %s25, 1
      %s461 = smul.u32 %s460, 8
      %p462 = scmp.lt.s32.totalorder %s461, 15
      %s463 = scalar_select %p462, %s461, 15
      %p464 = scmp.lt.s32.totalorder %s24, 1
      %s465 = scalar_select %p464, %s24, 1
      %p466 = scmp.lt.s32.totalorder %s463, 15
      %s467 = scalar_select %p466, %s463, 15
      %s468 = smul.addr %s467, 2
      %s469 = smul.addr %s465, 32
      %s470 = sadd.s32 %s468, %s469
      %s471 = smul.addr %s470, 8
      %s472 = scalar_lea.vmem %s2, %s471
      %s473 = sadd.s32 %s25, 1
      %s474 = smul.u32 %s473, 8
      %p475 = scmp.lt.s32.totalorder %s474, 15
      %s476 = scalar_select %p475, %s474, 15
      %s477 = smul.u32 8, %s25
      %p478 = scmp.lt.s32.totalorder %s24, 1
      %s479 = scalar_select %p478, %s24, 1
      %p480 = scmp.lt.s32.totalorder %s477, 15
      %s481 = scalar_select %p480, %s477, 15
      %s482 = smul.addr %s481, 2
      %s483 = smul.addr %s479, 32
      %s484 = sadd.s32 %s482, %s483
      %s485 = smul.addr %s484, 8
      %s486 = scalar_lea.vmem %s7, %s485
      %s487 = smul.u32 8, %s25
      %p488 = scmp.lt.s32.totalorder %s24, 1
      %s489 = scalar_select %p488, %s24, 1
      %p490 = scmp.lt.s32.totalorder %s25, 1
      %s491 = scalar_select %p490, %s25, 1
      %s492 = smul.addr %s491, 2
      %s493 = smul.addr %s489, 4
      %s494 = sadd.s32 %s492, %s493
      %s495 = smul.addr %s494, 8
      %s496 = scalar_lea.vmem %s8, %s495
      %v498 = vld [vmem:[%s3] sm:$0x1]
      %v499 = vld [vmem:[%s4] sm:$0x1]
      %vm500 = vcmask 1040384
      %vm501 = vsmask.f32 256
      %vm502 = vmand %vm500, %vm501
      %v503 = vld [vmem:[#allocation2] sm:$0x1]
      %v504 = vsel %vm502, 0, %v503
      %505 = vst [vmem:[#allocation2] sm:$0x1] %v504
      %v506 = vld [vmem:[#allocation2 + $0xc] sm:$0x1]
      %v507 = vsel %vm502, 0, %v506
      %508 = vst [vmem:[#allocation2 + $0xc] sm:$0x1] %v507
      %v509 = vld [vmem:[#allocation2 + $0x18] sm:$0x1]
      %v510 = vsel %vm502, 0, %v509
      %511 = vst [vmem:[#allocation2 + $0x18] sm:$0x1] %v510
      %v512 = vld [vmem:[#allocation2 + $0x24] sm:$0x1]
      %v513 = vsel %vm502, 0, %v512
      %514 = vst [vmem:[#allocation2 + $0x24] sm:$0x1] %v513
      %v515 = vld [vmem:[#allocation2 + $0x30] sm:$0x1]
      %v516 = vsel %vm502, 0, %v515
      %517 = vst [vmem:[#allocation2 + $0x30] sm:$0x1] %v516
      %v518 = vld [vmem:[#allocation2 + $0x3c] sm:$0x1]
      %v519 = vsel %vm502, 0, %v518
      %520 = vst [vmem:[#allocation2 + $0x3c] sm:$0x1] %v519
      %v521 = vld [vmem:[#allocation2 + $0x48] sm:$0x1]
      %v522 = vsel %vm502, 0, %v521
      %523 = vst [vmem:[#allocation2 + $0x48] sm:$0x1] %v522
      %v524 = vld [vmem:[#allocation2 + $0x54] sm:$0x1]
      %v525 = vsel %vm502, 0, %v524
      %526 = vst [vmem:[#allocation2 + $0x54] sm:$0x1] %v525
      %v527 = vld [vmem:[#allocation2 + $0x60] sm:$0x1]
      %v528 = vsel %vm502, 0, %v527
      %529 = vst [vmem:[#allocation2 + $0x60] sm:$0x1] %v528
      %v530 = vld [vmem:[#allocation2 + $0x6c] sm:$0x1]
      %v531 = vsel %vm502, 0, %v530
      %532 = vst [vmem:[#allocation2 + $0x6c] sm:$0x1] %v531
      %vm533 = vsmask.f32 7938
      %vm534 = vmand %vm500, %vm533
      %v535 = vld [vmem:[#allocation2 + $0x8] sm:$0x1]
      %v536 = vsel %vm534, 0, %v535
      %537 = vst [vmem:[#allocation2 + $0x8] sm:$0x1] %v536
      %v538 = vld [vmem:[#allocation2 + $0x14] sm:$0x1]
      %v539 = vsel %vm534, 0, %v538
      %540 = vst [vmem:[#allocation2 + $0x14] sm:$0x1] %v539
      %v541 = vld [vmem:[#allocation2 + $0x20] sm:$0x1]
      %v542 = vsel %vm534, 0, %v541
      %543 = vst [vmem:[#allocation2 + $0x20] sm:$0x1] %v542
      %v544 = vld [vmem:[#allocation2 + $0x2c] sm:$0x1]
      %v545 = vsel %vm534, 0, %v544
      %546 = vst [vmem:[#allocation2 + $0x2c] sm:$0x1] %v545
      %v547 = vld [vmem:[#allocation2 + $0x38] sm:$0x1]
      %v548 = vsel %vm534, 0, %v547
      %549 = vst [vmem:[#allocation2 + $0x38] sm:$0x1] %v548
      %v550 = vld [vmem:[#allocation2 + $0x44] sm:$0x1]
      %v551 = vsel %vm534, 0, %v550
      %552 = vst [vmem:[#allocation2 + $0x44] sm:$0x1] %v551
      %v553 = vld [vmem:[#allocation2 + $0x50] sm:$0x1]
      %v554 = vsel %vm534, 0, %v553
      %555 = vst [vmem:[#allocation2 + $0x50] sm:$0x1] %v554
      %v556 = vld [vmem:[#allocation2 + $0x5c] sm:$0x1]
      %v557 = vsel %vm534, 0, %v556
      %558 = vst [vmem:[#allocation2 + $0x5c] sm:$0x1] %v557
      %v559 = vld [vmem:[#allocation2 + $0x68] sm:$0x1]
      %v560 = vsel %vm534, 0, %v559
      %561 = vst [vmem:[#allocation2 + $0x68] sm:$0x1] %v560
      %v562 = vld [vmem:[#allocation2 + $0x74] sm:$0x1]
      %v563 = vsel %vm534, 0, %v562
      %564 = vst [vmem:[#allocation2 + $0x74] sm:$0x1] %v563
      %v565 = vld [vmem:[%s441] sm:$0xff]
      %v566 = vld [vmem:[%s441 + $0x8] sm:$0xff]
      %v567 = vld [vmem:[%s441 + $0x10] sm:$0xff]
      %v568 = vld [vmem:[%s441 + $0x18] sm:$0xff]
      %v569 = vld [vmem:[%s441 + $0x20] sm:$0xff]
      %v570 = vld [vmem:[%s441 + $0x28] sm:$0xff]
      %v571 = vld [vmem:[%s441 + $0x30] sm:$0xff]
      %v572 = vld [vmem:[%s441 + $0x38] sm:$0xff]
      %v573 = vld [vmem:[%s441 + $0x40] sm:$0xff]
      %v574 = vld [vmem:[%s441 + $0x48] sm:$0xff]
      %v575 = vld [vmem:[%s441 + $0x50] sm:$0xff]
      %v576 = vld [vmem:[%s441 + $0x58] sm:$0xff]
      %v577 = vld [vmem:[%s441 + $0x60] sm:$0xff]
      %v578 = vld [vmem:[%s441 + $0x68] sm:$0xff]
      %v579 = vld [vmem:[%s441 + $0x70] sm:$0xff]
      %v580 = vld [vmem:[%s441 + $0x78] sm:$0xff]
      %v582 = vperm.slane %v498, 0
      %v584 = vmul.f32 %v565, %v582
      %v585 = vmul.f32 %v566, %v582
      %v586 = vmul.f32 %v567, %v582
      %v587 = vmul.f32 %v568, %v582
      %v588 = vmul.f32 %v569, %v582
      %v589 = vmul.f32 %v570, %v582
      %v590 = vmul.f32 %v571, %v582
      %v591 = vmul.f32 %v572, %v582
      %v592 = vmul.f32 %v573, %v582
      %v593 = vmul.f32 %v574, %v582
      %v594 = vmul.f32 %v575, %v582
      %v595 = vmul.f32 %v576, %v582
      %v596 = vmul.f32 %v577, %v582
      %v597 = vmul.f32 %v578, %v582
      %v598 = vmul.f32 %v579, %v582
      %v599 = vmul.f32 %v580, %v582
      %v601 = vperm.slane %v499, 0
      %v603 = vadd.f32 %v584, %v601
      %v604 = vadd.f32 %v585, %v601
      %v605 = vadd.f32 %v586, %v601
      %v606 = vadd.f32 %v587, %v601
      %v607 = vadd.f32 %v588, %v601
      %v608 = vadd.f32 %v589, %v601
      %v609 = vadd.f32 %v590, %v601
      %v610 = vadd.f32 %v591, %v601
      %v611 = vadd.f32 %v592, %v601
      %v612 = vadd.f32 %v593, %v601
      %v613 = vadd.f32 %v594, %v601
      %v614 = vadd.f32 %v595, %v601
      %v615 = vadd.f32 %v596, %v601
      %v616 = vadd.f32 %v597, %v601
      %v617 = vadd.f32 %v598, %v601
      %v618 = vadd.f32 %v599, %v601
      %v619 = vxor.u32 %v603, 2147483648
      %v620 = vxor.u32 %v604, 2147483648
      %v621 = vxor.u32 %v605, 2147483648
      %v622 = vxor.u32 %v606, 2147483648
      %v623 = vxor.u32 %v607, 2147483648
      %v624 = vxor.u32 %v608, 2147483648
      %v625 = vxor.u32 %v609, 2147483648
      %v626 = vxor.u32 %v610, 2147483648
      %v627 = vxor.u32 %v611, 2147483648
      %v628 = vxor.u32 %v612, 2147483648
      %v629 = vxor.u32 %v613, 2147483648
      %v630 = vxor.u32 %v614, 2147483648
      %v631 = vxor.u32 %v615, 2147483648
      %v632 = vxor.u32 %v616, 2147483648
      %v633 = vxor.u32 %v617, 2147483648
      %v634 = vxor.u32 %v618, 2147483648
      %v635 = vmul.f32 %v619, 1.442695
      %v636 = vpow.pop %v635
      %v637 = vmul.f32 %v620, 1.442695
      %v638 = vpow.pop %v637
      %v639 = vmul.f32 %v621, 1.442695
      %v640 = vpow.pop %v639
      %v641 = vmul.f32 %v622, 1.442695
      %v642 = vpow.pop %v641
      %v643 = vmul.f32 %v623, 1.442695
      %v644 = vpow.pop %v643
      %v645 = vmul.f32 %v624, 1.442695
      %v646 = vpow.pop %v645
      %v647 = vmul.f32 %v625, 1.442695
      %v648 = vpow.pop %v647
      %v649 = vmul.f32 %v626, 1.442695
      %v650 = vpow.pop %v649
      %v651 = vmul.f32 %v627, 1.442695
      %v652 = vpow.pop %v651
      %v653 = vmul.f32 %v628, 1.442695
      %v654 = vpow.pop %v653
      %v655 = vmul.f32 %v629, 1.442695
      %v656 = vpow.pop %v655
      %v657 = vmul.f32 %v630, 1.442695
      %v658 = vpow.pop %v657
      %v659 = vmul.f32 %v631, 1.442695
      %v660 = vpow.pop %v659
      %v661 = vmul.f32 %v632, 1.442695
      %v662 = vpow.pop %v661
      %v663 = vmul.f32 %v633, 1.442695
      %v664 = vpow.pop %v663
      %v665 = vmul.f32 %v634, 1.442695
      %v666 = vpow.pop %v665
      %v667 = vadd.f32 %v636, 1.0
      %v668 = vadd.f32 %v638, 1.0
      %v669 = vadd.f32 %v640, 1.0
      %v670 = vadd.f32 %v642, 1.0
      %v671 = vadd.f32 %v644, 1.0
      %v672 = vadd.f32 %v646, 1.0
      %v673 = vadd.f32 %v648, 1.0
      %v674 = vadd.f32 %v650, 1.0
      %v675 = vadd.f32 %v652, 1.0
      %v676 = vadd.f32 %v654, 1.0
      %v677 = vadd.f32 %v656, 1.0
      %v678 = vadd.f32 %v658, 1.0
      %v679 = vadd.f32 %v660, 1.0
      %v680 = vadd.f32 %v662, 1.0
      %v681 = vadd.f32 %v664, 1.0
      %v682 = vadd.f32 %v666, 1.0
      %v683 = vrcp.pop %v667
      %v684 = vmul.f32 %v667, %v683
      %v685 = vsub.f32 1.0, %v684
      %v686 = vmul.f32 %v683, %v685
      %v687 = vadd.f32 %v683, %v686
      %vm688 = vweird.f32 %v667
      %vm689 = vweird.f32 %v683
      %vm690 = vmor %vm688, %vm689
      %v691 = vsel %vm690, %v683, %v687
      %v692 = vand.u32 2147483647, %v667
      %vm693 = vcmp.eq.f32.partialorder %v692, 8.507059e+37
      %v694 = vand.u32 %v667, 2147483648
      %v695 = vor.u32 1.1754944e-38, %v694
      %v696 = vsel %vm693, %v695, %v691
      %v697 = vmul.f32 1.0, %v696
      %v698 = vrcp.pop %v668
      %v699 = vmul.f32 %v668, %v698
      %v700 = vsub.f32 1.0, %v699
      %v701 = vmul.f32 %v698, %v700
      %v702 = vadd.f32 %v698, %v701
      %vm703 = vweird.f32 %v668
      %vm704 = vweird.f32 %v698
      %vm705 = vmor %vm703, %vm704
      %v706 = vsel %vm705, %v698, %v702
      %v707 = vand.u32 2147483647, %v668
      %vm708 = vcmp.eq.f32.partialorder %v707, 8.507059e+37
      %v709 = vand.u32 %v668, 2147483648
      %v710 = vor.u32 1.1754944e-38, %v709
      %v711 = vsel %vm708, %v710, %v706
      %v712 = vmul.f32 1.0, %v711
      %v713 = vrcp.pop %v669
      %v714 = vmul.f32 %v669, %v713
      %v715 = vsub.f32 1.0, %v714
      %v716 = vmul.f32 %v713, %v715
      %v717 = vadd.f32 %v713, %v716
      %vm718 = vweird.f32 %v669
      %vm719 = vweird.f32 %v713
      %vm720 = vmor %vm718, %vm719
      %v721 = vsel %vm720, %v713, %v717
      %v722 = vand.u32 2147483647, %v669
      %vm723 = vcmp.eq.f32.partialorder %v722, 8.507059e+37
      %v724 = vand.u32 %v669, 2147483648
      %v725 = vor.u32 1.1754944e-38, %v724
      %v726 = vsel %vm723, %v725, %v721
      %v727 = vmul.f32 1.0, %v726
      %v728 = vrcp.pop %v670
      %v729 = vmul.f32 %v670, %v728
      %v730 = vsub.f32 1.0, %v729
      %v731 = vmul.f32 %v728, %v730
      %v732 = vadd.f32 %v728, %v731
      %vm733 = vweird.f32 %v670
      %vm734 = vweird.f32 %v728
      %vm735 = vmor %vm733, %vm734
      %v736 = vsel %vm735, %v728, %v732
      %v737 = vand.u32 2147483647, %v670
      %vm738 = vcmp.eq.f32.partialorder %v737, 8.507059e+37
      %v739 = vand.u32 %v670, 2147483648
      %v740 = vor.u32 1.1754944e-38, %v739
      %v741 = vsel %vm738, %v740, %v736
      %v742 = vmul.f32 1.0, %v741
      %v743 = vrcp.pop %v671
      %v744 = vmul.f32 %v671, %v743
      %v745 = vsub.f32 1.0, %v744
      %v746 = vmul.f32 %v743, %v745
      %v747 = vadd.f32 %v743, %v746
      %vm748 = vweird.f32 %v671
      %vm749 = vweird.f32 %v743
      %vm750 = vmor %vm748, %vm749
      %v751 = vsel %vm750, %v743, %v747
      %v752 = vand.u32 2147483647, %v671
      %vm753 = vcmp.eq.f32.partialorder %v752, 8.507059e+37
      %v754 = vand.u32 %v671, 2147483648
      %v755 = vor.u32 1.1754944e-38, %v754
      %v756 = vsel %vm753, %v755, %v751
      %v757 = vmul.f32 1.0, %v756
      %v758 = vrcp.pop %v672
      %v759 = vmul.f32 %v672, %v758
      %v760 = vsub.f32 1.0, %v759
      %v761 = vmul.f32 %v758, %v760
      %v762 = vadd.f32 %v758, %v761
      %vm763 = vweird.f32 %v672
      %vm764 = vweird.f32 %v758
      %vm765 = vmor %vm763, %vm764
      %v766 = vsel %vm765, %v758, %v762
      %v767 = vand.u32 2147483647, %v672
      %vm768 = vcmp.eq.f32.partialorder %v767, 8.507059e+37
      %v769 = vand.u32 %v672, 2147483648
      %v770 = vor.u32 1.1754944e-38, %v769
      %v771 = vsel %vm768, %v770, %v766
      %v772 = vmul.f32 1.0, %v771
      %v773 = vrcp.pop %v673
      %v774 = vmul.f32 %v673, %v773
      %v775 = vsub.f32 1.0, %v774
      %v776 = vmul.f32 %v773, %v775
      %v777 = vadd.f32 %v773, %v776
      %vm778 = vweird.f32 %v673
      %vm779 = vweird.f32 %v773
      %vm780 = vmor %vm778, %vm779
      %v781 = vsel %vm780, %v773, %v777
      %v782 = vand.u32 2147483647, %v673
      %vm783 = vcmp.eq.f32.partialorder %v782, 8.507059e+37
      %v784 = vand.u32 %v673, 2147483648
      %v785 = vor.u32 1.1754944e-38, %v784
      %v786 = vsel %vm783, %v785, %v781
      %v787 = vmul.f32 1.0, %v786
      %v788 = vrcp.pop %v674
      %v789 = vmul.f32 %v674, %v788
      %v790 = vsub.f32 1.0, %v789
      %v791 = vmul.f32 %v788, %v790
      %v792 = vadd.f32 %v788, %v791
      %vm793 = vweird.f32 %v674
      %vm794 = vweird.f32 %v788
      %vm795 = vmor %vm793, %vm794
      %v796 = vsel %vm795, %v788, %v792
      %v797 = vand.u32 2147483647, %v674
      %vm798 = vcmp.eq.f32.partialorder %v797, 8.507059e+37
      %v799 = vand.u32 %v674, 2147483648
      %v800 = vor.u32 1.1754944e-38, %v799
      %v801 = vsel %vm798, %v800, %v796
      %v802 = vmul.f32 1.0, %v801
      %v803 = vrcp.pop %v675
      %v804 = vmul.f32 %v675, %v803
      %v805 = vsub.f32 1.0, %v804
      %v806 = vmul.f32 %v803, %v805
      %v807 = vadd.f32 %v803, %v806
      %vm808 = vweird.f32 %v675
      %vm809 = vweird.f32 %v803
      %vm810 = vmor %vm808, %vm809
      %v811 = vsel %vm810, %v803, %v807
      %v812 = vand.u32 2147483647, %v675
      %vm813 = vcmp.eq.f32.partialorder %v812, 8.507059e+37
      %v814 = vand.u32 %v675, 2147483648
      %v815 = vor.u32 1.1754944e-38, %v814
      %v816 = vsel %vm813, %v815, %v811
      %v817 = vmul.f32 1.0, %v816
      %v818 = vrcp.pop %v676
      %v819 = vmul.f32 %v676, %v818
      %v820 = vsub.f32 1.0, %v819
      %v821 = vmul.f32 %v818, %v820
      %v822 = vadd.f32 %v818, %v821
      %vm823 = vweird.f32 %v676
      %vm824 = vweird.f32 %v818
      %vm825 = vmor %vm823, %vm824
      %v826 = vsel %vm825, %v818, %v822
      %v827 = vand.u32 2147483647, %v676
      %vm828 = vcmp.eq.f32.partialorder %v827, 8.507059e+37
      %v829 = vand.u32 %v676, 2147483648
      %v830 = vor.u32 1.1754944e-38, %v829
      %v831 = vsel %vm828, %v830, %v826
      %v832 = vmul.f32 1.0, %v831
      %v833 = vrcp.pop %v677
      %v834 = vmul.f32 %v677, %v833
      %v835 = vsub.f32 1.0, %v834
      %v836 = vmul.f32 %v833, %v835
      %v837 = vadd.f32 %v833, %v836
      %vm838 = vweird.f32 %v677
      %vm839 = vweird.f32 %v833
      %vm840 = vmor %vm838, %vm839
      %v841 = vsel %vm840, %v833, %v837
      %v842 = vand.u32 2147483647, %v677
      %vm843 = vcmp.eq.f32.partialorder %v842, 8.507059e+37
      %v844 = vand.u32 %v677, 2147483648
      %v845 = vor.u32 1.1754944e-38, %v844
      %v846 = vsel %vm843, %v845, %v841
      %v847 = vmul.f32 1.0, %v846
      %v848 = vrcp.pop %v678
      %v849 = vmul.f32 %v678, %v848
      %v850 = vsub.f32 1.0, %v849
      %v851 = vmul.f32 %v848, %v850
      %v852 = vadd.f32 %v848, %v851
      %vm853 = vweird.f32 %v678
      %vm854 = vweird.f32 %v848
      %vm855 = vmor %vm853, %vm854
      %v856 = vsel %vm855, %v848, %v852
      %v857 = vand.u32 2147483647, %v678
      %vm858 = vcmp.eq.f32.partialorder %v857, 8.507059e+37
      %v859 = vand.u32 %v678, 2147483648
      %v860 = vor.u32 1.1754944e-38, %v859
      %v861 = vsel %vm858, %v860, %v856
      %v862 = vmul.f32 1.0, %v861
      %v863 = vrcp.pop %v679
      %v864 = vmul.f32 %v679, %v863
      %v865 = vsub.f32 1.0, %v864
      %v866 = vmul.f32 %v863, %v865
      %v867 = vadd.f32 %v863, %v866
      %vm868 = vweird.f32 %v679
      %vm869 = vweird.f32 %v863
      %vm870 = vmor %vm868, %vm869
      %v871 = vsel %vm870, %v863, %v867
      %v872 = vand.u32 2147483647, %v679
      %vm873 = vcmp.eq.f32.partialorder %v872, 8.507059e+37
      %v874 = vand.u32 %v679, 2147483648
      %v875 = vor.u32 1.1754944e-38, %v874
      %v876 = vsel %vm873, %v875, %v871
      %v877 = vmul.f32 1.0, %v876
      %v878 = vrcp.pop %v680
      %v879 = vmul.f32 %v680, %v878
      %v880 = vsub.f32 1.0, %v879
      %v881 = vmul.f32 %v878, %v880
      %v882 = vadd.f32 %v878, %v881
      %vm883 = vweird.f32 %v680
      %vm884 = vweird.f32 %v878
      %vm885 = vmor %vm883, %vm884
      %v886 = vsel %vm885, %v878, %v882
      %v887 = vand.u32 2147483647, %v680
      %vm888 = vcmp.eq.f32.partialorder %v887, 8.507059e+37
      %v889 = vand.u32 %v680, 2147483648
      %v890 = vor.u32 1.1754944e-38, %v889
      %v891 = vsel %vm888, %v890, %v886
      %v892 = vmul.f32 1.0, %v891
      %v893 = vrcp.pop %v681
      %v894 = vmul.f32 %v681, %v893
      %v895 = vsub.f32 1.0, %v894
      %v896 = vmul.f32 %v893, %v895
      %v897 = vadd.f32 %v893, %v896
      %vm898 = vweird.f32 %v681
      %vm899 = vweird.f32 %v893
      %vm900 = vmor %vm898, %vm899
      %v901 = vsel %vm900, %v893, %v897
      %v902 = vand.u32 2147483647, %v681
      %vm903 = vcmp.eq.f32.partialorder %v902, 8.507059e+37
      %v904 = vand.u32 %v681, 2147483648
      %v905 = vor.u32 1.1754944e-38, %v904
      %v906 = vsel %vm903, %v905, %v901
      %v907 = vmul.f32 1.0, %v906
      %v908 = vrcp.pop %v682
      %v909 = vmul.f32 %v682, %v908
      %v910 = vsub.f32 1.0, %v909
      %v911 = vmul.f32 %v908, %v910
      %v912 = vadd.f32 %v908, %v911
      %vm913 = vweird.f32 %v682
      %vm914 = vweird.f32 %v908
      %vm915 = vmor %vm913, %vm914
      %v916 = vsel %vm915, %v908, %v912
      %v917 = vand.u32 2147483647, %v682
      %vm918 = vcmp.eq.f32.partialorder %v917, 8.507059e+37
      %v919 = vand.u32 %v682, 2147483648
      %v920 = vor.u32 1.1754944e-38, %v919
      %v921 = vsel %vm918, %v920, %v916
      %v922 = vmul.f32 1.0, %v921
      %v923 = vmul.f32 %v603, %v697
      %v924 = vmul.f32 %v604, %v712
      %v925 = vmul.f32 %v605, %v727
      %v926 = vmul.f32 %v606, %v742
      %v927 = vmul.f32 %v607, %v757
      %v928 = vmul.f32 %v608, %v772
      %v929 = vmul.f32 %v609, %v787
      %v930 = vmul.f32 %v610, %v802
      %v931 = vmul.f32 %v611, %v817
      %v932 = vmul.f32 %v612, %v832
      %v933 = vmul.f32 %v613, %v847
      %v934 = vmul.f32 %v614, %v862
      %v935 = vmul.f32 %v615, %v877
      %v936 = vmul.f32 %v616, %v892
      %v937 = vmul.f32 %v617, %v907
      %v938 = vmul.f32 %v618, %v922
      %v939 = vpack.c.bf16 %v923, %v923
      %v940 = vpack.c.bf16 %v924, %v924
      %v941 = vpack.c.bf16 %v925, %v925
      %v942 = vpack.c.bf16 %v926, %v926
      %v943 = vpack.c.bf16 %v927, %v927
      %v944 = vpack.c.bf16 %v928, %v928
      %v945 = vpack.c.bf16 %v929, %v929
      %v946 = vpack.c.bf16 %v930, %v930
      %v947 = vpack.c.bf16 %v931, %v931
      %v948 = vpack.c.bf16 %v932, %v932
      %v949 = vpack.c.bf16 %v933, %v933
      %v950 = vpack.c.bf16 %v934, %v934
      %v951 = vpack.c.bf16 %v935, %v935
      %v952 = vpack.c.bf16 %v936, %v936
      %v953 = vpack.c.bf16 %v937, %v937
      %v954 = vpack.c.bf16 %v938, %v938
      %vm955 = vsmask.f32 4368
      %vm956 = vmor %vm501, %vm955
      %v958 = vshrl.u32 %v939, 16
      %v960 = vrot.slane %v958, 7
      %v961 = vshll.u32 %v939, 16
      %v963 = vor.u32 %v960, %v961
      %v964 = vrot.slane %v960, 4
      %v966 = vshrl.u32 %v940, 16
      %v968 = vrot.slane %v966, 7
      %v969 = vshll.u32 %v940, 16
      %v971 = vor.u32 %v968, %v969
      %v972 = vsel %vm956, %v964, %v971
      %v973 = vrot.slane %v968, 4
      %v975 = vshrl.u32 %v941, 16
      %v977 = vrot.slane %v975, 7
      %v978 = vshll.u32 %v941, 16
      %v980 = vor.u32 %v977, %v978
      %v981 = vrot.slane %v977, 4
      %v983 = vshrl.u32 %v942, 16
      %v985 = vrot.slane %v983, 7
      %v986 = vshll.u32 %v942, 16
      %v988 = vor.u32 %v985, %v986
      %v989 = vsel %vm956, %v981, %v988
      %v990 = vrot.slane %v985, 4
      %v992 = vshrl.u32 %v943, 16
      %v994 = vrot.slane %v992, 7
      %v995 = vshll.u32 %v943, 16
      %v997 = vor.u32 %v994, %v995
      %v998 = vrot.slane %v994, 4
      %v1000 = vshrl.u32 %v944, 16
      %v1002 = vrot.slane %v1000, 7
      %v1003 = vshll.u32 %v944, 16
      %v1005 = vor.u32 %v1002, %v1003
      %v1006 = vsel %vm956, %v998, %v1005
      %v1007 = vrot.slane %v1002, 4
      %v1009 = vshrl.u32 %v945, 16
      %v1011 = vrot.slane %v1009, 7
      %v1012 = vshll.u32 %v945, 16
      %v1014 = vor.u32 %v1011, %v1012
      %v1015 = vrot.slane %v1011, 4
      %v1017 = vshrl.u32 %v946, 16
      %v1019 = vrot.slane %v1017, 7
      %v1020 = vshll.u32 %v946, 16
      %v1022 = vor.u32 %v1019, %v1020
      %v1023 = vsel %vm956, %v1015, %v1022
      %v1024 = vrot.slane %v1019, 4
      %v1026 = vshrl.u32 %v947, 16
      %v1028 = vrot.slane %v1026, 7
      %v1029 = vshll.u32 %v947, 16
      %v1031 = vor.u32 %v1028, %v1029
      %v1032 = vrot.slane %v1028, 4
      %v1034 = vshrl.u32 %v948, 16
      %v1036 = vrot.slane %v1034, 7
      %v1037 = vshll.u32 %v948, 16
      %v1039 = vor.u32 %v1036, %v1037
      %v1040 = vsel %vm956, %v1032, %v1039
      %v1041 = vrot.slane %v1036, 4
      %v1043 = vshrl.u32 %v949, 16
      %v1045 = vrot.slane %v1043, 7
      %v1046 = vshll.u32 %v949, 16
      %v1048 = vor.u32 %v1045, %v1046
      %v1049 = vrot.slane %v1045, 4
      %v1051 = vshrl.u32 %v950, 16
      %v1053 = vrot.slane %v1051, 7
      %v1054 = vshll.u32 %v950, 16
      %v1056 = vor.u32 %v1053, %v1054
      %v1057 = vsel %vm956, %v1049, %v1056
      %v1058 = vrot.slane %v1053, 4
      %v1060 = vshrl.u32 %v951, 16
      %v1062 = vrot.slane %v1060, 7
      %v1063 = vshll.u32 %v951, 16
      %v1065 = vor.u32 %v1062, %v1063
      %v1066 = vrot.slane %v1062, 4
      %v1068 = vshrl.u32 %v952, 16
      %v1070 = vrot.slane %v1068, 7
      %v1071 = vshll.u32 %v952, 16
      %v1073 = vor.u32 %v1070, %v1071
      %v1074 = vsel %vm956, %v1066, %v1073
      %v1075 = vrot.slane %v1070, 4
      %v1077 = vshrl.u32 %v953, 16
      %v1079 = vrot.slane %v1077, 7
      %v1080 = vshll.u32 %v953, 16
      %v1082 = vor.u32 %v1079, %v1080
      %v1083 = vrot.slane %v1079, 4
      %v1085 = vshrl.u32 %v954, 16
      %v1087 = vrot.slane %v1085, 7
      %v1088 = vshll.u32 %v954, 16
      %v1090 = vor.u32 %v1087, %v1088
      %v1091 = vsel %vm956, %v1083, %v1090
      %v1092 = vrot.slane %v1087, 4
      %s1117 = scalar_lea.vmem [#allocation2], 12
      %vm1118 = vcmask 1043456
      %vm1119 = vmand %vm1118, %vm533
      %v1120 = vld [vmem:[%s1117] sm:$0xf]
      %v1121 = vsel %vm1119, %v963, %v1120
      %1122 = vst [vmem:[%s1117] sm:$0xf] %v1121
      %1123 = vst [vmem:[%s1117 + $0x4] sm:$0xf] %v972
      %v1124 = vld [vmem:[%s1117 + $0x8] sm:$0x1]
      %v1125 = vsel %vm502, %v973, %v1124
      %1126 = vst [vmem:[%s1117 + $0x8] sm:$0x1] %v1125
      %v1127 = vld [vmem:[%s1117 + $0xc] sm:$0xf]
      %v1128 = vsel %vm1119, %v980, %v1127
      %1129 = vst [vmem:[%s1117 + $0xc] sm:$0xf] %v1128
      %1130 = vst [vmem:[%s1117 + $0x10] sm:$0xf] %v989
      %v1131 = vld [vmem:[%s1117 + $0x14] sm:$0x1]
      %v1132 = vsel %vm502, %v990, %v1131
      %1133 = vst [vmem:[%s1117 + $0x14] sm:$0x1] %v1132
      %v1134 = vld [vmem:[%s1117 + $0x18] sm:$0xf]
      %v1135 = vsel %vm1119, %v997, %v1134
      %1136 = vst [vmem:[%s1117 + $0x18] sm:$0xf] %v1135
      %1137 = vst [vmem:[%s1117 + $0x1c] sm:$0xf] %v1006
      %v1138 = vld [vmem:[%s1117 + $0x20] sm:$0x1]
      %v1139 = vsel %vm502, %v1007, %v1138
      %1140 = vst [vmem:[%s1117 + $0x20] sm:$0x1] %v1139
      %v1141 = vld [vmem:[%s1117 + $0x24] sm:$0xf]
      %v1142 = vsel %vm1119, %v1014, %v1141
      %1143 = vst [vmem:[%s1117 + $0x24] sm:$0xf] %v1142
      %1144 = vst [vmem:[%s1117 + $0x28] sm:$0xf] %v1023
      %v1145 = vld [vmem:[%s1117 + $0x2c] sm:$0x1]
      %v1146 = vsel %vm502, %v1024, %v1145
      %1147 = vst [vmem:[%s1117 + $0x2c] sm:$0x1] %v1146
      %v1148 = vld [vmem:[%s1117 + $0x30] sm:$0xf]
      %v1149 = vsel %vm1119, %v1031, %v1148
      %1150 = vst [vmem:[%s1117 + $0x30] sm:$0xf] %v1149
      %1151 = vst [vmem:[%s1117 + $0x34] sm:$0xf] %v1040
      %v1152 = vld [vmem:[%s1117 + $0x38] sm:$0x1]
      %v1153 = vsel %vm502, %v1041, %v1152
      %1154 = vst [vmem:[%s1117 + $0x38] sm:$0x1] %v1153
      %v1155 = vld [vmem:[%s1117 + $0x3c] sm:$0xf]
      %v1156 = vsel %vm1119, %v1048, %v1155
      %1157 = vst [vmem:[%s1117 + $0x3c] sm:$0xf] %v1156
      %1158 = vst [vmem:[%s1117 + $0x40] sm:$0xf] %v1057
      %v1159 = vld [vmem:[%s1117 + $0x44] sm:$0x1]
      %v1160 = vsel %vm502, %v1058, %v1159
      %1161 = vst [vmem:[%s1117 + $0x44] sm:$0x1] %v1160
      %v1162 = vld [vmem:[%s1117 + $0x48] sm:$0xf]
      %v1163 = vsel %vm1119, %v1065, %v1162
      %1164 = vst [vmem:[%s1117 + $0x48] sm:$0xf] %v1163
      %1165 = vst [vmem:[%s1117 + $0x4c] sm:$0xf] %v1074
      %v1166 = vld [vmem:[%s1117 + $0x50] sm:$0x1]
      %v1167 = vsel %vm502, %v1075, %v1166
      %1168 = vst [vmem:[%s1117 + $0x50] sm:$0x1] %v1167
      %v1169 = vld [vmem:[%s1117 + $0x54] sm:$0xf]
      %v1170 = vsel %vm1119, %v1082, %v1169
      %1171 = vst [vmem:[%s1117 + $0x54] sm:$0xf] %v1170
      %1172 = vst [vmem:[%s1117 + $0x58] sm:$0xf] %v1091
      %v1173 = vld [vmem:[%s1117 + $0x5c] sm:$0x1]
      %v1174 = vsel %vm502, %v1092, %v1173
      %1175 = vst [vmem:[%s1117 + $0x5c] sm:$0x1] %v1174
      %v1176 = vld [vmem:[%s455] sm:$0xff]
      %v1177 = vld [vmem:[%s455 + $0x8] sm:$0xff]
      %v1178 = vmul.f32 %v1176, %v582
      %v1179 = vmul.f32 %v1177, %v582
      %v1180 = vadd.f32 %v1178, %v601
      %v1181 = vadd.f32 %v1179, %v601
      %v1182 = vxor.u32 %v1180, 2147483648
      %v1183 = vxor.u32 %v1181, 2147483648
      %v1184 = vmul.f32 %v1182, 1.442695
      %v1185 = vpow.pop %v1184
      %v1186 = vmul.f32 %v1183, 1.442695
      %v1187 = vpow.pop %v1186
      %v1188 = vadd.f32 %v1185, 1.0
      %v1189 = vadd.f32 %v1187, 1.0
      %v1190 = vrcp.pop %v1188
      %v1191 = vmul.f32 %v1188, %v1190
      %v1192 = vsub.f32 1.0, %v1191
      %v1193 = vmul.f32 %v1190, %v1192
      %v1194 = vadd.f32 %v1190, %v1193
      %vm1195 = vweird.f32 %v1188
      %vm1196 = vweird.f32 %v1190
      %vm1197 = vmor %vm1195, %vm1196
      %v1198 = vsel %vm1197, %v1190, %v1194
      %v1199 = vand.u32 2147483647, %v1188
      %vm1200 = vcmp.eq.f32.partialorder %v1199, 8.507059e+37
      %v1201 = vand.u32 %v1188, 2147483648
      %v1202 = vor.u32 1.1754944e-38, %v1201
      %v1203 = vsel %vm1200, %v1202, %v1198
      %v1204 = vmul.f32 1.0, %v1203
      %v1205 = vrcp.pop %v1189
      %v1206 = vmul.f32 %v1189, %v1205
      %v1207 = vsub.f32 1.0, %v1206
      %v1208 = vmul.f32 %v1205, %v1207
      %v1209 = vadd.f32 %v1205, %v1208
      %vm1210 = vweird.f32 %v1189
      %vm1211 = vweird.f32 %v1205
      %vm1212 = vmor %vm1210, %vm1211
      %v1213 = vsel %vm1212, %v1205, %v1209
      %v1214 = vand.u32 2147483647, %v1189
      %vm1215 = vcmp.eq.f32.partialorder %v1214, 8.507059e+37
      %v1216 = vand.u32 %v1189, 2147483648
      %v1217 = vor.u32 1.1754944e-38, %v1216
      %v1218 = vsel %vm1215, %v1217, %v1213
      %v1219 = vmul.f32 1.0, %v1218
      %v1220 = vmul.f32 %v1180, %v1204
      %v1221 = vmul.f32 %v1181, %v1219
      %v1222 = vpack.c.bf16 %v1220, %v1220
      %v1223 = vpack.c.bf16 %v1221, %v1221
      %v1224 = vld [vmem:[%s472] sm:$0xff]
      %v1225 = vld [vmem:[%s472 + $0x8] sm:$0xff]
      %v1226 = vmul.f32 %v1224, %v582
      %v1227 = vmul.f32 %v1225, %v582
      %v1228 = vadd.f32 %v1226, %v601
      %v1229 = vadd.f32 %v1227, %v601
      %v1230 = vxor.u32 %v1228, 2147483648
      %v1231 = vxor.u32 %v1229, 2147483648
      %v1232 = vmul.f32 %v1230, 1.442695
      %v1233 = vpow.pop %v1232
      %v1234 = vmul.f32 %v1231, 1.442695
      %v1235 = vpow.pop %v1234
      %v1236 = vadd.f32 %v1233, 1.0
      %v1237 = vadd.f32 %v1235, 1.0
      %v1238 = vrcp.pop %v1236
      %v1239 = vmul.f32 %v1236, %v1238
      %v1240 = vsub.f32 1.0, %v1239
      %v1241 = vmul.f32 %v1238, %v1240
      %v1242 = vadd.f32 %v1238, %v1241
      %vm1243 = vweird.f32 %v1236
      %vm1244 = vweird.f32 %v1238
      %vm1245 = vmor %vm1243, %vm1244
      %v1246 = vsel %vm1245, %v1238, %v1242
      %v1247 = vand.u32 2147483647, %v1236
      %vm1248 = vcmp.eq.f32.partialorder %v1247, 8.507059e+37
      %v1249 = vand.u32 %v1236, 2147483648
      %v1250 = vor.u32 1.1754944e-38, %v1249
      %v1251 = vsel %vm1248, %v1250, %v1246
      %v1252 = vmul.f32 1.0, %v1251
      %v1253 = vrcp.pop %v1237
      %v1254 = vmul.f32 %v1237, %v1253
      %v1255 = vsub.f32 1.0, %v1254
      %v1256 = vmul.f32 %v1253, %v1255
      %v1257 = vadd.f32 %v1253, %v1256
      %vm1258 = vweird.f32 %v1237
      %vm1259 = vweird.f32 %v1253
      %vm1260 = vmor %vm1258, %vm1259
      %v1261 = vsel %vm1260, %v1253, %v1257
      %v1262 = vand.u32 2147483647, %v1237
      %vm1263 = vcmp.eq.f32.partialorder %v1262, 8.507059e+37
      %v1264 = vand.u32 %v1237, 2147483648
      %v1265 = vor.u32 1.1754944e-38, %v1264
      %v1266 = vsel %vm1263, %v1265, %v1261
      %v1267 = vmul.f32 1.0, %v1266
      %v1268 = vmul.f32 %v1228, %v1252
      %v1269 = vmul.f32 %v1229, %v1267
      %v1270 = vpack.c.bf16 %v1268, %v1268
      %v1271 = vpack.c.bf16 %v1269, %v1269
      %p1272 = scmp.gt.s32.totalorder %s25, 0
      %s1273 = scalar_select %p1272, 1, 0
      %v1274 = vstv %s1273
      %vm1275 = vcmp.eq.s32.totalorder %v1274, 1
      %v1276 = vsel %vm1275, %v1222, 0
      %v1277 = vsel %vm1275, %v1223, 0
      %v1279 = vshrl.u32 %v1276, 16
      %v1281 = vrot.slane %v1279, 7
      %v1282 = vshll.u32 %v1276, 16
      %v1284 = vor.u32 %v1281, %v1282
      %v1285 = vrot.slane %v1281, 4
      %v1287 = vshrl.u32 %v1277, 16
      %v1289 = vrot.slane %v1287, 7
      %v1290 = vshll.u32 %v1277, 16
      %v1292 = vor.u32 %v1289, %v1290
      %v1293 = vsel %vm956, %v1285, %v1292
      %v1294 = vrot.slane %v1289, 4
      %v1298 = vld [vmem:[#allocation2] sm:$0xf]
      %v1299 = vsel %vm1119, %v1284, %v1298
      %1300 = vst [vmem:[#allocation2] sm:$0xf] %v1299
      %1301 = vst [vmem:[#allocation2 + $0x4] sm:$0xf] %v1293
      %v1302 = vld [vmem:[#allocation2 + $0x8] sm:$0x1]
      %v1303 = vsel %vm502, %v1294, %v1302
      %1304 = vst [vmem:[#allocation2 + $0x8] sm:$0x1] %v1303
      %p1305 = scmp.lt.s32.totalorder %s25, 1
      %s1306 = scalar_select %p1305, 1, 0
      %v1307 = vstv %s1306
      %vm1308 = vcmp.eq.s32.totalorder %v1307, 1
      %v1309 = vsel %vm1308, %v1270, 0
      %v1310 = vsel %vm1308, %v1271, 0
      %v1312 = vshrl.u32 %v1309, 16
      %v1314 = vrot.slane %v1312, 7
      %v1315 = vshll.u32 %v1309, 16
      %v1317 = vor.u32 %v1314, %v1315
      %v1318 = vrot.slane %v1314, 4
      %v1320 = vshrl.u32 %v1310, 16
      %v1322 = vrot.slane %v1320, 7
      %v1323 = vshll.u32 %v1310, 16
      %v1325 = vor.u32 %v1322, %v1323
      %v1326 = vsel %vm956, %v1318, %v1325
      %v1327 = vrot.slane %v1322, 4
      %s1331 = scalar_lea.vmem [#allocation2], 108
      %v1332 = vld [vmem:[%s1331] sm:$0xf]
      %v1333 = vsel %vm1119, %v1317, %v1332
      %1334 = vst [vmem:[%s1331] sm:$0xf] %v1333
      %1335 = vst [vmem:[%s1331 + $0x4] sm:$0xf] %v1326
      %v1336 = vld [vmem:[%s1331 + $0x8] sm:$0x1]
      %v1337 = vsel %vm502, %v1327, %v1336
      %1338 = vst [vmem:[%s1331 + $0x8] sm:$0x1] %v1337
      %v1339 = vld [vmem:[#allocation2] sm:$0xf]
      %v1340 = vld [vmem:[#allocation2 + $0x4] sm:$0xf]
      %v1341 = vld [vmem:[#allocation2 + $0xc] sm:$0xf]
      %v1342 = vld [vmem:[#allocation2 + $0x10] sm:$0xf]
      %v1343 = vld [vmem:[#allocation2 + $0x18] sm:$0xf]
      %v1344 = vld [vmem:[#allocation2 + $0x1c] sm:$0xf]
      %v1345 = vld [vmem:[#allocation2 + $0x24] sm:$0xf]
      %v1346 = vld [vmem:[#allocation2 + $0x28] sm:$0xf]
      %v1347 = vld [vmem:[#allocation2 + $0x30] sm:$0xf]
      %v1348 = vld [vmem:[#allocation2 + $0x34] sm:$0xf]
      %v1349 = vld [vmem:[#allocation2 + $0x3c] sm:$0xf]
      %v1350 = vld [vmem:[#allocation2 + $0x40] sm:$0xf]
      %v1351 = vld [vmem:[#allocation2 + $0x48] sm:$0xf]
      %v1352 = vld [vmem:[#allocation2 + $0x4c] sm:$0xf]
      %v1353 = vld [vmem:[#allocation2 + $0x54] sm:$0xf]
      %v1354 = vld [vmem:[#allocation2 + $0x58] sm:$0xf]
      %v1355 = vld [vmem:[#allocation2 + $0x60] sm:$0xf]
      %v1356 = vld [vmem:[#allocation2 + $0x64] sm:$0xf]
      %v1357 = vld [vmem:[#allocation2 + $0x6c] sm:$0xf]
      %v1358 = vld [vmem:[#allocation2 + $0x70] sm:$0xf]
      %1359 = vst [vmem:[#allocation3] sm:$0xf] %v1339
      %1360 = vst [vmem:[#allocation3 + $0xc] sm:$0xf] %v1340
      %1361 = vst [vmem:[#allocation3 + $0x18] sm:$0xf] %v1341
      %1362 = vst [vmem:[#allocation3 + $0x24] sm:$0xf] %v1342
      %1363 = vst [vmem:[#allocation3 + $0x30] sm:$0xf] %v1343
      %1364 = vst [vmem:[#allocation3 + $0x3c] sm:$0xf] %v1344
      %1365 = vst [vmem:[#allocation3 + $0x48] sm:$0xf] %v1345
      %1366 = vst [vmem:[#allocation3 + $0x54] sm:$0xf] %v1346
      %1367 = vst [vmem:[#allocation3 + $0x60] sm:$0xf] %v1347
      %1368 = vst [vmem:[#allocation3 + $0x6c] sm:$0xf] %v1348
      %1369 = vst [vmem:[#allocation3 + $0x78] sm:$0xf] %v1349
      %1370 = vst [vmem:[#allocation3 + $0x84] sm:$0xf] %v1350
      %1371 = vst [vmem:[#allocation3 + $0x90] sm:$0xf] %v1351
      %1372 = vst [vmem:[#allocation3 + $0x9c] sm:$0xf] %v1352
      %1373 = vst [vmem:[#allocation3 + $0xa8] sm:$0xf] %v1353
      %1374 = vst [vmem:[#allocation3 + $0xb4] sm:$0xf] %v1354
      %1375 = vst [vmem:[#allocation3 + $0xc0] sm:$0xf] %v1355
      %1376 = vst [vmem:[#allocation3 + $0xcc] sm:$0xf] %v1356
      %1377 = vst [vmem:[#allocation3 + $0xd8] sm:$0xf] %v1357
      %1378 = vst [vmem:[#allocation3 + $0xe4] sm:$0xf] %v1358
      %v1379 = vld [vmem:[#allocation2] sm:$0xf]
      %v1380 = vld [vmem:[#allocation2 + $0x4] sm:$0xf]
      %v1381 = vld [vmem:[#allocation2 + $0x8] sm:$0x1]
      %v1382 = vld [vmem:[#allocation2 + $0xc] sm:$0xf]
      %v1383 = vld [vmem:[#allocation2 + $0x10] sm:$0xf]
      %v1384 = vld [vmem:[#allocation2 + $0x14] sm:$0x1]
      %v1385 = vld [vmem:[#allocation2 + $0x18] sm:$0xf]
      %v1386 = vld [vmem:[#allocation2 + $0x1c] sm:$0xf]
      %v1387 = vld [vmem:[#allocation2 + $0x20] sm:$0x1]
      %v1388 = vld [vmem:[#allocation2 + $0x24] sm:$0xf]
      %v1389 = vld [vmem:[#allocation2 + $0x28] sm:$0xf]
      %v1390 = vld [vmem:[#allocation2 + $0x2c] sm:$0x1]
      %v1391 = vld [vmem:[#allocation2 + $0x30] sm:$0xf]
      %v1392 = vld [vmem:[#allocation2 + $0x34] sm:$0xf]
      %v1393 = vld [vmem:[#allocation2 + $0x38] sm:$0x1]
      %v1394 = vld [vmem:[#allocation2 + $0x3c] sm:$0xf]
      %v1395 = vld [vmem:[#allocation2 + $0x40] sm:$0xf]
      %v1396 = vld [vmem:[#allocation2 + $0x44] sm:$0x1]
      %v1397 = vld [vmem:[#allocation2 + $0x48] sm:$0xf]
      %v1398 = vld [vmem:[#allocation2 + $0x4c] sm:$0xf]
      %v1399 = vld [vmem:[#allocation2 + $0x50] sm:$0x1]
      %v1400 = vld [vmem:[#allocation2 + $0x54] sm:$0xf]
      %v1401 = vld [vmem:[#allocation2 + $0x58] sm:$0xf]
      %v1402 = vld [vmem:[#allocation2 + $0x5c] sm:$0x1]
      %v1403 = vld [vmem:[#allocation2 + $0x60] sm:$0xf]
      %v1404 = vld [vmem:[#allocation2 + $0x64] sm:$0xf]
      %v1405 = vld [vmem:[#allocation2 + $0x68] sm:$0x1]
      %v1406 = vld [vmem:[#allocation2 + $0x6c] sm:$0xf]
      %v1407 = vld [vmem:[#allocation2 + $0x70] sm:$0xf]
      %v1408 = vld [vmem:[#allocation2 + $0x74] sm:$0x1]
      %vm1409 = vsmask.f32 3328
      %vm1410 = vsmask.f32 7440
      %vm1411 = vmor %vm1409, %vm1410
      %v1413 = vshrl.u32 %v1379, 16
      %v1415 = vrot.slane %v1413, 4
      %v1416 = vshll.u32 %v1379, 16
      %v1418 = vrot.slane %v1416, 5
      %v1419 = vor.u32 %v1415, %v1418
      %v1420 = vrot.slane %v1419, 4
      %v1422 = vshll.u32 %v1380, 16
      %v1424 = vrot.slane %v1422, 5
      %v1425 = vsel %vm1411, %v1420, %v1424
      %v1426 = vshrl.u32 %v1380, 16
      %v1428 = vrot.slane %v1426, 4
      %v1429 = vor.u32 %v1428, %v1424
      %v1430 = vrot.slane %v1429, 4
      %v1432 = vshll.u32 %v1381, 16
      %v1434 = vrot.slane %v1432, 5
      %v1435 = vsel %vm1411, %v1430, %v1434
      %v1437 = vshrl.u32 %v1382, 16
      %v1439 = vrot.slane %v1437, 4
      %v1440 = vshll.u32 %v1382, 16
      %v1442 = vrot.slane %v1440, 5
      %v1443 = vor.u32 %v1439, %v1442
      %v1444 = vrot.slane %v1443, 4
      %v1446 = vshll.u32 %v1383, 16
      %v1448 = vrot.slane %v1446, 5
      %v1449 = vsel %vm1411, %v1444, %v1448
      %v1450 = vshrl.u32 %v1383, 16
      %v1452 = vrot.slane %v1450, 4
      %v1453 = vor.u32 %v1452, %v1448
      %v1454 = vrot.slane %v1453, 4
      %v1456 = vshll.u32 %v1384, 16
      %v1458 = vrot.slane %v1456, 5
      %v1459 = vsel %vm1411, %v1454, %v1458
      %v1461 = vshrl.u32 %v1385, 16
      %v1463 = vrot.slane %v1461, 4
      %v1464 = vshll.u32 %v1385, 16
      %v1466 = vrot.slane %v1464, 5
      %v1467 = vor.u32 %v1463, %v1466
      %v1468 = vrot.slane %v1467, 4
      %v1470 = vshll.u32 %v1386, 16
      %v1472 = vrot.slane %v1470, 5
      %v1473 = vsel %vm1411, %v1468, %v1472
      %v1474 = vshrl.u32 %v1386, 16
      %v1476 = vrot.slane %v1474, 4
      %v1477 = vor.u32 %v1476, %v1472
      %v1478 = vrot.slane %v1477, 4
      %v1480 = vshll.u32 %v1387, 16
      %v1482 = vrot.slane %v1480, 5
      %v1483 = vsel %vm1411, %v1478, %v1482
      %v1485 = vshrl.u32 %v1388, 16
      %v1487 = vrot.slane %v1485, 4
      %v1488 = vshll.u32 %v1388, 16
      %v1490 = vrot.slane %v1488, 5
      %v1491 = vor.u32 %v1487, %v1490
      %v1492 = vrot.slane %v1491, 4
      %v1494 = vshll.u32 %v1389, 16
      %v1496 = vrot.slane %v1494, 5
      %v1497 = vsel %vm1411, %v1492, %v1496
      %v1498 = vshrl.u32 %v1389, 16
      %v1500 = vrot.slane %v1498, 4
      %v1501 = vor.u32 %v1500, %v1496
      %v1502 = vrot.slane %v1501, 4
      %v1504 = vshll.u32 %v1390, 16
      %v1506 = vrot.slane %v1504, 5
      %v1507 = vsel %vm1411, %v1502, %v1506
      %v1509 = vshrl.u32 %v1391, 16
      %v1511 = vrot.slane %v1509, 4
      %v1512 = vshll.u32 %v1391, 16
      %v1514 = vrot.slane %v1512, 5
      %v1515 = vor.u32 %v1511, %v1514
      %v1516 = vrot.slane %v1515, 4
      %v1518 = vshll.u32 %v1392, 16
      %v1520 = vrot.slane %v1518, 5
      %v1521 = vsel %vm1411, %v1516, %v1520
      %v1522 = vshrl.u32 %v1392, 16
      %v1524 = vrot.slane %v1522, 4
      %v1525 = vor.u32 %v1524, %v1520
      %v1526 = vrot.slane %v1525, 4
      %v1528 = vshll.u32 %v1393, 16
      %v1530 = vrot.slane %v1528, 5
      %v1531 = vsel %vm1411, %v1526, %v1530
      %v1533 = vshrl.u32 %v1394, 16
      %v1535 = vrot.slane %v1533, 4
      %v1536 = vshll.u32 %v1394, 16
      %v1538 = vrot.slane %v1536, 5
      %v1539 = vor.u32 %v1535, %v1538
      %v1540 = vrot.slane %v1539, 4
      %v1542 = vshll.u32 %v1395, 16
      %v1544 = vrot.slane %v1542, 5
      %v1545 = vsel %vm1411, %v1540, %v1544
      %v1546 = vshrl.u32 %v1395, 16
      %v1548 = vrot.slane %v1546, 4
      %v1549 = vor.u32 %v1548, %v1544
      %v1550 = vrot.slane %v1549, 4
      %v1552 = vshll.u32 %v1396, 16
      %v1554 = vrot.slane %v1552, 5
      %v1555 = vsel %vm1411, %v1550, %v1554
      %v1557 = vshrl.u32 %v1397, 16
      %v1559 = vrot.slane %v1557, 4
      %v1560 = vshll.u32 %v1397, 16
      %v1562 = vrot.slane %v1560, 5
      %v1563 = vor.u32 %v1559, %v1562
      %v1564 = vrot.slane %v1563, 4
      %v1566 = vshll.u32 %v1398, 16
      %v1568 = vrot.slane %v1566, 5
      %v1569 = vsel %vm1411, %v1564, %v1568
      %v1570 = vshrl.u32 %v1398, 16
      %v1572 = vrot.slane %v1570, 4
      %v1573 = vor.u32 %v1572, %v1568
      %v1574 = vrot.slane %v1573, 4
      %v1576 = vshll.u32 %v1399, 16
      %v1578 = vrot.slane %v1576, 5
      %v1579 = vsel %vm1411, %v1574, %v1578
      %v1581 = vshrl.u32 %v1400, 16
      %v1583 = vrot.slane %v1581, 4
      %v1584 = vshll.u32 %v1400, 16
      %v1586 = vrot.slane %v1584, 5
      %v1587 = vor.u32 %v1583, %v1586
      %v1588 = vrot.slane %v1587, 4
      %v1590 = vshll.u32 %v1401, 16
      %v1592 = vrot.slane %v1590, 5
      %v1593 = vsel %vm1411, %v1588, %v1592
      %v1594 = vshrl.u32 %v1401, 16
      %v1596 = vrot.slane %v1594, 4
      %v1597 = vor.u32 %v1596, %v1592
      %v1598 = vrot.slane %v1597, 4
      %v1600 = vshll.u32 %v1402, 16
      %v1602 = vrot.slane %v1600, 5
      %v1603 = vsel %vm1411, %v1598, %v1602
      %v1605 = vshrl.u32 %v1403, 16
      %v1607 = vrot.slane %v1605, 4
      %v1608 = vshll.u32 %v1403, 16
      %v1610 = vrot.slane %v1608, 5
      %v1611 = vor.u32 %v1607, %v1610
      %v1612 = vrot.slane %v1611, 4
      %v1614 = vshll.u32 %v1404, 16
      %v1616 = vrot.slane %v1614, 5
      %v1617 = vsel %vm1411, %v1612, %v1616
      %v1618 = vshrl.u32 %v1404, 16
      %v1620 = vrot.slane %v1618, 4
      %v1621 = vor.u32 %v1620, %v1616
      %v1622 = vrot.slane %v1621, 4
      %v1624 = vshll.u32 %v1405, 16
      %v1626 = vrot.slane %v1624, 5
      %v1627 = vsel %vm1411, %v1622, %v1626
      %v1629 = vshrl.u32 %v1406, 16
      %v1631 = vrot.slane %v1629, 4
      %v1632 = vshll.u32 %v1406, 16
      %v1634 = vrot.slane %v1632, 5
      %v1635 = vor.u32 %v1631, %v1634
      %v1636 = vrot.slane %v1635, 4
      %v1638 = vshll.u32 %v1407, 16
      %v1640 = vrot.slane %v1638, 5
      %v1641 = vsel %vm1411, %v1636, %v1640
      %v1642 = vshrl.u32 %v1407, 16
      %v1644 = vrot.slane %v1642, 4
      %v1645 = vor.u32 %v1644, %v1640
      %v1646 = vrot.slane %v1645, 4
      %v1648 = vshll.u32 %v1408, 16
      %v1650 = vrot.slane %v1648, 5
      %v1651 = vsel %vm1411, %v1646, %v1650
      %1672 = vst [vmem:[#allocation3 + $0x4] sm:$0xf] %v1425
      %1673 = vst [vmem:[#allocation3 + $0x10] sm:$0xf] %v1435
      %1674 = vst [vmem:[#allocation3 + $0x1c] sm:$0xf] %v1449
      %1675 = vst [vmem:[#allocation3 + $0x28] sm:$0xf] %v1459
      %1676 = vst [vmem:[#allocation3 + $0x34] sm:$0xf] %v1473
      %1677 = vst [vmem:[#allocation3 + $0x40] sm:$0xf] %v1483
      %1678 = vst [vmem:[#allocation3 + $0x4c] sm:$0xf] %v1497
      %1679 = vst [vmem:[#allocation3 + $0x58] sm:$0xf] %v1507
      %1680 = vst [vmem:[#allocation3 + $0x64] sm:$0xf] %v1521
      %1681 = vst [vmem:[#allocation3 + $0x70] sm:$0xf] %v1531
      %1682 = vst [vmem:[#allocation3 + $0x7c] sm:$0xf] %v1545
      %1683 = vst [vmem:[#allocation3 + $0x88] sm:$0xf] %v1555
      %1684 = vst [vmem:[#allocation3 + $0x94] sm:$0xf] %v1569
      %1685 = vst [vmem:[#allocation3 + $0xa0] sm:$0xf] %v1579
      %1686 = vst [vmem:[#allocation3 + $0xac] sm:$0xf] %v1593
      %1687 = vst [vmem:[#allocation3 + $0xb8] sm:$0xf] %v1603
      %1688 = vst [vmem:[#allocation3 + $0xc4] sm:$0xf] %v1617
      %1689 = vst [vmem:[#allocation3 + $0xd0] sm:$0xf] %v1627
      %1690 = vst [vmem:[#allocation3 + $0xdc] sm:$0xf] %v1641
      %1691 = vst [vmem:[#allocation3 + $0xe8] sm:$0xf] %v1651
      %v1692 = vld [vmem:[#allocation2] sm:$0xe]
      %v1693 = vld [vmem:[#allocation2 + $0x4] sm:$0xf]
      %v1694 = vld [vmem:[#allocation2 + $0x8] sm:$0x1]
      %v1695 = vld [vmem:[#allocation2 + $0xc] sm:$0xe]
      %v1696 = vld [vmem:[#allocation2 + $0x10] sm:$0xf]
      %v1697 = vld [vmem:[#allocation2 + $0x14] sm:$0x1]
      %v1698 = vld [vmem:[#allocation2 + $0x18] sm:$0xe]
      %v1699 = vld [vmem:[#allocation2 + $0x1c] sm:$0xf]
      %v1700 = vld [vmem:[#allocation2 + $0x20] sm:$0x1]
      %v1701 = vld [vmem:[#allocation2 + $0x24] sm:$0xe]
      %v1702 = vld [vmem:[#allocation2 + $0x28] sm:$0xf]
      %v1703 = vld [vmem:[#allocation2 + $0x2c] sm:$0x1]
      %v1704 = vld [vmem:[#allocation2 + $0x30] sm:$0xe]
      %v1705 = vld [vmem:[#allocation2 + $0x34] sm:$0xf]
      %v1706 = vld [vmem:[#allocation2 + $0x38] sm:$0x1]
      %v1707 = vld [vmem:[#allocation2 + $0x3c] sm:$0xe]
      %v1708 = vld [vmem:[#allocation2 + $0x40] sm:$0xf]
      %v1709 = vld [vmem:[#allocation2 + $0x44] sm:$0x1]
      %v1710 = vld [vmem:[#allocation2 + $0x48] sm:$0xe]
      %v1711 = vld [vmem:[#allocation2 + $0x4c] sm:$0xf]
      %v1712 = vld [vmem:[#allocation2 + $0x50] sm:$0x1]
      %v1713 = vld [vmem:[#allocation2 + $0x54] sm:$0xe]
      %v1714 = vld [vmem:[#allocation2 + $0x58] sm:$0xf]
      %v1715 = vld [vmem:[#allocation2 + $0x5c] sm:$0x1]
      %v1716 = vld [vmem:[#allocation2 + $0x60] sm:$0xe]
      %v1717 = vld [vmem:[#allocation2 + $0x64] sm:$0xf]
      %v1718 = vld [vmem:[#allocation2 + $0x68] sm:$0x1]
      %v1719 = vld [vmem:[#allocation2 + $0x6c] sm:$0xe]
      %v1720 = vld [vmem:[#allocation2 + $0x70] sm:$0xf]
      %v1721 = vld [vmem:[#allocation2 + $0x74] sm:$0x1]
      %vm1752 = vcmask 1042432
      %vm1753 = vcmask 1046532
      %vm1754 = vmor %vm1752, %vm1753
      %v1755 = vrot.slane %v1692, 5
      %v1756 = vrot.slane %v1755, 4
      %v1757 = vrot.slane %v1693, 5
      %v1758 = vsel %vm1754, %v1756, %v1757
      %v1759 = vrot.slane %v1757, 4
      %v1760 = vrot.slane %v1694, 5
      %v1761 = vsel %vm1754, %v1759, %v1760
      %v1762 = vrot.slane %v1695, 5
      %v1763 = vrot.slane %v1762, 4
      %v1764 = vrot.slane %v1696, 5
      %v1765 = vsel %vm1754, %v1763, %v1764
      %v1766 = vrot.slane %v1764, 4
      %v1767 = vrot.slane %v1697, 5
      %v1768 = vsel %vm1754, %v1766, %v1767
      %v1769 = vrot.slane %v1698, 5
      %v1770 = vrot.slane %v1769, 4
      %v1771 = vrot.slane %v1699, 5
      %v1772 = vsel %vm1754, %v1770, %v1771
      %v1773 = vrot.slane %v1771, 4
      %v1774 = vrot.slane %v1700, 5
      %v1775 = vsel %vm1754, %v1773, %v1774
      %v1776 = vrot.slane %v1701, 5
      %v1777 = vrot.slane %v1776, 4
      %v1778 = vrot.slane %v1702, 5
      %v1779 = vsel %vm1754, %v1777, %v1778
      %v1780 = vrot.slane %v1778, 4
      %v1781 = vrot.slane %v1703, 5
      %v1782 = vsel %vm1754, %v1780, %v1781
      %v1783 = vrot.slane %v1704, 5
      %v1784 = vrot.slane %v1783, 4
      %v1785 = vrot.slane %v1705, 5
      %v1786 = vsel %vm1754, %v1784, %v1785
      %v1787 = vrot.slane %v1785, 4
      %v1788 = vrot.slane %v1706, 5
      %v1789 = vsel %vm1754, %v1787, %v1788
      %v1790 = vrot.slane %v1707, 5
      %v1791 = vrot.slane %v1790, 4
      %v1792 = vrot.slane %v1708, 5
      %v1793 = vsel %vm1754, %v1791, %v1792
      %v1794 = vrot.slane %v1792, 4
      %v1795 = vrot.slane %v1709, 5
      %v1796 = vsel %vm1754, %v1794, %v1795
      %v1797 = vrot.slane %v1710, 5
      %v1798 = vrot.slane %v1797, 4
      %v1799 = vrot.slane %v1711, 5
      %v1800 = vsel %vm1754, %v1798, %v1799
      %v1801 = vrot.slane %v1799, 4
      %v1802 = vrot.slane %v1712, 5
      %v1803 = vsel %vm1754, %v1801, %v1802
      %v1804 = vrot.slane %v1713, 5
      %v1805 = vrot.slane %v1804, 4
      %v1806 = vrot.slane %v1714, 5
      %v1807 = vsel %vm1754, %v1805, %v1806
      %v1808 = vrot.slane %v1806, 4
      %v1809 = vrot.slane %v1715, 5
      %v1810 = vsel %vm1754, %v1808, %v1809
      %v1811 = vrot.slane %v1716, 5
      %v1812 = vrot.slane %v1811, 4
      %v1813 = vrot.slane %v1717, 5
      %v1814 = vsel %vm1754, %v1812, %v1813
      %v1815 = vrot.slane %v1813, 4
      %v1816 = vrot.slane %v1718, 5
      %v1817 = vsel %vm1754, %v1815, %v1816
      %v1818 = vrot.slane %v1719, 5
      %v1819 = vrot.slane %v1818, 4
      %v1820 = vrot.slane %v1720, 5
      %v1821 = vsel %vm1754, %v1819, %v1820
      %v1822 = vrot.slane %v1820, 4
      %v1823 = vrot.slane %v1721, 5
      %v1824 = vsel %vm1754, %v1822, %v1823
      %1845 = vst [vmem:[#allocation3 + $0x8] sm:$0xf] %v1758
      %1846 = vst [vmem:[#allocation3 + $0x14] sm:$0xf] %v1761
      %1847 = vst [vmem:[#allocation3 + $0x20] sm:$0xf] %v1765
      %1848 = vst [vmem:[#allocation3 + $0x2c] sm:$0xf] %v1768
      %1849 = vst [vmem:[#allocation3 + $0x38] sm:$0xf] %v1772
      %1850 = vst [vmem:[#allocation3 + $0x44] sm:$0xf] %v1775
      %1851 = vst [vmem:[#allocation3 + $0x50] sm:$0xf] %v1779
      %1852 = vst [vmem:[#allocation3 + $0x5c] sm:$0xf] %v1782
      %1853 = vst [vmem:[#allocation3 + $0x68] sm:$0xf] %v1786
      %1854 = vst [vmem:[#allocation3 + $0x74] sm:$0xf] %v1789
      %1855 = vst [vmem:[#allocation3 + $0x80] sm:$0xf] %v1793
      %1856 = vst [vmem:[#allocation3 + $0x8c] sm:$0xf] %v1796
      %1857 = vst [vmem:[#allocation3 + $0x98] sm:$0xf] %v1800
      %1858 = vst [vmem:[#allocation3 + $0xa4] sm:$0xf] %v1803
      %1859 = vst [vmem:[#allocation3 + $0xb0] sm:$0xf] %v1807
      %1860 = vst [vmem:[#allocation3 + $0xbc] sm:$0xf] %v1810
      %1861 = vst [vmem:[#allocation3 + $0xc8] sm:$0xf] %v1814
      %1862 = vst [vmem:[#allocation3 + $0xd4] sm:$0xf] %v1817
      %1863 = vst [vmem:[#allocation3 + $0xe0] sm:$0xf] %v1821
      %1864 = vst [vmem:[#allocation3 + $0xec] sm:$0xf] %v1824
      %v1865 = vld [vmem:[#allocation3] sm:$0xff]
      %v1866 = vld [vmem:[#allocation3 + $0x8] sm:$0xf]
      %v1867 = vld [vmem:[#allocation3 + $0xc] sm:$0xff]
      %v1868 = vld [vmem:[#allocation3 + $0x14] sm:$0xf]
      %v1869 = vld [vmem:[#allocation3 + $0x18] sm:$0xff]
      %v1870 = vld [vmem:[#allocation3 + $0x20] sm:$0xf]
      %v1871 = vld [vmem:[#allocation3 + $0x24] sm:$0xff]
      %v1872 = vld [vmem:[#allocation3 + $0x2c] sm:$0xf]
      %v1873 = vld [vmem:[#allocation3 + $0x30] sm:$0xff]
      %v1874 = vld [vmem:[#allocation3 + $0x38] sm:$0xf]
      %v1875 = vld [vmem:[#allocation3 + $0x3c] sm:$0xff]
      %v1876 = vld [vmem:[#allocation3 + $0x44] sm:$0xf]
      %v1877 = vld [vmem:[#allocation3 + $0x48] sm:$0xff]
      %v1878 = vld [vmem:[#allocation3 + $0x50] sm:$0xf]
      %v1879 = vld [vmem:[#allocation3 + $0x54] sm:$0xff]
      %v1880 = vld [vmem:[#allocation3 + $0x5c] sm:$0xf]
      %v1881 = vld [vmem:[#allocation3 + $0x60] sm:$0xff]
      %v1882 = vld [vmem:[#allocation3 + $0x68] sm:$0xf]
      %v1883 = vld [vmem:[#allocation3 + $0x6c] sm:$0xff]
      %v1884 = vld [vmem:[#allocation3 + $0x74] sm:$0xf]
      %v1885 = vld [vmem:[#allocation3 + $0x78] sm:$0xff]
      %v1886 = vld [vmem:[#allocation3 + $0x80] sm:$0xf]
      %v1887 = vld [vmem:[#allocation3 + $0x84] sm:$0xff]
      %v1888 = vld [vmem:[#allocation3 + $0x8c] sm:$0xf]
      %v1889 = vld [vmem:[#allocation3 + $0x90] sm:$0xff]
      %v1890 = vld [vmem:[#allocation3 + $0x98] sm:$0xf]
      %v1891 = vld [vmem:[#allocation3 + $0x9c] sm:$0xff]
      %v1892 = vld [vmem:[#allocation3 + $0xa4] sm:$0xf]
      %v1893 = vld [vmem:[#allocation3 + $0xa8] sm:$0xff]
      %v1894 = vld [vmem:[#allocation3 + $0xb0] sm:$0xf]
      %v1895 = vld [vmem:[#allocation3 + $0xb4] sm:$0xff]
      %v1896 = vld [vmem:[#allocation3 + $0xbc] sm:$0xf]
      %v1897 = vld [vmem:[%s5] sm:$0xf]
      %v1898 = vld [vmem:[%s5 + $0x4] sm:$0xf]
      %v1899 = vld [vmem:[%s5 + $0x8] sm:$0xf]
      %v1900 = vld [vmem:[%s5 + $0xc] sm:$0xf]
      %v1901 = vld [vmem:[%s5 + $0x10] sm:$0xf]
      %v1902 = vld [vmem:[%s5 + $0x14] sm:$0xf]
      %v1903 = vld [vmem:[%s5 + $0x18] sm:$0xf]
      %v1904 = vld [vmem:[%s5 + $0x1c] sm:$0xf]
      %v1905 = vld [vmem:[%s5 + $0x20] sm:$0xf]
      %v1906 = vld [vmem:[%s5 + $0x24] sm:$0xf]
      %v1907 = vld [vmem:[%s5 + $0x28] sm:$0xf]
      %v1908 = vld [vmem:[%s5 + $0x2c] sm:$0xf]
      %v1909 = vld [vmem:[%s5 + $0x30] sm:$0xf]
      %v1910 = vld [vmem:[%s5 + $0x34] sm:$0xf]
      %v1911 = vld [vmem:[%s5 + $0x38] sm:$0xf]
      %v1912 = vld [vmem:[%s5 + $0x3c] sm:$0xf]
      %v1913 = vld [vmem:[%s5 + $0x40] sm:$0xf]
      %v1914 = vld [vmem:[%s5 + $0x44] sm:$0xf]
      %v1915 = vld [vmem:[%s5 + $0x48] sm:$0xf]
      %v1916 = vld [vmem:[%s5 + $0x4c] sm:$0xf]
      %v1917 = vld [vmem:[%s5 + $0x50] sm:$0xf]
      %v1918 = vld [vmem:[%s5 + $0x54] sm:$0xf]
      %v1919 = vld [vmem:[%s5 + $0x58] sm:$0xf]
      %v1920 = vld [vmem:[%s5 + $0x5c] sm:$0xf]
      %v1921 = vld [vmem:[%s5 + $0x60] sm:$0xf]
      %v1922 = vld [vmem:[%s5 + $0x64] sm:$0xf]
      %v1923 = vld [vmem:[%s5 + $0x68] sm:$0xf]
      %v1924 = vld [vmem:[%s5 + $0x6c] sm:$0xf]
      %v1925 = vld [vmem:[%s5 + $0x70] sm:$0xf]
      %v1926 = vld [vmem:[%s5 + $0x74] sm:$0xf]
      %v1927 = vld [vmem:[%s5 + $0x78] sm:$0xf]
      %v1928 = vld [vmem:[%s5 + $0x7c] sm:$0xf]
      %v1929 = vld [vmem:[%s5 + $0x80] sm:$0xf]
      %v1930 = vld [vmem:[%s5 + $0x84] sm:$0xf]
      %v1931 = vld [vmem:[%s5 + $0x88] sm:$0xf]
      %v1932 = vld [vmem:[%s5 + $0x8c] sm:$0xf]
      %v1933 = vld [vmem:[%s5 + $0x90] sm:$0xf]
      %v1934 = vld [vmem:[%s5 + $0x94] sm:$0xf]
      %v1935 = vld [vmem:[%s5 + $0x98] sm:$0xf]
      %v1936 = vld [vmem:[%s5 + $0x9c] sm:$0xf]
      %v1937 = vld [vmem:[%s5 + $0xa0] sm:$0xf]
      %v1938 = vld [vmem:[%s5 + $0xa4] sm:$0xf]
      %v1939 = vld [vmem:[%s5 + $0xa8] sm:$0xf]
      %v1940 = vld [vmem:[%s5 + $0xac] sm:$0xf]
      %v1941 = vld [vmem:[%s5 + $0xb0] sm:$0xf]
      %v1942 = vld [vmem:[%s5 + $0xb4] sm:$0xf]
      %v1943 = vld [vmem:[%s5 + $0xb8] sm:$0xf]
      %v1944 = vld [vmem:[%s5 + $0xbc] sm:$0xf]
      %s1945 = scalar_lea.vmem [#allocation3], 24
      %v1946 = vld [vmem:[%s1945] sm:$0xff]
      %v1947 = vld [vmem:[%s1945 + $0x8] sm:$0xf]
      %v1948 = vld [vmem:[%s1945 + $0xc] sm:$0xff]
      %v1949 = vld [vmem:[%s1945 + $0x14] sm:$0xf]
      %v1950 = vld [vmem:[%s1945 + $0x18] sm:$0xff]
      %v1951 = vld [vmem:[%s1945 + $0x20] sm:$0xf]
      %v1952 = vld [vmem:[%s1945 + $0x24] sm:$0xff]
      %v1953 = vld [vmem:[%s1945 + $0x2c] sm:$0xf]
      %v1954 = vld [vmem:[%s1945 + $0x30] sm:$0xff]
      %v1955 = vld [vmem:[%s1945 + $0x38] sm:$0xf]
      %v1956 = vld [vmem:[%s1945 + $0x3c] sm:$0xff]
      %v1957 = vld [vmem:[%s1945 + $0x44] sm:$0xf]
      %v1958 = vld [vmem:[%s1945 + $0x48] sm:$0xff]
      %v1959 = vld [vmem:[%s1945 + $0x50] sm:$0xf]
      %v1960 = vld [vmem:[%s1945 + $0x54] sm:$0xff]
      %v1961 = vld [vmem:[%s1945 + $0x5c] sm:$0xf]
      %v1962 = vld [vmem:[%s1945 + $0x60] sm:$0xff]
      %v1963 = vld [vmem:[%s1945 + $0x68] sm:$0xf]
      %v1964 = vld [vmem:[%s1945 + $0x6c] sm:$0xff]
      %v1965 = vld [vmem:[%s1945 + $0x74] sm:$0xf]
      %v1966 = vld [vmem:[%s1945 + $0x78] sm:$0xff]
      %v1967 = vld [vmem:[%s1945 + $0x80] sm:$0xf]
      %v1968 = vld [vmem:[%s1945 + $0x84] sm:$0xff]
      %v1969 = vld [vmem:[%s1945 + $0x8c] sm:$0xf]
      %v1970 = vld [vmem:[%s1945 + $0x90] sm:$0xff]
      %v1971 = vld [vmem:[%s1945 + $0x98] sm:$0xf]
      %v1972 = vld [vmem:[%s1945 + $0x9c] sm:$0xff]
      %v1973 = vld [vmem:[%s1945 + $0xa4] sm:$0xf]
      %v1974 = vld [vmem:[%s1945 + $0xa8] sm:$0xff]
      %v1975 = vld [vmem:[%s1945 + $0xb0] sm:$0xf]
      %v1976 = vld [vmem:[%s1945 + $0xb4] sm:$0xff]
      %v1977 = vld [vmem:[%s1945 + $0xbc] sm:$0xf]
      %s1978 = scalar_lea.vmem %s5, 192
      %v1979 = vld [vmem:[%s1978] sm:$0xf]
      %v1980 = vld [vmem:[%s1978 + $0x4] sm:$0xf]
      %v1981 = vld [vmem:[%s1978 + $0x8] sm:$0xf]
      %v1982 = vld [vmem:[%s1978 + $0xc] sm:$0xf]
      %v1983 = vld [vmem:[%s1978 + $0x10] sm:$0xf]
      %v1984 = vld [vmem:[%s1978 + $0x14] sm:$0xf]
      %v1985 = vld [vmem:[%s1978 + $0x18] sm:$0xf]
      %v1986 = vld [vmem:[%s1978 + $0x1c] sm:$0xf]
      %v1987 = vld [vmem:[%s1978 + $0x20] sm:$0xf]
      %v1988 = vld [vmem:[%s1978 + $0x24] sm:$0xf]
      %v1989 = vld [vmem:[%s1978 + $0x28] sm:$0xf]
      %v1990 = vld [vmem:[%s1978 + $0x2c] sm:$0xf]
      %v1991 = vld [vmem:[%s1978 + $0x30] sm:$0xf]
      %v1992 = vld [vmem:[%s1978 + $0x34] sm:$0xf]
      %v1993 = vld [vmem:[%s1978 + $0x38] sm:$0xf]
      %v1994 = vld [vmem:[%s1978 + $0x3c] sm:$0xf]
      %v1995 = vld [vmem:[%s1978 + $0x40] sm:$0xf]
      %v1996 = vld [vmem:[%s1978 + $0x44] sm:$0xf]
      %v1997 = vld [vmem:[%s1978 + $0x48] sm:$0xf]
      %v1998 = vld [vmem:[%s1978 + $0x4c] sm:$0xf]
      %v1999 = vld [vmem:[%s1978 + $0x50] sm:$0xf]
      %v2000 = vld [vmem:[%s1978 + $0x54] sm:$0xf]
      %v2001 = vld [vmem:[%s1978 + $0x58] sm:$0xf]
      %v2002 = vld [vmem:[%s1978 + $0x5c] sm:$0xf]
      %v2003 = vld [vmem:[%s1978 + $0x60] sm:$0xf]
      %v2004 = vld [vmem:[%s1978 + $0x64] sm:$0xf]
      %v2005 = vld [vmem:[%s1978 + $0x68] sm:$0xf]
      %v2006 = vld [vmem:[%s1978 + $0x6c] sm:$0xf]
      %v2007 = vld [vmem:[%s1978 + $0x70] sm:$0xf]
      %v2008 = vld [vmem:[%s1978 + $0x74] sm:$0xf]
      %v2009 = vld [vmem:[%s1978 + $0x78] sm:$0xf]
      %v2010 = vld [vmem:[%s1978 + $0x7c] sm:$0xf]
      %v2011 = vld [vmem:[%s1978 + $0x80] sm:$0xf]
      %v2012 = vld [vmem:[%s1978 + $0x84] sm:$0xf]
      %v2013 = vld [vmem:[%s1978 + $0x88] sm:$0xf]
      %v2014 = vld [vmem:[%s1978 + $0x8c] sm:$0xf]
      %v2015 = vld [vmem:[%s1978 + $0x90] sm:$0xf]
      %v2016 = vld [vmem:[%s1978 + $0x94] sm:$0xf]
      %v2017 = vld [vmem:[%s1978 + $0x98] sm:$0xf]
      %v2018 = vld [vmem:[%s1978 + $0x9c] sm:$0xf]
      %v2019 = vld [vmem:[%s1978 + $0xa0] sm:$0xf]
      %v2020 = vld [vmem:[%s1978 + $0xa4] sm:$0xf]
      %v2021 = vld [vmem:[%s1978 + $0xa8] sm:$0xf]
      %v2022 = vld [vmem:[%s1978 + $0xac] sm:$0xf]
      %v2023 = vld [vmem:[%s1978 + $0xb0] sm:$0xf]
      %v2024 = vld [vmem:[%s1978 + $0xb4] sm:$0xf]
      %v2025 = vld [vmem:[%s1978 + $0xb8] sm:$0xf]
      %v2026 = vld [vmem:[%s1978 + $0xbc] sm:$0xf]
      %v2059 = vunpack.c.l.b16 %v1946
      %v2060 = vunpack.c.h.b16 %v1946
      %v2061 = vunpack.c.l.b16 %v1947
      %v2062 = vunpack.c.l.b16 %v1948
      %v2063 = vunpack.c.h.b16 %v1948
      %v2064 = vunpack.c.l.b16 %v1949
      %v2065 = vunpack.c.l.b16 %v1950
      %v2066 = vunpack.c.h.b16 %v1950
      %v2067 = vunpack.c.l.b16 %v1951
      %v2068 = vunpack.c.l.b16 %v1952
      %v2069 = vunpack.c.h.b16 %v1952
      %v2070 = vunpack.c.l.b16 %v1953
      %v2071 = vunpack.c.l.b16 %v1954
      %v2072 = vunpack.c.h.b16 %v1954
      %v2073 = vunpack.c.l.b16 %v1955
      %v2074 = vunpack.c.l.b16 %v1956
      %v2075 = vunpack.c.h.b16 %v1956
      %v2076 = vunpack.c.l.b16 %v1957
      %v2077 = vunpack.c.l.b16 %v1958
      %v2078 = vunpack.c.h.b16 %v1958
      %v2079 = vunpack.c.l.b16 %v1959
      %v2080 = vunpack.c.l.b16 %v1960
      %v2081 = vunpack.c.h.b16 %v1960
      %v2082 = vunpack.c.l.b16 %v1961
      %v2083 = vunpack.c.l.b16 %v1962
      %v2084 = vunpack.c.h.b16 %v1962
      %v2085 = vunpack.c.l.b16 %v1963
      %v2086 = vunpack.c.l.b16 %v1964
      %v2087 = vunpack.c.h.b16 %v1964
      %v2088 = vunpack.c.l.b16 %v1965
      %v2089 = vunpack.c.l.b16 %v1966
      %v2090 = vunpack.c.h.b16 %v1966
      %v2091 = vunpack.c.l.b16 %v1967
      %v2092 = vunpack.c.l.b16 %v1968
      %v2093 = vunpack.c.h.b16 %v1968
      %v2094 = vunpack.c.l.b16 %v1969
      %v2095 = vunpack.c.l.b16 %v1970
      %v2096 = vunpack.c.h.b16 %v1970
      %v2097 = vunpack.c.l.b16 %v1971
      %v2098 = vunpack.c.l.b16 %v1972
      %v2099 = vunpack.c.h.b16 %v1972
      %v2100 = vunpack.c.l.b16 %v1973
      %v2101 = vunpack.c.l.b16 %v1974
      %v2102 = vunpack.c.h.b16 %v1974
      %v2103 = vunpack.c.l.b16 %v1975
      %v2104 = vunpack.c.l.b16 %v1976
      %v2105 = vunpack.c.h.b16 %v1976
      %v2106 = vunpack.c.l.b16 %v1977
      %v2107 = vpack.c.b16 %v2062, %v2059
      %v2108 = vpack.c.b16 %v2063, %v2060
      %v2109 = vpack.c.b16 %v2064, %v2061
      %v2110 = vpack.c.b16 %v2068, %v2065
      %v2111 = vpack.c.b16 %v2069, %v2066
      %v2112 = vpack.c.b16 %v2070, %v2067
      %v2113 = vpack.c.b16 %v2074, %v2071
      %v2114 = vpack.c.b16 %v2075, %v2072
      %v2115 = vpack.c.b16 %v2076, %v2073
      %v2116 = vpack.c.b16 %v2080, %v2077
      %v2117 = vpack.c.b16 %v2081, %v2078
      %v2118 = vpack.c.b16 %v2082, %v2079
      %v2119 = vpack.c.b16 %v2086, %v2083
      %v2120 = vpack.c.b16 %v2087, %v2084
      %v2121 = vpack.c.b16 %v2088, %v2085
      %v2122 = vpack.c.b16 %v2092, %v2089
      %v2123 = vpack.c.b16 %v2093, %v2090
      %v2124 = vpack.c.b16 %v2094, %v2091
      %v2125 = vpack.c.b16 %v2098, %v2095
      %v2126 = vpack.c.b16 %v2099, %v2096
      %v2127 = vpack.c.b16 %v2100, %v2097
      %v2128 = vpack.c.b16 %v2104, %v2101
      %v2129 = vpack.c.b16 %v2105, %v2102
      %v2130 = vpack.c.b16 %v2106, %v2103
      %v2203 = vunpack.c.l.b16 %v1979
      %v2204 = vunpack.c.l.b16 %v1980
      %v2205 = vunpack.c.l.b16 %v1981
      %v2206 = vunpack.c.l.b16 %v1982
      %v2207 = vunpack.c.l.b16 %v1983
      %v2208 = vunpack.c.l.b16 %v1984
      %v2209 = vunpack.c.l.b16 %v1985
      %v2210 = vunpack.c.l.b16 %v1986
      %v2211 = vunpack.c.l.b16 %v1987
      %v2212 = vunpack.c.l.b16 %v1988
      %v2213 = vunpack.c.l.b16 %v1989
      %v2214 = vunpack.c.l.b16 %v1990
      %v2215 = vunpack.c.l.b16 %v1991
      %v2216 = vunpack.c.l.b16 %v1992
      %v2217 = vunpack.c.l.b16 %v1993
      %v2218 = vunpack.c.l.b16 %v1994
      %v2219 = vunpack.c.l.b16 %v1995
      %v2220 = vunpack.c.l.b16 %v1996
      %v2221 = vunpack.c.l.b16 %v1997
      %v2222 = vunpack.c.l.b16 %v1998
      %v2223 = vunpack.c.l.b16 %v1999
      %v2224 = vunpack.c.l.b16 %v2000
      %v2225 = vunpack.c.l.b16 %v2001
      %v2226 = vunpack.c.l.b16 %v2002
      %v2227 = vunpack.c.l.b16 %v2003
      %v2228 = vunpack.c.l.b16 %v2004
      %v2229 = vunpack.c.l.b16 %v2005
      %v2230 = vunpack.c.l.b16 %v2006
      %v2231 = vunpack.c.l.b16 %v2007
      %v2232 = vunpack.c.l.b16 %v2008
      %v2233 = vunpack.c.l.b16 %v2009
      %v2234 = vunpack.c.l.b16 %v2010
      %v2235 = vunpack.c.l.b16 %v2011
      %v2236 = vunpack.c.l.b16 %v2012
      %v2237 = vunpack.c.l.b16 %v2013
      %v2238 = vunpack.c.l.b16 %v2014
      %v2239 = vunpack.c.l.b16 %v2015
      %v2240 = vunpack.c.l.b16 %v2016
      %v2241 = vunpack.c.l.b16 %v2017
      %v2242 = vunpack.c.l.b16 %v2018
      %v2243 = vunpack.c.l.b16 %v2019
      %v2244 = vunpack.c.l.b16 %v2020
      %v2245 = vunpack.c.l.b16 %v2021
      %v2246 = vunpack.c.l.b16 %v2022
      %v2247 = vunpack.c.l.b16 %v2023
      %v2248 = vunpack.c.l.b16 %v2024
      %v2249 = vunpack.c.l.b16 %v2025
      %v2250 = vunpack.c.l.b16 %v2026
      %v2251 = vpack.c.b16 %v2204, %v2203
      %v2252 = vpack.c.b16 %v2206, %v2205
      %v2253 = vpack.c.b16 %v2208, %v2207
      %v2254 = vpack.c.b16 %v2210, %v2209
      %v2255 = vpack.c.b16 %v2212, %v2211
      %v2256 = vpack.c.b16 %v2214, %v2213
      %v2257 = vpack.c.b16 %v2216, %v2215
      %v2258 = vpack.c.b16 %v2218, %v2217
      %v2259 = vpack.c.b16 %v2220, %v2219
      %v2260 = vpack.c.b16 %v2222, %v2221
      %v2261 = vpack.c.b16 %v2224, %v2223
      %v2262 = vpack.c.b16 %v2226, %v2225
      %v2263 = vpack.c.b16 %v2228, %v2227
      %v2264 = vpack.c.b16 %v2230, %v2229
      %v2265 = vpack.c.b16 %v2232, %v2231
      %v2266 = vpack.c.b16 %v2234, %v2233
      %v2267 = vpack.c.b16 %v2236, %v2235
      %v2268 = vpack.c.b16 %v2238, %v2237
      %v2269 = vpack.c.b16 %v2240, %v2239
      %v2270 = vpack.c.b16 %v2242, %v2241
      %v2271 = vpack.c.b16 %v2244, %v2243
      %v2272 = vpack.c.b16 %v2246, %v2245
      %v2273 = vpack.c.b16 %v2248, %v2247
      %v2274 = vpack.c.b16 %v2250, %v2249
      %2299 = vmatpush.bf16.msra.mxu0 %v2258
      %2300 = vmatpush.bf16.msra.mxu0 %v2257
      %2301 = vmatpush.bf16.msra.mxu0 %v2256
      %2302 = vmatpush.bf16.msra.mxu0 %v2255
      %2303 = vmatpush.bf16.msra.mxu0 %v2254
      %2304 = vmatpush.bf16.msra.mxu0 %v2253
      %2305 = vmatpush.bf16.msra.mxu0 %v2252
      %2306 = vmatpush.bf16.msra.mxu0 %v2251
      %2307 = vmatmul.bf16.gmra.mxu0 %v2107
      %v2308 = vpop.f32.mrf.mxu0
      %v2309 = vadd.f32 0.0, %v2308
      %v2310 = vpop.f32.mrf.mxu0
      %v2311 = vadd.f32 0.0, %v2310
      %2312 = vmatmul.bf16.gmra.mxu0 %v2110
      %v2313 = vpop.f32.mrf.mxu0
      %v2314 = vadd.f32 0.0, %v2313
      %v2315 = vpop.f32.mrf.mxu0
      %v2316 = vadd.f32 0.0, %v2315
      %2317 = vmatmul.bf16.gmra.mxu0 %v2113
      %v2318 = vpop.f32.mrf.mxu0
      %v2319 = vadd.f32 0.0, %v2318
      %v2320 = vpop.f32.mrf.mxu0
      %v2321 = vadd.f32 0.0, %v2320
      %2322 = vmatmul.bf16.gmra.mxu0 %v2116
      %v2323 = vpop.f32.mrf.mxu0
      %v2324 = vadd.f32 0.0, %v2323
      %v2325 = vpop.f32.mrf.mxu0
      %v2326 = vadd.f32 0.0, %v2325
      %2327 = vmatmul.bf16.gmra.mxu0 %v2119
      %v2328 = vpop.f32.mrf.mxu0
      %v2329 = vadd.f32 0.0, %v2328
      %v2330 = vpop.f32.mrf.mxu0
      %v2331 = vadd.f32 0.0, %v2330
      %2332 = vmatmul.bf16.gmra.mxu0 %v2122
      %v2333 = vpop.f32.mrf.mxu0
      %v2334 = vadd.f32 0.0, %v2333
      %v2335 = vpop.f32.mrf.mxu0
      %v2336 = vadd.f32 0.0, %v2335
      %2337 = vmatmul.bf16.gmra.mxu0 %v2125
      %v2338 = vpop.f32.mrf.mxu0
      %v2339 = vadd.f32 0.0, %v2338
      %v2340 = vpop.f32.mrf.mxu0
      %v2341 = vadd.f32 0.0, %v2340
      %2342 = vmatmul.bf16.gmra.mxu0 %v2128
      %v2343 = vpop.f32.mrf.mxu0
      %v2344 = vadd.f32 0.0, %v2343
      %v2345 = vpop.f32.mrf.mxu0
      %v2346 = vadd.f32 0.0, %v2345
      %2347 = vdwg.mxu0
      %2348 = vmatpush.bf16.msra.mxu0 %v2266
      %2349 = vmatpush.bf16.msra.mxu0 %v2265
      %2350 = vmatpush.bf16.msra.mxu0 %v2264
      %2351 = vmatpush.bf16.msra.mxu0 %v2263
      %2352 = vmatpush.bf16.msra.mxu0 %v2262
      %2353 = vmatpush.bf16.msra.mxu0 %v2261
      %2354 = vmatpush.bf16.msra.mxu0 %v2260
      %2355 = vmatpush.bf16.msra.mxu0 %v2259
      %2356 = vmatmul.bf16.gmra.mxu0 %v2108
      %v2357 = vpop.f32.mrf.mxu0
      %v2358 = vadd.f32 %v2309, %v2357
      %v2359 = vpop.f32.mrf.mxu0
      %v2360 = vadd.f32 %v2311, %v2359
      %2361 = vmatmul.bf16.gmra.mxu0 %v2111
      %v2362 = vpop.f32.mrf.mxu0
      %v2363 = vadd.f32 %v2314, %v2362
      %v2364 = vpop.f32.mrf.mxu0
      %v2365 = vadd.f32 %v2316, %v2364
      %2366 = vmatmul.bf16.gmra.mxu0 %v2114
      %v2367 = vpop.f32.mrf.mxu0
      %v2368 = vadd.f32 %v2319, %v2367
      %v2369 = vpop.f32.mrf.mxu0
      %v2370 = vadd.f32 %v2321, %v2369
      %2371 = vmatmul.bf16.gmra.mxu0 %v2117
      %v2372 = vpop.f32.mrf.mxu0
      %v2373 = vadd.f32 %v2324, %v2372
      %v2374 = vpop.f32.mrf.mxu0
      %v2375 = vadd.f32 %v2326, %v2374
      %2376 = vmatmul.bf16.gmra.mxu0 %v2120
      %v2377 = vpop.f32.mrf.mxu0
      %v2378 = vadd.f32 %v2329, %v2377
      %v2379 = vpop.f32.mrf.mxu0
      %v2380 = vadd.f32 %v2331, %v2379
      %2381 = vmatmul.bf16.gmra.mxu0 %v2123
      %v2382 = vpop.f32.mrf.mxu0
      %v2383 = vadd.f32 %v2334, %v2382
      %v2384 = vpop.f32.mrf.mxu0
      %v2385 = vadd.f32 %v2336, %v2384
      %2386 = vmatmul.bf16.gmra.mxu0 %v2126
      %v2387 = vpop.f32.mrf.mxu0
      %v2388 = vadd.f32 %v2339, %v2387
      %v2389 = vpop.f32.mrf.mxu0
      %v2390 = vadd.f32 %v2341, %v2389
      %2391 = vmatmul.bf16.gmra.mxu0 %v2129
      %v2392 = vpop.f32.mrf.mxu0
      %v2393 = vadd.f32 %v2344, %v2392
      %v2394 = vpop.f32.mrf.mxu0
      %v2395 = vadd.f32 %v2346, %v2394
      %2396 = vdwg.mxu0
      %2397 = vmatpush.bf16.msra.mxu0 %v2274
      %2398 = vmatpush.bf16.msra.mxu0 %v2273
      %2399 = vmatpush.bf16.msra.mxu0 %v2272
      %2400 = vmatpush.bf16.msra.mxu0 %v2271
      %2401 = vmatpush.bf16.msra.mxu0 %v2270
      %2402 = vmatpush.bf16.msra.mxu0 %v2269
      %2403 = vmatpush.bf16.msra.mxu0 %v2268
      %2404 = vmatpush.bf16.msra.mxu0 %v2267
      %2405 = vmatmul.bf16.gmra.mxu0 %v2109
      %v2406 = vpop.f32.mrf.mxu0
      %v2407 = vadd.f32 %v2358, %v2406
      %v2408 = vpop.f32.mrf.mxu0
      %v2409 = vadd.f32 %v2360, %v2408
      %2410 = vmatmul.bf16.gmra.mxu0 %v2112
      %v2411 = vpop.f32.mrf.mxu0
      %v2412 = vadd.f32 %v2363, %v2411
      %v2413 = vpop.f32.mrf.mxu0
      %v2414 = vadd.f32 %v2365, %v2413
      %2415 = vmatmul.bf16.gmra.mxu0 %v2115
      %v2416 = vpop.f32.mrf.mxu0
      %v2417 = vadd.f32 %v2368, %v2416
      %v2418 = vpop.f32.mrf.mxu0
      %v2419 = vadd.f32 %v2370, %v2418
      %2420 = vmatmul.bf16.gmra.mxu0 %v2118
      %v2421 = vpop.f32.mrf.mxu0
      %v2422 = vadd.f32 %v2373, %v2421
      %v2423 = vpop.f32.mrf.mxu0
      %v2424 = vadd.f32 %v2375, %v2423
      %2425 = vmatmul.bf16.gmra.mxu0 %v2121
      %v2426 = vpop.f32.mrf.mxu0
      %v2427 = vadd.f32 %v2378, %v2426
      %v2428 = vpop.f32.mrf.mxu0
      %v2429 = vadd.f32 %v2380, %v2428
      %2430 = vmatmul.bf16.gmra.mxu0 %v2124
      %v2431 = vpop.f32.mrf.mxu0
      %v2432 = vadd.f32 %v2383, %v2431
      %v2433 = vpop.f32.mrf.mxu0
      %v2434 = vadd.f32 %v2385, %v2433
      %2435 = vmatmul.bf16.gmra.mxu0 %v2127
      %v2436 = vpop.f32.mrf.mxu0
      %v2437 = vadd.f32 %v2388, %v2436
      %v2438 = vpop.f32.mrf.mxu0
      %v2439 = vadd.f32 %v2390, %v2438
      %2440 = vmatmul.bf16.gmra.mxu0 %v2130
      %v2441 = vpop.f32.mrf.mxu0
      %v2442 = vadd.f32 %v2393, %v2441
      %v2443 = vpop.f32.mrf.mxu0
      %v2444 = vadd.f32 %v2395, %v2443
      %2445 = vdwg.mxu0
      %v2478 = vunpack.c.l.b16 %v1865
      %v2479 = vunpack.c.h.b16 %v1865
      %v2480 = vunpack.c.l.b16 %v1866
      %v2481 = vunpack.c.l.b16 %v1867
      %v2482 = vunpack.c.h.b16 %v1867
      %v2483 = vunpack.c.l.b16 %v1868
      %v2484 = vunpack.c.l.b16 %v1869
      %v2485 = vunpack.c.h.b16 %v1869
      %v2486 = vunpack.c.l.b16 %v1870
      %v2487 = vunpack.c.l.b16 %v1871
      %v2488 = vunpack.c.h.b16 %v1871
      %v2489 = vunpack.c.l.b16 %v1872
      %v2490 = vunpack.c.l.b16 %v1873
      %v2491 = vunpack.c.h.b16 %v1873
      %v2492 = vunpack.c.l.b16 %v1874
      %v2493 = vunpack.c.l.b16 %v1875
      %v2494 = vunpack.c.h.b16 %v1875
      %v2495 = vunpack.c.l.b16 %v1876
      %v2496 = vunpack.c.l.b16 %v1877
      %v2497 = vunpack.c.h.b16 %v1877
      %v2498 = vunpack.c.l.b16 %v1878
      %v2499 = vunpack.c.l.b16 %v1879
      %v2500 = vunpack.c.h.b16 %v1879
      %v2501 = vunpack.c.l.b16 %v1880
      %v2502 = vunpack.c.l.b16 %v1881
      %v2503 = vunpack.c.h.b16 %v1881
      %v2504 = vunpack.c.l.b16 %v1882
      %v2505 = vunpack.c.l.b16 %v1883
      %v2506 = vunpack.c.h.b16 %v1883
      %v2507 = vunpack.c.l.b16 %v1884
      %v2508 = vunpack.c.l.b16 %v1885
      %v2509 = vunpack.c.h.b16 %v1885
      %v2510 = vunpack.c.l.b16 %v1886
      %v2511 = vunpack.c.l.b16 %v1887
      %v2512 = vunpack.c.h.b16 %v1887
      %v2513 = vunpack.c.l.b16 %v1888
      %v2514 = vunpack.c.l.b16 %v1889
      %v2515 = vunpack.c.h.b16 %v1889
      %v2516 = vunpack.c.l.b16 %v1890
      %v2517 = vunpack.c.l.b16 %v1891
      %v2518 = vunpack.c.h.b16 %v1891
      %v2519 = vunpack.c.l.b16 %v1892
      %v2520 = vunpack.c.l.b16 %v1893
      %v2521 = vunpack.c.h.b16 %v1893
      %v2522 = vunpack.c.l.b16 %v1894
      %v2523 = vunpack.c.l.b16 %v1895
      %v2524 = vunpack.c.h.b16 %v1895
      %v2525 = vunpack.c.l.b16 %v1896
      %v2526 = vpack.c.b16 %v2481, %v2478
      %v2527 = vpack.c.b16 %v2482, %v2479
      %v2528 = vpack.c.b16 %v2483, %v2480
      %v2529 = vpack.c.b16 %v2487, %v2484
      %v2530 = vpack.c.b16 %v2488, %v2485
      %v2531 = vpack.c.b16 %v2489, %v2486
      %v2532 = vpack.c.b16 %v2493, %v2490
      %v2533 = vpack.c.b16 %v2494, %v2491
      %v2534 = vpack.c.b16 %v2495, %v2492
      %v2535 = vpack.c.b16 %v2499, %v2496
      %v2536 = vpack.c.b16 %v2500, %v2497
      %v2537 = vpack.c.b16 %v2501, %v2498
      %v2538 = vpack.c.b16 %v2505, %v2502
      %v2539 = vpack.c.b16 %v2506, %v2503
      %v2540 = vpack.c.b16 %v2507, %v2504
      %v2541 = vpack.c.b16 %v2511, %v2508
      %v2542 = vpack.c.b16 %v2512, %v2509
      %v2543 = vpack.c.b16 %v2513, %v2510
      %v2544 = vpack.c.b16 %v2517, %v2514
      %v2545 = vpack.c.b16 %v2518, %v2515
      %v2546 = vpack.c.b16 %v2519, %v2516
      %v2547 = vpack.c.b16 %v2523, %v2520
      %v2548 = vpack.c.b16 %v2524, %v2521
      %v2549 = vpack.c.b16 %v2525, %v2522
      %v2622 = vunpack.c.l.b16 %v1897
      %v2623 = vunpack.c.l.b16 %v1898
      %v2624 = vunpack.c.l.b16 %v1899
      %v2625 = vunpack.c.l.b16 %v1900
      %v2626 = vunpack.c.l.b16 %v1901
      %v2627 = vunpack.c.l.b16 %v1902
      %v2628 = vunpack.c.l.b16 %v1903
      %v2629 = vunpack.c.l.b16 %v1904
      %v2630 = vunpack.c.l.b16 %v1905
      %v2631 = vunpack.c.l.b16 %v1906
      %v2632 = vunpack.c.l.b16 %v1907
      %v2633 = vunpack.c.l.b16 %v1908
      %v2634 = vunpack.c.l.b16 %v1909
      %v2635 = vunpack.c.l.b16 %v1910
      %v2636 = vunpack.c.l.b16 %v1911
      %v2637 = vunpack.c.l.b16 %v1912
      %v2638 = vunpack.c.l.b16 %v1913
      %v2639 = vunpack.c.l.b16 %v1914
      %v2640 = vunpack.c.l.b16 %v1915
      %v2641 = vunpack.c.l.b16 %v1916
      %v2642 = vunpack.c.l.b16 %v1917
      %v2643 = vunpack.c.l.b16 %v1918
      %v2644 = vunpack.c.l.b16 %v1919
      %v2645 = vunpack.c.l.b16 %v1920
      %v2646 = vunpack.c.l.b16 %v1921
      %v2647 = vunpack.c.l.b16 %v1922
      %v2648 = vunpack.c.l.b16 %v1923
      %v2649 = vunpack.c.l.b16 %v1924
      %v2650 = vunpack.c.l.b16 %v1925
      %v2651 = vunpack.c.l.b16 %v1926
      %v2652 = vunpack.c.l.b16 %v1927
      %v2653 = vunpack.c.l.b16 %v1928
      %v2654 = vunpack.c.l.b16 %v1929
      %v2655 = vunpack.c.l.b16 %v1930
      %v2656 = vunpack.c.l.b16 %v1931
      %v2657 = vunpack.c.l.b16 %v1932
      %v2658 = vunpack.c.l.b16 %v1933
      %v2659 = vunpack.c.l.b16 %v1934
      %v2660 = vunpack.c.l.b16 %v1935
      %v2661 = vunpack.c.l.b16 %v1936
      %v2662 = vunpack.c.l.b16 %v1937
      %v2663 = vunpack.c.l.b16 %v1938
      %v2664 = vunpack.c.l.b16 %v1939
      %v2665 = vunpack.c.l.b16 %v1940
      %v2666 = vunpack.c.l.b16 %v1941
      %v2667 = vunpack.c.l.b16 %v1942
      %v2668 = vunpack.c.l.b16 %v1943
      %v2669 = vunpack.c.l.b16 %v1944
      %v2670 = vpack.c.b16 %v2623, %v2622
      %v2671 = vpack.c.b16 %v2625, %v2624
      %v2672 = vpack.c.b16 %v2627, %v2626
      %v2673 = vpack.c.b16 %v2629, %v2628
      %v2674 = vpack.c.b16 %v2631, %v2630
      %v2675 = vpack.c.b16 %v2633, %v2632
      %v2676 = vpack.c.b16 %v2635, %v2634
      %v2677 = vpack.c.b16 %v2637, %v2636
      %v2678 = vpack.c.b16 %v2639, %v2638
      %v2679 = vpack.c.b16 %v2641, %v2640
      %v2680 = vpack.c.b16 %v2643, %v2642
      %v2681 = vpack.c.b16 %v2645, %v2644
      %v2682 = vpack.c.b16 %v2647, %v2646
      %v2683 = vpack.c.b16 %v2649, %v2648
      %v2684 = vpack.c.b16 %v2651, %v2650
      %v2685 = vpack.c.b16 %v2653, %v2652
      %v2686 = vpack.c.b16 %v2655, %v2654
      %v2687 = vpack.c.b16 %v2657, %v2656
      %v2688 = vpack.c.b16 %v2659, %v2658
      %v2689 = vpack.c.b16 %v2661, %v2660
      %v2690 = vpack.c.b16 %v2663, %v2662
      %v2691 = vpack.c.b16 %v2665, %v2664
      %v2692 = vpack.c.b16 %v2667, %v2666
      %v2693 = vpack.c.b16 %v2669, %v2668
      %2718 = vmatpush.bf16.msra.mxu0 %v2677
      %2719 = vmatpush.bf16.msra.mxu0 %v2676
      %2720 = vmatpush.bf16.msra.mxu0 %v2675
      %2721 = vmatpush.bf16.msra.mxu0 %v2674
      %2722 = vmatpush.bf16.msra.mxu0 %v2673
      %2723 = vmatpush.bf16.msra.mxu0 %v2672
      %2724 = vmatpush.bf16.msra.mxu0 %v2671
      %2725 = vmatpush.bf16.msra.mxu0 %v2670
      %2726 = vmatmul.bf16.gmra.mxu0 %v2526
      %v2727 = vpop.f32.mrf.mxu0
      %v2728 = vadd.f32 %v2407, %v2727
      %v2729 = vpop.f32.mrf.mxu0
      %v2730 = vadd.f32 %v2409, %v2729
      %2731 = vmatmul.bf16.gmra.mxu0 %v2529
      %v2732 = vpop.f32.mrf.mxu0
      %v2733 = vadd.f32 %v2412, %v2732
      %v2734 = vpop.f32.mrf.mxu0
      %v2735 = vadd.f32 %v2414, %v2734
      %2736 = vmatmul.bf16.gmra.mxu0 %v2532
      %v2737 = vpop.f32.mrf.mxu0
      %v2738 = vadd.f32 %v2417, %v2737
      %v2739 = vpop.f32.mrf.mxu0
      %v2740 = vadd.f32 %v2419, %v2739
      %2741 = vmatmul.bf16.gmra.mxu0 %v2535
      %v2742 = vpop.f32.mrf.mxu0
      %v2743 = vadd.f32 %v2422, %v2742
      %v2744 = vpop.f32.mrf.mxu0
      %v2745 = vadd.f32 %v2424, %v2744
      %2746 = vmatmul.bf16.gmra.mxu0 %v2538
      %v2747 = vpop.f32.mrf.mxu0
      %v2748 = vadd.f32 %v2427, %v2747
      %v2749 = vpop.f32.mrf.mxu0
      %v2750 = vadd.f32 %v2429, %v2749
      %2751 = vmatmul.bf16.gmra.mxu0 %v2541
      %v2752 = vpop.f32.mrf.mxu0
      %v2753 = vadd.f32 %v2432, %v2752
      %v2754 = vpop.f32.mrf.mxu0
      %v2755 = vadd.f32 %v2434, %v2754
      %2756 = vmatmul.bf16.gmra.mxu0 %v2544
      %v2757 = vpop.f32.mrf.mxu0
      %v2758 = vadd.f32 %v2437, %v2757
      %v2759 = vpop.f32.mrf.mxu0
      %v2760 = vadd.f32 %v2439, %v2759
      %2761 = vmatmul.bf16.gmra.mxu0 %v2547
      %v2762 = vpop.f32.mrf.mxu0
      %v2763 = vadd.f32 %v2442, %v2762
      %v2764 = vpop.f32.mrf.mxu0
      %v2765 = vadd.f32 %v2444, %v2764
      %2766 = vdwg.mxu0
      %2767 = vmatpush.bf16.msra.mxu0 %v2685
      %2768 = vmatpush.bf16.msra.mxu0 %v2684
      %2769 = vmatpush.bf16.msra.mxu0 %v2683
      %2770 = vmatpush.bf16.msra.mxu0 %v2682
      %2771 = vmatpush.bf16.msra.mxu0 %v2681
      %2772 = vmatpush.bf16.msra.mxu0 %v2680
      %2773 = vmatpush.bf16.msra.mxu0 %v2679
      %2774 = vmatpush.bf16.msra.mxu0 %v2678
      %2775 = vmatmul.bf16.gmra.mxu0 %v2527
      %v2776 = vpop.f32.mrf.mxu0
      %v2777 = vadd.f32 %v2728, %v2776
      %v2778 = vpop.f32.mrf.mxu0
      %v2779 = vadd.f32 %v2730, %v2778
      %2780 = vmatmul.bf16.gmra.mxu0 %v2530
      %v2781 = vpop.f32.mrf.mxu0
      %v2782 = vadd.f32 %v2733, %v2781
      %v2783 = vpop.f32.mrf.mxu0
      %v2784 = vadd.f32 %v2735, %v2783
      %2785 = vmatmul.bf16.gmra.mxu0 %v2533
      %v2786 = vpop.f32.mrf.mxu0
      %v2787 = vadd.f32 %v2738, %v2786
      %v2788 = vpop.f32.mrf.mxu0
      %v2789 = vadd.f32 %v2740, %v2788
      %2790 = vmatmul.bf16.gmra.mxu0 %v2536
      %v2791 = vpop.f32.mrf.mxu0
      %v2792 = vadd.f32 %v2743, %v2791
      %v2793 = vpop.f32.mrf.mxu0
      %v2794 = vadd.f32 %v2745, %v2793
      %2795 = vmatmul.bf16.gmra.mxu0 %v2539
      %v2796 = vpop.f32.mrf.mxu0
      %v2797 = vadd.f32 %v2748, %v2796
      %v2798 = vpop.f32.mrf.mxu0
      %v2799 = vadd.f32 %v2750, %v2798
      %2800 = vmatmul.bf16.gmra.mxu0 %v2542
      %v2801 = vpop.f32.mrf.mxu0
      %v2802 = vadd.f32 %v2753, %v2801
      %v2803 = vpop.f32.mrf.mxu0
      %v2804 = vadd.f32 %v2755, %v2803
      %2805 = vmatmul.bf16.gmra.mxu0 %v2545
      %v2806 = vpop.f32.mrf.mxu0
      %v2807 = vadd.f32 %v2758, %v2806
      %v2808 = vpop.f32.mrf.mxu0
      %v2809 = vadd.f32 %v2760, %v2808
      %2810 = vmatmul.bf16.gmra.mxu0 %v2548
      %v2811 = vpop.f32.mrf.mxu0
      %v2812 = vadd.f32 %v2763, %v2811
      %v2813 = vpop.f32.mrf.mxu0
      %v2814 = vadd.f32 %v2765, %v2813
      %2815 = vdwg.mxu0
      %2816 = vmatpush.bf16.msra.mxu0 %v2693
      %2817 = vmatpush.bf16.msra.mxu0 %v2692
      %2818 = vmatpush.bf16.msra.mxu0 %v2691
      %2819 = vmatpush.bf16.msra.mxu0 %v2690
      %2820 = vmatpush.bf16.msra.mxu0 %v2689
      %2821 = vmatpush.bf16.msra.mxu0 %v2688
      %2822 = vmatpush.bf16.msra.mxu0 %v2687
      %2823 = vmatpush.bf16.msra.mxu0 %v2686
      %2824 = vmatmul.bf16.gmra.mxu0 %v2528
      %v2825 = vpop.f32.mrf.mxu0
      %v2826 = vadd.f32 %v2777, %v2825
      %v2827 = vpop.f32.mrf.mxu0
      %v2828 = vadd.f32 %v2779, %v2827
      %2829 = vmatmul.bf16.gmra.mxu0 %v2531
      %v2830 = vpop.f32.mrf.mxu0
      %v2831 = vadd.f32 %v2782, %v2830
      %v2832 = vpop.f32.mrf.mxu0
      %v2833 = vadd.f32 %v2784, %v2832
      %2834 = vmatmul.bf16.gmra.mxu0 %v2534
      %v2835 = vpop.f32.mrf.mxu0
      %v2836 = vadd.f32 %v2787, %v2835
      %v2837 = vpop.f32.mrf.mxu0
      %v2838 = vadd.f32 %v2789, %v2837
      %2839 = vmatmul.bf16.gmra.mxu0 %v2537
      %v2840 = vpop.f32.mrf.mxu0
      %v2841 = vadd.f32 %v2792, %v2840
      %v2842 = vpop.f32.mrf.mxu0
      %v2843 = vadd.f32 %v2794, %v2842
      %2844 = vmatmul.bf16.gmra.mxu0 %v2540
      %v2845 = vpop.f32.mrf.mxu0
      %v2846 = vadd.f32 %v2797, %v2845
      %v2847 = vpop.f32.mrf.mxu0
      %v2848 = vadd.f32 %v2799, %v2847
      %2849 = vmatmul.bf16.gmra.mxu0 %v2543
      %v2850 = vpop.f32.mrf.mxu0
      %v2851 = vadd.f32 %v2802, %v2850
      %v2852 = vpop.f32.mrf.mxu0
      %v2853 = vadd.f32 %v2804, %v2852
      %2854 = vmatmul.bf16.gmra.mxu0 %v2546
      %v2855 = vpop.f32.mrf.mxu0
      %v2856 = vadd.f32 %v2807, %v2855
      %v2857 = vpop.f32.mrf.mxu0
      %v2858 = vadd.f32 %v2809, %v2857
      %2859 = vmatmul.bf16.gmra.mxu0 %v2549
      %v2860 = vpop.f32.mrf.mxu0
      %v2861 = vadd.f32 %v2812, %v2860
      %v2862 = vpop.f32.mrf.mxu0
      %v2863 = vadd.f32 %v2814, %v2862
      %2864 = vdwg.mxu0
      %s2865 = scalar_lea.vmem [#allocation3], 48
      %v2866 = vld [vmem:[%s2865] sm:$0xff]
      %v2867 = vld [vmem:[%s2865 + $0x8] sm:$0xf]
      %v2868 = vld [vmem:[%s2865 + $0xc] sm:$0xff]
      %v2869 = vld [vmem:[%s2865 + $0x14] sm:$0xf]
      %v2870 = vld [vmem:[%s2865 + $0x18] sm:$0xff]
      %v2871 = vld [vmem:[%s2865 + $0x20] sm:$0xf]
      %v2872 = vld [vmem:[%s2865 + $0x24] sm:$0xff]
      %v2873 = vld [vmem:[%s2865 + $0x2c] sm:$0xf]
      %v2874 = vld [vmem:[%s2865 + $0x30] sm:$0xff]
      %v2875 = vld [vmem:[%s2865 + $0x38] sm:$0xf]
      %v2876 = vld [vmem:[%s2865 + $0x3c] sm:$0xff]
      %v2877 = vld [vmem:[%s2865 + $0x44] sm:$0xf]
      %v2878 = vld [vmem:[%s2865 + $0x48] sm:$0xff]
      %v2879 = vld [vmem:[%s2865 + $0x50] sm:$0xf]
      %v2880 = vld [vmem:[%s2865 + $0x54] sm:$0xff]
      %v2881 = vld [vmem:[%s2865 + $0x5c] sm:$0xf]
      %v2882 = vld [vmem:[%s2865 + $0x60] sm:$0xff]
      %v2883 = vld [vmem:[%s2865 + $0x68] sm:$0xf]
      %v2884 = vld [vmem:[%s2865 + $0x6c] sm:$0xff]
      %v2885 = vld [vmem:[%s2865 + $0x74] sm:$0xf]
      %v2886 = vld [vmem:[%s2865 + $0x78] sm:$0xff]
      %v2887 = vld [vmem:[%s2865 + $0x80] sm:$0xf]
      %v2888 = vld [vmem:[%s2865 + $0x84] sm:$0xff]
      %v2889 = vld [vmem:[%s2865 + $0x8c] sm:$0xf]
      %v2890 = vld [vmem:[%s2865 + $0x90] sm:$0xff]
      %v2891 = vld [vmem:[%s2865 + $0x98] sm:$0xf]
      %v2892 = vld [vmem:[%s2865 + $0x9c] sm:$0xff]
      %v2893 = vld [vmem:[%s2865 + $0xa4] sm:$0xf]
      %v2894 = vld [vmem:[%s2865 + $0xa8] sm:$0xff]
      %v2895 = vld [vmem:[%s2865 + $0xb0] sm:$0xf]
      %v2896 = vld [vmem:[%s2865 + $0xb4] sm:$0xff]
      %v2897 = vld [vmem:[%s2865 + $0xbc] sm:$0xf]
      %s2898 = scalar_lea.vmem %s5, 384
      %v2899 = vld [vmem:[%s2898] sm:$0xf]
      %v2900 = vld [vmem:[%s2898 + $0x4] sm:$0xf]
      %v2901 = vld [vmem:[%s2898 + $0x8] sm:$0xf]
      %v2902 = vld [vmem:[%s2898 + $0xc] sm:$0xf]
      %v2903 = vld [vmem:[%s2898 + $0x10] sm:$0xf]
      %v2904 = vld [vmem:[%s2898 + $0x14] sm:$0xf]
      %v2905 = vld [vmem:[%s2898 + $0x18] sm:$0xf]
      %v2906 = vld [vmem:[%s2898 + $0x1c] sm:$0xf]
      %v2907 = vld [vmem:[%s2898 + $0x20] sm:$0xf]
      %v2908 = vld [vmem:[%s2898 + $0x24] sm:$0xf]
      %v2909 = vld [vmem:[%s2898 + $0x28] sm:$0xf]
      %v2910 = vld [vmem:[%s2898 + $0x2c] sm:$0xf]
      %v2911 = vld [vmem:[%s2898 + $0x30] sm:$0xf]
      %v2912 = vld [vmem:[%s2898 + $0x34] sm:$0xf]
      %v2913 = vld [vmem:[%s2898 + $0x38] sm:$0xf]
      %v2914 = vld [vmem:[%s2898 + $0x3c] sm:$0xf]
      %v2915 = vld [vmem:[%s2898 + $0x40] sm:$0xf]
      %v2916 = vld [vmem:[%s2898 + $0x44] sm:$0xf]
      %v2917 = vld [vmem:[%s2898 + $0x48] sm:$0xf]
      %v2918 = vld [vmem:[%s2898 + $0x4c] sm:$0xf]
      %v2919 = vld [vmem:[%s2898 + $0x50] sm:$0xf]
      %v2920 = vld [vmem:[%s2898 + $0x54] sm:$0xf]
      %v2921 = vld [vmem:[%s2898 + $0x58] sm:$0xf]
      %v2922 = vld [vmem:[%s2898 + $0x5c] sm:$0xf]
      %v2923 = vld [vmem:[%s2898 + $0x60] sm:$0xf]
      %v2924 = vld [vmem:[%s2898 + $0x64] sm:$0xf]
      %v2925 = vld [vmem:[%s2898 + $0x68] sm:$0xf]
      %v2926 = vld [vmem:[%s2898 + $0x6c] sm:$0xf]
      %v2927 = vld [vmem:[%s2898 + $0x70] sm:$0xf]
      %v2928 = vld [vmem:[%s2898 + $0x74] sm:$0xf]
      %v2929 = vld [vmem:[%s2898 + $0x78] sm:$0xf]
      %v2930 = vld [vmem:[%s2898 + $0x7c] sm:$0xf]
      %v2931 = vld [vmem:[%s2898 + $0x80] sm:$0xf]
      %v2932 = vld [vmem:[%s2898 + $0x84] sm:$0xf]
      %v2933 = vld [vmem:[%s2898 + $0x88] sm:$0xf]
      %v2934 = vld [vmem:[%s2898 + $0x8c] sm:$0xf]
      %v2935 = vld [vmem:[%s2898 + $0x90] sm:$0xf]
      %v2936 = vld [vmem:[%s2898 + $0x94] sm:$0xf]
      %v2937 = vld [vmem:[%s2898 + $0x98] sm:$0xf]
      %v2938 = vld [vmem:[%s2898 + $0x9c] sm:$0xf]
      %v2939 = vld [vmem:[%s2898 + $0xa0] sm:$0xf]
      %v2940 = vld [vmem:[%s2898 + $0xa4] sm:$0xf]
      %v2941 = vld [vmem:[%s2898 + $0xa8] sm:$0xf]
      %v2942 = vld [vmem:[%s2898 + $0xac] sm:$0xf]
      %v2943 = vld [vmem:[%s2898 + $0xb0] sm:$0xf]
      %v2944 = vld [vmem:[%s2898 + $0xb4] sm:$0xf]
      %v2945 = vld [vmem:[%s2898 + $0xb8] sm:$0xf]
      %v2946 = vld [vmem:[%s2898 + $0xbc] sm:$0xf]
      %v2979 = vunpack.c.l.b16 %v2866
      %v2980 = vunpack.c.h.b16 %v2866
      %v2981 = vunpack.c.l.b16 %v2867
      %v2982 = vunpack.c.l.b16 %v2868
      %v2983 = vunpack.c.h.b16 %v2868
      %v2984 = vunpack.c.l.b16 %v2869
      %v2985 = vunpack.c.l.b16 %v2870
      %v2986 = vunpack.c.h.b16 %v2870
      %v2987 = vunpack.c.l.b16 %v2871
      %v2988 = vunpack.c.l.b16 %v2872
      %v2989 = vunpack.c.h.b16 %v2872
      %v2990 = vunpack.c.l.b16 %v2873
      %v2991 = vunpack.c.l.b16 %v2874
      %v2992 = vunpack.c.h.b16 %v2874
      %v2993 = vunpack.c.l.b16 %v2875
      %v2994 = vunpack.c.l.b16 %v2876
      %v2995 = vunpack.c.h.b16 %v2876
      %v2996 = vunpack.c.l.b16 %v2877
      %v2997 = vunpack.c.l.b16 %v2878
      %v2998 = vunpack.c.h.b16 %v2878
      %v2999 = vunpack.c.l.b16 %v2879
      %v3000 = vunpack.c.l.b16 %v2880
      %v3001 = vunpack.c.h.b16 %v2880
      %v3002 = vunpack.c.l.b16 %v2881
      %v3003 = vunpack.c.l.b16 %v2882
      %v3004 = vunpack.c.h.b16 %v2882
      %v3005 = vunpack.c.l.b16 %v2883
      %v3006 = vunpack.c.l.b16 %v2884
      %v3007 = vunpack.c.h.b16 %v2884
      %v3008 = vunpack.c.l.b16 %v2885
      %v3009 = vunpack.c.l.b16 %v2886
      %v3010 = vunpack.c.h.b16 %v2886
      %v3011 = vunpack.c.l.b16 %v2887
      %v3012 = vunpack.c.l.b16 %v2888
      %v3013 = vunpack.c.h.b16 %v2888
      %v3014 = vunpack.c.l.b16 %v2889
      %v3015 = vunpack.c.l.b16 %v2890
      %v3016 = vunpack.c.h.b16 %v2890
      %v3017 = vunpack.c.l.b16 %v2891
      %v3018 = vunpack.c.l.b16 %v2892
      %v3019 = vunpack.c.h.b16 %v2892
      %v3020 = vunpack.c.l.b16 %v2893
      %v3021 = vunpack.c.l.b16 %v2894
      %v3022 = vunpack.c.h.b16 %v2894
      %v3023 = vunpack.c.l.b16 %v2895
      %v3024 = vunpack.c.l.b16 %v2896
      %v3025 = vunpack.c.h.b16 %v2896
      %v3026 = vunpack.c.l.b16 %v2897
      %v3027 = vpack.c.b16 %v2982, %v2979
      %v3028 = vpack.c.b16 %v2983, %v2980
      %v3029 = vpack.c.b16 %v2984, %v2981
      %v3030 = vpack.c.b16 %v2988, %v2985
      %v3031 = vpack.c.b16 %v2989, %v2986
      %v3032 = vpack.c.b16 %v2990, %v2987
      %v3033 = vpack.c.b16 %v2994, %v2991
      %v3034 = vpack.c.b16 %v2995, %v2992
      %v3035 = vpack.c.b16 %v2996, %v2993
      %v3036 = vpack.c.b16 %v3000, %v2997
      %v3037 = vpack.c.b16 %v3001, %v2998
      %v3038 = vpack.c.b16 %v3002, %v2999
      %v3039 = vpack.c.b16 %v3006, %v3003
      %v3040 = vpack.c.b16 %v3007, %v3004
      %v3041 = vpack.c.b16 %v3008, %v3005
      %v3042 = vpack.c.b16 %v3012, %v3009
      %v3043 = vpack.c.b16 %v3013, %v3010
      %v3044 = vpack.c.b16 %v3014, %v3011
      %v3045 = vpack.c.b16 %v3018, %v3015
      %v3046 = vpack.c.b16 %v3019, %v3016
      %v3047 = vpack.c.b16 %v3020, %v3017
      %v3048 = vpack.c.b16 %v3024, %v3021
      %v3049 = vpack.c.b16 %v3025, %v3022
      %v3050 = vpack.c.b16 %v3026, %v3023
      %v3123 = vunpack.c.l.b16 %v2899
      %v3124 = vunpack.c.l.b16 %v2900
      %v3125 = vunpack.c.l.b16 %v2901
      %v3126 = vunpack.c.l.b16 %v2902
      %v3127 = vunpack.c.l.b16 %v2903
      %v3128 = vunpack.c.l.b16 %v2904
      %v3129 = vunpack.c.l.b16 %v2905
      %v3130 = vunpack.c.l.b16 %v2906
      %v3131 = vunpack.c.l.b16 %v2907
      %v3132 = vunpack.c.l.b16 %v2908
      %v3133 = vunpack.c.l.b16 %v2909
      %v3134 = vunpack.c.l.b16 %v2910
      %v3135 = vunpack.c.l.b16 %v2911
      %v3136 = vunpack.c.l.b16 %v2912
      %v3137 = vunpack.c.l.b16 %v2913
      %v3138 = vunpack.c.l.b16 %v2914
      %v3139 = vunpack.c.l.b16 %v2915
      %v3140 = vunpack.c.l.b16 %v2916
      %v3141 = vunpack.c.l.b16 %v2917
      %v3142 = vunpack.c.l.b16 %v2918
      %v3143 = vunpack.c.l.b16 %v2919
      %v3144 = vunpack.c.l.b16 %v2920
      %v3145 = vunpack.c.l.b16 %v2921
      %v3146 = vunpack.c.l.b16 %v2922
      %v3147 = vunpack.c.l.b16 %v2923
      %v3148 = vunpack.c.l.b16 %v2924
      %v3149 = vunpack.c.l.b16 %v2925
      %v3150 = vunpack.c.l.b16 %v2926
      %v3151 = vunpack.c.l.b16 %v2927
      %v3152 = vunpack.c.l.b16 %v2928
      %v3153 = vunpack.c.l.b16 %v2929
      %v3154 = vunpack.c.l.b16 %v2930
      %v3155 = vunpack.c.l.b16 %v2931
      %v3156 = vunpack.c.l.b16 %v2932
      %v3157 = vunpack.c.l.b16 %v2933
      %v3158 = vunpack.c.l.b16 %v2934
      %v3159 = vunpack.c.l.b16 %v2935
      %v3160 = vunpack.c.l.b16 %v2936
      %v3161 = vunpack.c.l.b16 %v2937
      %v3162 = vunpack.c.l.b16 %v2938
      %v3163 = vunpack.c.l.b16 %v2939
      %v3164 = vunpack.c.l.b16 %v2940
      %v3165 = vunpack.c.l.b16 %v2941
      %v3166 = vunpack.c.l.b16 %v2942
      %v3167 = vunpack.c.l.b16 %v2943
      %v3168 = vunpack.c.l.b16 %v2944
      %v3169 = vunpack.c.l.b16 %v2945
      %v3170 = vunpack.c.l.b16 %v2946
      %v3171 = vpack.c.b16 %v3124, %v3123
      %v3172 = vpack.c.b16 %v3126, %v3125
      %v3173 = vpack.c.b16 %v3128, %v3127
      %v3174 = vpack.c.b16 %v3130, %v3129
      %v3175 = vpack.c.b16 %v3132, %v3131
      %v3176 = vpack.c.b16 %v3134, %v3133
      %v3177 = vpack.c.b16 %v3136, %v3135
      %v3178 = vpack.c.b16 %v3138, %v3137
      %v3179 = vpack.c.b16 %v3140, %v3139
      %v3180 = vpack.c.b16 %v3142, %v3141
      %v3181 = vpack.c.b16 %v3144, %v3143
      %v3182 = vpack.c.b16 %v3146, %v3145
      %v3183 = vpack.c.b16 %v3148, %v3147
      %v3184 = vpack.c.b16 %v3150, %v3149
      %v3185 = vpack.c.b16 %v3152, %v3151
      %v3186 = vpack.c.b16 %v3154, %v3153
      %v3187 = vpack.c.b16 %v3156, %v3155
      %v3188 = vpack.c.b16 %v3158, %v3157
      %v3189 = vpack.c.b16 %v3160, %v3159
      %v3190 = vpack.c.b16 %v3162, %v3161
      %v3191 = vpack.c.b16 %v3164, %v3163
      %v3192 = vpack.c.b16 %v3166, %v3165
      %v3193 = vpack.c.b16 %v3168, %v3167
      %v3194 = vpack.c.b16 %v3170, %v3169
      %3219 = vmatpush.bf16.msra.mxu0 %v3178
      %3220 = vmatpush.bf16.msra.mxu0 %v3177
      %3221 = vmatpush.bf16.msra.mxu0 %v3176
      %3222 = vmatpush.bf16.msra.mxu0 %v3175
      %3223 = vmatpush.bf16.msra.mxu0 %v3174
      %3224 = vmatpush.bf16.msra.mxu0 %v3173
      %3225 = vmatpush.bf16.msra.mxu0 %v3172
      %3226 = vmatpush.bf16.msra.mxu0 %v3171
      %3227 = vmatmul.bf16.gmra.mxu0 %v3027
      %v3228 = vpop.f32.mrf.mxu0
      %v3229 = vadd.f32 0.0, %v3228
      %v3230 = vpop.f32.mrf.mxu0
      %v3231 = vadd.f32 0.0, %v3230
      %3232 = vmatmul.bf16.gmra.mxu0 %v3030
      %v3233 = vpop.f32.mrf.mxu0
      %v3234 = vadd.f32 0.0, %v3233
      %v3235 = vpop.f32.mrf.mxu0
      %v3236 = vadd.f32 0.0, %v3235
      %3237 = vmatmul.bf16.gmra.mxu0 %v3033
      %v3238 = vpop.f32.mrf.mxu0
      %v3239 = vadd.f32 0.0, %v3238
      %v3240 = vpop.f32.mrf.mxu0
      %v3241 = vadd.f32 0.0, %v3240
      %3242 = vmatmul.bf16.gmra.mxu0 %v3036
      %v3243 = vpop.f32.mrf.mxu0
      %v3244 = vadd.f32 0.0, %v3243
      %v3245 = vpop.f32.mrf.mxu0
      %v3246 = vadd.f32 0.0, %v3245
      %3247 = vmatmul.bf16.gmra.mxu0 %v3039
      %v3248 = vpop.f32.mrf.mxu0
      %v3249 = vadd.f32 0.0, %v3248
      %v3250 = vpop.f32.mrf.mxu0
      %v3251 = vadd.f32 0.0, %v3250
      %3252 = vmatmul.bf16.gmra.mxu0 %v3042
      %v3253 = vpop.f32.mrf.mxu0
      %v3254 = vadd.f32 0.0, %v3253
      %v3255 = vpop.f32.mrf.mxu0
      %v3256 = vadd.f32 0.0, %v3255
      %3257 = vmatmul.bf16.gmra.mxu0 %v3045
      %v3258 = vpop.f32.mrf.mxu0
      %v3259 = vadd.f32 0.0, %v3258
      %v3260 = vpop.f32.mrf.mxu0
      %v3261 = vadd.f32 0.0, %v3260
      %3262 = vmatmul.bf16.gmra.mxu0 %v3048
      %v3263 = vpop.f32.mrf.mxu0
      %v3264 = vadd.f32 0.0, %v3263
      %v3265 = vpop.f32.mrf.mxu0
      %v3266 = vadd.f32 0.0, %v3265
      %3267 = vdwg.mxu0
      %3268 = vmatpush.bf16.msra.mxu0 %v3186
      %3269 = vmatpush.bf16.msra.mxu0 %v3185
      %3270 = vmatpush.bf16.msra.mxu0 %v3184
      %3271 = vmatpush.bf16.msra.mxu0 %v3183
      %3272 = vmatpush.bf16.msra.mxu0 %v3182
      %3273 = vmatpush.bf16.msra.mxu0 %v3181
      %3274 = vmatpush.bf16.msra.mxu0 %v3180
      %3275 = vmatpush.bf16.msra.mxu0 %v3179
      %3276 = vmatmul.bf16.gmra.mxu0 %v3028
      %v3277 = vpop.f32.mrf.mxu0
      %v3278 = vadd.f32 %v3229, %v3277
      %v3279 = vpop.f32.mrf.mxu0
      %v3280 = vadd.f32 %v3231, %v3279
      %3281 = vmatmul.bf16.gmra.mxu0 %v3031
      %v3282 = vpop.f32.mrf.mxu0
      %v3283 = vadd.f32 %v3234, %v3282
      %v3284 = vpop.f32.mrf.mxu0
      %v3285 = vadd.f32 %v3236, %v3284
      %3286 = vmatmul.bf16.gmra.mxu0 %v3034
      %v3287 = vpop.f32.mrf.mxu0
      %v3288 = vadd.f32 %v3239, %v3287
      %v3289 = vpop.f32.mrf.mxu0
      %v3290 = vadd.f32 %v3241, %v3289
      %3291 = vmatmul.bf16.gmra.mxu0 %v3037
      %v3292 = vpop.f32.mrf.mxu0
      %v3293 = vadd.f32 %v3244, %v3292
      %v3294 = vpop.f32.mrf.mxu0
      %v3295 = vadd.f32 %v3246, %v3294
      %3296 = vmatmul.bf16.gmra.mxu0 %v3040
      %v3297 = vpop.f32.mrf.mxu0
      %v3298 = vadd.f32 %v3249, %v3297
      %v3299 = vpop.f32.mrf.mxu0
      %v3300 = vadd.f32 %v3251, %v3299
      %3301 = vmatmul.bf16.gmra.mxu0 %v3043
      %v3302 = vpop.f32.mrf.mxu0
      %v3303 = vadd.f32 %v3254, %v3302
      %v3304 = vpop.f32.mrf.mxu0
      %v3305 = vadd.f32 %v3256, %v3304
      %3306 = vmatmul.bf16.gmra.mxu0 %v3046
      %v3307 = vpop.f32.mrf.mxu0
      %v3308 = vadd.f32 %v3259, %v3307
      %v3309 = vpop.f32.mrf.mxu0
      %v3310 = vadd.f32 %v3261, %v3309
      %3311 = vmatmul.bf16.gmra.mxu0 %v3049
      %v3312 = vpop.f32.mrf.mxu0
      %v3313 = vadd.f32 %v3264, %v3312
      %v3314 = vpop.f32.mrf.mxu0
      %v3315 = vadd.f32 %v3266, %v3314
      %3316 = vdwg.mxu0
      %3317 = vmatpush.bf16.msra.mxu0 %v3194
      %3318 = vmatpush.bf16.msra.mxu0 %v3193
      %3319 = vmatpush.bf16.msra.mxu0 %v3192
      %3320 = vmatpush.bf16.msra.mxu0 %v3191
      %3321 = vmatpush.bf16.msra.mxu0 %v3190
      %3322 = vmatpush.bf16.msra.mxu0 %v3189
      %3323 = vmatpush.bf16.msra.mxu0 %v3188
      %3324 = vmatpush.bf16.msra.mxu0 %v3187
      %3325 = vmatmul.bf16.gmra.mxu0 %v3029
      %v3326 = vpop.f32.mrf.mxu0
      %v3327 = vadd.f32 %v3278, %v3326
      %v3328 = vpop.f32.mrf.mxu0
      %v3329 = vadd.f32 %v3280, %v3328
      %3330 = vmatmul.bf16.gmra.mxu0 %v3032
      %v3331 = vpop.f32.mrf.mxu0
      %v3332 = vadd.f32 %v3283, %v3331
      %v3333 = vpop.f32.mrf.mxu0
      %v3334 = vadd.f32 %v3285, %v3333
      %3335 = vmatmul.bf16.gmra.mxu0 %v3035
      %v3336 = vpop.f32.mrf.mxu0
      %v3337 = vadd.f32 %v3288, %v3336
      %v3338 = vpop.f32.mrf.mxu0
      %v3339 = vadd.f32 %v3290, %v3338
      %3340 = vmatmul.bf16.gmra.mxu0 %v3038
      %v3341 = vpop.f32.mrf.mxu0
      %v3342 = vadd.f32 %v3293, %v3341
      %v3343 = vpop.f32.mrf.mxu0
      %v3344 = vadd.f32 %v3295, %v3343
      %3345 = vmatmul.bf16.gmra.mxu0 %v3041
      %v3346 = vpop.f32.mrf.mxu0
      %v3347 = vadd.f32 %v3298, %v3346
      %v3348 = vpop.f32.mrf.mxu0
      %v3349 = vadd.f32 %v3300, %v3348
      %3350 = vmatmul.bf16.gmra.mxu0 %v3044
      %v3351 = vpop.f32.mrf.mxu0
      %v3352 = vadd.f32 %v3303, %v3351
      %v3353 = vpop.f32.mrf.mxu0
      %v3354 = vadd.f32 %v3305, %v3353
      %3355 = vmatmul.bf16.gmra.mxu0 %v3047
      %v3356 = vpop.f32.mrf.mxu0
      %v3357 = vadd.f32 %v3308, %v3356
      %v3358 = vpop.f32.mrf.mxu0
      %v3359 = vadd.f32 %v3310, %v3358
      %3360 = vmatmul.bf16.gmra.mxu0 %v3050
      %v3361 = vpop.f32.mrf.mxu0
      %v3362 = vadd.f32 %v3313, %v3361
      %v3363 = vpop.f32.mrf.mxu0
      %v3364 = vadd.f32 %v3315, %v3363
      %3365 = vdwg.mxu0
      %v3366 = vadd.f32 %v2826, %v3327
      %v3367 = vadd.f32 %v2828, %v3329
      %v3368 = vadd.f32 %v2831, %v3332
      %v3369 = vadd.f32 %v2833, %v3334
      %v3370 = vadd.f32 %v2836, %v3337
      %v3371 = vadd.f32 %v2838, %v3339
      %v3372 = vadd.f32 %v2841, %v3342
      %v3373 = vadd.f32 %v2843, %v3344
      %v3374 = vadd.f32 %v2846, %v3347
      %v3375 = vadd.f32 %v2848, %v3349
      %v3376 = vadd.f32 %v2851, %v3352
      %v3377 = vadd.f32 %v2853, %v3354
      %v3378 = vadd.f32 %v2856, %v3357
      %v3379 = vadd.f32 %v2858, %v3359
      %v3380 = vadd.f32 %v2861, %v3362
      %v3381 = vadd.f32 %v2863, %v3364
      %v3382 = vld [vmem:[%s6] sm:$0x1]
      %v3384 = vperm.slane %v3382, 0
      %v3386 = vadd.f32 %v3366, %v3384
      %v3387 = vadd.f32 %v3367, %v3384
      %v3388 = vadd.f32 %v3368, %v3384
      %v3389 = vadd.f32 %v3369, %v3384
      %v3390 = vadd.f32 %v3370, %v3384
      %v3391 = vadd.f32 %v3371, %v3384
      %v3392 = vadd.f32 %v3372, %v3384
      %v3393 = vadd.f32 %v3373, %v3384
      %v3394 = vadd.f32 %v3374, %v3384
      %v3395 = vadd.f32 %v3375, %v3384
      %v3396 = vadd.f32 %v3376, %v3384
      %v3397 = vadd.f32 %v3377, %v3384
      %v3398 = vadd.f32 %v3378, %v3384
      %v3399 = vadd.f32 %v3379, %v3384
      %v3400 = vadd.f32 %v3380, %v3384
      %v3401 = vadd.f32 %v3381, %v3384
      %3402 = vst [vmem:[%s486] sm:$0xff] %v3386
      %3403 = vst [vmem:[%s486 + $0x8] sm:$0xff] %v3387
      %3404 = vst [vmem:[%s486 + $0x10] sm:$0xff] %v3388
      %3405 = vst [vmem:[%s486 + $0x18] sm:$0xff] %v3389
      %3406 = vst [vmem:[%s486 + $0x20] sm:$0xff] %v3390
      %3407 = vst [vmem:[%s486 + $0x28] sm:$0xff] %v3391
      %3408 = vst [vmem:[%s486 + $0x30] sm:$0xff] %v3392
      %3409 = vst [vmem:[%s486 + $0x38] sm:$0xff] %v3393
      %3410 = vst [vmem:[%s486 + $0x40] sm:$0xff] %v3394
      %3411 = vst [vmem:[%s486 + $0x48] sm:$0xff] %v3395
      %3412 = vst [vmem:[%s486 + $0x50] sm:$0xff] %v3396
      %3413 = vst [vmem:[%s486 + $0x58] sm:$0xff] %v3397
      %3414 = vst [vmem:[%s486 + $0x60] sm:$0xff] %v3398
      %3415 = vst [vmem:[%s486 + $0x68] sm:$0xff] %v3399
      %3416 = vst [vmem:[%s486 + $0x70] sm:$0xff] %v3400
      %3417 = vst [vmem:[%s486 + $0x78] sm:$0xff] %v3401
      %v3418 = vadd.f32 %v3386, %v3387
      %v3419 = vadd.f32 %v3418, %v3388
      %v3420 = vadd.f32 %v3419, %v3389
      %v3421 = vadd.f32 %v3420, %v3390
      %v3422 = vadd.f32 %v3421, %v3391
      %v3423 = vadd.f32 %v3422, %v3392
      %v3424 = vadd.f32 %v3423, %v3393
      %v3425 = vadd.f32 %v3424, %v3394
      %v3426 = vadd.f32 %v3425, %v3395
      %v3427 = vadd.f32 %v3426, %v3396
      %v3428 = vadd.f32 %v3427, %v3397
      %v3429 = vadd.f32 %v3428, %v3398
      %v3430 = vadd.f32 %v3429, %v3399
      %v3431 = vadd.f32 %v3430, %v3400
      %v3432 = vadd.f32 %v3431, %v3401
      %v3433 = vmul.f32 %v3386, %v3386
      %v3434 = vmul.f32 %v3387, %v3387
      %v3435 = vmul.f32 %v3388, %v3388
      %v3436 = vmul.f32 %v3389, %v3389
      %v3437 = vmul.f32 %v3390, %v3390
      %v3438 = vmul.f32 %v3391, %v3391
      %v3439 = vmul.f32 %v3392, %v3392
      %v3440 = vmul.f32 %v3393, %v3393
      %v3441 = vmul.f32 %v3394, %v3394
      %v3442 = vmul.f32 %v3395, %v3395
      %v3443 = vmul.f32 %v3396, %v3396
      %v3444 = vmul.f32 %v3397, %v3397
      %v3445 = vmul.f32 %v3398, %v3398
      %v3446 = vmul.f32 %v3399, %v3399
      %v3447 = vmul.f32 %v3400, %v3400
      %v3448 = vmul.f32 %v3401, %v3401
      %v3449 = vadd.f32 %v3433, %v3434
      %v3450 = vadd.f32 %v3449, %v3435
      %v3451 = vadd.f32 %v3450, %v3436
      %v3452 = vadd.f32 %v3451, %v3437
      %v3453 = vadd.f32 %v3452, %v3438
      %v3454 = vadd.f32 %v3453, %v3439
      %v3455 = vadd.f32 %v3454, %v3440
      %v3456 = vadd.f32 %v3455, %v3441
      %v3457 = vadd.f32 %v3456, %v3442
      %v3458 = vadd.f32 %v3457, %v3443
      %v3459 = vadd.f32 %v3458, %v3444
      %v3460 = vadd.f32 %v3459, %v3445
      %v3461 = vadd.f32 %v3460, %v3446
      %v3462 = vadd.f32 %v3461, %v3447
      %v3463 = vadd.f32 %v3462, %v3448
      %3464 = vst [vmem:[%s496] sm:$0xff] %v3432
      %3465 = vst [vmem:[%s496 + $0x8] sm:$0xff] %v3463
      %s3466 = smul.u32 8, %s25
      %p3467 = scmp.lt.s32.totalorder %s24, 1
      %s3468 = scalar_select %p3467, %s24, 1
      %p3469 = scmp.lt.s32.totalorder %s3466, 15
      %s3470 = scalar_select %p3469, %s3466, 15
      %s3471 = smul.addr %s3470, 2
      %s3472 = smul.addr %s3468, 32
      %s3473 = sadd.s32 %s3471, %s3472
      %s3474 = smul.addr %s3473, 8
      %s3475 = scalar_lea.vmem %s7, %s3474
      %p3476 = scmp.lt.s32.totalorder %s24, 1
      %s3477 = scalar_select %p3476, %s24, 1
      %p3478 = scmp.lt.s32.totalorder %s25, 1
      %s3479 = scalar_select %p3478, %s25, 1
      %s3480 = smul.addr %s3479, 2
      %s3481 = smul.addr %s3477, 4
      %s3482 = sadd.s32 %s3480, %s3481
      %s3483 = smul.addr %s3482, 8
      %s3484 = scalar_lea.vmem %s8, %s3483
      // Predicated region
      $region49: #{resnet_block_forward.4} parent=47 // pred_check
        %p3485 = pneg %p236
      $region50: #{resnet_block_forward.4} parent=47 // pred_check_branch
        %3487 = sbr.rel (%p3485) target = $region52
      $region51: #{resnet_block_forward.4} parent=47 // pred_region
        %s3488 = smul.u32 8, %s25
      $region52: #{resnet_block_forward.4} parent=47 // pred_fallthru
        _
      // Predicated region
      $region53: #{resnet_block_forward.4} parent=47 // pred_check
        %p3489 = pneg %p264
      $region54: #{resnet_block_forward.4} parent=47 // pred_check_branch
        %3491 = sbr.rel (%p3489) target = $region56
      $region55: #{resnet_block_forward.4} parent=47 // pred_region
        _
      $region56: #{resnet_block_forward.4} parent=47 // pred_fallthru
        _
    $region48: #{resnet_block_forward.4} parent=5 // pred_fallthru
      _
    %p3492 = scmp.le.s32.totalorder 2, %s15
    // Predicated region
    $region57: #{resnet_block_forward.4} parent=5 // pred_check
      %p3493 = pneg %p3492
    $region58: #{resnet_block_forward.4} parent=5 // pred_check_branch
      %3495 = sbr.rel (%p3493) target = $region60
    $region59: #{resnet_block_forward.4} parent=5 // pred_region
      %s3496 = ssub.s32 %s15, 2
      // Predicated region
      $region61: #{resnet_block_forward.4} parent=59 // pred_check
        %p3497 = pneg %p242
      $region62: #{resnet_block_forward.4} parent=59 // pred_check_branch
        %3499 = sbr.rel (%p3497) target = $region64
      $region63: #{resnet_block_forward.4} parent=59 // pred_region
        %s3500 = smul.u32 8, %s27
        %p3501 = scmp.lt.s32.totalorder %s26, 1
        %s3502 = scalar_select %p3501, %s26, 1
        %p3503 = scmp.lt.s32.totalorder %s3500, 15
        %s3504 = scalar_select %p3503, %s3500, 15
        %s3505 = smul.addr %s3504, 2
        %s3506 = smul.addr %s3502, 32
        %s3507 = sadd.s32 %s3505, %s3506
        %s3508 = smul.addr %s3507, 8
        %s3509 = scalar_lea.vmem %s7, %s3508
      $region64: #{resnet_block_forward.4} parent=59 // pred_fallthru
        _
      // Predicated region
      $region65: #{resnet_block_forward.4} parent=59 // pred_check
        %p3510 = pneg %p270
      $region66: #{resnet_block_forward.4} parent=59 // pred_check_branch
        %3512 = sbr.rel (%p3510) target = $region68
      $region67: #{resnet_block_forward.4} parent=59 // pred_region
        %p3513 = scmp.lt.s32.totalorder %s26, 1
        %s3514 = scalar_select %p3513, %s26, 1
        %p3515 = scmp.lt.s32.totalorder %s27, 1
        %s3516 = scalar_select %p3515, %s27, 1
        %s3517 = smul.addr %s3516, 2
        %s3518 = smul.addr %s3514, 4
        %s3519 = sadd.s32 %s3517, %s3518
        %s3520 = smul.addr %s3519, 8
        %s3521 = scalar_lea.vmem %s8, %s3520
      $region68: #{resnet_block_forward.4} parent=59 // pred_fallthru
        _
    $region60: #{resnet_block_forward.4} parent=5 // pred_fallthru
      _
  $region6: #{resnet_block_forward.4} parent=0 // loop_footer
    %s19 = sadd.s32 1, %s15
  $region7: #{resnet_block_forward.4} parent=0 // loop_footer_branch
    %14 = sbr.rel target = $region3
  $region8: #{resnet_block_forward.4} parent=0 // loop_exit
    _

// kernel: resnet_block_forward.5
$region0: #{resnet_block_forward.5}
  #allocation0 [shape = 'u32[]', space=smem, size = 0x4, offset = 0x4, fixed_abs, tag = 'smem constant byte address 0x4 - core index']
  #allocation1 [shape = 'u32[72,128]{1,0:T(1,128)}', space=vmem, size = 0x9000, scoped, tag = 'internal scratch']
  #allocation2 [shape = 'bf16[10,18,128]{2,1,0:T(8,128)(2,1)}', space=vmem, size = 0xf000, scoped, tag = 'scratch operand']
  #allocation3 [shape = 'bf16[10,16,384]{2,1,0:T(8,128)(2,1)}', space=vmem, size = 0x1e000, scoped, tag = 'scratch operand']
  %s0 = inlined_call_operand.vmem [shape: f32[2,16,16,128], index: 0, kind: input, shape index: {}, may-alias: {0,1,2}]
  %s1 = inlined_call_operand.vmem [shape: f32[2,16,16,128], index: 1, kind: input, shape index: {}, may-alias: {0,1,2}]
  %s2 = inlined_call_operand.vmem [shape: f32[2,16,16,128], index: 2, kind: input, shape index: {}, may-alias: {0,1,2}]
  %s3 = inlined_call_operand.vmem [shape: f32[2,16,16,128], index: 3, kind: input, shape index: {}]
  %s4 = inlined_call_operand.vmem [shape: f32[1,128], index: 4, kind: input, shape index: {}]
  %s5 = inlined_call_operand.vmem [shape: f32[1,128], index: 5, kind: input, shape index: {}]
  %s6 = inlined_call_operand.vmem [shape: bf16[3,384,128], index: 6, kind: input, shape index: {}]
  %s7 = inlined_call_operand.vmem [shape: f32[1,128], index: 7, kind: input, shape index: {}]
  %s8 = inlined_call_operand.vmem [shape: bf16[128,128], index: 8, kind: input, shape index: {}]
  %s9 = inlined_call_operand.vmem [shape: f32[1,128], index: 9, kind: input, shape index: {}]
  %s10 = inlined_call_operand.vmem [shape: f32[2,16,16,128], index: 10, kind: output, shape index: {}]
  %s11 = sld [smem:[#allocation0]]
  $region73: #{resnet_block_forward.5} parent=0
    _
  %s13 = ssub.s32 1, %s11
  %s14 = scalar_select 0, %s13, %s11
  loop: start=0, step=1, limit=6
  $region2: #{resnet_block_forward.5} parent=0 // loop_pre_header
    _
  $region3: #{resnet_block_forward.5} parent=0 // loop_header
    %s16 = sphi 0, %s20
    %p17 = scmp.ge.s32.totalorder %s16, 6
    %s23 = sphi 0, %s35
    %s24 = sphi 0, %s31
    %s25 = sphi 0, %s23
    %s26 = sphi 0, %s24
    %s27 = sphi 0, %s25
    %s28 = sphi 0, %s26
    %s40 = sphi 0, %s42
    %s43 = sphi 0, %s40
    %s44 = sphi 0, %s43
    %s60 = sphi 0, %s44
    %s76 = sphi 0, %s78
    %s79 = sphi 0, %s76
    %s80 = sphi 0, %s79
    %s96 = sphi 0, %s80
    %s112 = sphi 0, %s114
    %s115 = sphi 0, %s112
    %s116 = sphi 0, %s115
    %s132 = sphi 0, %s116
    %s140 = sphi 0, %s142
    %s143 = sphi 0, %s140
    %s144 = sphi 0, %s143
    %s160 = sphi 0, %s144
    %s164 = sphi 0, %s164
    %s166 = sphi 0, %s164
    %s167 = sphi 0, %s166
    %s181 = sphi 0, %s167
    %s185 = sphi 0, %s185
    %s187 = sphi 0, %s185
    %s188 = sphi 0, %s187
    %s202 = sphi 0, %s188
    %s206 = sphi 0, %s206
    %s208 = sphi 0, %s206
    %s209 = sphi 0, %s208
    %s223 = sphi 0, %s209
    %s227 = sphi 0, %s227
    %s229 = sphi 0, %s227
    %s230 = sphi 0, %s229
    %s244 = sphi 0, %s230
    %s248 = sphi 0, %s248
    %s250 = sphi 0, %s248
    %s251 = sphi 0, %s250
    %s265 = sphi 0, %s251
    %s269 = sphi 0, %s269
    %s271 = sphi 0, %s269
    %s272 = sphi 0, %s271
    %s286 = sphi 0, %s272
    %s294 = sphi 0, %s296
    %s297 = sphi 0, %s294
    %s298 = sphi 0, %s297
    %s314 = sphi 0, %s298
  $region4: #{resnet_block_forward.5} parent=0 // loop_header_branch
    %19 = sbr.rel (%p17) target = $region8
  $region5: #{resnet_block_forward.5} parent=0 // loop_body
    %s21 = ssub.s32 %s16, 1
    %s22 = ssub.s32 %s16, 2
    %s29 = sadd.s32 1, %s24
    %p30 = scmp.ge.s32.totalorder %s29, 2
    %s31 = scalar_select %p30, 0, %s29
    %s32 = sadd.s32 1, %s23
    %s33 = scalar_select %p30, %s32, %s23
    %p34 = scmp.ge.s32.totalorder %s33, 2
    %s35 = scalar_select %p34, 0, %s33
    %s36 = ssub.s32 %s23, %s35
    %s37 = ssub.s32 %s24, %s31
    %s38 = sor.u32 %s36, %s37
    %p39 = scmp.eq.s32.totalorder %s38, 0
    %s41 = sadd.s32 %s40, 1
    %s42 = scalar_select %p39, %s40, %s41
    %p45 = pneg %p39
    %p46 = scmp.eq.s32.totalorder %s16, 3
    %p47 = por %p45, %p46
    %p48 = scmp.ne.s32.totalorder %s40, %s43
    %p49 = scmp.eq.s32.totalorder %s16, 0
    %p50 = por %p48, %p49
    %p51 = scmp.ne.s32.totalorder %s40, %s43
    %p52 = scmp.eq.s32.totalorder %s21, 3
    %p53 = por %p51, %p52
    %p54 = scmp.ne.s32.totalorder %s43, %s44
    %p55 = scmp.eq.s32.totalorder %s21, 0
    %p56 = por %p54, %p55
    %p57 = scmp.ne.s32.totalorder %s43, %s44
    %p58 = scmp.eq.s32.totalorder %s22, 3
    %p59 = por %p57, %p58
    %p61 = scmp.ne.s32.totalorder %s44, %s60
    %p62 = scmp.eq.s32.totalorder %s22, 0
    %p63 = por %p61, %p62
    %s64 = smul.u32 %s24, 8
    %s65 = ssub.s32 %s64, 1
    %p66 = scmp.gt.s32.totalorder %s65, 0
    %s67 = scalar_select %p66, %s65, 0
    %s68 = smul.u32 %s31, 8
    %s69 = ssub.s32 %s68, 1
    %p70 = scmp.gt.s32.totalorder %s69, 0
    %s71 = scalar_select %p70, %s69, 0
    %s72 = ssub.s32 %s23, %s35
    %s73 = ssub.s32 %s67, %s71
    %s74 = sor.u32 %s72, %s73
    %p75 = scmp.eq.s32.totalorder %s74, 0
    %s77 = sadd.s32 %s76, 1
    %s78 = scalar_select %p75, %s76, %s77
    %p81 = pneg %p75
    %p82 = scmp.eq.s32.totalorder %s16, 3
    %p83 = por %p81, %p82
    %p84 = scmp.ne.s32.totalorder %s76, %s79
    %p85 = scmp.eq.s32.totalorder %s16, 0
    %p86 = por %p84, %p85
    %p87 = scmp.ne.s32.totalorder %s76, %s79
    %p88 = scmp.eq.s32.totalorder %s21, 3
    %p89 = por %p87, %p88
    %p90 = scmp.ne.s32.totalorder %s79, %s80
    %p91 = scmp.eq.s32.totalorder %s21, 0
    %p92 = por %p90, %p91
    %p93 = scmp.ne.s32.totalorder %s79, %s80
    %p94 = scmp.eq.s32.totalorder %s22, 3
    %p95 = por %p93, %p94
    %p97 = scmp.ne.s32.totalorder %s80, %s96
    %p98 = scmp.eq.s32.totalorder %s22, 0
    %p99 = por %p97, %p98
    %s100 = sadd.s32 %s24, 1
    %s101 = smul.u32 %s100, 8
    %p102 = scmp.lt.s32.totalorder %s101, 15
    %s103 = scalar_select %p102, %s101, 15
    %s104 = sadd.s32 %s31, 1
    %s105 = smul.u32 %s104, 8
    %p106 = scmp.lt.s32.totalorder %s105, 15
    %s107 = scalar_select %p106, %s105, 15
    %s108 = ssub.s32 %s23, %s35
    %s109 = ssub.s32 %s103, %s107
    %s110 = sor.u32 %s108, %s109
    %p111 = scmp.eq.s32.totalorder %s110, 0
    %s113 = sadd.s32 %s112, 1
    %s114 = scalar_select %p111, %s112, %s113
    %p117 = pneg %p111
    %p118 = scmp.eq.s32.totalorder %s16, 3
    %p119 = por %p117, %p118
    %p120 = scmp.ne.s32.totalorder %s112, %s115
    %p121 = scmp.eq.s32.totalorder %s16, 0
    %p122 = por %p120, %p121
    %p123 = scmp.ne.s32.totalorder %s112, %s115
    %p124 = scmp.eq.s32.totalorder %s21, 3
    %p125 = por %p123, %p124
    %p126 = scmp.ne.s32.totalorder %s115, %s116
    %p127 = scmp.eq.s32.totalorder %s21, 0
    %p128 = por %p126, %p127
    %p129 = scmp.ne.s32.totalorder %s115, %s116
    %p130 = scmp.eq.s32.totalorder %s22, 3
    %p131 = por %p129, %p130
    %p133 = scmp.ne.s32.totalorder %s116, %s132
    %p134 = scmp.eq.s32.totalorder %s22, 0
    %p135 = por %p133, %p134
    %s136 = ssub.s32 %s23, %s35
    %s137 = ssub.s32 %s24, %s31
    %s138 = sor.u32 %s136, %s137
    %p139 = scmp.eq.s32.totalorder %s138, 0
    %s141 = sadd.s32 %s140, 1
    %s142 = scalar_select %p139, %s140, %s141
    %p145 = pneg %p139
    %p146 = scmp.eq.s32.totalorder %s16, 3
    %p147 = por %p145, %p146
    %p148 = scmp.ne.s32.totalorder %s140, %s143
    %p149 = scmp.eq.s32.totalorder %s16, 0
    %p150 = por %p148, %p149
    %p151 = scmp.ne.s32.totalorder %s140, %s143
    %p152 = scmp.eq.s32.totalorder %s21, 3
    %p153 = por %p151, %p152
    %p154 = scmp.ne.s32.totalorder %s143, %s144
    %p155 = scmp.eq.s32.totalorder %s21, 0
    %p156 = por %p154, %p155
    %p157 = scmp.ne.s32.totalorder %s143, %s144
    %p158 = scmp.eq.s32.totalorder %s22, 3
    %p159 = por %p157, %p158
    %p161 = scmp.ne.s32.totalorder %s144, %s160
    %p162 = scmp.eq.s32.totalorder %s22, 0
    %p163 = por %p161, %p162
    %s165 = sadd.s32 %s164, 1
    %p168 = scmp.eq.s32.totalorder %s16, 3
    %p169 = scmp.ne.s32.totalorder %s164, %s166
    %p170 = scmp.eq.s32.totalorder %s16, 0
    %p171 = por %p169, %p170
    %p172 = scmp.ne.s32.totalorder %s164, %s166
    %p173 = scmp.eq.s32.totalorder %s21, 3
    %p174 = por %p172, %p173
    %p175 = scmp.ne.s32.totalorder %s166, %s167
    %p176 = scmp.eq.s32.totalorder %s21, 0
    %p177 = por %p175, %p176
    %p178 = scmp.ne.s32.totalorder %s166, %s167
    %p179 = scmp.eq.s32.totalorder %s22, 3
    %p180 = por %p178, %p179
    %p182 = scmp.ne.s32.totalorder %s167, %s181
    %p183 = scmp.eq.s32.totalorder %s22, 0
    %p184 = por %p182, %p183
    %s186 = sadd.s32 %s185, 1
    %p189 = scmp.eq.s32.totalorder %s16, 3
    %p190 = scmp.ne.s32.totalorder %s185, %s187
    %p191 = scmp.eq.s32.totalorder %s16, 0
    %p192 = por %p190, %p191
    %p193 = scmp.ne.s32.totalorder %s185, %s187
    %p194 = scmp.eq.s32.totalorder %s21, 3
    %p195 = por %p193, %p194
    %p196 = scmp.ne.s32.totalorder %s187, %s188
    %p197 = scmp.eq.s32.totalorder %s21, 0
    %p198 = por %p196, %p197
    %p199 = scmp.ne.s32.totalorder %s187, %s188
    %p200 = scmp.eq.s32.totalorder %s22, 3
    %p201 = por %p199, %p200
    %p203 = scmp.ne.s32.totalorder %s188, %s202
    %p204 = scmp.eq.s32.totalorder %s22, 0
    %p205 = por %p203, %p204
    %s207 = sadd.s32 %s206, 1
    %p210 = scmp.eq.s32.totalorder %s16, 3
    %p211 = scmp.ne.s32.totalorder %s206, %s208
    %p212 = scmp.eq.s32.totalorder %s16, 0
    %p213 = por %p211, %p212
    %p214 = scmp.ne.s32.totalorder %s206, %s208
    %p215 = scmp.eq.s32.totalorder %s21, 3
    %p216 = por %p214, %p215
    %p217 = scmp.ne.s32.totalorder %s208, %s209
    %p218 = scmp.eq.s32.totalorder %s21, 0
    %p219 = por %p217, %p218
    %p220 = scmp.ne.s32.totalorder %s208, %s209
    %p221 = scmp.eq.s32.totalorder %s22, 3
    %p222 = por %p220, %p221
    %p224 = scmp.ne.s32.totalorder %s209, %s223
    %p225 = scmp.eq.s32.totalorder %s22, 0
    %p226 = por %p224, %p225
    %s228 = sadd.s32 %s227, 1
    %p231 = scmp.eq.s32.totalorder %s16, 3
    %p232 = scmp.ne.s32.totalorder %s227, %s229
    %p233 = scmp.eq.s32.totalorder %s16, 0
    %p234 = por %p232, %p233
    %p235 = scmp.ne.s32.totalorder %s227, %s229
    %p236 = scmp.eq.s32.totalorder %s21, 3
    %p237 = por %p235, %p236
    %p238 = scmp.ne.s32.totalorder %s229, %s230
    %p239 = scmp.eq.s32.totalorder %s21, 0
    %p240 = por %p238, %p239
    %p241 = scmp.ne.s32.totalorder %s229, %s230
    %p242 = scmp.eq.s32.totalorder %s22, 3
    %p243 = por %p241, %p242
    %p245 = scmp.ne.s32.totalorder %s230, %s244
    %p246 = scmp.eq.s32.totalorder %s22, 0
    %p247 = por %p245, %p246
    %s249 = sadd.s32 %s248, 1
    %p252 = scmp.eq.s32.totalorder %s16, 3
    %p253 = scmp.ne.s32.totalorder %s248, %s250
    %p254 = scmp.eq.s32.totalorder %s16, 0
    %p255 = por %p253, %p254
    %p256 = scmp.ne.s32.totalorder %s248, %s250
    %p257 = scmp.eq.s32.totalorder %s21, 3
    %p258 = por %p256, %p257
    %p259 = scmp.ne.s32.totalorder %s250, %s251
    %p260 = scmp.eq.s32.totalorder %s21, 0
    %p261 = por %p259, %p260
    %p262 = scmp.ne.s32.totalorder %s250, %s251
    %p263 = scmp.eq.s32.totalorder %s22, 3
    %p264 = por %p262, %p263
    %p266 = scmp.ne.s32.totalorder %s251, %s265
    %p267 = scmp.eq.s32.totalorder %s22, 0
    %p268 = por %p266, %p267
    %s270 = sadd.s32 %s269, 1
    %p273 = scmp.eq.s32.totalorder %s16, 3
    %p274 = scmp.ne.s32.totalorder %s269, %s271
    %p275 = scmp.eq.s32.totalorder %s16, 0
    %p276 = por %p274, %p275
    %p277 = scmp.ne.s32.totalorder %s269, %s271
    %p278 = scmp.eq.s32.totalorder %s21, 3
    %p279 = por %p277, %p278
    %p280 = scmp.ne.s32.totalorder %s271, %s272
    %p281 = scmp.eq.s32.totalorder %s21, 0
    %p282 = por %p280, %p281
    %p283 = scmp.ne.s32.totalorder %s271, %s272
    %p284 = scmp.eq.s32.totalorder %s22, 3
    %p285 = por %p283, %p284
    %p287 = scmp.ne.s32.totalorder %s272, %s286
    %p288 = scmp.eq.s32.totalorder %s22, 0
    %p289 = por %p287, %p288
    %s290 = ssub.s32 %s23, %s35
    %s291 = ssub.s32 %s24, %s31
    %s292 = sor.u32 %s290, %s291
    %p293 = scmp.eq.s32.totalorder %s292, 0
    %s295 = sadd.s32 %s294, 1
    %s296 = scalar_select %p293, %s294, %s295
    %p299 = pneg %p293
    %p300 = scmp.eq.s32.totalorder %s16, 3
    %p301 = por %p299, %p300
    %p302 = scmp.ne.s32.totalorder %s294, %s297
    %p303 = scmp.eq.s32.totalorder %s16, 0
    %p304 = por %p302, %p303
    %p305 = scmp.ne.s32.totalorder %s294, %s297
    %p306 = scmp.eq.s32.totalorder %s21, 3
    %p307 = por %p305, %p306
    %p308 = scmp.ne.s32.totalorder %s297, %s298
    %p309 = scmp.eq.s32.totalorder %s21, 0
    %p310 = por %p308, %p309
    %p311 = scmp.ne.s32.totalorder %s297, %s298
    %p312 = scmp.eq.s32.totalorder %s22, 3
    %p313 = por %p311, %p312
    %p315 = scmp.ne.s32.totalorder %s298, %s314
    %p316 = scmp.eq.s32.totalorder %s22, 0
    %p317 = por %p315, %p316
    %p318 = scmp.le.s32.totalorder 1, %s16
    %p319 = scmp.lt.s32.totalorder %s16, 5
    %p320 = pnand %p318, %p319
    %p321 = pneg %p320
    // Predicated region
    $region9: #{resnet_block_forward.5} parent=5 // pred_check
      _
    $region10: #{resnet_block_forward.5} parent=5 // pred_check_branch
      %323 = sbr.rel (%p320) target = $region12
    $region11: #{resnet_block_forward.5} parent=5 // pred_region
      %s324 = ssub.s32 %s16, 1
      // Predicated region
      $region13: #{resnet_block_forward.5} parent=11 // pred_check
        %p325 = pneg %p177
      $region14: #{resnet_block_forward.5} parent=11 // pred_check_branch
        %327 = sbr.rel (%p325) target = $region16
      $region15: #{resnet_block_forward.5} parent=11 // pred_region
        _
      $region16: #{resnet_block_forward.5} parent=11 // pred_fallthru
        _
      // Predicated region
      $region17: #{resnet_block_forward.5} parent=11 // pred_check
        %p328 = pneg %p198
      $region18: #{resnet_block_forward.5} parent=11 // pred_check_branch
        %330 = sbr.rel (%p328) target = $region20
      $region19: #{resnet_block_forward.5} parent=11 // pred_region
        _
      $region20: #{resnet_block_forward.5} parent=11 // pred_fallthru
        _
      // Predicated region
      $region21: #{resnet_block_forward.5} parent=11 // pred_check
        %p331 = pneg %p219
      $region22: #{resnet_block_forward.5} parent=11 // pred_check_branch
        %333 = sbr.rel (%p331) target = $region24
      $region23: #{resnet_block_forward.5} parent=11 // pred_region
        _
      $region24: #{resnet_block_forward.5} parent=11 // pred_fallthru
        _
      // Predicated region
      $region25: #{resnet_block_forward.5} parent=11 // pred_check
        %p334 = pneg %p240
      $region26: #{resnet_block_forward.5} parent=11 // pred_check_branch
        %336 = sbr.rel (%p334) target = $region28
      $region27: #{resnet_block_forward.5} parent=11 // pred_region
        _
      $region28: #{resnet_block_forward.5} parent=11 // pred_fallthru
        _
      // Predicated region
      $region29: #{resnet_block_forward.5} parent=11 // pred_check
        %p337 = pneg %p261
      $region30: #{resnet_block_forward.5} parent=11 // pred_check_branch
        %339 = sbr.rel (%p337) target = $region32
      $region31: #{resnet_block_forward.5} parent=11 // pred_region
        _
      $region32: #{resnet_block_forward.5} parent=11 // pred_fallthru
        _
      // Predicated region
      $region33: #{resnet_block_forward.5} parent=11 // pred_check
        %p340 = pneg %p282
      $region34: #{resnet_block_forward.5} parent=11 // pred_check_branch
        %342 = sbr.rel (%p340) target = $region36
      $region35: #{resnet_block_forward.5} parent=11 // pred_region
        _
      $region36: #{resnet_block_forward.5} parent=11 // pred_fallthru
        _
    $region12: #{resnet_block_forward.5} parent=5 // pred_fallthru
      _
    %p343 = scmp.lt.s32.totalorder %s16, 4
    // Predicated region
    $region37: #{resnet_block_forward.5} parent=5 // pred_check
      %p344 = pneg %p343
    $region38: #{resnet_block_forward.5} parent=5 // pred_check_branch
      %346 = sbr.rel (%p344) target = $region40
    $region39: #{resnet_block_forward.5} parent=5 // pred_region
      // Predicated region
      $region41: #{resnet_block_forward.5} parent=39 // pred_check
        %p347 = pneg %p50
      $region42: #{resnet_block_forward.5} parent=39 // pred_check_branch
        %349 = sbr.rel (%p347) target = $region44
      $region43: #{resnet_block_forward.5} parent=39 // pred_region
        %s350 = smul.u32 8, %s24
        %p351 = scmp.lt.s32.totalorder %s23, 1
        %s352 = scalar_select %p351, %s23, 1
        %p353 = scmp.lt.s32.totalorder %s350, 15
        %s354 = scalar_select %p353, %s350, 15
        %s355 = smul.addr %s354, 2
        %s356 = smul.addr %s352, 32
        %s357 = sadd.s32 %s355, %s356
        %s358 = smul.addr %s357, 8
        %s359 = scalar_lea.vmem %s0, %s358
        %s360 = smul.u32 8, %s24
      $region44: #{resnet_block_forward.5} parent=39 // pred_fallthru
        _
      // Predicated region
      $region45: #{resnet_block_forward.5} parent=39 // pred_check
        %p361 = pneg %p86
      $region46: #{resnet_block_forward.5} parent=39 // pred_check_branch
        %363 = sbr.rel (%p361) target = $region48
      $region47: #{resnet_block_forward.5} parent=39 // pred_region
        %s364 = smul.u32 %s24, 8
        %s365 = ssub.s32 %s364, 1
        %p366 = scmp.gt.s32.totalorder %s365, 0
        %s367 = scalar_select %p366, %s365, 0
        %p368 = scmp.lt.s32.totalorder %s23, 1
        %s369 = scalar_select %p368, %s23, 1
        %p370 = scmp.lt.s32.totalorder %s367, 15
        %s371 = scalar_select %p370, %s367, 15
        %s372 = smul.addr %s371, 2
        %s373 = smul.addr %s369, 32
        %s374 = sadd.s32 %s372, %s373
        %s375 = smul.addr %s374, 8
        %s376 = scalar_lea.vmem %s1, %s375
        %s377 = smul.u32 %s24, 8
        %s378 = ssub.s32 %s377, 1
        %p379 = scmp.gt.s32.totalorder %s378, 0
        %s380 = scalar_select %p379, %s378, 0
      $region48: #{resnet_block_forward.5} parent=39 // pred_fallthru
        _
      // Predicated region
      $region49: #{resnet_block_forward.5} parent=39 // pred_check
        %p381 = pneg %p122
      $region50: #{resnet_block_forward.5} parent=39 // pred_check_branch
        %383 = sbr.rel (%p381) target = $region52
      $region51: #{resnet_block_forward.5} parent=39 // pred_region
        %s384 = sadd.s32 %s24, 1
        %s385 = smul.u32 %s384, 8
        %p386 = scmp.lt.s32.totalorder %s385, 15
        %s387 = scalar_select %p386, %s385, 15
        %p388 = scmp.lt.s32.totalorder %s23, 1
        %s389 = scalar_select %p388, %s23, 1
        %p390 = scmp.lt.s32.totalorder %s387, 15
        %s391 = scalar_select %p390, %s387, 15
        %s392 = smul.addr %s391, 2
        %s393 = smul.addr %s389, 32
        %s394 = sadd.s32 %s392, %s393
        %s395 = smul.addr %s394, 8
        %s396 = scalar_lea.vmem %s2, %s395
        %s397 = sadd.s32 %s24, 1
        %s398 = smul.u32 %s397, 8
        %p399 = scmp.lt.s32.totalorder %s398, 15
        %s400 = scalar_select %p399, %s398, 15
      $region52: #{resnet_block_forward.5} parent=39 // pred_fallthru
        _
      // Predicated region
      $region53: #{resnet_block_forward.5} parent=39 // pred_check
        %p401 = pneg %p150
      $region54: #{resnet_block_forward.5} parent=39 // pred_check_branch
        %403 = sbr.rel (%p401) target = $region56
      $region55: #{resnet_block_forward.5} parent=39 // pred_region
        %s404 = smul.u32 8, %s24
        %p405 = scmp.lt.s32.totalorder %s23, 1
        %s406 = scalar_select %p405, %s23, 1
        %p407 = scmp.lt.s32.totalorder %s404, 15
        %s408 = scalar_select %p407, %s404, 15
        %s409 = smul.addr %s408, 2
        %s410 = smul.addr %s406, 32
        %s411 = sadd.s32 %s409, %s410
        %s412 = smul.addr %s411, 8
        %s413 = scalar_lea.vmem %s3, %s412
        %s414 = smul.u32 8, %s24
      $region56: #{resnet_block_forward.5} parent=39 // pred_fallthru
        _
    $region40: #{resnet_block_forward.5} parent=5 // pred_fallthru
      _
    %p415 = scmp.le.s32.totalorder 1, %s16
    %p416 = scmp.lt.s32.totalorder %s16, 5
    %p417 = pnand %p415, %p416
    %p418 = pneg %p417
    // Predicated region
    $region57: #{resnet_block_forward.5} parent=5 // pred_check
      _
    $region58: #{resnet_block_forward.5} parent=5 // pred_check_branch
      %420 = sbr.rel (%p417) target = $region60
    $region59: #{resnet_block_forward.5} parent=5 // pred_region
      %s421 = ssub.s32 %s16, 1
      %s422 = smul.u32 8, %s26
      %p423 = scmp.lt.s32.totalorder %s25, 1
      %s424 = scalar_select %p423, %s25, 1
      %p425 = scmp.lt.s32.totalorder %s422, 15
      %s426 = scalar_select %p425, %s422, 15
      %s427 = smul.addr %s426, 2
      %s428 = smul.addr %s424, 32
      %s429 = sadd.s32 %s427, %s428
      %s430 = smul.addr %s429, 8
      %s431 = scalar_lea.vmem %s0, %s430
      %p432 = pneg %p56
      %p433 = pneg %p53
      %s434 = smul.u32 %s26, 8
      %s435 = ssub.s32 %s434, 1
      %p436 = scmp.gt.s32.totalorder %s435, 0
      %s437 = scalar_select %p436, %s435, 0
      %p438 = scmp.lt.s32.totalorder %s25, 1
      %s439 = scalar_select %p438, %s25, 1
      %p440 = scmp.lt.s32.totalorder %s437, 15
      %s441 = scalar_select %p440, %s437, 15
      %s442 = smul.addr %s441, 2
      %s443 = smul.addr %s439, 32
      %s444 = sadd.s32 %s442, %s443
      %s445 = smul.addr %s444, 8
      %s446 = scalar_lea.vmem %s1, %s445
      %p447 = pneg %p92
      %p448 = pneg %p89
      %s449 = sadd.s32 %s26, 1
      %s450 = smul.u32 %s449, 8
      %p451 = scmp.lt.s32.totalorder %s450, 15
      %s452 = scalar_select %p451, %s450, 15
      %p453 = scmp.lt.s32.totalorder %s25, 1
      %s454 = scalar_select %p453, %s25, 1
      %p455 = scmp.lt.s32.totalorder %s452, 15
      %s456 = scalar_select %p455, %s452, 15
      %s457 = smul.addr %s456, 2
      %s458 = smul.addr %s454, 32
      %s459 = sadd.s32 %s457, %s458
      %s460 = smul.addr %s459, 8
      %s461 = scalar_lea.vmem %s2, %s460
      %p462 = pneg %p128
      %p463 = pneg %p125
      %s464 = smul.u32 8, %s26
      %p465 = scmp.lt.s32.totalorder %s25, 1
      %s466 = scalar_select %p465, %s25, 1
      %p467 = scmp.lt.s32.totalorder %s464, 15
      %s468 = scalar_select %p467, %s464, 15
      %s469 = smul.addr %s468, 2
      %s470 = smul.addr %s466, 32
      %s471 = sadd.s32 %s469, %s470
      %s472 = smul.addr %s471, 8
      %s473 = scalar_lea.vmem %s3, %s472
      %p474 = pneg %p156
      %p475 = pneg %p153
      %p476 = pneg %p177
      %p477 = pneg %p174
      %p478 = pneg %p198
      %p479 = pneg %p195
      %p480 = pneg %p219
      %p481 = pneg %p216
      %p482 = pneg %p240
      %p483 = pneg %p237
      %p484 = pneg %p261
      %p485 = pneg %p258
      %p486 = pneg %p282
      %p487 = pneg %p279
      %p488 = pneg %p310
      %p489 = pneg %p307
      %s490 = smul.u32 8, %s26
      %p491 = scmp.lt.s32.totalorder %s25, 1
      %s492 = scalar_select %p491, %s25, 1
      %p493 = scmp.lt.s32.totalorder %s490, 15
      %s494 = scalar_select %p493, %s490, 15
      %s495 = smul.addr %s494, 2
      %s496 = smul.addr %s492, 32
      %s497 = sadd.s32 %s495, %s496
      %s498 = smul.addr %s497, 8
      %s499 = scalar_lea.vmem %s10, %s498
      %s500 = smul.u32 8, %s26
      %p501 = scmp.lt.s32.totalorder %s25, 1
      %s502 = scalar_select %p501, %s25, 1
      %p503 = scmp.lt.s32.totalorder %s500, 15
      %s504 = scalar_select %p503, %s500, 15
      %s505 = smul.addr %s504, 2
      %s506 = smul.addr %s502, 32
      %s507 = sadd.s32 %s505, %s506
      %s508 = smul.addr %s507, 8
      %s509 = scalar_lea.vmem %s0, %s508
      %s510 = smul.u32 8, %s26
      %s511 = smul.u32 %s26, 8
      %s512 = ssub.s32 %s511, 1
      %p513 = scmp.gt.s32.totalorder %s512, 0
      %s514 = scalar_select %p513, %s512, 0
      %p515 = scmp.lt.s32.totalorder %s25, 1
      %s516 = scalar_select %p515, %s25, 1
      %p517 = scmp.lt.s32.totalorder %s514, 15
      %s518 = scalar_select %p517, %s514, 15
      %s519 = smul.addr %s518, 2
      %s520 = smul.addr %s516, 32
      %s521 = sadd.s32 %s519, %s520
      %s522 = smul.addr %s521, 8
      %s523 = scalar_lea.vmem %s1, %s522
      %s524 = smul.u32 %s26, 8
      %s525 = ssub.s32 %s524, 1
      %p526 = scmp.gt.s32.totalorder %s525, 0
      %s527 = scalar_select %p526, %s525, 0
      %s528 = sadd.s32 %s26, 1
      %s529 = smul.u32 %s528, 8
      %p530 = scmp.lt.s32.totalorder %s529, 15
      %s531 = scalar_select %p530, %s529, 15
      %p532 = scmp.lt.s32.totalorder %s25, 1
      %s533 = scalar_select %p532, %s25, 1
      %p534 = scmp.lt.s32.totalorder %s531, 15
      %s535 = scalar_select %p534, %s531, 15
      %s536 = smul.addr %s535, 2
      %s537 = smul.addr %s533, 32
      %s538 = sadd.s32 %s536, %s537
      %s539 = smul.addr %s538, 8
      %s540 = scalar_lea.vmem %s2, %s539
      %s541 = sadd.s32 %s26, 1
      %s542 = smul.u32 %s541, 8
      %p543 = scmp.lt.s32.totalorder %s542, 15
      %s544 = scalar_select %p543, %s542, 15
      %s545 = smul.u32 8, %s26
      %p546 = scmp.lt.s32.totalorder %s25, 1
      %s547 = scalar_select %p546, %s25, 1
      %p548 = scmp.lt.s32.totalorder %s545, 15
      %s549 = scalar_select %p548, %s545, 15
      %s550 = smul.addr %s549, 2
      %s551 = smul.addr %s547, 32
      %s552 = sadd.s32 %s550, %s551
      %s553 = smul.addr %s552, 8
      %s554 = scalar_lea.vmem %s3, %s553
      %s555 = smul.u32 8, %s26
      %s556 = smul.u32 8, %s26
      %p557 = scmp.lt.s32.totalorder %s25, 1
      %s558 = scalar_select %p557, %s25, 1
      %p559 = scmp.lt.s32.totalorder %s556, 15
      %s560 = scalar_select %p559, %s556, 15
      %s561 = smul.addr %s560, 2
      %s562 = smul.addr %s558, 32
      %s563 = sadd.s32 %s561, %s562
      %s564 = smul.addr %s563, 8
      %s565 = scalar_lea.vmem %s10, %s564
      %s566 = smul.u32 8, %s26
      %v568 = vld [vmem:[%s4] sm:$0x1]
      %v569 = vld [vmem:[%s5] sm:$0x1]
      %vm570 = vcmask 1040384
      %vm571 = vsmask.f32 256
      %vm572 = vmand %vm570, %vm571
      %v573 = vld [vmem:[#allocation2] sm:$0x1]
      %v574 = vsel %vm572, 0, %v573
      %575 = vst [vmem:[#allocation2] sm:$0x1] %v574
      %v576 = vld [vmem:[#allocation2 + $0xc] sm:$0x1]
      %v577 = vsel %vm572, 0, %v576
      %578 = vst [vmem:[#allocation2 + $0xc] sm:$0x1] %v577
      %v579 = vld [vmem:[#allocation2 + $0x18] sm:$0x1]
      %v580 = vsel %vm572, 0, %v579
      %581 = vst [vmem:[#allocation2 + $0x18] sm:$0x1] %v580
      %v582 = vld [vmem:[#allocation2 + $0x24] sm:$0x1]
      %v583 = vsel %vm572, 0, %v582
      %584 = vst [vmem:[#allocation2 + $0x24] sm:$0x1] %v583
      %v585 = vld [vmem:[#allocation2 + $0x30] sm:$0x1]
      %v586 = vsel %vm572, 0, %v585
      %587 = vst [vmem:[#allocation2 + $0x30] sm:$0x1] %v586
      %v588 = vld [vmem:[#allocation2 + $0x3c] sm:$0x1]
      %v589 = vsel %vm572, 0, %v588
      %590 = vst [vmem:[#allocation2 + $0x3c] sm:$0x1] %v589
      %v591 = vld [vmem:[#allocation2 + $0x48] sm:$0x1]
      %v592 = vsel %vm572, 0, %v591
      %593 = vst [vmem:[#allocation2 + $0x48] sm:$0x1] %v592
      %v594 = vld [vmem:[#allocation2 + $0x54] sm:$0x1]
      %v595 = vsel %vm572, 0, %v594
      %596 = vst [vmem:[#allocation2 + $0x54] sm:$0x1] %v595
      %v597 = vld [vmem:[#allocation2 + $0x60] sm:$0x1]
      %v598 = vsel %vm572, 0, %v597
      %599 = vst [vmem:[#allocation2 + $0x60] sm:$0x1] %v598
      %v600 = vld [vmem:[#allocation2 + $0x6c] sm:$0x1]
      %v601 = vsel %vm572, 0, %v600
      %602 = vst [vmem:[#allocation2 + $0x6c] sm:$0x1] %v601
      %vm603 = vsmask.f32 7938
      %vm604 = vmand %vm570, %vm603
      %v605 = vld [vmem:[#allocation2 + $0x8] sm:$0x1]
      %v606 = vsel %vm604, 0, %v605
      %607 = vst [vmem:[#allocation2 + $0x8] sm:$0x1] %v606
      %v608 = vld [vmem:[#allocation2 + $0x14] sm:$0x1]
      %v609 = vsel %vm604, 0, %v608
      %610 = vst [vmem:[#allocation2 + $0x14] sm:$0x1] %v609
      %v611 = vld [vmem:[#allocation2 + $0x20] sm:$0x1]
      %v612 = vsel %vm604, 0, %v611
      %613 = vst [vmem:[#allocation2 + $0x20] sm:$0x1] %v612
      %v614 = vld [vmem:[#allocation2 + $0x2c] sm:$0x1]
      %v615 = vsel %vm604, 0, %v614
      %616 = vst [vmem:[#allocation2 + $0x2c] sm:$0x1] %v615
      %v617 = vld [vmem:[#allocation2 + $0x38] sm:$0x1]
      %v618 = vsel %vm604, 0, %v617
      %619 = vst [vmem:[#allocation2 + $0x38] sm:$0x1] %v618
      %v620 = vld [vmem:[#allocation2 + $0x44] sm:$0x1]
      %v621 = vsel %vm604, 0, %v620
      %622 = vst [vmem:[#allocation2 + $0x44] sm:$0x1] %v621
      %v623 = vld [vmem:[#allocation2 + $0x50] sm:$0x1]
      %v624 = vsel %vm604, 0, %v623
      %625 = vst [vmem:[#allocation2 + $0x50] sm:$0x1] %v624
      %v626 = vld [vmem:[#allocation2 + $0x5c] sm:$0x1]
      %v627 = vsel %vm604, 0, %v626
      %628 = vst [vmem:[#allocation2 + $0x5c] sm:$0x1] %v627
      %v629 = vld [vmem:[#allocation2 + $0x68] sm:$0x1]
      %v630 = vsel %vm604, 0, %v629
      %631 = vst [vmem:[#allocation2 + $0x68] sm:$0x1] %v630
      %v632 = vld [vmem:[#allocation2 + $0x74] sm:$0x1]
      %v633 = vsel %vm604, 0, %v632
      %634 = vst [vmem:[#allocation2 + $0x74] sm:$0x1] %v633
      %v635 = vld [vmem:[%s509] sm:$0xff]
      %v636 = vld [vmem:[%s509 + $0x8] sm:$0xff]
      %v637 = vld [vmem:[%s509 + $0x10] sm:$0xff]
      %v638 = vld [vmem:[%s509 + $0x18] sm:$0xff]
      %v639 = vld [vmem:[%s509 + $0x20] sm:$0xff]
      %v640 = vld [vmem:[%s509 + $0x28] sm:$0xff]
      %v641 = vld [vmem:[%s509 + $0x30] sm:$0xff]
      %v642 = vld [vmem:[%s509 + $0x38] sm:$0xff]
      %v643 = vld [vmem:[%s509 + $0x40] sm:$0xff]
      %v644 = vld [vmem:[%s509 + $0x48] sm:$0xff]
      %v645 = vld [vmem:[%s509 + $0x50] sm:$0xff]
      %v646 = vld [vmem:[%s509 + $0x58] sm:$0xff]
      %v647 = vld [vmem:[%s509 + $0x60] sm:$0xff]
      %v648 = vld [vmem:[%s509 + $0x68] sm:$0xff]
      %v649 = vld [vmem:[%s509 + $0x70] sm:$0xff]
      %v650 = vld [vmem:[%s509 + $0x78] sm:$0xff]
      %v652 = vperm.slane %v568, 0
      %v654 = vmul.f32 %v635, %v652
      %v655 = vmul.f32 %v636, %v652
      %v656 = vmul.f32 %v637, %v652
      %v657 = vmul.f32 %v638, %v652
      %v658 = vmul.f32 %v639, %v652
      %v659 = vmul.f32 %v640, %v652
      %v660 = vmul.f32 %v641, %v652
      %v661 = vmul.f32 %v642, %v652
      %v662 = vmul.f32 %v643, %v652
      %v663 = vmul.f32 %v644, %v652
      %v664 = vmul.f32 %v645, %v652
      %v665 = vmul.f32 %v646, %v652
      %v666 = vmul.f32 %v647, %v652
      %v667 = vmul.f32 %v648, %v652
      %v668 = vmul.f32 %v649, %v652
      %v669 = vmul.f32 %v650, %v652
      %v671 = vperm.slane %v569, 0
      %v673 = vadd.f32 %v654, %v671
      %v674 = vadd.f32 %v655, %v671
      %v675 = vadd.f32 %v656, %v671
      %v676 = vadd.f32 %v657, %v671
      %v677 = vadd.f32 %v658, %v671
      %v678 = vadd.f32 %v659, %v671
      %v679 = vadd.f32 %v660, %v671
      %v680 = vadd.f32 %v661, %v671
      %v681 = vadd.f32 %v662, %v671
      %v682 = vadd.f32 %v663, %v671
      %v683 = vadd.f32 %v664, %v671
      %v684 = vadd.f32 %v665, %v671
      %v685 = vadd.f32 %v666, %v671
      %v686 = vadd.f32 %v667, %v671
      %v687 = vadd.f32 %v668, %v671
      %v688 = vadd.f32 %v669, %v671
      %v689 = vxor.u32 %v673, 2147483648
      %v690 = vxor.u32 %v674, 2147483648
      %v691 = vxor.u32 %v675, 2147483648
      %v692 = vxor.u32 %v676, 2147483648
      %v693 = vxor.u32 %v677, 2147483648
      %v694 = vxor.u32 %v678, 2147483648
      %v695 = vxor.u32 %v679, 2147483648
      %v696 = vxor.u32 %v680, 2147483648
      %v697 = vxor.u32 %v681, 2147483648
      %v698 = vxor.u32 %v682, 2147483648
      %v699 = vxor.u32 %v683, 2147483648
      %v700 = vxor.u32 %v684, 2147483648
      %v701 = vxor.u32 %v685, 2147483648
      %v702 = vxor.u32 %v686, 2147483648
      %v703 = vxor.u32 %v687, 2147483648
      %v704 = vxor.u32 %v688, 2147483648
      %v705 = vmul.f32 %v689, 1.442695
      %v706 = vpow.pop %v705
      %v707 = vmul.f32 %v690, 1.442695
      %v708 = vpow.pop %v707
      %v709 = vmul.f32 %v691, 1.442695
      %v710 = vpow.pop %v709
      %v711 = vmul.f32 %v692, 1.442695
      %v712 = vpow.pop %v711
      %v713 = vmul.f32 %v693, 1.442695
      %v714 = vpow.pop %v713
      %v715 = vmul.f32 %v694, 1.442695
      %v716 = vpow.pop %v715
      %v717 = vmul.f32 %v695, 1.442695
      %v718 = vpow.pop %v717
      %v719 = vmul.f32 %v696, 1.442695
      %v720 = vpow.pop %v719
      %v721 = vmul.f32 %v697, 1.442695
      %v722 = vpow.pop %v721
      %v723 = vmul.f32 %v698, 1.442695
      %v724 = vpow.pop %v723
      %v725 = vmul.f32 %v699, 1.442695
      %v726 = vpow.pop %v725
      %v727 = vmul.f32 %v700, 1.442695
      %v728 = vpow.pop %v727
      %v729 = vmul.f32 %v701, 1.442695
      %v730 = vpow.pop %v729
      %v731 = vmul.f32 %v702, 1.442695
      %v732 = vpow.pop %v731
      %v733 = vmul.f32 %v703, 1.442695
      %v734 = vpow.pop %v733
      %v735 = vmul.f32 %v704, 1.442695
      %v736 = vpow.pop %v735
      %v737 = vadd.f32 %v706, 1.0
      %v738 = vadd.f32 %v708, 1.0
      %v739 = vadd.f32 %v710, 1.0
      %v740 = vadd.f32 %v712, 1.0
      %v741 = vadd.f32 %v714, 1.0
      %v742 = vadd.f32 %v716, 1.0
      %v743 = vadd.f32 %v718, 1.0
      %v744 = vadd.f32 %v720, 1.0
      %v745 = vadd.f32 %v722, 1.0
      %v746 = vadd.f32 %v724, 1.0
      %v747 = vadd.f32 %v726, 1.0
      %v748 = vadd.f32 %v728, 1.0
      %v749 = vadd.f32 %v730, 1.0
      %v750 = vadd.f32 %v732, 1.0
      %v751 = vadd.f32 %v734, 1.0
      %v752 = vadd.f32 %v736, 1.0
      %v753 = vrcp.pop %v737
      %v754 = vmul.f32 %v737, %v753
      %v755 = vsub.f32 1.0, %v754
      %v756 = vmul.f32 %v753, %v755
      %v757 = vadd.f32 %v753, %v756
      %vm758 = vweird.f32 %v737
      %vm759 = vweird.f32 %v753
      %vm760 = vmor %vm758, %vm759
      %v761 = vsel %vm760, %v753, %v757
      %v762 = vand.u32 2147483647, %v737
      %vm763 = vcmp.eq.f32.partialorder %v762, 8.507059e+37
      %v764 = vand.u32 %v737, 2147483648
      %v765 = vor.u32 1.1754944e-38, %v764
      %v766 = vsel %vm763, %v765, %v761
      %v767 = vmul.f32 1.0, %v766
      %v768 = vrcp.pop %v738
      %v769 = vmul.f32 %v738, %v768
      %v770 = vsub.f32 1.0, %v769
      %v771 = vmul.f32 %v768, %v770
      %v772 = vadd.f32 %v768, %v771
      %vm773 = vweird.f32 %v738
      %vm774 = vweird.f32 %v768
      %vm775 = vmor %vm773, %vm774
      %v776 = vsel %vm775, %v768, %v772
      %v777 = vand.u32 2147483647, %v738
      %vm778 = vcmp.eq.f32.partialorder %v777, 8.507059e+37
      %v779 = vand.u32 %v738, 2147483648
      %v780 = vor.u32 1.1754944e-38, %v779
      %v781 = vsel %vm778, %v780, %v776
      %v782 = vmul.f32 1.0, %v781
      %v783 = vrcp.pop %v739
      %v784 = vmul.f32 %v739, %v783
      %v785 = vsub.f32 1.0, %v784
      %v786 = vmul.f32 %v783, %v785
      %v787 = vadd.f32 %v783, %v786
      %vm788 = vweird.f32 %v739
      %vm789 = vweird.f32 %v783
      %vm790 = vmor %vm788, %vm789
      %v791 = vsel %vm790, %v783, %v787
      %v792 = vand.u32 2147483647, %v739
      %vm793 = vcmp.eq.f32.partialorder %v792, 8.507059e+37
      %v794 = vand.u32 %v739, 2147483648
      %v795 = vor.u32 1.1754944e-38, %v794
      %v796 = vsel %vm793, %v795, %v791
      %v797 = vmul.f32 1.0, %v796
      %v798 = vrcp.pop %v740
      %v799 = vmul.f32 %v740, %v798
      %v800 = vsub.f32 1.0, %v799
      %v801 = vmul.f32 %v798, %v800
      %v802 = vadd.f32 %v798, %v801
      %vm803 = vweird.f32 %v740
      %vm804 = vweird.f32 %v798
      %vm805 = vmor %vm803, %vm804
      %v806 = vsel %vm805, %v798, %v802
      %v807 = vand.u32 2147483647, %v740
      %vm808 = vcmp.eq.f32.partialorder %v807, 8.507059e+37
      %v809 = vand.u32 %v740, 2147483648
      %v810 = vor.u32 1.1754944e-38, %v809
      %v811 = vsel %vm808, %v810, %v806
      %v812 = vmul.f32 1.0, %v811
      %v813 = vrcp.pop %v741
      %v814 = vmul.f32 %v741, %v813
      %v815 = vsub.f32 1.0, %v814
      %v816 = vmul.f32 %v813, %v815
      %v817 = vadd.f32 %v813, %v816
      %vm818 = vweird.f32 %v741
      %vm819 = vweird.f32 %v813
      %vm820 = vmor %vm818, %vm819
      %v821 = vsel %vm820, %v813, %v817
      %v822 = vand.u32 2147483647, %v741
      %vm823 = vcmp.eq.f32.partialorder %v822, 8.507059e+37
      %v824 = vand.u32 %v741, 2147483648
      %v825 = vor.u32 1.1754944e-38, %v824
      %v826 = vsel %vm823, %v825, %v821
      %v827 = vmul.f32 1.0, %v826
      %v828 = vrcp.pop %v742
      %v829 = vmul.f32 %v742, %v828
      %v830 = vsub.f32 1.0, %v829
      %v831 = vmul.f32 %v828, %v830
      %v832 = vadd.f32 %v828, %v831
      %vm833 = vweird.f32 %v742
      %vm834 = vweird.f32 %v828
      %vm835 = vmor %vm833, %vm834
      %v836 = vsel %vm835, %v828, %v832
      %v837 = vand.u32 2147483647, %v742
      %vm838 = vcmp.eq.f32.partialorder %v837, 8.507059e+37
      %v839 = vand.u32 %v742, 2147483648
      %v840 = vor.u32 1.1754944e-38, %v839
      %v841 = vsel %vm838, %v840, %v836
      %v842 = vmul.f32 1.0, %v841
      %v843 = vrcp.pop %v743
      %v844 = vmul.f32 %v743, %v843
      %v845 = vsub.f32 1.0, %v844
      %v846 = vmul.f32 %v843, %v845
      %v847 = vadd.f32 %v843, %v846
      %vm848 = vweird.f32 %v743
      %vm849 = vweird.f32 %v843
      %vm850 = vmor %vm848, %vm849
      %v851 = vsel %vm850, %v843, %v847
      %v852 = vand.u32 2147483647, %v743
      %vm853 = vcmp.eq.f32.partialorder %v852, 8.507059e+37
      %v854 = vand.u32 %v743, 2147483648
      %v855 = vor.u32 1.1754944e-38, %v854
      %v856 = vsel %vm853, %v855, %v851
      %v857 = vmul.f32 1.0, %v856
      %v858 = vrcp.pop %v744
      %v859 = vmul.f32 %v744, %v858
      %v860 = vsub.f32 1.0, %v859
      %v861 = vmul.f32 %v858, %v860
      %v862 = vadd.f32 %v858, %v861
      %vm863 = vweird.f32 %v744
      %vm864 = vweird.f32 %v858
      %vm865 = vmor %vm863, %vm864
      %v866 = vsel %vm865, %v858, %v862
      %v867 = vand.u32 2147483647, %v744
      %vm868 = vcmp.eq.f32.partialorder %v867, 8.507059e+37
      %v869 = vand.u32 %v744, 2147483648
      %v870 = vor.u32 1.1754944e-38, %v869
      %v871 = vsel %vm868, %v870, %v866
      %v872 = vmul.f32 1.0, %v871
      %v873 = vrcp.pop %v745
      %v874 = vmul.f32 %v745, %v873
      %v875 = vsub.f32 1.0, %v874
      %v876 = vmul.f32 %v873, %v875
      %v877 = vadd.f32 %v873, %v876
      %vm878 = vweird.f32 %v745
      %vm879 = vweird.f32 %v873
      %vm880 = vmor %vm878, %vm879
      %v881 = vsel %vm880, %v873, %v877
      %v882 = vand.u32 2147483647, %v745
      %vm883 = vcmp.eq.f32.partialorder %v882, 8.507059e+37
      %v884 = vand.u32 %v745, 2147483648
      %v885 = vor.u32 1.1754944e-38, %v884
      %v886 = vsel %vm883, %v885, %v881
      %v887 = vmul.f32 1.0, %v886
      %v888 = vrcp.pop %v746
      %v889 = vmul.f32 %v746, %v888
      %v890 = vsub.f32 1.0, %v889
      %v891 = vmul.f32 %v888, %v890
      %v892 = vadd.f32 %v888, %v891
      %vm893 = vweird.f32 %v746
      %vm894 = vweird.f32 %v888
      %vm895 = vmor %vm893, %vm894
      %v896 = vsel %vm895, %v888, %v892
      %v897 = vand.u32 2147483647, %v746
      %vm898 = vcmp.eq.f32.partialorder %v897, 8.507059e+37
      %v899 = vand.u32 %v746, 2147483648
      %v900 = vor.u32 1.1754944e-38, %v899
      %v901 = vsel %vm898, %v900, %v896
      %v902 = vmul.f32 1.0, %v901
      %v903 = vrcp.pop %v747
      %v904 = vmul.f32 %v747, %v903
      %v905 = vsub.f32 1.0, %v904
      %v906 = vmul.f32 %v903, %v905
      %v907 = vadd.f32 %v903, %v906
      %vm908 = vweird.f32 %v747
      %vm909 = vweird.f32 %v903
      %vm910 = vmor %vm908, %vm909
      %v911 = vsel %vm910, %v903, %v907
      %v912 = vand.u32 2147483647, %v747
      %vm913 = vcmp.eq.f32.partialorder %v912, 8.507059e+37
      %v914 = vand.u32 %v747, 2147483648
      %v915 = vor.u32 1.1754944e-38, %v914
      %v916 = vsel %vm913, %v915, %v911
      %v917 = vmul.f32 1.0, %v916
      %v918 = vrcp.pop %v748
      %v919 = vmul.f32 %v748, %v918
      %v920 = vsub.f32 1.0, %v919
      %v921 = vmul.f32 %v918, %v920
      %v922 = vadd.f32 %v918, %v921
      %vm923 = vweird.f32 %v748
      %vm924 = vweird.f32 %v918
      %vm925 = vmor %vm923, %vm924
      %v926 = vsel %vm925, %v918, %v922
      %v927 = vand.u32 2147483647, %v748
      %vm928 = vcmp.eq.f32.partialorder %v927, 8.507059e+37
      %v929 = vand.u32 %v748, 2147483648
      %v930 = vor.u32 1.1754944e-38, %v929
      %v931 = vsel %vm928, %v930, %v926
      %v932 = vmul.f32 1.0, %v931
      %v933 = vrcp.pop %v749
      %v934 = vmul.f32 %v749, %v933
      %v935 = vsub.f32 1.0, %v934
      %v936 = vmul.f32 %v933, %v935
      %v937 = vadd.f32 %v933, %v936
      %vm938 = vweird.f32 %v749
      %vm939 = vweird.f32 %v933
      %vm940 = vmor %vm938, %vm939
      %v941 = vsel %vm940, %v933, %v937
      %v942 = vand.u32 2147483647, %v749
      %vm943 = vcmp.eq.f32.partialorder %v942, 8.507059e+37
      %v944 = vand.u32 %v749, 2147483648
      %v945 = vor.u32 1.1754944e-38, %v944
      %v946 = vsel %vm943, %v945, %v941
      %v947 = vmul.f32 1.0, %v946
      %v948 = vrcp.pop %v750
      %v949 = vmul.f32 %v750, %v948
      %v950 = vsub.f32 1.0, %v949
      %v951 = vmul.f32 %v948, %v950
      %v952 = vadd.f32 %v948, %v951
      %vm953 = vweird.f32 %v750
      %vm954 = vweird.f32 %v948
      %vm955 = vmor %vm953, %vm954
      %v956 = vsel %vm955, %v948, %v952
      %v957 = vand.u32 2147483647, %v750
      %vm958 = vcmp.eq.f32.partialorder %v957, 8.507059e+37
      %v959 = vand.u32 %v750, 2147483648
      %v960 = vor.u32 1.1754944e-38, %v959
      %v961 = vsel %vm958, %v960, %v956
      %v962 = vmul.f32 1.0, %v961
      %v963 = vrcp.pop %v751
      %v964 = vmul.f32 %v751, %v963
      %v965 = vsub.f32 1.0, %v964
      %v966 = vmul.f32 %v963, %v965
      %v967 = vadd.f32 %v963, %v966
      %vm968 = vweird.f32 %v751
      %vm969 = vweird.f32 %v963
      %vm970 = vmor %vm968, %vm969
      %v971 = vsel %vm970, %v963, %v967
      %v972 = vand.u32 2147483647, %v751
      %vm973 = vcmp.eq.f32.partialorder %v972, 8.507059e+37
      %v974 = vand.u32 %v751, 2147483648
      %v975 = vor.u32 1.1754944e-38, %v974
      %v976 = vsel %vm973, %v975, %v971
      %v977 = vmul.f32 1.0, %v976
      %v978 = vrcp.pop %v752
      %v979 = vmul.f32 %v752, %v978
      %v980 = vsub.f32 1.0, %v979
      %v981 = vmul.f32 %v978, %v980
      %v982 = vadd.f32 %v978, %v981
      %vm983 = vweird.f32 %v752
      %vm984 = vweird.f32 %v978
      %vm985 = vmor %vm983, %vm984
      %v986 = vsel %vm985, %v978, %v982
      %v987 = vand.u32 2147483647, %v752
      %vm988 = vcmp.eq.f32.partialorder %v987, 8.507059e+37
      %v989 = vand.u32 %v752, 2147483648
      %v990 = vor.u32 1.1754944e-38, %v989
      %v991 = vsel %vm988, %v990, %v986
      %v992 = vmul.f32 1.0, %v991
      %v993 = vmul.f32 %v673, %v767
      %v994 = vmul.f32 %v674, %v782
      %v995 = vmul.f32 %v675, %v797
      %v996 = vmul.f32 %v676, %v812
      %v997 = vmul.f32 %v677, %v827
      %v998 = vmul.f32 %v678, %v842
      %v999 = vmul.f32 %v679, %v857
      %v1000 = vmul.f32 %v680, %v872
      %v1001 = vmul.f32 %v681, %v887
      %v1002 = vmul.f32 %v682, %v902
      %v1003 = vmul.f32 %v683, %v917
      %v1004 = vmul.f32 %v684, %v932
      %v1005 = vmul.f32 %v685, %v947
      %v1006 = vmul.f32 %v686, %v962
      %v1007 = vmul.f32 %v687, %v977
      %v1008 = vmul.f32 %v688, %v992
      %v1009 = vpack.c.bf16 %v993, %v993
      %v1010 = vpack.c.bf16 %v994, %v994
      %v1011 = vpack.c.bf16 %v995, %v995
      %v1012 = vpack.c.bf16 %v996, %v996
      %v1013 = vpack.c.bf16 %v997, %v997
      %v1014 = vpack.c.bf16 %v998, %v998
      %v1015 = vpack.c.bf16 %v999, %v999
      %v1016 = vpack.c.bf16 %v1000, %v1000
      %v1017 = vpack.c.bf16 %v1001, %v1001
      %v1018 = vpack.c.bf16 %v1002, %v1002
      %v1019 = vpack.c.bf16 %v1003, %v1003
      %v1020 = vpack.c.bf16 %v1004, %v1004
      %v1021 = vpack.c.bf16 %v1005, %v1005
      %v1022 = vpack.c.bf16 %v1006, %v1006
      %v1023 = vpack.c.bf16 %v1007, %v1007
      %v1024 = vpack.c.bf16 %v1008, %v1008
      %vm1025 = vsmask.f32 4368
      %vm1026 = vmor %vm571, %vm1025
      %v1028 = vshrl.u32 %v1009, 16
      %v1030 = vrot.slane %v1028, 7
      %v1031 = vshll.u32 %v1009, 16
      %v1033 = vor.u32 %v1030, %v1031
      %v1034 = vrot.slane %v1030, 4
      %v1036 = vshrl.u32 %v1010, 16
      %v1038 = vrot.slane %v1036, 7
      %v1039 = vshll.u32 %v1010, 16
      %v1041 = vor.u32 %v1038, %v1039
      %v1042 = vsel %vm1026, %v1034, %v1041
      %v1043 = vrot.slane %v1038, 4
      %v1045 = vshrl.u32 %v1011, 16
      %v1047 = vrot.slane %v1045, 7
      %v1048 = vshll.u32 %v1011, 16
      %v1050 = vor.u32 %v1047, %v1048
      %v1051 = vrot.slane %v1047, 4
      %v1053 = vshrl.u32 %v1012, 16
      %v1055 = vrot.slane %v1053, 7
      %v1056 = vshll.u32 %v1012, 16
      %v1058 = vor.u32 %v1055, %v1056
      %v1059 = vsel %vm1026, %v1051, %v1058
      %v1060 = vrot.slane %v1055, 4
      %v1062 = vshrl.u32 %v1013, 16
      %v1064 = vrot.slane %v1062, 7
      %v1065 = vshll.u32 %v1013, 16
      %v1067 = vor.u32 %v1064, %v1065
      %v1068 = vrot.slane %v1064, 4
      %v1070 = vshrl.u32 %v1014, 16
      %v1072 = vrot.slane %v1070, 7
      %v1073 = vshll.u32 %v1014, 16
      %v1075 = vor.u32 %v1072, %v1073
      %v1076 = vsel %vm1026, %v1068, %v1075
      %v1077 = vrot.slane %v1072, 4
      %v1079 = vshrl.u32 %v1015, 16
      %v1081 = vrot.slane %v1079, 7
      %v1082 = vshll.u32 %v1015, 16
      %v1084 = vor.u32 %v1081, %v1082
      %v1085 = vrot.slane %v1081, 4
      %v1087 = vshrl.u32 %v1016, 16
      %v1089 = vrot.slane %v1087, 7
      %v1090 = vshll.u32 %v1016, 16
      %v1092 = vor.u32 %v1089, %v1090
      %v1093 = vsel %vm1026, %v1085, %v1092
      %v1094 = vrot.slane %v1089, 4
      %v1096 = vshrl.u32 %v1017, 16
      %v1098 = vrot.slane %v1096, 7
      %v1099 = vshll.u32 %v1017, 16
      %v1101 = vor.u32 %v1098, %v1099
      %v1102 = vrot.slane %v1098, 4
      %v1104 = vshrl.u32 %v1018, 16
      %v1106 = vrot.slane %v1104, 7
      %v1107 = vshll.u32 %v1018, 16
      %v1109 = vor.u32 %v1106, %v1107
      %v1110 = vsel %vm1026, %v1102, %v1109
      %v1111 = vrot.slane %v1106, 4
      %v1113 = vshrl.u32 %v1019, 16
      %v1115 = vrot.slane %v1113, 7
      %v1116 = vshll.u32 %v1019, 16
      %v1118 = vor.u32 %v1115, %v1116
      %v1119 = vrot.slane %v1115, 4
      %v1121 = vshrl.u32 %v1020, 16
      %v1123 = vrot.slane %v1121, 7
      %v1124 = vshll.u32 %v1020, 16
      %v1126 = vor.u32 %v1123, %v1124
      %v1127 = vsel %vm1026, %v1119, %v1126
      %v1128 = vrot.slane %v1123, 4
      %v1130 = vshrl.u32 %v1021, 16
      %v1132 = vrot.slane %v1130, 7
      %v1133 = vshll.u32 %v1021, 16
      %v1135 = vor.u32 %v1132, %v1133
      %v1136 = vrot.slane %v1132, 4
      %v1138 = vshrl.u32 %v1022, 16
      %v1140 = vrot.slane %v1138, 7
      %v1141 = vshll.u32 %v1022, 16
      %v1143 = vor.u32 %v1140, %v1141
      %v1144 = vsel %vm1026, %v1136, %v1143
      %v1145 = vrot.slane %v1140, 4
      %v1147 = vshrl.u32 %v1023, 16
      %v1149 = vrot.slane %v1147, 7
      %v1150 = vshll.u32 %v1023, 16
      %v1152 = vor.u32 %v1149, %v1150
      %v1153 = vrot.slane %v1149, 4
      %v1155 = vshrl.u32 %v1024, 16
      %v1157 = vrot.slane %v1155, 7
      %v1158 = vshll.u32 %v1024, 16
      %v1160 = vor.u32 %v1157, %v1158
      %v1161 = vsel %vm1026, %v1153, %v1160
      %v1162 = vrot.slane %v1157, 4
      %s1187 = scalar_lea.vmem [#allocation2], 12
      %vm1188 = vcmask 1043456
      %vm1189 = vmand %vm1188, %vm603
      %v1190 = vld [vmem:[%s1187] sm:$0xf]
      %v1191 = vsel %vm1189, %v1033, %v1190
      %1192 = vst [vmem:[%s1187] sm:$0xf] %v1191
      %1193 = vst [vmem:[%s1187 + $0x4] sm:$0xf] %v1042
      %v1194 = vld [vmem:[%s1187 + $0x8] sm:$0x1]
      %v1195 = vsel %vm572, %v1043, %v1194
      %1196 = vst [vmem:[%s1187 + $0x8] sm:$0x1] %v1195
      %v1197 = vld [vmem:[%s1187 + $0xc] sm:$0xf]
      %v1198 = vsel %vm1189, %v1050, %v1197
      %1199 = vst [vmem:[%s1187 + $0xc] sm:$0xf] %v1198
      %1200 = vst [vmem:[%s1187 + $0x10] sm:$0xf] %v1059
      %v1201 = vld [vmem:[%s1187 + $0x14] sm:$0x1]
      %v1202 = vsel %vm572, %v1060, %v1201
      %1203 = vst [vmem:[%s1187 + $0x14] sm:$0x1] %v1202
      %v1204 = vld [vmem:[%s1187 + $0x18] sm:$0xf]
      %v1205 = vsel %vm1189, %v1067, %v1204
      %1206 = vst [vmem:[%s1187 + $0x18] sm:$0xf] %v1205
      %1207 = vst [vmem:[%s1187 + $0x1c] sm:$0xf] %v1076
      %v1208 = vld [vmem:[%s1187 + $0x20] sm:$0x1]
      %v1209 = vsel %vm572, %v1077, %v1208
      %1210 = vst [vmem:[%s1187 + $0x20] sm:$0x1] %v1209
      %v1211 = vld [vmem:[%s1187 + $0x24] sm:$0xf]
      %v1212 = vsel %vm1189, %v1084, %v1211
      %1213 = vst [vmem:[%s1187 + $0x24] sm:$0xf] %v1212
      %1214 = vst [vmem:[%s1187 + $0x28] sm:$0xf] %v1093
      %v1215 = vld [vmem:[%s1187 + $0x2c] sm:$0x1]
      %v1216 = vsel %vm572, %v1094, %v1215
      %1217 = vst [vmem:[%s1187 + $0x2c] sm:$0x1] %v1216
      %v1218 = vld [vmem:[%s1187 + $0x30] sm:$0xf]
      %v1219 = vsel %vm1189, %v1101, %v1218
      %1220 = vst [vmem:[%s1187 + $0x30] sm:$0xf] %v1219
      %1221 = vst [vmem:[%s1187 + $0x34] sm:$0xf] %v1110
      %v1222 = vld [vmem:[%s1187 + $0x38] sm:$0x1]
      %v1223 = vsel %vm572, %v1111, %v1222
      %1224 = vst [vmem:[%s1187 + $0x38] sm:$0x1] %v1223
      %v1225 = vld [vmem:[%s1187 + $0x3c] sm:$0xf]
      %v1226 = vsel %vm1189, %v1118, %v1225
      %1227 = vst [vmem:[%s1187 + $0x3c] sm:$0xf] %v1226
      %1228 = vst [vmem:[%s1187 + $0x40] sm:$0xf] %v1127
      %v1229 = vld [vmem:[%s1187 + $0x44] sm:$0x1]
      %v1230 = vsel %vm572, %v1128, %v1229
      %1231 = vst [vmem:[%s1187 + $0x44] sm:$0x1] %v1230
      %v1232 = vld [vmem:[%s1187 + $0x48] sm:$0xf]
      %v1233 = vsel %vm1189, %v1135, %v1232
      %1234 = vst [vmem:[%s1187 + $0x48] sm:$0xf] %v1233
      %1235 = vst [vmem:[%s1187 + $0x4c] sm:$0xf] %v1144
      %v1236 = vld [vmem:[%s1187 + $0x50] sm:$0x1]
      %v1237 = vsel %vm572, %v1145, %v1236
      %1238 = vst [vmem:[%s1187 + $0x50] sm:$0x1] %v1237
      %v1239 = vld [vmem:[%s1187 + $0x54] sm:$0xf]
      %v1240 = vsel %vm1189, %v1152, %v1239
      %1241 = vst [vmem:[%s1187 + $0x54] sm:$0xf] %v1240
      %1242 = vst [vmem:[%s1187 + $0x58] sm:$0xf] %v1161
      %v1243 = vld [vmem:[%s1187 + $0x5c] sm:$0x1]
      %v1244 = vsel %vm572, %v1162, %v1243
      %1245 = vst [vmem:[%s1187 + $0x5c] sm:$0x1] %v1244
      %v1246 = vld [vmem:[%s523] sm:$0xff]
      %v1247 = vld [vmem:[%s523 + $0x8] sm:$0xff]
      %v1248 = vmul.f32 %v1246, %v652
      %v1249 = vmul.f32 %v1247, %v652
      %v1250 = vadd.f32 %v1248, %v671
      %v1251 = vadd.f32 %v1249, %v671
      %v1252 = vxor.u32 %v1250, 2147483648
      %v1253 = vxor.u32 %v1251, 2147483648
      %v1254 = vmul.f32 %v1252, 1.442695
      %v1255 = vpow.pop %v1254
      %v1256 = vmul.f32 %v1253, 1.442695
      %v1257 = vpow.pop %v1256
      %v1258 = vadd.f32 %v1255, 1.0
      %v1259 = vadd.f32 %v1257, 1.0
      %v1260 = vrcp.pop %v1258
      %v1261 = vmul.f32 %v1258, %v1260
      %v1262 = vsub.f32 1.0, %v1261
      %v1263 = vmul.f32 %v1260, %v1262
      %v1264 = vadd.f32 %v1260, %v1263
      %vm1265 = vweird.f32 %v1258
      %vm1266 = vweird.f32 %v1260
      %vm1267 = vmor %vm1265, %vm1266
      %v1268 = vsel %vm1267, %v1260, %v1264
      %v1269 = vand.u32 2147483647, %v1258
      %vm1270 = vcmp.eq.f32.partialorder %v1269, 8.507059e+37
      %v1271 = vand.u32 %v1258, 2147483648
      %v1272 = vor.u32 1.1754944e-38, %v1271
      %v1273 = vsel %vm1270, %v1272, %v1268
      %v1274 = vmul.f32 1.0, %v1273
      %v1275 = vrcp.pop %v1259
      %v1276 = vmul.f32 %v1259, %v1275
      %v1277 = vsub.f32 1.0, %v1276
      %v1278 = vmul.f32 %v1275, %v1277
      %v1279 = vadd.f32 %v1275, %v1278
      %vm1280 = vweird.f32 %v1259
      %vm1281 = vweird.f32 %v1275
      %vm1282 = vmor %vm1280, %vm1281
      %v1283 = vsel %vm1282, %v1275, %v1279
      %v1284 = vand.u32 2147483647, %v1259
      %vm1285 = vcmp.eq.f32.partialorder %v1284, 8.507059e+37
      %v1286 = vand.u32 %v1259, 2147483648
      %v1287 = vor.u32 1.1754944e-38, %v1286
      %v1288 = vsel %vm1285, %v1287, %v1283
      %v1289 = vmul.f32 1.0, %v1288
      %v1290 = vmul.f32 %v1250, %v1274
      %v1291 = vmul.f32 %v1251, %v1289
      %v1292 = vpack.c.bf16 %v1290, %v1290
      %v1293 = vpack.c.bf16 %v1291, %v1291
      %v1294 = vld [vmem:[%s540] sm:$0xff]
      %v1295 = vld [vmem:[%s540 + $0x8] sm:$0xff]
      %v1296 = vmul.f32 %v1294, %v652
      %v1297 = vmul.f32 %v1295, %v652
      %v1298 = vadd.f32 %v1296, %v671
      %v1299 = vadd.f32 %v1297, %v671
      %v1300 = vxor.u32 %v1298, 2147483648
      %v1301 = vxor.u32 %v1299, 2147483648
      %v1302 = vmul.f32 %v1300, 1.442695
      %v1303 = vpow.pop %v1302
      %v1304 = vmul.f32 %v1301, 1.442695
      %v1305 = vpow.pop %v1304
      %v1306 = vadd.f32 %v1303, 1.0
      %v1307 = vadd.f32 %v1305, 1.0
      %v1308 = vrcp.pop %v1306
      %v1309 = vmul.f32 %v1306, %v1308
      %v1310 = vsub.f32 1.0, %v1309
      %v1311 = vmul.f32 %v1308, %v1310
      %v1312 = vadd.f32 %v1308, %v1311
      %vm1313 = vweird.f32 %v1306
      %vm1314 = vweird.f32 %v1308
      %vm1315 = vmor %vm1313, %vm1314
      %v1316 = vsel %vm1315, %v1308, %v1312
      %v1317 = vand.u32 2147483647, %v1306
      %vm1318 = vcmp.eq.f32.partialorder %v1317, 8.507059e+37
      %v1319 = vand.u32 %v1306, 2147483648
      %v1320 = vor.u32 1.1754944e-38, %v1319
      %v1321 = vsel %vm1318, %v1320, %v1316
      %v1322 = vmul.f32 1.0, %v1321
      %v1323 = vrcp.pop %v1307
      %v1324 = vmul.f32 %v1307, %v1323
      %v1325 = vsub.f32 1.0, %v1324
      %v1326 = vmul.f32 %v1323, %v1325
      %v1327 = vadd.f32 %v1323, %v1326
      %vm1328 = vweird.f32 %v1307
      %vm1329 = vweird.f32 %v1323
      %vm1330 = vmor %vm1328, %vm1329
      %v1331 = vsel %vm1330, %v1323, %v1327
      %v1332 = vand.u32 2147483647, %v1307
      %vm1333 = vcmp.eq.f32.partialorder %v1332, 8.507059e+37
      %v1334 = vand.u32 %v1307, 2147483648
      %v1335 = vor.u32 1.1754944e-38, %v1334
      %v1336 = vsel %vm1333, %v1335, %v1331
      %v1337 = vmul.f32 1.0, %v1336
      %v1338 = vmul.f32 %v1298, %v1322
      %v1339 = vmul.f32 %v1299, %v1337
      %v1340 = vpack.c.bf16 %v1338, %v1338
      %v1341 = vpack.c.bf16 %v1339, %v1339
      %p1342 = scmp.gt.s32.totalorder %s26, 0
      %s1343 = scalar_select %p1342, 1, 0
      %v1344 = vstv %s1343
      %vm1345 = vcmp.eq.s32.totalorder %v1344, 1
      %v1346 = vsel %vm1345, %v1292, 0
      %v1347 = vsel %vm1345, %v1293, 0
      %v1349 = vshrl.u32 %v1346, 16
      %v1351 = vrot.slane %v1349, 7
      %v1352 = vshll.u32 %v1346, 16
      %v1354 = vor.u32 %v1351, %v1352
      %v1355 = vrot.slane %v1351, 4
      %v1357 = vshrl.u32 %v1347, 16
      %v1359 = vrot.slane %v1357, 7
      %v1360 = vshll.u32 %v1347, 16
      %v1362 = vor.u32 %v1359, %v1360
      %v1363 = vsel %vm1026, %v1355, %v1362
      %v1364 = vrot.slane %v1359, 4
      %v1368 = vld [vmem:[#allocation2] sm:$0xf]
      %v1369 = vsel %vm1189, %v1354, %v1368
      %1370 = vst [vmem:[#allocation2] sm:$0xf] %v1369
      %1371 = vst [vmem:[#allocation2 + $0x4] sm:$0xf] %v1363
      %v1372 = vld [vmem:[#allocation2 + $0x8] sm:$0x1]
      %v1373 = vsel %vm572, %v1364, %v1372
      %1374 = vst [vmem:[#allocation2 + $0x8] sm:$0x1] %v1373
      %p1375 = scmp.lt.s32.totalorder %s26, 1
      %s1376 = scalar_select %p1375, 1, 0
      %v1377 = vstv %s1376
      %vm1378 = vcmp.eq.s32.totalorder %v1377, 1
      %v1379 = vsel %vm1378, %v1340, 0
      %v1380 = vsel %vm1378, %v1341, 0
      %v1382 = vshrl.u32 %v1379, 16
      %v1384 = vrot.slane %v1382, 7
      %v1385 = vshll.u32 %v1379, 16
      %v1387 = vor.u32 %v1384, %v1385
      %v1388 = vrot.slane %v1384, 4
      %v1390 = vshrl.u32 %v1380, 16
      %v1392 = vrot.slane %v1390, 7
      %v1393 = vshll.u32 %v1380, 16
      %v1395 = vor.u32 %v1392, %v1393
      %v1396 = vsel %vm1026, %v1388, %v1395
      %v1397 = vrot.slane %v1392, 4
      %s1401 = scalar_lea.vmem [#allocation2], 108
      %v1402 = vld [vmem:[%s1401] sm:$0xf]
      %v1403 = vsel %vm1189, %v1387, %v1402
      %1404 = vst [vmem:[%s1401] sm:$0xf] %v1403
      %1405 = vst [vmem:[%s1401 + $0x4] sm:$0xf] %v1396
      %v1406 = vld [vmem:[%s1401 + $0x8] sm:$0x1]
      %v1407 = vsel %vm572, %v1397, %v1406
      %1408 = vst [vmem:[%s1401 + $0x8] sm:$0x1] %v1407
      %v1409 = vld [vmem:[#allocation2] sm:$0xf]
      %v1410 = vld [vmem:[#allocation2 + $0x4] sm:$0xf]
      %v1411 = vld [vmem:[#allocation2 + $0xc] sm:$0xf]
      %v1412 = vld [vmem:[#allocation2 + $0x10] sm:$0xf]
      %v1413 = vld [vmem:[#allocation2 + $0x18] sm:$0xf]
      %v1414 = vld [vmem:[#allocation2 + $0x1c] sm:$0xf]
      %v1415 = vld [vmem:[#allocation2 + $0x24] sm:$0xf]
      %v1416 = vld [vmem:[#allocation2 + $0x28] sm:$0xf]
      %v1417 = vld [vmem:[#allocation2 + $0x30] sm:$0xf]
      %v1418 = vld [vmem:[#allocation2 + $0x34] sm:$0xf]
      %v1419 = vld [vmem:[#allocation2 + $0x3c] sm:$0xf]
      %v1420 = vld [vmem:[#allocation2 + $0x40] sm:$0xf]
      %v1421 = vld [vmem:[#allocation2 + $0x48] sm:$0xf]
      %v1422 = vld [vmem:[#allocation2 + $0x4c] sm:$0xf]
      %v1423 = vld [vmem:[#allocation2 + $0x54] sm:$0xf]
      %v1424 = vld [vmem:[#allocation2 + $0x58] sm:$0xf]
      %v1425 = vld [vmem:[#allocation2 + $0x60] sm:$0xf]
      %v1426 = vld [vmem:[#allocation2 + $0x64] sm:$0xf]
      %v1427 = vld [vmem:[#allocation2 + $0x6c] sm:$0xf]
      %v1428 = vld [vmem:[#allocation2 + $0x70] sm:$0xf]
      %1429 = vst [vmem:[#allocation3] sm:$0xf] %v1409
      %1430 = vst [vmem:[#allocation3 + $0xc] sm:$0xf] %v1410
      %1431 = vst [vmem:[#allocation3 + $0x18] sm:$0xf] %v1411
      %1432 = vst [vmem:[#allocation3 + $0x24] sm:$0xf] %v1412
      %1433 = vst [vmem:[#allocation3 + $0x30] sm:$0xf] %v1413
      %1434 = vst [vmem:[#allocation3 + $0x3c] sm:$0xf] %v1414
      %1435 = vst [vmem:[#allocation3 + $0x48] sm:$0xf] %v1415
      %1436 = vst [vmem:[#allocation3 + $0x54] sm:$0xf] %v1416
      %1437 = vst [vmem:[#allocation3 + $0x60] sm:$0xf] %v1417
      %1438 = vst [vmem:[#allocation3 + $0x6c] sm:$0xf] %v1418
      %1439 = vst [vmem:[#allocation3 + $0x78] sm:$0xf] %v1419
      %1440 = vst [vmem:[#allocation3 + $0x84] sm:$0xf] %v1420
      %1441 = vst [vmem:[#allocation3 + $0x90] sm:$0xf] %v1421
      %1442 = vst [vmem:[#allocation3 + $0x9c] sm:$0xf] %v1422
      %1443 = vst [vmem:[#allocation3 + $0xa8] sm:$0xf] %v1423
      %1444 = vst [vmem:[#allocation3 + $0xb4] sm:$0xf] %v1424
      %1445 = vst [vmem:[#allocation3 + $0xc0] sm:$0xf] %v1425
      %1446 = vst [vmem:[#allocation3 + $0xcc] sm:$0xf] %v1426
      %1447 = vst [vmem:[#allocation3 + $0xd8] sm:$0xf] %v1427
      %1448 = vst [vmem:[#allocation3 + $0xe4] sm:$0xf] %v1428
      %v1449 = vld [vmem:[#allocation2] sm:$0xf]
      %v1450 = vld [vmem:[#allocation2 + $0x4] sm:$0xf]
      %v1451 = vld [vmem:[#allocation2 + $0x8] sm:$0x1]
      %v1452 = vld [vmem:[#allocation2 + $0xc] sm:$0xf]
      %v1453 = vld [vmem:[#allocation2 + $0x10] sm:$0xf]
      %v1454 = vld [vmem:[#allocation2 + $0x14] sm:$0x1]
      %v1455 = vld [vmem:[#allocation2 + $0x18] sm:$0xf]
      %v1456 = vld [vmem:[#allocation2 + $0x1c] sm:$0xf]
      %v1457 = vld [vmem:[#allocation2 + $0x20] sm:$0x1]
      %v1458 = vld [vmem:[#allocation2 + $0x24] sm:$0xf]
      %v1459 = vld [vmem:[#allocation2 + $0x28] sm:$0xf]
      %v1460 = vld [vmem:[#allocation2 + $0x2c] sm:$0x1]
      %v1461 = vld [vmem:[#allocation2 + $0x30] sm:$0xf]
      %v1462 = vld [vmem:[#allocation2 + $0x34] sm:$0xf]
      %v1463 = vld [vmem:[#allocation2 + $0x38] sm:$0x1]
      %v1464 = vld [vmem:[#allocation2 + $0x3c] sm:$0xf]
      %v1465 = vld [vmem:[#allocation2 + $0x40] sm:$0xf]
      %v1466 = vld [vmem:[#allocation2 + $0x44] sm:$0x1]
      %v1467 = vld [vmem:[#allocation2 + $0x48] sm:$0xf]
      %v1468 = vld [vmem:[#allocation2 + $0x4c] sm:$0xf]
      %v1469 = vld [vmem:[#allocation2 + $0x50] sm:$0x1]
      %v1470 = vld [vmem:[#allocation2 + $0x54] sm:$0xf]
      %v1471 = vld [vmem:[#allocation2 + $0x58] sm:$0xf]
      %v1472 = vld [vmem:[#allocation2 + $0x5c] sm:$0x1]
      %v1473 = vld [vmem:[#allocation2 + $0x60] sm:$0xf]
      %v1474 = vld [vmem:[#allocation2 + $0x64] sm:$0xf]
      %v1475 = vld [vmem:[#allocation2 + $0x68] sm:$0x1]
      %v1476 = vld [vmem:[#allocation2 + $0x6c] sm:$0xf]
      %v1477 = vld [vmem:[#allocation2 + $0x70] sm:$0xf]
      %v1478 = vld [vmem:[#allocation2 + $0x74] sm:$0x1]
      %vm1479 = vsmask.f32 3328
      %vm1480 = vsmask.f32 7440
      %vm1481 = vmor %vm1479, %vm1480
      %v1483 = vshrl.u32 %v1449, 16
      %v1485 = vrot.slane %v1483, 4
      %v1486 = vshll.u32 %v1449, 16
      %v1488 = vrot.slane %v1486, 5
      %v1489 = vor.u32 %v1485, %v1488
      %v1490 = vrot.slane %v1489, 4
      %v1492 = vshll.u32 %v1450, 16
      %v1494 = vrot.slane %v1492, 5
      %v1495 = vsel %vm1481, %v1490, %v1494
      %v1496 = vshrl.u32 %v1450, 16
      %v1498 = vrot.slane %v1496, 4
      %v1499 = vor.u32 %v1498, %v1494
      %v1500 = vrot.slane %v1499, 4
      %v1502 = vshll.u32 %v1451, 16
      %v1504 = vrot.slane %v1502, 5
      %v1505 = vsel %vm1481, %v1500, %v1504
      %v1507 = vshrl.u32 %v1452, 16
      %v1509 = vrot.slane %v1507, 4
      %v1510 = vshll.u32 %v1452, 16
      %v1512 = vrot.slane %v1510, 5
      %v1513 = vor.u32 %v1509, %v1512
      %v1514 = vrot.slane %v1513, 4
      %v1516 = vshll.u32 %v1453, 16
      %v1518 = vrot.slane %v1516, 5
      %v1519 = vsel %vm1481, %v1514, %v1518
      %v1520 = vshrl.u32 %v1453, 16
      %v1522 = vrot.slane %v1520, 4
      %v1523 = vor.u32 %v1522, %v1518
      %v1524 = vrot.slane %v1523, 4
      %v1526 = vshll.u32 %v1454, 16
      %v1528 = vrot.slane %v1526, 5
      %v1529 = vsel %vm1481, %v1524, %v1528
      %v1531 = vshrl.u32 %v1455, 16
      %v1533 = vrot.slane %v1531, 4
      %v1534 = vshll.u32 %v1455, 16
      %v1536 = vrot.slane %v1534, 5
      %v1537 = vor.u32 %v1533, %v1536
      %v1538 = vrot.slane %v1537, 4
      %v1540 = vshll.u32 %v1456, 16
      %v1542 = vrot.slane %v1540, 5
      %v1543 = vsel %vm1481, %v1538, %v1542
      %v1544 = vshrl.u32 %v1456, 16
      %v1546 = vrot.slane %v1544, 4
      %v1547 = vor.u32 %v1546, %v1542
      %v1548 = vrot.slane %v1547, 4
      %v1550 = vshll.u32 %v1457, 16
      %v1552 = vrot.slane %v1550, 5
      %v1553 = vsel %vm1481, %v1548, %v1552
      %v1555 = vshrl.u32 %v1458, 16
      %v1557 = vrot.slane %v1555, 4
      %v1558 = vshll.u32 %v1458, 16
      %v1560 = vrot.slane %v1558, 5
      %v1561 = vor.u32 %v1557, %v1560
      %v1562 = vrot.slane %v1561, 4
      %v1564 = vshll.u32 %v1459, 16
      %v1566 = vrot.slane %v1564, 5
      %v1567 = vsel %vm1481, %v1562, %v1566
      %v1568 = vshrl.u32 %v1459, 16
      %v1570 = vrot.slane %v1568, 4
      %v1571 = vor.u32 %v1570, %v1566
      %v1572 = vrot.slane %v1571, 4
      %v1574 = vshll.u32 %v1460, 16
      %v1576 = vrot.slane %v1574, 5
      %v1577 = vsel %vm1481, %v1572, %v1576
      %v1579 = vshrl.u32 %v1461, 16
      %v1581 = vrot.slane %v1579, 4
      %v1582 = vshll.u32 %v1461, 16
      %v1584 = vrot.slane %v1582, 5
      %v1585 = vor.u32 %v1581, %v1584
      %v1586 = vrot.slane %v1585, 4
      %v1588 = vshll.u32 %v1462, 16
      %v1590 = vrot.slane %v1588, 5
      %v1591 = vsel %vm1481, %v1586, %v1590
      %v1592 = vshrl.u32 %v1462, 16
      %v1594 = vrot.slane %v1592, 4
      %v1595 = vor.u32 %v1594, %v1590
      %v1596 = vrot.slane %v1595, 4
      %v1598 = vshll.u32 %v1463, 16
      %v1600 = vrot.slane %v1598, 5
      %v1601 = vsel %vm1481, %v1596, %v1600
      %v1603 = vshrl.u32 %v1464, 16
      %v1605 = vrot.slane %v1603, 4
      %v1606 = vshll.u32 %v1464, 16
      %v1608 = vrot.slane %v1606, 5
      %v1609 = vor.u32 %v1605, %v1608
      %v1610 = vrot.slane %v1609, 4
      %v1612 = vshll.u32 %v1465, 16
      %v1614 = vrot.slane %v1612, 5
      %v1615 = vsel %vm1481, %v1610, %v1614
      %v1616 = vshrl.u32 %v1465, 16
      %v1618 = vrot.slane %v1616, 4
      %v1619 = vor.u32 %v1618, %v1614
      %v1620 = vrot.slane %v1619, 4
      %v1622 = vshll.u32 %v1466, 16
      %v1624 = vrot.slane %v1622, 5
      %v1625 = vsel %vm1481, %v1620, %v1624
      %v1627 = vshrl.u32 %v1467, 16
      %v1629 = vrot.slane %v1627, 4
      %v1630 = vshll.u32 %v1467, 16
      %v1632 = vrot.slane %v1630, 5
      %v1633 = vor.u32 %v1629, %v1632
      %v1634 = vrot.slane %v1633, 4
      %v1636 = vshll.u32 %v1468, 16
      %v1638 = vrot.slane %v1636, 5
      %v1639 = vsel %vm1481, %v1634, %v1638
      %v1640 = vshrl.u32 %v1468, 16
      %v1642 = vrot.slane %v1640, 4
      %v1643 = vor.u32 %v1642, %v1638
      %v1644 = vrot.slane %v1643, 4
      %v1646 = vshll.u32 %v1469, 16
      %v1648 = vrot.slane %v1646, 5
      %v1649 = vsel %vm1481, %v1644, %v1648
      %v1651 = vshrl.u32 %v1470, 16
      %v1653 = vrot.slane %v1651, 4
      %v1654 = vshll.u32 %v1470, 16
      %v1656 = vrot.slane %v1654, 5
      %v1657 = vor.u32 %v1653, %v1656
      %v1658 = vrot.slane %v1657, 4
      %v1660 = vshll.u32 %v1471, 16
      %v1662 = vrot.slane %v1660, 5
      %v1663 = vsel %vm1481, %v1658, %v1662
      %v1664 = vshrl.u32 %v1471, 16
      %v1666 = vrot.slane %v1664, 4
      %v1667 = vor.u32 %v1666, %v1662
      %v1668 = vrot.slane %v1667, 4
      %v1670 = vshll.u32 %v1472, 16
      %v1672 = vrot.slane %v1670, 5
      %v1673 = vsel %vm1481, %v1668, %v1672
      %v1675 = vshrl.u32 %v1473, 16
      %v1677 = vrot.slane %v1675, 4
      %v1678 = vshll.u32 %v1473, 16
      %v1680 = vrot.slane %v1678, 5
      %v1681 = vor.u32 %v1677, %v1680
      %v1682 = vrot.slane %v1681, 4
      %v1684 = vshll.u32 %v1474, 16
      %v1686 = vrot.slane %v1684, 5
      %v1687 = vsel %vm1481, %v1682, %v1686
      %v1688 = vshrl.u32 %v1474, 16
      %v1690 = vrot.slane %v1688, 4
      %v1691 = vor.u32 %v1690, %v1686
      %v1692 = vrot.slane %v1691, 4
      %v1694 = vshll.u32 %v1475, 16
      %v1696 = vrot.slane %v1694, 5
      %v1697 = vsel %vm1481, %v1692, %v1696
      %v1699 = vshrl.u32 %v1476, 16
      %v1701 = vrot.slane %v1699, 4
      %v1702 = vshll.u32 %v1476, 16
      %v1704 = vrot.slane %v1702, 5
      %v1705 = vor.u32 %v1701, %v1704
      %v1706 = vrot.slane %v1705, 4
      %v1708 = vshll.u32 %v1477, 16
      %v1710 = vrot.slane %v1708, 5
      %v1711 = vsel %vm1481, %v1706, %v1710
      %v1712 = vshrl.u32 %v1477, 16
      %v1714 = vrot.slane %v1712, 4
      %v1715 = vor.u32 %v1714, %v1710
      %v1716 = vrot.slane %v1715, 4
      %v1718 = vshll.u32 %v1478, 16
      %v1720 = vrot.slane %v1718, 5
      %v1721 = vsel %vm1481, %v1716, %v1720
      %1742 = vst [vmem:[#allocation3 + $0x4] sm:$0xf] %v1495
      %1743 = vst [vmem:[#allocation3 + $0x10] sm:$0xf] %v1505
      %1744 = vst [vmem:[#allocation3 + $0x1c] sm:$0xf] %v1519
      %1745 = vst [vmem:[#allocation3 + $0x28] sm:$0xf] %v1529
      %1746 = vst [vmem:[#allocation3 + $0x34] sm:$0xf] %v1543
      %1747 = vst [vmem:[#allocation3 + $0x40] sm:$0xf] %v1553
      %1748 = vst [vmem:[#allocation3 + $0x4c] sm:$0xf] %v1567
      %1749 = vst [vmem:[#allocation3 + $0x58] sm:$0xf] %v1577
      %1750 = vst [vmem:[#allocation3 + $0x64] sm:$0xf] %v1591
      %1751 = vst [vmem:[#allocation3 + $0x70] sm:$0xf] %v1601
      %1752 = vst [vmem:[#allocation3 + $0x7c] sm:$0xf] %v1615
      %1753 = vst [vmem:[#allocation3 + $0x88] sm:$0xf] %v1625
      %1754 = vst [vmem:[#allocation3 + $0x94] sm:$0xf] %v1639
      %1755 = vst [vmem:[#allocation3 + $0xa0] sm:$0xf] %v1649
      %1756 = vst [vmem:[#allocation3 + $0xac] sm:$0xf] %v1663
      %1757 = vst [vmem:[#allocation3 + $0xb8] sm:$0xf] %v1673
      %1758 = vst [vmem:[#allocation3 + $0xc4] sm:$0xf] %v1687
      %1759 = vst [vmem:[#allocation3 + $0xd0] sm:$0xf] %v1697
      %1760 = vst [vmem:[#allocation3 + $0xdc] sm:$0xf] %v1711
      %1761 = vst [vmem:[#allocation3 + $0xe8] sm:$0xf] %v1721
      %v1762 = vld [vmem:[#allocation2] sm:$0xe]
      %v1763 = vld [vmem:[#allocation2 + $0x4] sm:$0xf]
      %v1764 = vld [vmem:[#allocation2 + $0x8] sm:$0x1]
      %v1765 = vld [vmem:[#allocation2 + $0xc] sm:$0xe]
      %v1766 = vld [vmem:[#allocation2 + $0x10] sm:$0xf]
      %v1767 = vld [vmem:[#allocation2 + $0x14] sm:$0x1]
      %v1768 = vld [vmem:[#allocation2 + $0x18] sm:$0xe]
      %v1769 = vld [vmem:[#allocation2 + $0x1c] sm:$0xf]
      %v1770 = vld [vmem:[#allocation2 + $0x20] sm:$0x1]
      %v1771 = vld [vmem:[#allocation2 + $0x24] sm:$0xe]
      %v1772 = vld [vmem:[#allocation2 + $0x28] sm:$0xf]
      %v1773 = vld [vmem:[#allocation2 + $0x2c] sm:$0x1]
      %v1774 = vld [vmem:[#allocation2 + $0x30] sm:$0xe]
      %v1775 = vld [vmem:[#allocation2 + $0x34] sm:$0xf]
      %v1776 = vld [vmem:[#allocation2 + $0x38] sm:$0x1]
      %v1777 = vld [vmem:[#allocation2 + $0x3c] sm:$0xe]
      %v1778 = vld [vmem:[#allocation2 + $0x40] sm:$0xf]
      %v1779 = vld [vmem:[#allocation2 + $0x44] sm:$0x1]
      %v1780 = vld [vmem:[#allocation2 + $0x48] sm:$0xe]
      %v1781 = vld [vmem:[#allocation2 + $0x4c] sm:$0xf]
      %v1782 = vld [vmem:[#allocation2 + $0x50] sm:$0x1]
      %v1783 = vld [vmem:[#allocation2 + $0x54] sm:$0xe]
      %v1784 = vld [vmem:[#allocation2 + $0x58] sm:$0xf]
      %v1785 = vld [vmem:[#allocation2 + $0x5c] sm:$0x1]
      %v1786 = vld [vmem:[#allocation2 + $0x60] sm:$0xe]
      %v1787 = vld [vmem:[#allocation2 + $0x64] sm:$0xf]
      %v1788 = vld [vmem:[#allocation2 + $0x68] sm:$0x1]
      %v1789 = vld [vmem:[#allocation2 + $0x6c] sm:$0xe]
      %v1790 = vld [vmem:[#allocation2 + $0x70] sm:$0xf]
      %v1791 = vld [vmem:[#allocation2 + $0x74] sm:$0x1]
      %vm1822 = vcmask 1042432
      %vm1823 = vcmask 1046532
      %vm1824 = vmor %vm1822, %vm1823
      %v1825 = vrot.slane %v1762, 5
      %v1826 = vrot.slane %v1825, 4
      %v1827 = vrot.slane %v1763, 5
      %v1828 = vsel %vm1824, %v1826, %v1827
      %v1829 = vrot.slane %v1827, 4
      %v1830 = vrot.slane %v1764, 5
      %v1831 = vsel %vm1824, %v1829, %v1830
      %v1832 = vrot.slane %v1765, 5
      %v1833 = vrot.slane %v1832, 4
      %v1834 = vrot.slane %v1766, 5
      %v1835 = vsel %vm1824, %v1833, %v1834
      %v1836 = vrot.slane %v1834, 4
      %v1837 = vrot.slane %v1767, 5
      %v1838 = vsel %vm1824, %v1836, %v1837
      %v1839 = vrot.slane %v1768, 5
      %v1840 = vrot.slane %v1839, 4
      %v1841 = vrot.slane %v1769, 5
      %v1842 = vsel %vm1824, %v1840, %v1841
      %v1843 = vrot.slane %v1841, 4
      %v1844 = vrot.slane %v1770, 5
      %v1845 = vsel %vm1824, %v1843, %v1844
      %v1846 = vrot.slane %v1771, 5
      %v1847 = vrot.slane %v1846, 4
      %v1848 = vrot.slane %v1772, 5
      %v1849 = vsel %vm1824, %v1847, %v1848
      %v1850 = vrot.slane %v1848, 4
      %v1851 = vrot.slane %v1773, 5
      %v1852 = vsel %vm1824, %v1850, %v1851
      %v1853 = vrot.slane %v1774, 5
      %v1854 = vrot.slane %v1853, 4
      %v1855 = vrot.slane %v1775, 5
      %v1856 = vsel %vm1824, %v1854, %v1855
      %v1857 = vrot.slane %v1855, 4
      %v1858 = vrot.slane %v1776, 5
      %v1859 = vsel %vm1824, %v1857, %v1858
      %v1860 = vrot.slane %v1777, 5
      %v1861 = vrot.slane %v1860, 4
      %v1862 = vrot.slane %v1778, 5
      %v1863 = vsel %vm1824, %v1861, %v1862
      %v1864 = vrot.slane %v1862, 4
      %v1865 = vrot.slane %v1779, 5
      %v1866 = vsel %vm1824, %v1864, %v1865
      %v1867 = vrot.slane %v1780, 5
      %v1868 = vrot.slane %v1867, 4
      %v1869 = vrot.slane %v1781, 5
      %v1870 = vsel %vm1824, %v1868, %v1869
      %v1871 = vrot.slane %v1869, 4
      %v1872 = vrot.slane %v1782, 5
      %v1873 = vsel %vm1824, %v1871, %v1872
      %v1874 = vrot.slane %v1783, 5
      %v1875 = vrot.slane %v1874, 4
      %v1876 = vrot.slane %v1784, 5
      %v1877 = vsel %vm1824, %v1875, %v1876
      %v1878 = vrot.slane %v1876, 4
      %v1879 = vrot.slane %v1785, 5
      %v1880 = vsel %vm1824, %v1878, %v1879
      %v1881 = vrot.slane %v1786, 5
      %v1882 = vrot.slane %v1881, 4
      %v1883 = vrot.slane %v1787, 5
      %v1884 = vsel %vm1824, %v1882, %v1883
      %v1885 = vrot.slane %v1883, 4
      %v1886 = vrot.slane %v1788, 5
      %v1887 = vsel %vm1824, %v1885, %v1886
      %v1888 = vrot.slane %v1789, 5
      %v1889 = vrot.slane %v1888, 4
      %v1890 = vrot.slane %v1790, 5
      %v1891 = vsel %vm1824, %v1889, %v1890
      %v1892 = vrot.slane %v1890, 4
      %v1893 = vrot.slane %v1791, 5
      %v1894 = vsel %vm1824, %v1892, %v1893
      %1915 = vst [vmem:[#allocation3 + $0x8] sm:$0xf] %v1828
      %1916 = vst [vmem:[#allocation3 + $0x14] sm:$0xf] %v1831
      %1917 = vst [vmem:[#allocation3 + $0x20] sm:$0xf] %v1835
      %1918 = vst [vmem:[#allocation3 + $0x2c] sm:$0xf] %v1838
      %1919 = vst [vmem:[#allocation3 + $0x38] sm:$0xf] %v1842
      %1920 = vst [vmem:[#allocation3 + $0x44] sm:$0xf] %v1845
      %1921 = vst [vmem:[#allocation3 + $0x50] sm:$0xf] %v1849
      %1922 = vst [vmem:[#allocation3 + $0x5c] sm:$0xf] %v1852
      %1923 = vst [vmem:[#allocation3 + $0x68] sm:$0xf] %v1856
      %1924 = vst [vmem:[#allocation3 + $0x74] sm:$0xf] %v1859
      %1925 = vst [vmem:[#allocation3 + $0x80] sm:$0xf] %v1863
      %1926 = vst [vmem:[#allocation3 + $0x8c] sm:$0xf] %v1866
      %1927 = vst [vmem:[#allocation3 + $0x98] sm:$0xf] %v1870
      %1928 = vst [vmem:[#allocation3 + $0xa4] sm:$0xf] %v1873
      %1929 = vst [vmem:[#allocation3 + $0xb0] sm:$0xf] %v1877
      %1930 = vst [vmem:[#allocation3 + $0xbc] sm:$0xf] %v1880
      %1931 = vst [vmem:[#allocation3 + $0xc8] sm:$0xf] %v1884
      %1932 = vst [vmem:[#allocation3 + $0xd4] sm:$0xf] %v1887
      %1933 = vst [vmem:[#allocation3 + $0xe0] sm:$0xf] %v1891
      %1934 = vst [vmem:[#allocation3 + $0xec] sm:$0xf] %v1894
      %v1935 = vld [vmem:[#allocation3] sm:$0xff]
      %v1936 = vld [vmem:[#allocation3 + $0x8] sm:$0xf]
      %v1937 = vld [vmem:[#allocation3 + $0xc] sm:$0xff]
      %v1938 = vld [vmem:[#allocation3 + $0x14] sm:$0xf]
      %v1939 = vld [vmem:[#allocation3 + $0x18] sm:$0xff]
      %v1940 = vld [vmem:[#allocation3 + $0x20] sm:$0xf]
      %v1941 = vld [vmem:[#allocation3 + $0x24] sm:$0xff]
      %v1942 = vld [vmem:[#allocation3 + $0x2c] sm:$0xf]
      %v1943 = vld [vmem:[#allocation3 + $0x30] sm:$0xff]
      %v1944 = vld [vmem:[#allocation3 + $0x38] sm:$0xf]
      %v1945 = vld [vmem:[#allocation3 + $0x3c] sm:$0xff]
      %v1946 = vld [vmem:[#allocation3 + $0x44] sm:$0xf]
      %v1947 = vld [vmem:[#allocation3 + $0x48] sm:$0xff]
      %v1948 = vld [vmem:[#allocation3 + $0x50] sm:$0xf]
      %v1949 = vld [vmem:[#allocation3 + $0x54] sm:$0xff]
      %v1950 = vld [vmem:[#allocation3 + $0x5c] sm:$0xf]
      %v1951 = vld [vmem:[#allocation3 + $0x60] sm:$0xff]
      %v1952 = vld [vmem:[#allocation3 + $0x68] sm:$0xf]
      %v1953 = vld [vmem:[#allocation3 + $0x6c] sm:$0xff]
      %v1954 = vld [vmem:[#allocation3 + $0x74] sm:$0xf]
      %v1955 = vld [vmem:[#allocation3 + $0x78] sm:$0xff]
      %v1956 = vld [vmem:[#allocation3 + $0x80] sm:$0xf]
      %v1957 = vld [vmem:[#allocation3 + $0x84] sm:$0xff]
      %v1958 = vld [vmem:[#allocation3 + $0x8c] sm:$0xf]
      %v1959 = vld [vmem:[#allocation3 + $0x90] sm:$0xff]
      %v1960 = vld [vmem:[#allocation3 + $0x98] sm:$0xf]
      %v1961 = vld [vmem:[#allocation3 + $0x9c] sm:$0xff]
      %v1962 = vld [vmem:[#allocation3 + $0xa4] sm:$0xf]
      %v1963 = vld [vmem:[#allocation3 + $0xa8] sm:$0xff]
      %v1964 = vld [vmem:[#allocation3 + $0xb0] sm:$0xf]
      %v1965 = vld [vmem:[#allocation3 + $0xb4] sm:$0xff]
      %v1966 = vld [vmem:[#allocation3 + $0xbc] sm:$0xf]
      %v1967 = vld [vmem:[%s6] sm:$0xf]
      %v1968 = vld [vmem:[%s6 + $0x4] sm:$0xf]
      %v1969 = vld [vmem:[%s6 + $0x8] sm:$0xf]
      %v1970 = vld [vmem:[%s6 + $0xc] sm:$0xf]
      %v1971 = vld [vmem:[%s6 + $0x10] sm:$0xf]
      %v1972 = vld [vmem:[%s6 + $0x14] sm:$0xf]
      %v1973 = vld [vmem:[%s6 + $0x18] sm:$0xf]
      %v1974 = vld [vmem:[%s6 + $0x1c] sm:$0xf]
      %v1975 = vld [vmem:[%s6 + $0x20] sm:$0xf]
      %v1976 = vld [vmem:[%s6 + $0x24] sm:$0xf]
      %v1977 = vld [vmem:[%s6 + $0x28] sm:$0xf]
      %v1978 = vld [vmem:[%s6 + $0x2c] sm:$0xf]
      %v1979 = vld [vmem:[%s6 + $0x30] sm:$0xf]
      %v1980 = vld [vmem:[%s6 + $0x34] sm:$0xf]
      %v1981 = vld [vmem:[%s6 + $0x38] sm:$0xf]
      %v1982 = vld [vmem:[%s6 + $0x3c] sm:$0xf]
      %v1983 = vld [vmem:[%s6 + $0x40] sm:$0xf]
      %v1984 = vld [vmem:[%s6 + $0x44] sm:$0xf]
      %v1985 = vld [vmem:[%s6 + $0x48] sm:$0xf]
      %v1986 = vld [vmem:[%s6 + $0x4c] sm:$0xf]
      %v1987 = vld [vmem:[%s6 + $0x50] sm:$0xf]
      %v1988 = vld [vmem:[%s6 + $0x54] sm:$0xf]
      %v1989 = vld [vmem:[%s6 + $0x58] sm:$0xf]
      %v1990 = vld [vmem:[%s6 + $0x5c] sm:$0xf]
      %v1991 = vld [vmem:[%s6 + $0x60] sm:$0xf]
      %v1992 = vld [vmem:[%s6 + $0x64] sm:$0xf]
      %v1993 = vld [vmem:[%s6 + $0x68] sm:$0xf]
      %v1994 = vld [vmem:[%s6 + $0x6c] sm:$0xf]
      %v1995 = vld [vmem:[%s6 + $0x70] sm:$0xf]
      %v1996 = vld [vmem:[%s6 + $0x74] sm:$0xf]
      %v1997 = vld [vmem:[%s6 + $0x78] sm:$0xf]
      %v1998 = vld [vmem:[%s6 + $0x7c] sm:$0xf]
      %v1999 = vld [vmem:[%s6 + $0x80] sm:$0xf]
      %v2000 = vld [vmem:[%s6 + $0x84] sm:$0xf]
      %v2001 = vld [vmem:[%s6 + $0x88] sm:$0xf]
      %v2002 = vld [vmem:[%s6 + $0x8c] sm:$0xf]
      %v2003 = vld [vmem:[%s6 + $0x90] sm:$0xf]
      %v2004 = vld [vmem:[%s6 + $0x94] sm:$0xf]
      %v2005 = vld [vmem:[%s6 + $0x98] sm:$0xf]
      %v2006 = vld [vmem:[%s6 + $0x9c] sm:$0xf]
      %v2007 = vld [vmem:[%s6 + $0xa0] sm:$0xf]
      %v2008 = vld [vmem:[%s6 + $0xa4] sm:$0xf]
      %v2009 = vld [vmem:[%s6 + $0xa8] sm:$0xf]
      %v2010 = vld [vmem:[%s6 + $0xac] sm:$0xf]
      %v2011 = vld [vmem:[%s6 + $0xb0] sm:$0xf]
      %v2012 = vld [vmem:[%s6 + $0xb4] sm:$0xf]
      %v2013 = vld [vmem:[%s6 + $0xb8] sm:$0xf]
      %v2014 = vld [vmem:[%s6 + $0xbc] sm:$0xf]
      %s2015 = scalar_lea.vmem [#allocation3], 24
      %v2016 = vld [vmem:[%s2015] sm:$0xff]
      %v2017 = vld [vmem:[%s2015 + $0x8] sm:$0xf]
      %v2018 = vld [vmem:[%s2015 + $0xc] sm:$0xff]
      %v2019 = vld [vmem:[%s2015 + $0x14] sm:$0xf]
      %v2020 = vld [vmem:[%s2015 + $0x18] sm:$0xff]
      %v2021 = vld [vmem:[%s2015 + $0x20] sm:$0xf]
      %v2022 = vld [vmem:[%s2015 + $0x24] sm:$0xff]
      %v2023 = vld [vmem:[%s2015 + $0x2c] sm:$0xf]
      %v2024 = vld [vmem:[%s2015 + $0x30] sm:$0xff]
      %v2025 = vld [vmem:[%s2015 + $0x38] sm:$0xf]
      %v2026 = vld [vmem:[%s2015 + $0x3c] sm:$0xff]
      %v2027 = vld [vmem:[%s2015 + $0x44] sm:$0xf]
      %v2028 = vld [vmem:[%s2015 + $0x48] sm:$0xff]
      %v2029 = vld [vmem:[%s2015 + $0x50] sm:$0xf]
      %v2030 = vld [vmem:[%s2015 + $0x54] sm:$0xff]
      %v2031 = vld [vmem:[%s2015 + $0x5c] sm:$0xf]
      %v2032 = vld [vmem:[%s2015 + $0x60] sm:$0xff]
      %v2033 = vld [vmem:[%s2015 + $0x68] sm:$0xf]
      %v2034 = vld [vmem:[%s2015 + $0x6c] sm:$0xff]
      %v2035 = vld [vmem:[%s2015 + $0x74] sm:$0xf]
      %v2036 = vld [vmem:[%s2015 + $0x78] sm:$0xff]
      %v2037 = vld [vmem:[%s2015 + $0x80] sm:$0xf]
      %v2038 = vld [vmem:[%s2015 + $0x84] sm:$0xff]
      %v2039 = vld [vmem:[%s2015 + $0x8c] sm:$0xf]
      %v2040 = vld [vmem:[%s2015 + $0x90] sm:$0xff]
      %v2041 = vld [vmem:[%s2015 + $0x98] sm:$0xf]
      %v2042 = vld [vmem:[%s2015 + $0x9c] sm:$0xff]
      %v2043 = vld [vmem:[%s2015 + $0xa4] sm:$0xf]
      %v2044 = vld [vmem:[%s2015 + $0xa8] sm:$0xff]
      %v2045 = vld [vmem:[%s2015 + $0xb0] sm:$0xf]
      %v2046 = vld [vmem:[%s2015 + $0xb4] sm:$0xff]
      %v2047 = vld [vmem:[%s2015 + $0xbc] sm:$0xf]
      %s2048 = scalar_lea.vmem %s6, 192
      %v2049 = vld [vmem:[%s2048] sm:$0xf]
      %v2050 = vld [vmem:[%s2048 + $0x4] sm:$0xf]
      %v2051 = vld [vmem:[%s2048 + $0x8] sm:$0xf]
      %v2052 = vld [vmem:[%s2048 + $0xc] sm:$0xf]
      %v2053 = vld [vmem:[%s2048 + $0x10] sm:$0xf]
      %v2054 = vld [vmem:[%s2048 + $0x14] sm:$0xf]
      %v2055 = vld [vmem:[%s2048 + $0x18] sm:$0xf]
      %v2056 = vld [vmem:[%s2048 + $0x1c] sm:$0xf]
      %v2057 = vld [vmem:[%s2048 + $0x20] sm:$0xf]
      %v2058 = vld [vmem:[%s2048 + $0x24] sm:$0xf]
      %v2059 = vld [vmem:[%s2048 + $0x28] sm:$0xf]
      %v2060 = vld [vmem:[%s2048 + $0x2c] sm:$0xf]
      %v2061 = vld [vmem:[%s2048 + $0x30] sm:$0xf]
      %v2062 = vld [vmem:[%s2048 + $0x34] sm:$0xf]
      %v2063 = vld [vmem:[%s2048 + $0x38] sm:$0xf]
      %v2064 = vld [vmem:[%s2048 + $0x3c] sm:$0xf]
      %v2065 = vld [vmem:[%s2048 + $0x40] sm:$0xf]
      %v2066 = vld [vmem:[%s2048 + $0x44] sm:$0xf]
      %v2067 = vld [vmem:[%s2048 + $0x48] sm:$0xf]
      %v2068 = vld [vmem:[%s2048 + $0x4c] sm:$0xf]
      %v2069 = vld [vmem:[%s2048 + $0x50] sm:$0xf]
      %v2070 = vld [vmem:[%s2048 + $0x54] sm:$0xf]
      %v2071 = vld [vmem:[%s2048 + $0x58] sm:$0xf]
      %v2072 = vld [vmem:[%s2048 + $0x5c] sm:$0xf]
      %v2073 = vld [vmem:[%s2048 + $0x60] sm:$0xf]
      %v2074 = vld [vmem:[%s2048 + $0x64] sm:$0xf]
      %v2075 = vld [vmem:[%s2048 + $0x68] sm:$0xf]
      %v2076 = vld [vmem:[%s2048 + $0x6c] sm:$0xf]
      %v2077 = vld [vmem:[%s2048 + $0x70] sm:$0xf]
      %v2078 = vld [vmem:[%s2048 + $0x74] sm:$0xf]
      %v2079 = vld [vmem:[%s2048 + $0x78] sm:$0xf]
      %v2080 = vld [vmem:[%s2048 + $0x7c] sm:$0xf]
      %v2081 = vld [vmem:[%s2048 + $0x80] sm:$0xf]
      %v2082 = vld [vmem:[%s2048 + $0x84] sm:$0xf]
      %v2083 = vld [vmem:[%s2048 + $0x88] sm:$0xf]
      %v2084 = vld [vmem:[%s2048 + $0x8c] sm:$0xf]
      %v2085 = vld [vmem:[%s2048 + $0x90] sm:$0xf]
      %v2086 = vld [vmem:[%s2048 + $0x94] sm:$0xf]
      %v2087 = vld [vmem:[%s2048 + $0x98] sm:$0xf]
      %v2088 = vld [vmem:[%s2048 + $0x9c] sm:$0xf]
      %v2089 = vld [vmem:[%s2048 + $0xa0] sm:$0xf]
      %v2090 = vld [vmem:[%s2048 + $0xa4] sm:$0xf]
      %v2091 = vld [vmem:[%s2048 + $0xa8] sm:$0xf]
      %v2092 = vld [vmem:[%s2048 + $0xac] sm:$0xf]
      %v2093 = vld [vmem:[%s2048 + $0xb0] sm:$0xf]
      %v2094 = vld [vmem:[%s2048 + $0xb4] sm:$0xf]
      %v2095 = vld [vmem:[%s2048 + $0xb8] sm:$0xf]
      %v2096 = vld [vmem:[%s2048 + $0xbc] sm:$0xf]
      %v2129 = vunpack.c.l.b16 %v2016
      %v2130 = vunpack.c.h.b16 %v2016
      %v2131 = vunpack.c.l.b16 %v2017
      %v2132 = vunpack.c.l.b16 %v2018
      %v2133 = vunpack.c.h.b16 %v2018
      %v2134 = vunpack.c.l.b16 %v2019
      %v2135 = vunpack.c.l.b16 %v2020
      %v2136 = vunpack.c.h.b16 %v2020
      %v2137 = vunpack.c.l.b16 %v2021
      %v2138 = vunpack.c.l.b16 %v2022
      %v2139 = vunpack.c.h.b16 %v2022
      %v2140 = vunpack.c.l.b16 %v2023
      %v2141 = vunpack.c.l.b16 %v2024
      %v2142 = vunpack.c.h.b16 %v2024
      %v2143 = vunpack.c.l.b16 %v2025
      %v2144 = vunpack.c.l.b16 %v2026
      %v2145 = vunpack.c.h.b16 %v2026
      %v2146 = vunpack.c.l.b16 %v2027
      %v2147 = vunpack.c.l.b16 %v2028
      %v2148 = vunpack.c.h.b16 %v2028
      %v2149 = vunpack.c.l.b16 %v2029
      %v2150 = vunpack.c.l.b16 %v2030
      %v2151 = vunpack.c.h.b16 %v2030
      %v2152 = vunpack.c.l.b16 %v2031
      %v2153 = vunpack.c.l.b16 %v2032
      %v2154 = vunpack.c.h.b16 %v2032
      %v2155 = vunpack.c.l.b16 %v2033
      %v2156 = vunpack.c.l.b16 %v2034
      %v2157 = vunpack.c.h.b16 %v2034
      %v2158 = vunpack.c.l.b16 %v2035
      %v2159 = vunpack.c.l.b16 %v2036
      %v2160 = vunpack.c.h.b16 %v2036
      %v2161 = vunpack.c.l.b16 %v2037
      %v2162 = vunpack.c.l.b16 %v2038
      %v2163 = vunpack.c.h.b16 %v2038
      %v2164 = vunpack.c.l.b16 %v2039
      %v2165 = vunpack.c.l.b16 %v2040
      %v2166 = vunpack.c.h.b16 %v2040
      %v2167 = vunpack.c.l.b16 %v2041
      %v2168 = vunpack.c.l.b16 %v2042
      %v2169 = vunpack.c.h.b16 %v2042
      %v2170 = vunpack.c.l.b16 %v2043
      %v2171 = vunpack.c.l.b16 %v2044
      %v2172 = vunpack.c.h.b16 %v2044
      %v2173 = vunpack.c.l.b16 %v2045
      %v2174 = vunpack.c.l.b16 %v2046
      %v2175 = vunpack.c.h.b16 %v2046
      %v2176 = vunpack.c.l.b16 %v2047
      %v2177 = vpack.c.b16 %v2132, %v2129
      %v2178 = vpack.c.b16 %v2133, %v2130
      %v2179 = vpack.c.b16 %v2134, %v2131
      %v2180 = vpack.c.b16 %v2138, %v2135
      %v2181 = vpack.c.b16 %v2139, %v2136
      %v2182 = vpack.c.b16 %v2140, %v2137
      %v2183 = vpack.c.b16 %v2144, %v2141
      %v2184 = vpack.c.b16 %v2145, %v2142
      %v2185 = vpack.c.b16 %v2146, %v2143
      %v2186 = vpack.c.b16 %v2150, %v2147
      %v2187 = vpack.c.b16 %v2151, %v2148
      %v2188 = vpack.c.b16 %v2152, %v2149
      %v2189 = vpack.c.b16 %v2156, %v2153
      %v2190 = vpack.c.b16 %v2157, %v2154
      %v2191 = vpack.c.b16 %v2158, %v2155
      %v2192 = vpack.c.b16 %v2162, %v2159
      %v2193 = vpack.c.b16 %v2163, %v2160
      %v2194 = vpack.c.b16 %v2164, %v2161
      %v2195 = vpack.c.b16 %v2168, %v2165
      %v2196 = vpack.c.b16 %v2169, %v2166
      %v2197 = vpack.c.b16 %v2170, %v2167
      %v2198 = vpack.c.b16 %v2174, %v2171
      %v2199 = vpack.c.b16 %v2175, %v2172
      %v2200 = vpack.c.b16 %v2176, %v2173
      %v2273 = vunpack.c.l.b16 %v2049
      %v2274 = vunpack.c.l.b16 %v2050
      %v2275 = vunpack.c.l.b16 %v2051
      %v2276 = vunpack.c.l.b16 %v2052
      %v2277 = vunpack.c.l.b16 %v2053
      %v2278 = vunpack.c.l.b16 %v2054
      %v2279 = vunpack.c.l.b16 %v2055
      %v2280 = vunpack.c.l.b16 %v2056
      %v2281 = vunpack.c.l.b16 %v2057
      %v2282 = vunpack.c.l.b16 %v2058
      %v2283 = vunpack.c.l.b16 %v2059
      %v2284 = vunpack.c.l.b16 %v2060
      %v2285 = vunpack.c.l.b16 %v2061
      %v2286 = vunpack.c.l.b16 %v2062
      %v2287 = vunpack.c.l.b16 %v2063
      %v2288 = vunpack.c.l.b16 %v2064
      %v2289 = vunpack.c.l.b16 %v2065
      %v2290 = vunpack.c.l.b16 %v2066
      %v2291 = vunpack.c.l.b16 %v2067
      %v2292 = vunpack.c.l.b16 %v2068
      %v2293 = vunpack.c.l.b16 %v2069
      %v2294 = vunpack.c.l.b16 %v2070
      %v2295 = vunpack.c.l.b16 %v2071
      %v2296 = vunpack.c.l.b16 %v2072
      %v2297 = vunpack.c.l.b16 %v2073
      %v2298 = vunpack.c.l.b16 %v2074
      %v2299 = vunpack.c.l.b16 %v2075
      %v2300 = vunpack.c.l.b16 %v2076
      %v2301 = vunpack.c.l.b16 %v2077
      %v2302 = vunpack.c.l.b16 %v2078
      %v2303 = vunpack.c.l.b16 %v2079
      %v2304 = vunpack.c.l.b16 %v2080
      %v2305 = vunpack.c.l.b16 %v2081
      %v2306 = vunpack.c.l.b16 %v2082
      %v2307 = vunpack.c.l.b16 %v2083
      %v2308 = vunpack.c.l.b16 %v2084
      %v2309 = vunpack.c.l.b16 %v2085
      %v2310 = vunpack.c.l.b16 %v2086
      %v2311 = vunpack.c.l.b16 %v2087
      %v2312 = vunpack.c.l.b16 %v2088
      %v2313 = vunpack.c.l.b16 %v2089
      %v2314 = vunpack.c.l.b16 %v2090
      %v2315 = vunpack.c.l.b16 %v2091
      %v2316 = vunpack.c.l.b16 %v2092
      %v2317 = vunpack.c.l.b16 %v2093
      %v2318 = vunpack.c.l.b16 %v2094
      %v2319 = vunpack.c.l.b16 %v2095
      %v2320 = vunpack.c.l.b16 %v2096
      %v2321 = vpack.c.b16 %v2274, %v2273
      %v2322 = vpack.c.b16 %v2276, %v2275
      %v2323 = vpack.c.b16 %v2278, %v2277
      %v2324 = vpack.c.b16 %v2280, %v2279
      %v2325 = vpack.c.b16 %v2282, %v2281
      %v2326 = vpack.c.b16 %v2284, %v2283
      %v2327 = vpack.c.b16 %v2286, %v2285
      %v2328 = vpack.c.b16 %v2288, %v2287
      %v2329 = vpack.c.b16 %v2290, %v2289
      %v2330 = vpack.c.b16 %v2292, %v2291
      %v2331 = vpack.c.b16 %v2294, %v2293
      %v2332 = vpack.c.b16 %v2296, %v2295
      %v2333 = vpack.c.b16 %v2298, %v2297
      %v2334 = vpack.c.b16 %v2300, %v2299
      %v2335 = vpack.c.b16 %v2302, %v2301
      %v2336 = vpack.c.b16 %v2304, %v2303
      %v2337 = vpack.c.b16 %v2306, %v2305
      %v2338 = vpack.c.b16 %v2308, %v2307
      %v2339 = vpack.c.b16 %v2310, %v2309
      %v2340 = vpack.c.b16 %v2312, %v2311
      %v2341 = vpack.c.b16 %v2314, %v2313
      %v2342 = vpack.c.b16 %v2316, %v2315
      %v2343 = vpack.c.b16 %v2318, %v2317
      %v2344 = vpack.c.b16 %v2320, %v2319
      %2369 = vmatpush.bf16.msra.mxu0 %v2328
      %2370 = vmatpush.bf16.msra.mxu0 %v2327
      %2371 = vmatpush.bf16.msra.mxu0 %v2326
      %2372 = vmatpush.bf16.msra.mxu0 %v2325
      %2373 = vmatpush.bf16.msra.mxu0 %v2324
      %2374 = vmatpush.bf16.msra.mxu0 %v2323
      %2375 = vmatpush.bf16.msra.mxu0 %v2322
      %2376 = vmatpush.bf16.msra.mxu0 %v2321
      %2377 = vmatmul.bf16.gmra.mxu0 %v2177
      %v2378 = vpop.f32.mrf.mxu0
      %v2379 = vadd.f32 0.0, %v2378
      %v2380 = vpop.f32.mrf.mxu0
      %v2381 = vadd.f32 0.0, %v2380
      %2382 = vmatmul.bf16.gmra.mxu0 %v2180
      %v2383 = vpop.f32.mrf.mxu0
      %v2384 = vadd.f32 0.0, %v2383
      %v2385 = vpop.f32.mrf.mxu0
      %v2386 = vadd.f32 0.0, %v2385
      %2387 = vmatmul.bf16.gmra.mxu0 %v2183
      %v2388 = vpop.f32.mrf.mxu0
      %v2389 = vadd.f32 0.0, %v2388
      %v2390 = vpop.f32.mrf.mxu0
      %v2391 = vadd.f32 0.0, %v2390
      %2392 = vmatmul.bf16.gmra.mxu0 %v2186
      %v2393 = vpop.f32.mrf.mxu0
      %v2394 = vadd.f32 0.0, %v2393
      %v2395 = vpop.f32.mrf.mxu0
      %v2396 = vadd.f32 0.0, %v2395
      %2397 = vmatmul.bf16.gmra.mxu0 %v2189
      %v2398 = vpop.f32.mrf.mxu0
      %v2399 = vadd.f32 0.0, %v2398
      %v2400 = vpop.f32.mrf.mxu0
      %v2401 = vadd.f32 0.0, %v2400
      %2402 = vmatmul.bf16.gmra.mxu0 %v2192
      %v2403 = vpop.f32.mrf.mxu0
      %v2404 = vadd.f32 0.0, %v2403
      %v2405 = vpop.f32.mrf.mxu0
      %v2406 = vadd.f32 0.0, %v2405
      %2407 = vmatmul.bf16.gmra.mxu0 %v2195
      %v2408 = vpop.f32.mrf.mxu0
      %v2409 = vadd.f32 0.0, %v2408
      %v2410 = vpop.f32.mrf.mxu0
      %v2411 = vadd.f32 0.0, %v2410
      %2412 = vmatmul.bf16.gmra.mxu0 %v2198
      %v2413 = vpop.f32.mrf.mxu0
      %v2414 = vadd.f32 0.0, %v2413
      %v2415 = vpop.f32.mrf.mxu0
      %v2416 = vadd.f32 0.0, %v2415
      %2417 = vdwg.mxu0
      %2418 = vmatpush.bf16.msra.mxu0 %v2336
      %2419 = vmatpush.bf16.msra.mxu0 %v2335
      %2420 = vmatpush.bf16.msra.mxu0 %v2334
      %2421 = vmatpush.bf16.msra.mxu0 %v2333
      %2422 = vmatpush.bf16.msra.mxu0 %v2332
      %2423 = vmatpush.bf16.msra.mxu0 %v2331
      %2424 = vmatpush.bf16.msra.mxu0 %v2330
      %2425 = vmatpush.bf16.msra.mxu0 %v2329
      %2426 = vmatmul.bf16.gmra.mxu0 %v2178
      %v2427 = vpop.f32.mrf.mxu0
      %v2428 = vadd.f32 %v2379, %v2427
      %v2429 = vpop.f32.mrf.mxu0
      %v2430 = vadd.f32 %v2381, %v2429
      %2431 = vmatmul.bf16.gmra.mxu0 %v2181
      %v2432 = vpop.f32.mrf.mxu0
      %v2433 = vadd.f32 %v2384, %v2432
      %v2434 = vpop.f32.mrf.mxu0
      %v2435 = vadd.f32 %v2386, %v2434
      %2436 = vmatmul.bf16.gmra.mxu0 %v2184
      %v2437 = vpop.f32.mrf.mxu0
      %v2438 = vadd.f32 %v2389, %v2437
      %v2439 = vpop.f32.mrf.mxu0
      %v2440 = vadd.f32 %v2391, %v2439
      %2441 = vmatmul.bf16.gmra.mxu0 %v2187
      %v2442 = vpop.f32.mrf.mxu0
      %v2443 = vadd.f32 %v2394, %v2442
      %v2444 = vpop.f32.mrf.mxu0
      %v2445 = vadd.f32 %v2396, %v2444
      %2446 = vmatmul.bf16.gmra.mxu0 %v2190
      %v2447 = vpop.f32.mrf.mxu0
      %v2448 = vadd.f32 %v2399, %v2447
      %v2449 = vpop.f32.mrf.mxu0
      %v2450 = vadd.f32 %v2401, %v2449
      %2451 = vmatmul.bf16.gmra.mxu0 %v2193
      %v2452 = vpop.f32.mrf.mxu0
      %v2453 = vadd.f32 %v2404, %v2452
      %v2454 = vpop.f32.mrf.mxu0
      %v2455 = vadd.f32 %v2406, %v2454
      %2456 = vmatmul.bf16.gmra.mxu0 %v2196
      %v2457 = vpop.f32.mrf.mxu0
      %v2458 = vadd.f32 %v2409, %v2457
      %v2459 = vpop.f32.mrf.mxu0
      %v2460 = vadd.f32 %v2411, %v2459
      %2461 = vmatmul.bf16.gmra.mxu0 %v2199
      %v2462 = vpop.f32.mrf.mxu0
      %v2463 = vadd.f32 %v2414, %v2462
      %v2464 = vpop.f32.mrf.mxu0
      %v2465 = vadd.f32 %v2416, %v2464
      %2466 = vdwg.mxu0
      %2467 = vmatpush.bf16.msra.mxu0 %v2344
      %2468 = vmatpush.bf16.msra.mxu0 %v2343
      %2469 = vmatpush.bf16.msra.mxu0 %v2342
      %2470 = vmatpush.bf16.msra.mxu0 %v2341
      %2471 = vmatpush.bf16.msra.mxu0 %v2340
      %2472 = vmatpush.bf16.msra.mxu0 %v2339
      %2473 = vmatpush.bf16.msra.mxu0 %v2338
      %2474 = vmatpush.bf16.msra.mxu0 %v2337
      %2475 = vmatmul.bf16.gmra.mxu0 %v2179
      %v2476 = vpop.f32.mrf.mxu0
      %v2477 = vadd.f32 %v2428, %v2476
      %v2478 = vpop.f32.mrf.mxu0
      %v2479 = vadd.f32 %v2430, %v2478
      %2480 = vmatmul.bf16.gmra.mxu0 %v2182
      %v2481 = vpop.f32.mrf.mxu0
      %v2482 = vadd.f32 %v2433, %v2481
      %v2483 = vpop.f32.mrf.mxu0
      %v2484 = vadd.f32 %v2435, %v2483
      %2485 = vmatmul.bf16.gmra.mxu0 %v2185
      %v2486 = vpop.f32.mrf.mxu0
      %v2487 = vadd.f32 %v2438, %v2486
      %v2488 = vpop.f32.mrf.mxu0
      %v2489 = vadd.f32 %v2440, %v2488
      %2490 = vmatmul.bf16.gmra.mxu0 %v2188
      %v2491 = vpop.f32.mrf.mxu0
      %v2492 = vadd.f32 %v2443, %v2491
      %v2493 = vpop.f32.mrf.mxu0
      %v2494 = vadd.f32 %v2445, %v2493
      %2495 = vmatmul.bf16.gmra.mxu0 %v2191
      %v2496 = vpop.f32.mrf.mxu0
      %v2497 = vadd.f32 %v2448, %v2496
      %v2498 = vpop.f32.mrf.mxu0
      %v2499 = vadd.f32 %v2450, %v2498
      %2500 = vmatmul.bf16.gmra.mxu0 %v2194
      %v2501 = vpop.f32.mrf.mxu0
      %v2502 = vadd.f32 %v2453, %v2501
      %v2503 = vpop.f32.mrf.mxu0
      %v2504 = vadd.f32 %v2455, %v2503
      %2505 = vmatmul.bf16.gmra.mxu0 %v2197
      %v2506 = vpop.f32.mrf.mxu0
      %v2507 = vadd.f32 %v2458, %v2506
      %v2508 = vpop.f32.mrf.mxu0
      %v2509 = vadd.f32 %v2460, %v2508
      %2510 = vmatmul.bf16.gmra.mxu0 %v2200
      %v2511 = vpop.f32.mrf.mxu0
      %v2512 = vadd.f32 %v2463, %v2511
      %v2513 = vpop.f32.mrf.mxu0
      %v2514 = vadd.f32 %v2465, %v2513
      %2515 = vdwg.mxu0
      %v2548 = vunpack.c.l.b16 %v1935
      %v2549 = vunpack.c.h.b16 %v1935
      %v2550 = vunpack.c.l.b16 %v1936
      %v2551 = vunpack.c.l.b16 %v1937
      %v2552 = vunpack.c.h.b16 %v1937
      %v2553 = vunpack.c.l.b16 %v1938
      %v2554 = vunpack.c.l.b16 %v1939
      %v2555 = vunpack.c.h.b16 %v1939
      %v2556 = vunpack.c.l.b16 %v1940
      %v2557 = vunpack.c.l.b16 %v1941
      %v2558 = vunpack.c.h.b16 %v1941
      %v2559 = vunpack.c.l.b16 %v1942
      %v2560 = vunpack.c.l.b16 %v1943
      %v2561 = vunpack.c.h.b16 %v1943
      %v2562 = vunpack.c.l.b16 %v1944
      %v2563 = vunpack.c.l.b16 %v1945
      %v2564 = vunpack.c.h.b16 %v1945
      %v2565 = vunpack.c.l.b16 %v1946
      %v2566 = vunpack.c.l.b16 %v1947
      %v2567 = vunpack.c.h.b16 %v1947
      %v2568 = vunpack.c.l.b16 %v1948
      %v2569 = vunpack.c.l.b16 %v1949
      %v2570 = vunpack.c.h.b16 %v1949
      %v2571 = vunpack.c.l.b16 %v1950
      %v2572 = vunpack.c.l.b16 %v1951
      %v2573 = vunpack.c.h.b16 %v1951
      %v2574 = vunpack.c.l.b16 %v1952
      %v2575 = vunpack.c.l.b16 %v1953
      %v2576 = vunpack.c.h.b16 %v1953
      %v2577 = vunpack.c.l.b16 %v1954
      %v2578 = vunpack.c.l.b16 %v1955
      %v2579 = vunpack.c.h.b16 %v1955
      %v2580 = vunpack.c.l.b16 %v1956
      %v2581 = vunpack.c.l.b16 %v1957
      %v2582 = vunpack.c.h.b16 %v1957
      %v2583 = vunpack.c.l.b16 %v1958
      %v2584 = vunpack.c.l.b16 %v1959
      %v2585 = vunpack.c.h.b16 %v1959
      %v2586 = vunpack.c.l.b16 %v1960
      %v2587 = vunpack.c.l.b16 %v1961
      %v2588 = vunpack.c.h.b16 %v1961
      %v2589 = vunpack.c.l.b16 %v1962
      %v2590 = vunpack.c.l.b16 %v1963
      %v2591 = vunpack.c.h.b16 %v1963
      %v2592 = vunpack.c.l.b16 %v1964
      %v2593 = vunpack.c.l.b16 %v1965
      %v2594 = vunpack.c.h.b16 %v1965
      %v2595 = vunpack.c.l.b16 %v1966
      %v2596 = vpack.c.b16 %v2551, %v2548
      %v2597 = vpack.c.b16 %v2552, %v2549
      %v2598 = vpack.c.b16 %v2553, %v2550
      %v2599 = vpack.c.b16 %v2557, %v2554
      %v2600 = vpack.c.b16 %v2558, %v2555
      %v2601 = vpack.c.b16 %v2559, %v2556
      %v2602 = vpack.c.b16 %v2563, %v2560
      %v2603 = vpack.c.b16 %v2564, %v2561
      %v2604 = vpack.c.b16 %v2565, %v2562
      %v2605 = vpack.c.b16 %v2569, %v2566
      %v2606 = vpack.c.b16 %v2570, %v2567
      %v2607 = vpack.c.b16 %v2571, %v2568
      %v2608 = vpack.c.b16 %v2575, %v2572
      %v2609 = vpack.c.b16 %v2576, %v2573
      %v2610 = vpack.c.b16 %v2577, %v2574
      %v2611 = vpack.c.b16 %v2581, %v2578
      %v2612 = vpack.c.b16 %v2582, %v2579
      %v2613 = vpack.c.b16 %v2583, %v2580
      %v2614 = vpack.c.b16 %v2587, %v2584
      %v2615 = vpack.c.b16 %v2588, %v2585
      %v2616 = vpack.c.b16 %v2589, %v2586
      %v2617 = vpack.c.b16 %v2593, %v2590
      %v2618 = vpack.c.b16 %v2594, %v2591
      %v2619 = vpack.c.b16 %v2595, %v2592
      %v2692 = vunpack.c.l.b16 %v1967
      %v2693 = vunpack.c.l.b16 %v1968
      %v2694 = vunpack.c.l.b16 %v1969
      %v2695 = vunpack.c.l.b16 %v1970
      %v2696 = vunpack.c.l.b16 %v1971
      %v2697 = vunpack.c.l.b16 %v1972
      %v2698 = vunpack.c.l.b16 %v1973
      %v2699 = vunpack.c.l.b16 %v1974
      %v2700 = vunpack.c.l.b16 %v1975
      %v2701 = vunpack.c.l.b16 %v1976
      %v2702 = vunpack.c.l.b16 %v1977
      %v2703 = vunpack.c.l.b16 %v1978
      %v2704 = vunpack.c.l.b16 %v1979
      %v2705 = vunpack.c.l.b16 %v1980
      %v2706 = vunpack.c.l.b16 %v1981
      %v2707 = vunpack.c.l.b16 %v1982
      %v2708 = vunpack.c.l.b16 %v1983
      %v2709 = vunpack.c.l.b16 %v1984
      %v2710 = vunpack.c.l.b16 %v1985
      %v2711 = vunpack.c.l.b16 %v1986
      %v2712 = vunpack.c.l.b16 %v1987
      %v2713 = vunpack.c.l.b16 %v1988
      %v2714 = vunpack.c.l.b16 %v1989
      %v2715 = vunpack.c.l.b16 %v1990
      %v2716 = vunpack.c.l.b16 %v1991
      %v2717 = vunpack.c.l.b16 %v1992
      %v2718 = vunpack.c.l.b16 %v1993
      %v2719 = vunpack.c.l.b16 %v1994
      %v2720 = vunpack.c.l.b16 %v1995
      %v2721 = vunpack.c.l.b16 %v1996
      %v2722 = vunpack.c.l.b16 %v1997
      %v2723 = vunpack.c.l.b16 %v1998
      %v2724 = vunpack.c.l.b16 %v1999
      %v2725 = vunpack.c.l.b16 %v2000
      %v2726 = vunpack.c.l.b16 %v2001
      %v2727 = vunpack.c.l.b16 %v2002
      %v2728 = vunpack.c.l.b16 %v2003
      %v2729 = vunpack.c.l.b16 %v2004
      %v2730 = vunpack.c.l.b16 %v2005
      %v2731 = vunpack.c.l.b16 %v2006
      %v2732 = vunpack.c.l.b16 %v2007
      %v2733 = vunpack.c.l.b16 %v2008
      %v2734 = vunpack.c.l.b16 %v2009
      %v2735 = vunpack.c.l.b16 %v2010
      %v2736 = vunpack.c.l.b16 %v2011
      %v2737 = vunpack.c.l.b16 %v2012
      %v2738 = vunpack.c.l.b16 %v2013
      %v2739 = vunpack.c.l.b16 %v2014
      %v2740 = vpack.c.b16 %v2693, %v2692
      %v2741 = vpack.c.b16 %v2695, %v2694
      %v2742 = vpack.c.b16 %v2697, %v2696
      %v2743 = vpack.c.b16 %v2699, %v2698
      %v2744 = vpack.c.b16 %v2701, %v2700
      %v2745 = vpack.c.b16 %v2703, %v2702
      %v2746 = vpack.c.b16 %v2705, %v2704
      %v2747 = vpack.c.b16 %v2707, %v2706
      %v2748 = vpack.c.b16 %v2709, %v2708
      %v2749 = vpack.c.b16 %v2711, %v2710
      %v2750 = vpack.c.b16 %v2713, %v2712
      %v2751 = vpack.c.b16 %v2715, %v2714
      %v2752 = vpack.c.b16 %v2717, %v2716
      %v2753 = vpack.c.b16 %v2719, %v2718
      %v2754 = vpack.c.b16 %v2721, %v2720
      %v2755 = vpack.c.b16 %v2723, %v2722
      %v2756 = vpack.c.b16 %v2725, %v2724
      %v2757 = vpack.c.b16 %v2727, %v2726
      %v2758 = vpack.c.b16 %v2729, %v2728
      %v2759 = vpack.c.b16 %v2731, %v2730
      %v2760 = vpack.c.b16 %v2733, %v2732
      %v2761 = vpack.c.b16 %v2735, %v2734
      %v2762 = vpack.c.b16 %v2737, %v2736
      %v2763 = vpack.c.b16 %v2739, %v2738
      %2788 = vmatpush.bf16.msra.mxu0 %v2747
      %2789 = vmatpush.bf16.msra.mxu0 %v2746
      %2790 = vmatpush.bf16.msra.mxu0 %v2745
      %2791 = vmatpush.bf16.msra.mxu0 %v2744
      %2792 = vmatpush.bf16.msra.mxu0 %v2743
      %2793 = vmatpush.bf16.msra.mxu0 %v2742
      %2794 = vmatpush.bf16.msra.mxu0 %v2741
      %2795 = vmatpush.bf16.msra.mxu0 %v2740
      %2796 = vmatmul.bf16.gmra.mxu0 %v2596
      %v2797 = vpop.f32.mrf.mxu0
      %v2798 = vadd.f32 %v2477, %v2797
      %v2799 = vpop.f32.mrf.mxu0
      %v2800 = vadd.f32 %v2479, %v2799
      %2801 = vmatmul.bf16.gmra.mxu0 %v2599
      %v2802 = vpop.f32.mrf.mxu0
      %v2803 = vadd.f32 %v2482, %v2802
      %v2804 = vpop.f32.mrf.mxu0
      %v2805 = vadd.f32 %v2484, %v2804
      %2806 = vmatmul.bf16.gmra.mxu0 %v2602
      %v2807 = vpop.f32.mrf.mxu0
      %v2808 = vadd.f32 %v2487, %v2807
      %v2809 = vpop.f32.mrf.mxu0
      %v2810 = vadd.f32 %v2489, %v2809
      %2811 = vmatmul.bf16.gmra.mxu0 %v2605
      %v2812 = vpop.f32.mrf.mxu0
      %v2813 = vadd.f32 %v2492, %v2812
      %v2814 = vpop.f32.mrf.mxu0
      %v2815 = vadd.f32 %v2494, %v2814
      %2816 = vmatmul.bf16.gmra.mxu0 %v2608
      %v2817 = vpop.f32.mrf.mxu0
      %v2818 = vadd.f32 %v2497, %v2817
      %v2819 = vpop.f32.mrf.mxu0
      %v2820 = vadd.f32 %v2499, %v2819
      %2821 = vmatmul.bf16.gmra.mxu0 %v2611
      %v2822 = vpop.f32.mrf.mxu0
      %v2823 = vadd.f32 %v2502, %v2822
      %v2824 = vpop.f32.mrf.mxu0
      %v2825 = vadd.f32 %v2504, %v2824
      %2826 = vmatmul.bf16.gmra.mxu0 %v2614
      %v2827 = vpop.f32.mrf.mxu0
      %v2828 = vadd.f32 %v2507, %v2827
      %v2829 = vpop.f32.mrf.mxu0
      %v2830 = vadd.f32 %v2509, %v2829
      %2831 = vmatmul.bf16.gmra.mxu0 %v2617
      %v2832 = vpop.f32.mrf.mxu0
      %v2833 = vadd.f32 %v2512, %v2832
      %v2834 = vpop.f32.mrf.mxu0
      %v2835 = vadd.f32 %v2514, %v2834
      %2836 = vdwg.mxu0
      %2837 = vmatpush.bf16.msra.mxu0 %v2755
      %2838 = vmatpush.bf16.msra.mxu0 %v2754
      %2839 = vmatpush.bf16.msra.mxu0 %v2753
      %2840 = vmatpush.bf16.msra.mxu0 %v2752
      %2841 = vmatpush.bf16.msra.mxu0 %v2751
      %2842 = vmatpush.bf16.msra.mxu0 %v2750
      %2843 = vmatpush.bf16.msra.mxu0 %v2749
      %2844 = vmatpush.bf16.msra.mxu0 %v2748
      %2845 = vmatmul.bf16.gmra.mxu0 %v2597
      %v2846 = vpop.f32.mrf.mxu0
      %v2847 = vadd.f32 %v2798, %v2846
      %v2848 = vpop.f32.mrf.mxu0
      %v2849 = vadd.f32 %v2800, %v2848
      %2850 = vmatmul.bf16.gmra.mxu0 %v2600
      %v2851 = vpop.f32.mrf.mxu0
      %v2852 = vadd.f32 %v2803, %v2851
      %v2853 = vpop.f32.mrf.mxu0
      %v2854 = vadd.f32 %v2805, %v2853
      %2855 = vmatmul.bf16.gmra.mxu0 %v2603
      %v2856 = vpop.f32.mrf.mxu0
      %v2857 = vadd.f32 %v2808, %v2856
      %v2858 = vpop.f32.mrf.mxu0
      %v2859 = vadd.f32 %v2810, %v2858
      %2860 = vmatmul.bf16.gmra.mxu0 %v2606
      %v2861 = vpop.f32.mrf.mxu0
      %v2862 = vadd.f32 %v2813, %v2861
      %v2863 = vpop.f32.mrf.mxu0
      %v2864 = vadd.f32 %v2815, %v2863
      %2865 = vmatmul.bf16.gmra.mxu0 %v2609
      %v2866 = vpop.f32.mrf.mxu0
      %v2867 = vadd.f32 %v2818, %v2866
      %v2868 = vpop.f32.mrf.mxu0
      %v2869 = vadd.f32 %v2820, %v2868
      %2870 = vmatmul.bf16.gmra.mxu0 %v2612
      %v2871 = vpop.f32.mrf.mxu0
      %v2872 = vadd.f32 %v2823, %v2871
      %v2873 = vpop.f32.mrf.mxu0
      %v2874 = vadd.f32 %v2825, %v2873
      %2875 = vmatmul.bf16.gmra.mxu0 %v2615
      %v2876 = vpop.f32.mrf.mxu0
      %v2877 = vadd.f32 %v2828, %v2876
      %v2878 = vpop.f32.mrf.mxu0
      %v2879 = vadd.f32 %v2830, %v2878
      %2880 = vmatmul.bf16.gmra.mxu0 %v2618
      %v2881 = vpop.f32.mrf.mxu0
      %v2882 = vadd.f32 %v2833, %v2881
      %v2883 = vpop.f32.mrf.mxu0
      %v2884 = vadd.f32 %v2835, %v2883
      %2885 = vdwg.mxu0
      %2886 = vmatpush.bf16.msra.mxu0 %v2763
      %2887 = vmatpush.bf16.msra.mxu0 %v2762
      %2888 = vmatpush.bf16.msra.mxu0 %v2761
      %2889 = vmatpush.bf16.msra.mxu0 %v2760
      %2890 = vmatpush.bf16.msra.mxu0 %v2759
      %2891 = vmatpush.bf16.msra.mxu0 %v2758
      %2892 = vmatpush.bf16.msra.mxu0 %v2757
      %2893 = vmatpush.bf16.msra.mxu0 %v2756
      %2894 = vmatmul.bf16.gmra.mxu0 %v2598
      %v2895 = vpop.f32.mrf.mxu0
      %v2896 = vadd.f32 %v2847, %v2895
      %v2897 = vpop.f32.mrf.mxu0
      %v2898 = vadd.f32 %v2849, %v2897
      %2899 = vmatmul.bf16.gmra.mxu0 %v2601
      %v2900 = vpop.f32.mrf.mxu0
      %v2901 = vadd.f32 %v2852, %v2900
      %v2902 = vpop.f32.mrf.mxu0
      %v2903 = vadd.f32 %v2854, %v2902
      %2904 = vmatmul.bf16.gmra.mxu0 %v2604
      %v2905 = vpop.f32.mrf.mxu0
      %v2906 = vadd.f32 %v2857, %v2905
      %v2907 = vpop.f32.mrf.mxu0
      %v2908 = vadd.f32 %v2859, %v2907
      %2909 = vmatmul.bf16.gmra.mxu0 %v2607
      %v2910 = vpop.f32.mrf.mxu0
      %v2911 = vadd.f32 %v2862, %v2910
      %v2912 = vpop.f32.mrf.mxu0
      %v2913 = vadd.f32 %v2864, %v2912
      %2914 = vmatmul.bf16.gmra.mxu0 %v2610
      %v2915 = vpop.f32.mrf.mxu0
      %v2916 = vadd.f32 %v2867, %v2915
      %v2917 = vpop.f32.mrf.mxu0
      %v2918 = vadd.f32 %v2869, %v2917
      %2919 = vmatmul.bf16.gmra.mxu0 %v2613
      %v2920 = vpop.f32.mrf.mxu0
      %v2921 = vadd.f32 %v2872, %v2920
      %v2922 = vpop.f32.mrf.mxu0
      %v2923 = vadd.f32 %v2874, %v2922
      %2924 = vmatmul.bf16.gmra.mxu0 %v2616
      %v2925 = vpop.f32.mrf.mxu0
      %v2926 = vadd.f32 %v2877, %v2925
      %v2927 = vpop.f32.mrf.mxu0
      %v2928 = vadd.f32 %v2879, %v2927
      %2929 = vmatmul.bf16.gmra.mxu0 %v2619
      %v2930 = vpop.f32.mrf.mxu0
      %v2931 = vadd.f32 %v2882, %v2930
      %v2932 = vpop.f32.mrf.mxu0
      %v2933 = vadd.f32 %v2884, %v2932
      %2934 = vdwg.mxu0
      %s2935 = scalar_lea.vmem [#allocation3], 48
      %v2936 = vld [vmem:[%s2935] sm:$0xff]
      %v2937 = vld [vmem:[%s2935 + $0x8] sm:$0xf]
      %v2938 = vld [vmem:[%s2935 + $0xc] sm:$0xff]
      %v2939 = vld [vmem:[%s2935 + $0x14] sm:$0xf]
      %v2940 = vld [vmem:[%s2935 + $0x18] sm:$0xff]
      %v2941 = vld [vmem:[%s2935 + $0x20] sm:$0xf]
      %v2942 = vld [vmem:[%s2935 + $0x24] sm:$0xff]
      %v2943 = vld [vmem:[%s2935 + $0x2c] sm:$0xf]
      %v2944 = vld [vmem:[%s2935 + $0x30] sm:$0xff]
      %v2945 = vld [vmem:[%s2935 + $0x38] sm:$0xf]
      %v2946 = vld [vmem:[%s2935 + $0x3c] sm:$0xff]
      %v2947 = vld [vmem:[%s2935 + $0x44] sm:$0xf]
      %v2948 = vld [vmem:[%s2935 + $0x48] sm:$0xff]
      %v2949 = vld [vmem:[%s2935 + $0x50] sm:$0xf]
      %v2950 = vld [vmem:[%s2935 + $0x54] sm:$0xff]
      %v2951 = vld [vmem:[%s2935 + $0x5c] sm:$0xf]
      %v2952 = vld [vmem:[%s2935 + $0x60] sm:$0xff]
      %v2953 = vld [vmem:[%s2935 + $0x68] sm:$0xf]
      %v2954 = vld [vmem:[%s2935 + $0x6c] sm:$0xff]
      %v2955 = vld [vmem:[%s2935 + $0x74] sm:$0xf]
      %v2956 = vld [vmem:[%s2935 + $0x78] sm:$0xff]
      %v2957 = vld [vmem:[%s2935 + $0x80] sm:$0xf]
      %v2958 = vld [vmem:[%s2935 + $0x84] sm:$0xff]
      %v2959 = vld [vmem:[%s2935 + $0x8c] sm:$0xf]
      %v2960 = vld [vmem:[%s2935 + $0x90] sm:$0xff]
      %v2961 = vld [vmem:[%s2935 + $0x98] sm:$0xf]
      %v2962 = vld [vmem:[%s2935 + $0x9c] sm:$0xff]
      %v2963 = vld [vmem:[%s2935 + $0xa4] sm:$0xf]
      %v2964 = vld [vmem:[%s2935 + $0xa8] sm:$0xff]
      %v2965 = vld [vmem:[%s2935 + $0xb0] sm:$0xf]
      %v2966 = vld [vmem:[%s2935 + $0xb4] sm:$0xff]
      %v2967 = vld [vmem:[%s2935 + $0xbc] sm:$0xf]
      %s2968 = scalar_lea.vmem %s6, 384
      %v2969 = vld [vmem:[%s2968] sm:$0xf]
      %v2970 = vld [vmem:[%s2968 + $0x4] sm:$0xf]
      %v2971 = vld [vmem:[%s2968 + $0x8] sm:$0xf]
      %v2972 = vld [vmem:[%s2968 + $0xc] sm:$0xf]
      %v2973 = vld [vmem:[%s2968 + $0x10] sm:$0xf]
      %v2974 = vld [vmem:[%s2968 + $0x14] sm:$0xf]
      %v2975 = vld [vmem:[%s2968 + $0x18] sm:$0xf]
      %v2976 = vld [vmem:[%s2968 + $0x1c] sm:$0xf]
      %v2977 = vld [vmem:[%s2968 + $0x20] sm:$0xf]
      %v2978 = vld [vmem:[%s2968 + $0x24] sm:$0xf]
      %v2979 = vld [vmem:[%s2968 + $0x28] sm:$0xf]
      %v2980 = vld [vmem:[%s2968 + $0x2c] sm:$0xf]
      %v2981 = vld [vmem:[%s2968 + $0x30] sm:$0xf]
      %v2982 = vld [vmem:[%s2968 + $0x34] sm:$0xf]
      %v2983 = vld [vmem:[%s2968 + $0x38] sm:$0xf]
      %v2984 = vld [vmem:[%s2968 + $0x3c] sm:$0xf]
      %v2985 = vld [vmem:[%s2968 + $0x40] sm:$0xf]
      %v2986 = vld [vmem:[%s2968 + $0x44] sm:$0xf]
      %v2987 = vld [vmem:[%s2968 + $0x48] sm:$0xf]
      %v2988 = vld [vmem:[%s2968 + $0x4c] sm:$0xf]
      %v2989 = vld [vmem:[%s2968 + $0x50] sm:$0xf]
      %v2990 = vld [vmem:[%s2968 + $0x54] sm:$0xf]
      %v2991 = vld [vmem:[%s2968 + $0x58] sm:$0xf]
      %v2992 = vld [vmem:[%s2968 + $0x5c] sm:$0xf]
      %v2993 = vld [vmem:[%s2968 + $0x60] sm:$0xf]
      %v2994 = vld [vmem:[%s2968 + $0x64] sm:$0xf]
      %v2995 = vld [vmem:[%s2968 + $0x68] sm:$0xf]
      %v2996 = vld [vmem:[%s2968 + $0x6c] sm:$0xf]
      %v2997 = vld [vmem:[%s2968 + $0x70] sm:$0xf]
      %v2998 = vld [vmem:[%s2968 + $0x74] sm:$0xf]
      %v2999 = vld [vmem:[%s2968 + $0x78] sm:$0xf]
      %v3000 = vld [vmem:[%s2968 + $0x7c] sm:$0xf]
      %v3001 = vld [vmem:[%s2968 + $0x80] sm:$0xf]
      %v3002 = vld [vmem:[%s2968 + $0x84] sm:$0xf]
      %v3003 = vld [vmem:[%s2968 + $0x88] sm:$0xf]
      %v3004 = vld [vmem:[%s2968 + $0x8c] sm:$0xf]
      %v3005 = vld [vmem:[%s2968 + $0x90] sm:$0xf]
      %v3006 = vld [vmem:[%s2968 + $0x94] sm:$0xf]
      %v3007 = vld [vmem:[%s2968 + $0x98] sm:$0xf]
      %v3008 = vld [vmem:[%s2968 + $0x9c] sm:$0xf]
      %v3009 = vld [vmem:[%s2968 + $0xa0] sm:$0xf]
      %v3010 = vld [vmem:[%s2968 + $0xa4] sm:$0xf]
      %v3011 = vld [vmem:[%s2968 + $0xa8] sm:$0xf]
      %v3012 = vld [vmem:[%s2968 + $0xac] sm:$0xf]
      %v3013 = vld [vmem:[%s2968 + $0xb0] sm:$0xf]
      %v3014 = vld [vmem:[%s2968 + $0xb4] sm:$0xf]
      %v3015 = vld [vmem:[%s2968 + $0xb8] sm:$0xf]
      %v3016 = vld [vmem:[%s2968 + $0xbc] sm:$0xf]
      %v3049 = vunpack.c.l.b16 %v2936
      %v3050 = vunpack.c.h.b16 %v2936
      %v3051 = vunpack.c.l.b16 %v2937
      %v3052 = vunpack.c.l.b16 %v2938
      %v3053 = vunpack.c.h.b16 %v2938
      %v3054 = vunpack.c.l.b16 %v2939
      %v3055 = vunpack.c.l.b16 %v2940
      %v3056 = vunpack.c.h.b16 %v2940
      %v3057 = vunpack.c.l.b16 %v2941
      %v3058 = vunpack.c.l.b16 %v2942
      %v3059 = vunpack.c.h.b16 %v2942
      %v3060 = vunpack.c.l.b16 %v2943
      %v3061 = vunpack.c.l.b16 %v2944
      %v3062 = vunpack.c.h.b16 %v2944
      %v3063 = vunpack.c.l.b16 %v2945
      %v3064 = vunpack.c.l.b16 %v2946
      %v3065 = vunpack.c.h.b16 %v2946
      %v3066 = vunpack.c.l.b16 %v2947
      %v3067 = vunpack.c.l.b16 %v2948
      %v3068 = vunpack.c.h.b16 %v2948
      %v3069 = vunpack.c.l.b16 %v2949
      %v3070 = vunpack.c.l.b16 %v2950
      %v3071 = vunpack.c.h.b16 %v2950
      %v3072 = vunpack.c.l.b16 %v2951
      %v3073 = vunpack.c.l.b16 %v2952
      %v3074 = vunpack.c.h.b16 %v2952
      %v3075 = vunpack.c.l.b16 %v2953
      %v3076 = vunpack.c.l.b16 %v2954
      %v3077 = vunpack.c.h.b16 %v2954
      %v3078 = vunpack.c.l.b16 %v2955
      %v3079 = vunpack.c.l.b16 %v2956
      %v3080 = vunpack.c.h.b16 %v2956
      %v3081 = vunpack.c.l.b16 %v2957
      %v3082 = vunpack.c.l.b16 %v2958
      %v3083 = vunpack.c.h.b16 %v2958
      %v3084 = vunpack.c.l.b16 %v2959
      %v3085 = vunpack.c.l.b16 %v2960
      %v3086 = vunpack.c.h.b16 %v2960
      %v3087 = vunpack.c.l.b16 %v2961
      %v3088 = vunpack.c.l.b16 %v2962
      %v3089 = vunpack.c.h.b16 %v2962
      %v3090 = vunpack.c.l.b16 %v2963
      %v3091 = vunpack.c.l.b16 %v2964
      %v3092 = vunpack.c.h.b16 %v2964
      %v3093 = vunpack.c.l.b16 %v2965
      %v3094 = vunpack.c.l.b16 %v2966
      %v3095 = vunpack.c.h.b16 %v2966
      %v3096 = vunpack.c.l.b16 %v2967
      %v3097 = vpack.c.b16 %v3052, %v3049
      %v3098 = vpack.c.b16 %v3053, %v3050
      %v3099 = vpack.c.b16 %v3054, %v3051
      %v3100 = vpack.c.b16 %v3058, %v3055
      %v3101 = vpack.c.b16 %v3059, %v3056
      %v3102 = vpack.c.b16 %v3060, %v3057
      %v3103 = vpack.c.b16 %v3064, %v3061
      %v3104 = vpack.c.b16 %v3065, %v3062
      %v3105 = vpack.c.b16 %v3066, %v3063
      %v3106 = vpack.c.b16 %v3070, %v3067
      %v3107 = vpack.c.b16 %v3071, %v3068
      %v3108 = vpack.c.b16 %v3072, %v3069
      %v3109 = vpack.c.b16 %v3076, %v3073
      %v3110 = vpack.c.b16 %v3077, %v3074
      %v3111 = vpack.c.b16 %v3078, %v3075
      %v3112 = vpack.c.b16 %v3082, %v3079
      %v3113 = vpack.c.b16 %v3083, %v3080
      %v3114 = vpack.c.b16 %v3084, %v3081
      %v3115 = vpack.c.b16 %v3088, %v3085
      %v3116 = vpack.c.b16 %v3089, %v3086
      %v3117 = vpack.c.b16 %v3090, %v3087
      %v3118 = vpack.c.b16 %v3094, %v3091
      %v3119 = vpack.c.b16 %v3095, %v3092
      %v3120 = vpack.c.b16 %v3096, %v3093
      %v3193 = vunpack.c.l.b16 %v2969
      %v3194 = vunpack.c.l.b16 %v2970
      %v3195 = vunpack.c.l.b16 %v2971
      %v3196 = vunpack.c.l.b16 %v2972
      %v3197 = vunpack.c.l.b16 %v2973
      %v3198 = vunpack.c.l.b16 %v2974
      %v3199 = vunpack.c.l.b16 %v2975
      %v3200 = vunpack.c.l.b16 %v2976
      %v3201 = vunpack.c.l.b16 %v2977
      %v3202 = vunpack.c.l.b16 %v2978
      %v3203 = vunpack.c.l.b16 %v2979
      %v3204 = vunpack.c.l.b16 %v2980
      %v3205 = vunpack.c.l.b16 %v2981
      %v3206 = vunpack.c.l.b16 %v2982
      %v3207 = vunpack.c.l.b16 %v2983
      %v3208 = vunpack.c.l.b16 %v2984
      %v3209 = vunpack.c.l.b16 %v2985
      %v3210 = vunpack.c.l.b16 %v2986
      %v3211 = vunpack.c.l.b16 %v2987
      %v3212 = vunpack.c.l.b16 %v2988
      %v3213 = vunpack.c.l.b16 %v2989
      %v3214 = vunpack.c.l.b16 %v2990
      %v3215 = vunpack.c.l.b16 %v2991
      %v3216 = vunpack.c.l.b16 %v2992
      %v3217 = vunpack.c.l.b16 %v2993
      %v3218 = vunpack.c.l.b16 %v2994
      %v3219 = vunpack.c.l.b16 %v2995
      %v3220 = vunpack.c.l.b16 %v2996
      %v3221 = vunpack.c.l.b16 %v2997
      %v3222 = vunpack.c.l.b16 %v2998
      %v3223 = vunpack.c.l.b16 %v2999
      %v3224 = vunpack.c.l.b16 %v3000
      %v3225 = vunpack.c.l.b16 %v3001
      %v3226 = vunpack.c.l.b16 %v3002
      %v3227 = vunpack.c.l.b16 %v3003
      %v3228 = vunpack.c.l.b16 %v3004
      %v3229 = vunpack.c.l.b16 %v3005
      %v3230 = vunpack.c.l.b16 %v3006
      %v3231 = vunpack.c.l.b16 %v3007
      %v3232 = vunpack.c.l.b16 %v3008
      %v3233 = vunpack.c.l.b16 %v3009
      %v3234 = vunpack.c.l.b16 %v3010
      %v3235 = vunpack.c.l.b16 %v3011
      %v3236 = vunpack.c.l.b16 %v3012
      %v3237 = vunpack.c.l.b16 %v3013
      %v3238 = vunpack.c.l.b16 %v3014
      %v3239 = vunpack.c.l.b16 %v3015
      %v3240 = vunpack.c.l.b16 %v3016
      %v3241 = vpack.c.b16 %v3194, %v3193
      %v3242 = vpack.c.b16 %v3196, %v3195
      %v3243 = vpack.c.b16 %v3198, %v3197
      %v3244 = vpack.c.b16 %v3200, %v3199
      %v3245 = vpack.c.b16 %v3202, %v3201
      %v3246 = vpack.c.b16 %v3204, %v3203
      %v3247 = vpack.c.b16 %v3206, %v3205
      %v3248 = vpack.c.b16 %v3208, %v3207
      %v3249 = vpack.c.b16 %v3210, %v3209
      %v3250 = vpack.c.b16 %v3212, %v3211
      %v3251 = vpack.c.b16 %v3214, %v3213
      %v3252 = vpack.c.b16 %v3216, %v3215
      %v3253 = vpack.c.b16 %v3218, %v3217
      %v3254 = vpack.c.b16 %v3220, %v3219
      %v3255 = vpack.c.b16 %v3222, %v3221
      %v3256 = vpack.c.b16 %v3224, %v3223
      %v3257 = vpack.c.b16 %v3226, %v3225
      %v3258 = vpack.c.b16 %v3228, %v3227
      %v3259 = vpack.c.b16 %v3230, %v3229
      %v3260 = vpack.c.b16 %v3232, %v3231
      %v3261 = vpack.c.b16 %v3234, %v3233
      %v3262 = vpack.c.b16 %v3236, %v3235
      %v3263 = vpack.c.b16 %v3238, %v3237
      %v3264 = vpack.c.b16 %v3240, %v3239
      %3289 = vmatpush.bf16.msra.mxu0 %v3248
      %3290 = vmatpush.bf16.msra.mxu0 %v3247
      %3291 = vmatpush.bf16.msra.mxu0 %v3246
      %3292 = vmatpush.bf16.msra.mxu0 %v3245
      %3293 = vmatpush.bf16.msra.mxu0 %v3244
      %3294 = vmatpush.bf16.msra.mxu0 %v3243
      %3295 = vmatpush.bf16.msra.mxu0 %v3242
      %3296 = vmatpush.bf16.msra.mxu0 %v3241
      %3297 = vmatmul.bf16.gmra.mxu0 %v3097
      %v3298 = vpop.f32.mrf.mxu0
      %v3299 = vadd.f32 0.0, %v3298
      %v3300 = vpop.f32.mrf.mxu0
      %v3301 = vadd.f32 0.0, %v3300
      %3302 = vmatmul.bf16.gmra.mxu0 %v3100
      %v3303 = vpop.f32.mrf.mxu0
      %v3304 = vadd.f32 0.0, %v3303
      %v3305 = vpop.f32.mrf.mxu0
      %v3306 = vadd.f32 0.0, %v3305
      %3307 = vmatmul.bf16.gmra.mxu0 %v3103
      %v3308 = vpop.f32.mrf.mxu0
      %v3309 = vadd.f32 0.0, %v3308
      %v3310 = vpop.f32.mrf.mxu0
      %v3311 = vadd.f32 0.0, %v3310
      %3312 = vmatmul.bf16.gmra.mxu0 %v3106
      %v3313 = vpop.f32.mrf.mxu0
      %v3314 = vadd.f32 0.0, %v3313
      %v3315 = vpop.f32.mrf.mxu0
      %v3316 = vadd.f32 0.0, %v3315
      %3317 = vmatmul.bf16.gmra.mxu0 %v3109
      %v3318 = vpop.f32.mrf.mxu0
      %v3319 = vadd.f32 0.0, %v3318
      %v3320 = vpop.f32.mrf.mxu0
      %v3321 = vadd.f32 0.0, %v3320
      %3322 = vmatmul.bf16.gmra.mxu0 %v3112
      %v3323 = vpop.f32.mrf.mxu0
      %v3324 = vadd.f32 0.0, %v3323
      %v3325 = vpop.f32.mrf.mxu0
      %v3326 = vadd.f32 0.0, %v3325
      %3327 = vmatmul.bf16.gmra.mxu0 %v3115
      %v3328 = vpop.f32.mrf.mxu0
      %v3329 = vadd.f32 0.0, %v3328
      %v3330 = vpop.f32.mrf.mxu0
      %v3331 = vadd.f32 0.0, %v3330
      %3332 = vmatmul.bf16.gmra.mxu0 %v3118
      %v3333 = vpop.f32.mrf.mxu0
      %v3334 = vadd.f32 0.0, %v3333
      %v3335 = vpop.f32.mrf.mxu0
      %v3336 = vadd.f32 0.0, %v3335
      %3337 = vdwg.mxu0
      %3338 = vmatpush.bf16.msra.mxu0 %v3256
      %3339 = vmatpush.bf16.msra.mxu0 %v3255
      %3340 = vmatpush.bf16.msra.mxu0 %v3254
      %3341 = vmatpush.bf16.msra.mxu0 %v3253
      %3342 = vmatpush.bf16.msra.mxu0 %v3252
      %3343 = vmatpush.bf16.msra.mxu0 %v3251
      %3344 = vmatpush.bf16.msra.mxu0 %v3250
      %3345 = vmatpush.bf16.msra.mxu0 %v3249
      %3346 = vmatmul.bf16.gmra.mxu0 %v3098
      %v3347 = vpop.f32.mrf.mxu0
      %v3348 = vadd.f32 %v3299, %v3347
      %v3349 = vpop.f32.mrf.mxu0
      %v3350 = vadd.f32 %v3301, %v3349
      %3351 = vmatmul.bf16.gmra.mxu0 %v3101
      %v3352 = vpop.f32.mrf.mxu0
      %v3353 = vadd.f32 %v3304, %v3352
      %v3354 = vpop.f32.mrf.mxu0
      %v3355 = vadd.f32 %v3306, %v3354
      %3356 = vmatmul.bf16.gmra.mxu0 %v3104
      %v3357 = vpop.f32.mrf.mxu0
      %v3358 = vadd.f32 %v3309, %v3357
      %v3359 = vpop.f32.mrf.mxu0
      %v3360 = vadd.f32 %v3311, %v3359
      %3361 = vmatmul.bf16.gmra.mxu0 %v3107
      %v3362 = vpop.f32.mrf.mxu0
      %v3363 = vadd.f32 %v3314, %v3362
      %v3364 = vpop.f32.mrf.mxu0
      %v3365 = vadd.f32 %v3316, %v3364
      %3366 = vmatmul.bf16.gmra.mxu0 %v3110
      %v3367 = vpop.f32.mrf.mxu0
      %v3368 = vadd.f32 %v3319, %v3367
      %v3369 = vpop.f32.mrf.mxu0
      %v3370 = vadd.f32 %v3321, %v3369
      %3371 = vmatmul.bf16.gmra.mxu0 %v3113
      %v3372 = vpop.f32.mrf.mxu0
      %v3373 = vadd.f32 %v3324, %v3372
      %v3374 = vpop.f32.mrf.mxu0
      %v3375 = vadd.f32 %v3326, %v3374
      %3376 = vmatmul.bf16.gmra.mxu0 %v3116
      %v3377 = vpop.f32.mrf.mxu0
      %v3378 = vadd.f32 %v3329, %v3377
      %v3379 = vpop.f32.mrf.mxu0
      %v3380 = vadd.f32 %v3331, %v3379
      %3381 = vmatmul.bf16.gmra.mxu0 %v3119
      %v3382 = vpop.f32.mrf.mxu0
      %v3383 = vadd.f32 %v3334, %v3382
      %v3384 = vpop.f32.mrf.mxu0
      %v3385 = vadd.f32 %v3336, %v3384
      %3386 = vdwg.mxu0
      %3387 = vmatpush.bf16.msra.mxu0 %v3264
      %3388 = vmatpush.bf16.msra.mxu0 %v3263
      %3389 = vmatpush.bf16.msra.mxu0 %v3262
      %3390 = vmatpush.bf16.msra.mxu0 %v3261
      %3391 = vmatpush.bf16.msra.mxu0 %v3260
      %3392 = vmatpush.bf16.msra.mxu0 %v3259
      %3393 = vmatpush.bf16.msra.mxu0 %v3258
      %3394 = vmatpush.bf16.msra.mxu0 %v3257
      %3395 = vmatmul.bf16.gmra.mxu0 %v3099
      %v3396 = vpop.f32.mrf.mxu0
      %v3397 = vadd.f32 %v3348, %v3396
      %v3398 = vpop.f32.mrf.mxu0
      %v3399 = vadd.f32 %v3350, %v3398
      %3400 = vmatmul.bf16.gmra.mxu0 %v3102
      %v3401 = vpop.f32.mrf.mxu0
      %v3402 = vadd.f32 %v3353, %v3401
      %v3403 = vpop.f32.mrf.mxu0
      %v3404 = vadd.f32 %v3355, %v3403
      %3405 = vmatmul.bf16.gmra.mxu0 %v3105
      %v3406 = vpop.f32.mrf.mxu0
      %v3407 = vadd.f32 %v3358, %v3406
      %v3408 = vpop.f32.mrf.mxu0
      %v3409 = vadd.f32 %v3360, %v3408
      %3410 = vmatmul.bf16.gmra.mxu0 %v3108
      %v3411 = vpop.f32.mrf.mxu0
      %v3412 = vadd.f32 %v3363, %v3411
      %v3413 = vpop.f32.mrf.mxu0
      %v3414 = vadd.f32 %v3365, %v3413
      %3415 = vmatmul.bf16.gmra.mxu0 %v3111
      %v3416 = vpop.f32.mrf.mxu0
      %v3417 = vadd.f32 %v3368, %v3416
      %v3418 = vpop.f32.mrf.mxu0
      %v3419 = vadd.f32 %v3370, %v3418
      %3420 = vmatmul.bf16.gmra.mxu0 %v3114
      %v3421 = vpop.f32.mrf.mxu0
      %v3422 = vadd.f32 %v3373, %v3421
      %v3423 = vpop.f32.mrf.mxu0
      %v3424 = vadd.f32 %v3375, %v3423
      %3425 = vmatmul.bf16.gmra.mxu0 %v3117
      %v3426 = vpop.f32.mrf.mxu0
      %v3427 = vadd.f32 %v3378, %v3426
      %v3428 = vpop.f32.mrf.mxu0
      %v3429 = vadd.f32 %v3380, %v3428
      %3430 = vmatmul.bf16.gmra.mxu0 %v3120
      %v3431 = vpop.f32.mrf.mxu0
      %v3432 = vadd.f32 %v3383, %v3431
      %v3433 = vpop.f32.mrf.mxu0
      %v3434 = vadd.f32 %v3385, %v3433
      %3435 = vdwg.mxu0
      %v3436 = vadd.f32 %v2896, %v3397
      %v3437 = vadd.f32 %v2898, %v3399
      %v3438 = vadd.f32 %v2901, %v3402
      %v3439 = vadd.f32 %v2903, %v3404
      %v3440 = vadd.f32 %v2906, %v3407
      %v3441 = vadd.f32 %v2908, %v3409
      %v3442 = vadd.f32 %v2911, %v3412
      %v3443 = vadd.f32 %v2913, %v3414
      %v3444 = vadd.f32 %v2916, %v3417
      %v3445 = vadd.f32 %v2918, %v3419
      %v3446 = vadd.f32 %v2921, %v3422
      %v3447 = vadd.f32 %v2923, %v3424
      %v3448 = vadd.f32 %v2926, %v3427
      %v3449 = vadd.f32 %v2928, %v3429
      %v3450 = vadd.f32 %v2931, %v3432
      %v3451 = vadd.f32 %v2933, %v3434
      %v3452 = vld [vmem:[%s7] sm:$0x1]
      %v3454 = vperm.slane %v3452, 0
      %v3456 = vadd.f32 %v3436, %v3454
      %v3457 = vadd.f32 %v3437, %v3454
      %v3458 = vadd.f32 %v3438, %v3454
      %v3459 = vadd.f32 %v3439, %v3454
      %v3460 = vadd.f32 %v3440, %v3454
      %v3461 = vadd.f32 %v3441, %v3454
      %v3462 = vadd.f32 %v3442, %v3454
      %v3463 = vadd.f32 %v3443, %v3454
      %v3464 = vadd.f32 %v3444, %v3454
      %v3465 = vadd.f32 %v3445, %v3454
      %v3466 = vadd.f32 %v3446, %v3454
      %v3467 = vadd.f32 %v3447, %v3454
      %v3468 = vadd.f32 %v3448, %v3454
      %v3469 = vadd.f32 %v3449, %v3454
      %v3470 = vadd.f32 %v3450, %v3454
      %v3471 = vadd.f32 %v3451, %v3454
      %v3472 = vld [vmem:[%s554] sm:$0xff]
      %v3473 = vld [vmem:[%s554 + $0x8] sm:$0xff]
      %v3474 = vld [vmem:[%s554 + $0x10] sm:$0xff]
      %v3475 = vld [vmem:[%s554 + $0x18] sm:$0xff]
      %v3476 = vld [vmem:[%s554 + $0x20] sm:$0xff]
      %v3477 = vld [vmem:[%s554 + $0x28] sm:$0xff]
      %v3478 = vld [vmem:[%s554 + $0x30] sm:$0xff]
      %v3479 = vld [vmem:[%s554 + $0x38] sm:$0xff]
      %v3480 = vld [vmem:[%s554 + $0x40] sm:$0xff]
      %v3481 = vld [vmem:[%s554 + $0x48] sm:$0xff]
      %v3482 = vld [vmem:[%s554 + $0x50] sm:$0xff]
      %v3483 = vld [vmem:[%s554 + $0x58] sm:$0xff]
      %v3484 = vld [vmem:[%s554 + $0x60] sm:$0xff]
      %v3485 = vld [vmem:[%s554 + $0x68] sm:$0xff]
      %v3486 = vld [vmem:[%s554 + $0x70] sm:$0xff]
      %v3487 = vld [vmem:[%s554 + $0x78] sm:$0xff]
      %v3488 = vpack.c.bf16 %v3473, %v3472
      %v3489 = vpack.c.bf16 %v3475, %v3474
      %v3490 = vpack.c.bf16 %v3477, %v3476
      %v3491 = vpack.c.bf16 %v3479, %v3478
      %v3492 = vpack.c.bf16 %v3481, %v3480
      %v3493 = vpack.c.bf16 %v3483, %v3482
      %v3494 = vpack.c.bf16 %v3485, %v3484
      %v3495 = vpack.c.bf16 %v3487, %v3486
      %v3496 = vld [vmem:[%s8] sm:$0xf]
      %v3497 = vld [vmem:[%s8 + $0x4] sm:$0xf]
      %v3498 = vld [vmem:[%s8 + $0x8] sm:$0xf]
      %v3499 = vld [vmem:[%s8 + $0xc] sm:$0xf]
      %v3500 = vld [vmem:[%s8 + $0x10] sm:$0xf]
      %v3501 = vld [vmem:[%s8 + $0x14] sm:$0xf]
      %v3502 = vld [vmem:[%s8 + $0x18] sm:$0xf]
      %v3503 = vld [vmem:[%s8 + $0x1c] sm:$0xf]
      %v3504 = vld [vmem:[%s8 + $0x20] sm:$0xf]
      %v3505 = vld [vmem:[%s8 + $0x24] sm:$0xf]
      %v3506 = vld [vmem:[%s8 + $0x28] sm:$0xf]
      %v3507 = vld [vmem:[%s8 + $0x2c] sm:$0xf]
      %v3508 = vld [vmem:[%s8 + $0x30] sm:$0xf]
      %v3509 = vld [vmem:[%s8 + $0x34] sm:$0xf]
      %v3510 = vld [vmem:[%s8 + $0x38] sm:$0xf]
      %v3511 = vld [vmem:[%s8 + $0x3c] sm:$0xf]
      %v3512 = vld [vmem:[%s9] sm:$0x1]
      %v3514 = vperm.slane %v3512, 0
      %v3532 = vunpack.c.l.b16 %v3496
      %v3533 = vunpack.c.l.b16 %v3497
      %v3534 = vunpack.c.l.b16 %v3498
      %v3535 = vunpack.c.l.b16 %v3499
      %v3536 = vunpack.c.l.b16 %v3500
      %v3537 = vunpack.c.l.b16 %v3501
      %v3538 = vunpack.c.l.b16 %v3502
      %v3539 = vunpack.c.l.b16 %v3503
      %v3540 = vunpack.c.l.b16 %v3504
      %v3541 = vunpack.c.l.b16 %v3505
      %v3542 = vunpack.c.l.b16 %v3506
      %v3543 = vunpack.c.l.b16 %v3507
      %v3544 = vunpack.c.l.b16 %v3508
      %v3545 = vunpack.c.l.b16 %v3509
      %v3546 = vunpack.c.l.b16 %v3510
      %v3547 = vunpack.c.l.b16 %v3511
      %v3548 = vpack.c.b16 %v3533, %v3532
      %v3549 = vpack.c.b16 %v3535, %v3534
      %v3550 = vpack.c.b16 %v3537, %v3536
      %v3551 = vpack.c.b16 %v3539, %v3538
      %v3552 = vpack.c.b16 %v3541, %v3540
      %v3553 = vpack.c.b16 %v3543, %v3542
      %v3554 = vpack.c.b16 %v3545, %v3544
      %v3555 = vpack.c.b16 %v3547, %v3546
      %3564 = vmatpush.bf16.msra.mxu0 %v3555
      %3565 = vmatpush.bf16.msra.mxu0 %v3554
      %3566 = vmatpush.bf16.msra.mxu0 %v3553
      %3567 = vmatpush.bf16.msra.mxu0 %v3552
      %3568 = vmatpush.bf16.msra.mxu0 %v3551
      %3569 = vmatpush.bf16.msra.mxu0 %v3550
      %3570 = vmatpush.bf16.msra.mxu0 %v3549
      %3571 = vmatpush.bf16.msra.mxu0 %v3548
      %3572 = vmatmul.bf16.gmra.mxu0 %v3488
      %v3573 = vpop.f32.mrf.mxu0
      %v3574 = vadd.f32 %v3514, %v3573
      %v3575 = vpop.f32.mrf.mxu0
      %v3576 = vadd.f32 %v3514, %v3575
      %3577 = vmatmul.bf16.gmra.mxu0 %v3489
      %v3578 = vpop.f32.mrf.mxu0
      %v3579 = vadd.f32 %v3514, %v3578
      %v3580 = vpop.f32.mrf.mxu0
      %v3581 = vadd.f32 %v3514, %v3580
      %3582 = vmatmul.bf16.gmra.mxu0 %v3490
      %v3583 = vpop.f32.mrf.mxu0
      %v3584 = vadd.f32 %v3514, %v3583
      %v3585 = vpop.f32.mrf.mxu0
      %v3586 = vadd.f32 %v3514, %v3585
      %3587 = vmatmul.bf16.gmra.mxu0 %v3491
      %v3588 = vpop.f32.mrf.mxu0
      %v3589 = vadd.f32 %v3514, %v3588
      %v3590 = vpop.f32.mrf.mxu0
      %v3591 = vadd.f32 %v3514, %v3590
      %3592 = vmatmul.bf16.gmra.mxu0 %v3492
      %v3593 = vpop.f32.mrf.mxu0
      %v3594 = vadd.f32 %v3514, %v3593
      %v3595 = vpop.f32.mrf.mxu0
      %v3596 = vadd.f32 %v3514, %v3595
      %3597 = vmatmul.bf16.gmra.mxu0 %v3493
      %v3598 = vpop.f32.mrf.mxu0
      %v3599 = vadd.f32 %v3514, %v3598
      %v3600 = vpop.f32.mrf.mxu0
      %v3601 = vadd.f32 %v3514, %v3600
      %3602 = vmatmul.bf16.gmra.mxu0 %v3494
      %v3603 = vpop.f32.mrf.mxu0
      %v3604 = vadd.f32 %v3514, %v3603
      %v3605 = vpop.f32.mrf.mxu0
      %v3606 = vadd.f32 %v3514, %v3605
      %3607 = vmatmul.bf16.gmra.mxu0 %v3495
      %v3608 = vpop.f32.mrf.mxu0
      %v3609 = vadd.f32 %v3514, %v3608
      %v3610 = vpop.f32.mrf.mxu0
      %v3611 = vadd.f32 %v3514, %v3610
      %3612 = vdwg.mxu0
      %v3613 = vadd.f32 %v3456, %v3574
      %v3614 = vadd.f32 %v3457, %v3576
      %v3615 = vadd.f32 %v3458, %v3579
      %v3616 = vadd.f32 %v3459, %v3581
      %v3617 = vadd.f32 %v3460, %v3584
      %v3618 = vadd.f32 %v3461, %v3586
      %v3619 = vadd.f32 %v3462, %v3589
      %v3620 = vadd.f32 %v3463, %v3591
      %v3621 = vadd.f32 %v3464, %v3594
      %v3622 = vadd.f32 %v3465, %v3596
      %v3623 = vadd.f32 %v3466, %v3599
      %v3624 = vadd.f32 %v3467, %v3601
      %v3625 = vadd.f32 %v3468, %v3604
      %v3626 = vadd.f32 %v3469, %v3606
      %v3627 = vadd.f32 %v3470, %v3609
      %v3628 = vadd.f32 %v3471, %v3611
      %3629 = vst [vmem:[%s565] sm:$0xff] %v3613
      %3630 = vst [vmem:[%s565 + $0x8] sm:$0xff] %v3614
      %3631 = vst [vmem:[%s565 + $0x10] sm:$0xff] %v3615
      %3632 = vst [vmem:[%s565 + $0x18] sm:$0xff] %v3616
      %3633 = vst [vmem:[%s565 + $0x20] sm:$0xff] %v3617
      %3634 = vst [vmem:[%s565 + $0x28] sm:$0xff] %v3618
      %3635 = vst [vmem:[%s565 + $0x30] sm:$0xff] %v3619
      %3636 = vst [vmem:[%s565 + $0x38] sm:$0xff] %v3620
      %3637 = vst [vmem:[%s565 + $0x40] sm:$0xff] %v3621
      %3638 = vst [vmem:[%s565 + $0x48] sm:$0xff] %v3622
      %3639 = vst [vmem:[%s565 + $0x50] sm:$0xff] %v3623
      %3640 = vst [vmem:[%s565 + $0x58] sm:$0xff] %v3624
      %3641 = vst [vmem:[%s565 + $0x60] sm:$0xff] %v3625
      %3642 = vst [vmem:[%s565 + $0x68] sm:$0xff] %v3626
      %3643 = vst [vmem:[%s565 + $0x70] sm:$0xff] %v3627
      %3644 = vst [vmem:[%s565 + $0x78] sm:$0xff] %v3628
      %s3645 = smul.u32 8, %s26
      %p3646 = scmp.lt.s32.totalorder %s25, 1
      %s3647 = scalar_select %p3646, %s25, 1
      %p3648 = scmp.lt.s32.totalorder %s3645, 15
      %s3649 = scalar_select %p3648, %s3645, 15
      %s3650 = smul.addr %s3649, 2
      %s3651 = smul.addr %s3647, 32
      %s3652 = sadd.s32 %s3650, %s3651
      %s3653 = smul.addr %s3652, 8
      %s3654 = scalar_lea.vmem %s10, %s3653
      // Predicated region
      $region61: #{resnet_block_forward.5} parent=59 // pred_check
        %p3655 = pneg %p307
      $region62: #{resnet_block_forward.5} parent=59 // pred_check_branch
        %3657 = sbr.rel (%p3655) target = $region64
      $region63: #{resnet_block_forward.5} parent=59 // pred_region
        %s3658 = smul.u32 8, %s26
      $region64: #{resnet_block_forward.5} parent=59 // pred_fallthru
        _
    $region60: #{resnet_block_forward.5} parent=5 // pred_fallthru
      _
    %p3659 = scmp.le.s32.totalorder 2, %s16
    // Predicated region
    $region65: #{resnet_block_forward.5} parent=5 // pred_check
      %p3660 = pneg %p3659
    $region66: #{resnet_block_forward.5} parent=5 // pred_check_branch
      %3662 = sbr.rel (%p3660) target = $region68
    $region67: #{resnet_block_forward.5} parent=5 // pred_region
      %s3663 = ssub.s32 %s16, 2
      // Predicated region
      $region69: #{resnet_block_forward.5} parent=67 // pred_check
        %p3664 = pneg %p313
      $region70: #{resnet_block_forward.5} parent=67 // pred_check_branch
        %3666 = sbr.rel (%p3664) target = $region72
      $region71: #{resnet_block_forward.5} parent=67 // pred_region
        %s3667 = smul.u32 8, %s28
        %p3668 = scmp.lt.s32.totalorder %s27, 1
        %s3669 = scalar_select %p3668, %s27, 1
        %p3670 = scmp.lt.s32.totalorder %s3667, 15
        %s3671 = scalar_select %p3670, %s3667, 15
        %s3672 = smul.addr %s3671, 2
        %s3673 = smul.addr %s3669, 32
        %s3674 = sadd.s32 %s3672, %s3673
        %s3675 = smul.addr %s3674, 8
        %s3676 = scalar_lea.vmem %s10, %s3675
      $region72: #{resnet_block_forward.5} parent=67 // pred_fallthru
        _
    $region68: #{resnet_block_forward.5} parent=5 // pred_fallthru
      _
  $region6: #{resnet_block_forward.5} parent=0 // loop_footer
    %s20 = sadd.s32 1, %s16
  $region7: #{resnet_block_forward.5} parent=0 // loop_footer_branch
    %15 = sbr.rel target = $region3
  $region8: #{resnet_block_forward.5} parent=0 // loop_exit
    _

</llo_original>
